<compile_context>
chip_gen: v7x
topology: tpu7x:2x2x1
jax: 0.10.0
libtpu: 0.0.40
codegen_flags: <defaults>
</compile_context>

<pallas_src>
import functools
import math

import numpy as np
import jax
import jax.numpy as jnp
from jax.experimental import pallas as pl
from jax.experimental.pallas import tpu as pltpu


# ----------------------------- Pallas kernels -----------------------------

def _const_spec(shape):
    """BlockSpec covering the whole array, constant across the batch grid."""
    n = len(shape)
    return pl.BlockSpec(shape, lambda b, _n=n: (0,) * _n)


def _ln(v, g_row, b_row, eps=1e-5):
    """LayerNorm of [S, D] value with [1, D] gamma/beta rows (f32 statistics)."""
    mu = jnp.mean(v, axis=-1, keepdims=True)
    vc = v - mu
    var = jnp.mean(vc * vc, axis=-1, keepdims=True)
    return vc * jax.lax.rsqrt(var + eps) * g_row + b_row


def _stem_kernel(x_ref, w_ref, b_ref, emb_ref, pe_ref, lnb_ref, lna_ref, o_ref,
                 *, scale):
    """fc_in -> [cls ; x] -> *sqrt(D) -> ln_before -> +PE -> ln_after, one batch elem."""
    x = x_ref[0].astype(jnp.float32)                                   # [S, Din]
    y = jnp.dot(x, w_ref[...].astype(jnp.float32),
                preferred_element_type=jnp.float32) + b_ref[...]       # [S, D]
    full = jnp.concatenate([emb_ref[...].astype(jnp.float32), y], axis=0)  # [S+1, D]
    full = full * scale                                                # 1/emb_scale = sqrt(D)
    lnb = lnb_ref[...].astype(jnp.float32)
    lna = lna_ref[...].astype(jnp.float32)
    full = _ln(full, lnb[0:1, :], lnb[1:2, :])
    full = full + pe_ref[...].astype(jnp.float32)
    # F.dropout(training=False) -> identity
    full = _ln(full, lna[0:1, :], lna[1:2, :])
    o_ref[0] = full.astype(o_ref.dtype)


def stem_forward(x, fc, emb, ln_before, ln_after, pe_table):
    """x: [B, S, Din] -> [B, S+1, D]  (fused stem, grid over batch)."""
    B, S, Din = x.shape
    D = fc["w"].shape[1]
    lnb = jnp.stack([ln_before["g"], ln_before["b"]], axis=0)          # [2, D]
    lna = jnp.stack([ln_after["g"], ln_after["b"]], axis=0)            # [2, D]
    return pl.pallas_call(
        functools.partial(_stem_kernel, scale=float(math.sqrt(D))),
        out_shape=jax.ShapeDtypeStruct((B, S + 1, D), jnp.float32),
        grid=(B,),
        in_specs=[
            pl.BlockSpec((1, S, Din), lambda b: (b, 0, 0)),
            _const_spec((Din, D)),
            _const_spec((1, D)),          # bias
            _const_spec((1, D)),          # cls embedding
            _const_spec((S + 1, D)),      # PE table (constant)
            _const_spec((2, D)),          # ln_before (g, b)
            _const_spec((2, D)),          # ln_after  (g, b)
        ],
        out_specs=pl.BlockSpec((1, S + 1, D), lambda b: (b, 0, 0)),
        compiler_params=pltpu.CompilerParams(dimension_semantics=("parallel",)),
    )(x, fc["w"], fc["b"].reshape(1, D), emb.reshape(1, D), pe_table, lnb, lna)


def _fused_block_kernel(x_ref, wqkv_ref, bqkv_ref, wout_ref, bout_ref,
                        wfc_ref, bfc_ref, wproj_ref, bproj_ref, ln_ref,
                        o_ref, *, nh, scale):
    """Whole ResidualAttentionBlock for one batch element. ln_ref rows:
    [ln1_g, ln1_b, ln12_g, ln12_b, ln2_g, ln2_b, ln22_g, ln22_b]."""
    x = x_ref[0].astype(jnp.float32)                                   # [S, D]
    S, D = x.shape
    dh = D // nh
    ln = ln_ref[...].astype(jnp.float32)                               # [8, D]

    # ---------------- attention branch ----------------
    h = _ln(x, ln[0:1, :], ln[1:2, :])                                 # ln_1
    qkv = jnp.dot(h, wqkv_ref[...].astype(jnp.float32),
                  preferred_element_type=jnp.float32) + bqkv_ref[...]  # [S, 3D]
    q = qkv[:, 0:D]
    k = qkv[:, D:2 * D]
    v = qkv[:, 2 * D:3 * D]

    # Per-head attention; output projection accumulated per head so the head
    # concat never materialises (concat fused into the [dh, D] matmuls).
    attn = jnp.zeros((S, D), jnp.float32)
    for hi in range(nh):
        lo, hi_ = hi * dh, (hi + 1) * dh
        qh = q[:, lo:hi_]
        kh = k[:, lo:hi_]
        vh = v[:, lo:hi_]
        s = jnp.dot(qh, kh.T, preferred_element_type=jnp.float32) * scale
        s = s - jnp.max(s, axis=-1, keepdims=True)
        e = jnp.exp(s)
        p = e * pl.reciprocal(jnp.sum(e, axis=-1, keepdims=True), approx=True)
        oh = jnp.dot(p, vh, preferred_element_type=jnp.float32)        # [S, dh]
        attn = attn + jnp.dot(oh, wout_ref[lo:hi_, :].astype(jnp.float32),
                              preferred_element_type=jnp.float32)
        # attn dropout (p=0.2) is identity in eval mode
    attn = attn + bout_ref[...]
    attn = _ln(attn, ln[2:3, :], ln[3:4, :])                           # ln_12
    x = x + attn

    # ---------------- MLP branch ----------------
    h = _ln(x, ln[4:5, :], ln[5:6, :])                                 # ln_2
    h = jnp.dot(h, wfc_ref[...].astype(jnp.float32),
                preferred_element_type=jnp.float32) + bfc_ref[...]     # [S, 4D]
    h = jnp.maximum(h, 0.0)
    # mlp dropout (p=0.1) is identity in eval mode
    h = jnp.dot(h, wproj_ref[...].astype(jnp.float32),
                preferred_element_type=jnp.float32) + bproj_ref[...]   # [S, D]
    h = _ln(h, ln[6:7, :], ln[7:8, :])                                 # ln_22
    o_ref[0] = (x + h).astype(o_ref.dtype)


def residual_block(bp, x, nh):
    """Fused ResidualAttentionBlock forward: x [B, S, D] -> [B, S, D]."""
    B, S, D = x.shape
    dh = D // nh
    ln_stack = jnp.stack([bp["ln1"]["g"], bp["ln1"]["b"],
                          bp["ln12"]["g"], bp["ln12"]["b"],
                          bp["ln2"]["g"], bp["ln2"]["b"],
                          bp["ln22"]["g"], bp["ln22"]["b"]], axis=0)   # [8, D]
    return pl.pallas_call(
        functools.partial(_fused_block_kernel, nh=nh, scale=1.0 / math.sqrt(dh)),
        out_shape=jax.ShapeDtypeStruct((B, S, D), jnp.float32),
        grid=(B,),
        in_specs=[
            pl.BlockSpec((1, S, D), lambda b: (b, 0, 0)),
            _const_spec((D, 3 * D)), _const_spec((1, 3 * D)),
            _const_spec((D, D)),     _const_spec((1, D)),
            _const_spec((D, 4 * D)), _const_spec((1, 4 * D)),
            _const_spec((4 * D, D)), _const_spec((1, D)),
            _const_spec((8, D)),
        ],
        out_specs=pl.BlockSpec((1, S, D), lambda b: (b, 0, 0)),
        compiler_params=pltpu.CompilerParams(dimension_semantics=("parallel",)),
    )(x,
      bp["in_proj"]["w"], bp["in_proj"]["b"].reshape(1, 3 * D),
      bp["out_proj"]["w"], bp["out_proj"]["b"].reshape(1, D),
      bp["c_fc"]["w"], bp["c_fc"]["b"].reshape(1, 4 * D),
      bp["c_proj"]["w"], bp["c_proj"]["b"].reshape(1, D),
      ln_stack)


# ----------------------------- model glue (plain JAX) -----------------------------

def sinusoidal_pe(seq_len, dim):
    # TODO(synk): fairseq-style pad-aware SinusoidalPositionalEmbedding replaced by a
    # standard deterministic sin/cos table (positions depend only on sequence length).
    pos = np.arange(seq_len, dtype=np.float32)[:, None]
    i = np.arange(dim // 2, dtype=np.float32)[None, :]
    angle = pos / np.power(10000.0, 2.0 * i / dim)
    table = np.concatenate([np.sin(angle), np.cos(angle)], axis=-1)    # [S, dim]
    return jnp.asarray(table, dtype=jnp.float32)


def encoder_forward(p, x_a, x_t, x_v, num_layer, heads):
    x_t = x_t[:, 0:80, :]
    x_a = x_a.astype(jnp.float32)
    x_t = x_t.astype(jnp.float32)
    x_v = x_v.astype(jnp.float32)
    D = p["fc_in_a"]["w"].shape[1]

    pe_a = sinusoidal_pe(x_a.shape[1] + 1, D)
    pe_t = sinusoidal_pe(x_t.shape[1] + 1, D)
    pe_v = sinusoidal_pe(x_v.shape[1] + 1, D)

    # NOTE: the reference code applies ln_before_pe_a to all three modalities
    # (intentional reproduction of the upstream bug — do not "fix").
    x_a = stem_forward(x_a, p["fc_in_a"], p["emb_a"], p["ln_before_pe_a"], p["ln_after_pe_a"], pe_a)
    x_t = stem_forward(x_t, p["fc_in_t"], p["emb_t"], p["ln_before_pe_a"], p["ln_after_pe_t"], pe_t)
    x_v = stem_forward(x_v, p["fc_in_v"], p["emb_v"], p["ln_before_pe_a"], p["ln_after_pe_v"], pe_v)

    for i in range(num_layer):
        x_a = residual_block(p["blocks_a"][i], x_a, heads[0])
        x_t = residual_block(p["blocks_t"][i], x_t, heads[1])
        x_v = residual_block(p["blocks_v"][2 * i], x_v, heads[2])
        x_v = residual_block(p["blocks_v"][2 * i + 1], x_v, heads[2])

    # pool_method == 'mix' — lane-sparse, negligible FLOPs; keep in plain JAX.
    x_a = jnp.einsum("l,bld->bd", p["mix_pool_a"], x_a)
    x_t = jnp.einsum("l,bld->bd", p["mix_pool_t"], x_t)
    x_v = jnp.einsum("l,bld->bd", p["mix_pool_v"], x_v)
    return x_a, x_t, x_v


def _mlp3(x, layers):
    h = jax.nn.relu(x @ layers[0]["w"] + layers[0]["b"])
    h = jax.nn.relu(h @ layers[1]["w"] + layers[1]["b"])
    return h @ layers[2]["w"] + layers[2]["b"]


def class_attention_forward(p, x_a, x_t, x_v):
    # Tiny / lane-sparse tail (last dims 3, 7) — plain JAX per perf review.
    logits_a = _mlp3(x_a, p["mlp_a"])
    logits_t = _mlp3(x_t, p["mlp_t"])
    logits_v = _mlp3(x_v, p["mlp_v"])
    x = jnp.stack([x_a, x_t, x_v], axis=1)                              # [B, 3, H]
    part = jnp.tanh(x @ p["net"]["w"] + p["net"]["b"])                  # [B, 3, M]
    scores = jnp.transpose(x_part := part @ p["W1"]["w"] + p["W1"]["b"], (0, 2, 1))  # [B, C, 3]
    A = jax.nn.softmax(scores, axis=2)
    x_m = jnp.einsum("bcn,bnh->bch", A, x)                              # [B, C, H]
    x_m = jnp.einsum("c,bch->bh", p["mix_pool_m"], x_m)                 # [B, H]
    logits_m = jax.nn.relu(x_m @ p["mlp_m"][0]["w"] + p["mlp_m"][0]["b"])
    logits_m = logits_m @ p["mlp_m"][1]["w"] + p["mlp_m"][1]["b"]
    logits_m = logits_m @ p["W2"]["w"] + p["W2"]["b"]
    return A, logits_a, logits_t, logits_v, logits_m


def cross_entropy(logits, labels):
    logp = jax.nn.log_softmax(logits, axis=-1)
    nll = -jnp.take_along_axis(logp, labels[:, None], axis=1)[:, 0]
    return jnp.mean(nll)


def emo_model_forward(params, x_t, x_a, x_v, label_t, label_a, label_v, label_m,
                      heads, num_layer):
    x_a_q, x_t_q, x_v_q = encoder_forward(params["encoder"], x_a, x_t, x_v, num_layer, heads)
    A, logits_a, logits_t, logits_v, logits_m = class_attention_forward(
        params["class_attention"], x_a_q, x_t_q, x_v_q)
    B = A.shape[0]

    # loss_a/t/v only feed the omitted contrastive branch in the reference; skipped here.
    loss_m = cross_entropy(logits_m, label_m)

    A_tgt = A[jnp.arange(B), label_m]                                   # [B, 3]
    label_s = jnp.stack([label_a, label_t, label_v], axis=1)            # [B, 3]
    label_atten = (label_s == label_m[:, None]).astype(jnp.float32)
    flag_need_combine = jnp.sum(label_atten, axis=1) == 0
    label_atten = jnp.where(flag_need_combine[:, None], 1.0, label_atten)
    A_tgt_right = jnp.sum(A_tgt * label_atten, axis=1)
    # Reference applies F.cross_entropy directly to these probabilities (not logits);
    # semantics reproduced faithfully.
    A_tgt_right = jnp.stack([A_tgt_right, 1.0 - A_tgt_right], axis=1)
    loss_atten_tgt = cross_entropy(A_tgt_right, jnp.zeros((B,), jnp.int32))

    # TODO(synk): contrastive term (0.33 * sum(all_loss_cl)) omitted — it needs an in-forward
    # autograd .backward() on encoder outputs plus torch.distributed all_gather; no clean
    # Pallas equivalent for that branch.
    loss = 0.2 * loss_atten_tgt + loss_m
    return loss


# ----------------------------- deterministic parameter init -----------------------------

class KeyGen:
    def __init__(self, seed=0):
        self._key = jax.random.PRNGKey(seed)

    def __call__(self):
        self._key, sub = jax.random.split(self._key)
        return sub


def init_ln(d):
    return {"g": jnp.ones((d,), jnp.float32), "b": jnp.zeros((d,), jnp.float32)}


def init_linear(kg, din, dout, std=0.02):
    return {"w": (std * jax.random.normal(kg(), (din, dout))).astype(jnp.float32),
            "b": jnp.zeros((dout,), jnp.float32)}


def init_block(kg, d):
    return {
        "in_proj": init_linear(kg, d, 3 * d, std=d ** -0.5),
        "out_proj": init_linear(kg, d, d, std=d ** -0.5),
        "ln1": init_ln(d), "ln12": init_ln(d), "ln2": init_ln(d), "ln22": init_ln(d),
        "c_fc": init_linear(kg, d, 4 * d, std=(2 * d) ** -0.5),
        "c_proj": init_linear(kg, 4 * d, d, std=d ** -0.5),
    }


def init_params(widths_encoder, d, num_layer, fea_lens, M, H, C, seed=0):
    kg = KeyGen(seed)
    enc = {
        "fc_in_a": init_linear(kg, widths_encoder[0], d),
        "fc_in_t": init_linear(kg, widths_encoder[1], d),
        "fc_in_v": init_linear(kg, widths_encoder[2], d),
        "emb_a": ((d ** -0.5) * jax.random.normal(kg(), (d,))).astype(jnp.float32),
        "emb_t": ((d ** -0.5) * jax.random.normal(kg(), (d,))).astype(jnp.float32),
        "emb_v": ((d ** -0.5) * jax.random.normal(kg(), (d,))).astype(jnp.float32),
        "ln_before_pe_a": init_ln(d), "ln_before_pe_t": init_ln(d), "ln_before_pe_v": init_ln(d),
        "ln_after_pe_a": init_ln(d), "ln_after_pe_t": init_ln(d), "ln_after_pe_v": init_ln(d),
        "blocks_a": [init_block(kg, d) for _ in range(num_layer)],
        "blocks_t": [init_block(kg, d) for _ in range(num_layer)],
        "blocks_v": [init_block(kg, d) for _ in range(2 * num_layer)],
        "mix_pool_a": ((fea_lens[0] ** -0.5) * jax.random.uniform(kg(), (fea_lens[0],))).astype(jnp.float32),
        "mix_pool_t": ((fea_lens[1] ** -0.5) * jax.random.uniform(kg(), (fea_lens[1],))).astype(jnp.float32),
        "mix_pool_v": ((fea_lens[2] ** -0.5) * jax.random.uniform(kg(), (fea_lens[2],))).astype(jnp.float32),
    }
    ca = {
        "net": init_linear(kg, H, M),
        "W1": init_linear(kg, M, C),
        "W2": init_linear(kg, C, C),
        "mlp_a": [init_linear(kg, d, d // 2), init_linear(kg, d // 2, 32), init_linear(kg, 32, C)],
        "mlp_t": [init_linear(kg, d, d // 2), init_linear(kg, d // 2, 32), init_linear(kg, 32, C)],
        "mlp_v": [init_linear(kg, d, d // 2), init_linear(kg, d // 2, 32), init_linear(kg, 32, C)],
        "mix_pool_m": ((C ** -0.5) * jax.random.uniform(kg(), (C,))).astype(jnp.float32),
        "mlp_m": [init_linear(kg, H, 32), init_linear(kg, 32, C)],
    }
    return {"encoder": enc, "class_attention": ca}


# ----------------------------- main -----------------------------

if __name__ == "__main__":
    # Small shapes consistent with the module (args: fea_len_* = seq+1, pool_method='mix').
    B = 2
    D = M = H = 128            # widths = [128]*3
    C = 7
    heads = (4, 4, 4)
    num_layer = 1
    widths_encoder = [64, 64, 128]
    Sa = St = Sv = 7
    fea_lens = (Sa + 1, St + 1, Sv + 1)

    key = jax.random.PRNGKey(0)
    k1, k2, k3, k4 = jax.random.split(key, 4)
    x_a = jax.random.normal(k1, (B, Sa, widths_encoder[0]), jnp.float32)
    x_t = jax.random.normal(k2, (B, St, widths_encoder[1]), jnp.float32)
    x_v = jax.random.normal(k3, (B, Sv, widths_encoder[2]), jnp.float32)
    lk = jax.random.split(k4, 4)
    label_a = jax.random.randint(lk[0], (B,), 0, C)
    label_t = jax.random.randint(lk[1], (B,), 0, C)
    label_v = jax.random.randint(lk[2], (B,), 0, C)
    label_m = jax.random.randint(lk[3], (B,), 0, C)

    params = init_params(widths_encoder, D, num_layer, fea_lens, M, H, C, seed=0)

    forward = jax.jit(functools.partial(emo_model_forward, heads=heads, num_layer=num_layer))
    loss = forward(params, x_t, x_a, x_v, label_t, label_a, label_v, label_m)
    jax.block_until_ready(loss)
    assert jnp.isfinite(loss)
    print("KERNEL_OK")
</pallas_src>

<mosaic_0001>
module attributes {stable_mosaic.version = 11 : i64} {
  func.func @_stem_kernel(%arg0: i32, %arg1: memref<1x7x128xf32, #tpu.memory_space<vmem>>, %arg2: memref<128x128xf32, #tpu.memory_space<vmem>>, %arg3: memref<1x128xf32, #tpu.memory_space<vmem>>, %arg4: memref<1x128xf32, #tpu.memory_space<vmem>>, %arg5: memref<8x128xf32, #tpu.memory_space<vmem>>, %arg6: memref<2x128xf32, #tpu.memory_space<vmem>>, %arg7: memref<2x128xf32, #tpu.memory_space<vmem>>, %arg8: memref<1x8x128xf32, #tpu.memory_space<vmem>>) attributes {dimension_semantics = [#tpu.dimension_semantics<parallel>], iteration_bounds = array<i64: 2>, scalar_prefetch = 0 : i64, scratch_operands = 0 : i64, tpu.core_type = #tpu.core_type<tc>, window_params = [{transform_indices = @transform_0, window_bounds = array<i64: 1, 7, 128>}, {pipeline_mode = #tpu.pipeline_mode<synchronous>, transform_indices = @transform_1, window_bounds = array<i64: 128, 128>}, {pipeline_mode = #tpu.pipeline_mode<synchronous>, transform_indices = @transform_2, window_bounds = array<i64: 1, 128>}, {pipeline_mode = #tpu.pipeline_mode<synchronous>, transform_indices = @transform_3, window_bounds = array<i64: 1, 128>}, {pipeline_mode = #tpu.pipeline_mode<synchronous>, transform_indices = @transform_4, window_bounds = array<i64: 8, 128>}, {pipeline_mode = #tpu.pipeline_mode<synchronous>, transform_indices = @transform_5, window_bounds = array<i64: 2, 128>}, {pipeline_mode = #tpu.pipeline_mode<synchronous>, transform_indices = @transform_6, window_bounds = array<i64: 2, 128>}, {transform_indices = @transform_7, window_bounds = array<i64: 1, 8, 128>}]} {
    %c0 = arith.constant 0 : index
    %c0_0 = arith.constant 0 : index
    %c0_1 = arith.constant 0 : index
    %0 = vector.load %arg1[%c0, %c0_0, %c0_1] : memref<1x7x128xf32, #tpu.memory_space<vmem>>, vector<1x7x128xf32>
    %1 = vector.shape_cast %0 : vector<1x7x128xf32> to vector<7x128xf32>
    %c0_2 = arith.constant 0 : index
    %c0_3 = arith.constant 0 : index
    %2 = vector.load %arg2[%c0_2, %c0_3] : memref<128x128xf32, #tpu.memory_space<vmem>>, vector<128x128xf32>
    %cst = arith.constant dense<0.000000e+00> : vector<7x128xf32>
    %3 = tpu.matmul %1, %2, %cst {dimension_numbers = #tpu.dot_dimension_numbers<[1], [0], [0], [1], [0, 0, 1, 1], [], []>} : vector<7x128xf32>, vector<128x128xf32>, vector<7x128xf32> -> vector<7x128xf32>
    %c0_4 = arith.constant 0 : index
    %c0_5 = arith.constant 0 : index
    %4 = vector.load %arg3[%c0_4, %c0_5] : memref<1x128xf32, #tpu.memory_space<vmem>>, vector<1x128xf32>
    %5 = vector.broadcast %4 : vector<1x128xf32> to vector<7x128xf32>
    %6 = arith.addf %3, %5 : vector<7x128xf32>
    %c0_6 = arith.constant 0 : index
    %c0_7 = arith.constant 0 : index
    %7 = vector.load %arg4[%c0_6, %c0_7] : memref<1x128xf32, #tpu.memory_space<vmem>>, vector<1x128xf32>
    %8 = tpu.concatenate %7, %6 in 0 : vector<1x128xf32>, vector<7x128xf32> -> vector<8x128xf32>
    %cst_8 = arith.constant 11.3137083 : f32
    %9 = vector.broadcast %cst_8 : f32 to vector<8x128xf32>
    %10 = arith.mulf %8, %9 : vector<8x128xf32>
    %c0_9 = arith.constant 0 : index
    %c0_10 = arith.constant 0 : index
    %11 = vector.load %arg6[%c0_9, %c0_10] : memref<2x128xf32, #tpu.memory_space<vmem>>, vector<2x128xf32>
    %c0_11 = arith.constant 0 : index
    %c0_12 = arith.constant 0 : index
    %12 = vector.load %arg7[%c0_11, %c0_12] : memref<2x128xf32, #tpu.memory_space<vmem>>, vector<2x128xf32>
    %13 = vector.extract_strided_slice %11 {offsets = [0, 0], sizes = [1, 128], strides = [1, 1]} : vector<2x128xf32> to vector<1x128xf32>
    %14 = vector.extract_strided_slice %11 {offsets = [1, 0], sizes = [1, 128], strides = [1, 1]} : vector<2x128xf32> to vector<1x128xf32>
    %cst_13 = arith.constant dense<0.000000e+00> : vector<8xf32>
    %15 = vector.multi_reduction <add>, %10, %cst_13 [1] : vector<8x128xf32> to vector<8xf32>
    %16 = vector.shape_cast %15 : vector<8xf32> to vector<8x1xf32>
    %cst_14 = arith.constant 1.280000e+02 : f32
    %17 = vector.broadcast %cst_14 : f32 to vector<8x1xf32>
    %18 = arith.divf %16, %17 : vector<8x1xf32>
    %19 = vector.broadcast %18 : vector<8x1xf32> to vector<8x128xf32>
    %20 = arith.subf %10, %19 : vector<8x128xf32>
    %21 = arith.mulf %20, %20 : vector<8x128xf32>
    %cst_15 = arith.constant dense<0.000000e+00> : vector<8xf32>
    %22 = vector.multi_reduction <add>, %21, %cst_15 [1] : vector<8x128xf32> to vector<8xf32>
    %23 = vector.shape_cast %22 : vector<8xf32> to vector<8x1xf32>
    %cst_16 = arith.constant 1.280000e+02 : f32
    %24 = vector.broadcast %cst_16 : f32 to vector<8x1xf32>
    %25 = arith.divf %23, %24 : vector<8x1xf32>
    %cst_17 = arith.constant 9.99999974E-6 : f32
    %26 = vector.broadcast %cst_17 : f32 to vector<8x1xf32>
    %27 = arith.addf %25, %26 : vector<8x1xf32>
    %28 = math.rsqrt %27 : vector<8x1xf32>
    %29 = vector.broadcast %28 : vector<8x1xf32> to vector<8x128xf32>
    %30 = arith.mulf %20, %29 : vector<8x128xf32>
    %31 = vector.broadcast %13 : vector<1x128xf32> to vector<8x128xf32>
    %32 = arith.mulf %30, %31 : vector<8x128xf32>
    %33 = vector.broadcast %14 : vector<1x128xf32> to vector<8x128xf32>
    %34 = arith.addf %32, %33 : vector<8x128xf32>
    %c0_18 = arith.constant 0 : index
    %c0_19 = arith.constant 0 : index
    %35 = vector.load %arg5[%c0_18, %c0_19] : memref<8x128xf32, #tpu.memory_space<vmem>>, vector<8x128xf32>
    %36 = arith.addf %34, %35 : vector<8x128xf32>
    %37 = vector.extract_strided_slice %12 {offsets = [0, 0], sizes = [1, 128], strides = [1, 1]} : vector<2x128xf32> to vector<1x128xf32>
    %38 = vector.extract_strided_slice %12 {offsets = [1, 0], sizes = [1, 128], strides = [1, 1]} : vector<2x128xf32> to vector<1x128xf32>
    %cst_20 = arith.constant dense<0.000000e+00> : vector<8xf32>
    %39 = vector.multi_reduction <add>, %36, %cst_20 [1] : vector<8x128xf32> to vector<8xf32>
    %40 = vector.shape_cast %39 : vector<8xf32> to vector<8x1xf32>
    %cst_21 = arith.constant 1.280000e+02 : f32
    %41 = vector.broadcast %cst_21 : f32 to vector<8x1xf32>
    %42 = arith.divf %40, %41 : vector<8x1xf32>
    %43 = vector.broadcast %42 : vector<8x1xf32> to vector<8x128xf32>
    %44 = arith.subf %36, %43 : vector<8x128xf32>
    %45 = arith.mulf %44, %44 : vector<8x128xf32>
    %cst_22 = arith.constant dense<0.000000e+00> : vector<8xf32>
    %46 = vector.multi_reduction <add>, %45, %cst_22 [1] : vector<8x128xf32> to vector<8xf32>
    %47 = vector.shape_cast %46 : vector<8xf32> to vector<8x1xf32>
    %cst_23 = arith.constant 1.280000e+02 : f32
    %48 = vector.broadcast %cst_23 : f32 to vector<8x1xf32>
    %49 = arith.divf %47, %48 : vector<8x1xf32>
    %cst_24 = arith.constant 9.99999974E-6 : f32
    %50 = vector.broadcast %cst_24 : f32 to vector<8x1xf32>
    %51 = arith.addf %49, %50 : vector<8x1xf32>
    %52 = math.rsqrt %51 : vector<8x1xf32>
    %53 = vector.broadcast %52 : vector<8x1xf32> to vector<8x128xf32>
    %54 = arith.mulf %44, %53 : vector<8x128xf32>
    %55 = vector.broadcast %37 : vector<1x128xf32> to vector<8x128xf32>
    %56 = arith.mulf %54, %55 : vector<8x128xf32>
    %57 = vector.broadcast %38 : vector<1x128xf32> to vector<8x128xf32>
    %58 = arith.addf %56, %57 : vector<8x128xf32>
    %c0_25 = arith.constant 0 : index
    %c0_26 = arith.constant 0 : index
    %c0_27 = arith.constant 0 : index
    %59 = vector.load %arg8[%c0_25, %c0_26, %c0_27] : memref<1x8x128xf32, #tpu.memory_space<vmem>>, vector<1x8x128xf32>
    %60 = vector.shape_cast %59 : vector<1x8x128xf32> to vector<8x128xf32>
    %61 = vector.shape_cast %58 : vector<8x128xf32> to vector<1x8x128xf32>
    tpu.vector_store %arg8[%c0_25, %c0_26, %c0_27], %61 {strides = array<i32>} : memref<1x8x128xf32, #tpu.memory_space<vmem>>, vector<1x8x128xf32>,
    return
  }
  func.func @transform_0(%arg0: i32) -> (i32, i32, i32) {
    %c0_i32 = arith.constant 0 : i32
    %c0_i32_0 = arith.constant 0 : i32
    %c0_i32_1 = arith.constant 0 : i32
    return %arg0, %c0_i32, %c0_i32_0 : i32, i32, i32
  }
  func.func @transform_1(%arg0: i32) -> (i32, i32) {
    %c0_i32 = arith.constant 0 : i32
    %c0_i32_0 = arith.constant 0 : i32
    %c0_i32_1 = arith.constant 0 : i32
    return %c0_i32, %c0_i32_0 : i32, i32
  }
  func.func @transform_2(%arg0: i32) -> (i32, i32) {
    %c0_i32 = arith.constant 0 : i32
    %c0_i32_0 = arith.constant 0 : i32
    %c0_i32_1 = arith.constant 0 : i32
    return %c0_i32, %c0_i32_0 : i32, i32
  }
  func.func @transform_3(%arg0: i32) -> (i32, i32) {
    %c0_i32 = arith.constant 0 : i32
    %c0_i32_0 = arith.constant 0 : i32
    %c0_i32_1 = arith.constant 0 : i32
    return %c0_i32, %c0_i32_0 : i32, i32
  }
  func.func @transform_4(%arg0: i32) -> (i32, i32) {
    %c0_i32 = arith.constant 0 : i32
    %c0_i32_0 = arith.constant 0 : i32
    %c0_i32_1 = arith.constant 0 : i32
    return %c0_i32, %c0_i32_0 : i32, i32
  }
  func.func @transform_5(%arg0: i32) -> (i32, i32) {
    %c0_i32 = arith.constant 0 : i32
    %c0_i32_0 = arith.constant 0 : i32
    %c0_i32_1 = arith.constant 0 : i32
    return %c0_i32, %c0_i32_0 : i32, i32
  }
  func.func @transform_6(%arg0: i32) -> (i32, i32) {
    %c0_i32 = arith.constant 0 : i32
    %c0_i32_0 = arith.constant 0 : i32
    %c0_i32_1 = arith.constant 0 : i32
    return %c0_i32, %c0_i32_0 : i32, i32
  }
  func.func @transform_7(%arg0: i32) -> (i32, i32, i32) {
    %c0_i32 = arith.constant 0 : i32
    %c0_i32_0 = arith.constant 0 : i32
    %c0_i32_1 = arith.constant 0 : i32
    return %arg0, %c0_i32, %c0_i32_0 : i32, i32, i32
  }
}

module attributes {stable_mosaic.version = 11 : i64} {
  func.func @_fused_block_kernel(%arg0: i32, %arg1: memref<1x8x128xf32, #tpu.memory_space<vmem>>, %arg2: memref<128x384xf32, #tpu.memory_space<vmem>>, %arg3: memref<1x384xf32, #tpu.memory_space<vmem>>, %arg4: memref<128x128xf32, #tpu.memory_space<vmem>>, %arg5: memref<1x128xf32, #tpu.memory_space<vmem>>, %arg6: memref<128x512xf32, #tpu.memory_space<vmem>>, %arg7: memref<1x512xf32, #tpu.memory_space<vmem>>, %arg8: memref<512x128xf32, #tpu.memory_space<vmem>>, %arg9: memref<1x128xf32, #tpu.memory_space<vmem>>, %arg10: memref<8x128xf32, #tpu.memory_space<vmem>>, %arg11: memref<1x8x128xf32, #tpu.memory_space<vmem>>) attributes {dimension_semantics = [#tpu.dimension_semantics<parallel>], iteration_bounds = array<i64: 2>, scalar_prefetch = 0 : i64, scratch_operands = 0 : i64, tpu.core_type = #tpu.core_type<tc>, window_params = [{transform_indices = @transform_0, window_bounds = array<i64: 1, 8, 128>}, {pipeline_mode = #tpu.pipeline_mode<synchronous>, transform_indices = @transform_1, window_bounds = array<i64: 128, 384>}, {pipeline_mode = #tpu.pipeline_mode<synchronous>, transform_indices = @transform_2, window_bounds = array<i64: 1, 384>}, {pipeline_mode = #tpu.pipeline_mode<synchronous>, transform_indices = @transform_3, window_bounds = array<i64: 128, 128>}, {pipeline_mode = #tpu.pipeline_mode<synchronous>, transform_indices = @transform_4, window_bounds = array<i64: 1, 128>}, {pipeline_mode = #tpu.pipeline_mode<synchronous>, transform_indices = @transform_5, window_bounds = array<i64: 128, 512>}, {pipeline_mode = #tpu.pipeline_mode<synchronous>, transform_indices = @transform_6, window_bounds = array<i64: 1, 512>}, {pipeline_mode = #tpu.pipeline_mode<synchronous>, transform_indices = @transform_7, window_bounds = array<i64: 512, 128>}, {pipeline_mode = #tpu.pipeline_mode<synchronous>, transform_indices = @transform_8, window_bounds = array<i64: 1, 128>}, {pipeline_mode = #tpu.pipeline_mode<synchronous>, transform_indices = @transform_9, window_bounds = array<i64: 8, 128>}, {transform_indices = @transform_10, window_bounds = array<i64: 1, 8, 128>}]} {
    %c0 = arith.constant 0 : index
    %c0_0 = arith.constant 0 : index
    %c0_1 = arith.constant 0 : index
    %0 = vector.load %arg1[%c0, %c0_0, %c0_1] : memref<1x8x128xf32, #tpu.memory_space<vmem>>, vector<1x8x128xf32>
    %1 = vector.shape_cast %0 : vector<1x8x128xf32> to vector<8x128xf32>
    %c0_2 = arith.constant 0 : index
    %c0_3 = arith.constant 0 : index
    %2 = vector.load %arg10[%c0_2, %c0_3] : memref<8x128xf32, #tpu.memory_space<vmem>>, vector<8x128xf32>
    %3 = vector.extract_strided_slice %2 {offsets = [0, 0], sizes = [1, 128], strides = [1, 1]} : vector<8x128xf32> to vector<1x128xf32>
    %4 = vector.extract_strided_slice %2 {offsets = [1, 0], sizes = [1, 128], strides = [1, 1]} : vector<8x128xf32> to vector<1x128xf32>
    %cst = arith.constant dense<0.000000e+00> : vector<8xf32>
    %5 = vector.multi_reduction <add>, %1, %cst [1] : vector<8x128xf32> to vector<8xf32>
    %6 = vector.shape_cast %5 : vector<8xf32> to vector<8x1xf32>
    %cst_4 = arith.constant 1.280000e+02 : f32
    %7 = vector.broadcast %cst_4 : f32 to vector<8x1xf32>
    %8 = arith.divf %6, %7 : vector<8x1xf32>
    %9 = vector.broadcast %8 : vector<8x1xf32> to vector<8x128xf32>
    %10 = arith.subf %1, %9 : vector<8x128xf32>
    %11 = arith.mulf %10, %10 : vector<8x128xf32>
    %cst_5 = arith.constant dense<0.000000e+00> : vector<8xf32>
    %12 = vector.multi_reduction <add>, %11, %cst_5 [1] : vector<8x128xf32> to vector<8xf32>
    %13 = vector.shape_cast %12 : vector<8xf32> to vector<8x1xf32>
    %cst_6 = arith.constant 1.280000e+02 : f32
    %14 = vector.broadcast %cst_6 : f32 to vector<8x1xf32>
    %15 = arith.divf %13, %14 : vector<8x1xf32>
    %cst_7 = arith.constant 9.99999974E-6 : f32
    %16 = vector.broadcast %cst_7 : f32 to vector<8x1xf32>
    %17 = arith.addf %15, %16 : vector<8x1xf32>
    %18 = math.rsqrt %17 : vector<8x1xf32>
    %19 = vector.broadcast %18 : vector<8x1xf32> to vector<8x128xf32>
    %20 = arith.mulf %10, %19 : vector<8x128xf32>
    %21 = vector.broadcast %3 : vector<1x128xf32> to vector<8x128xf32>
    %22 = arith.mulf %20, %21 : vector<8x128xf32>
    %23 = vector.broadcast %4 : vector<1x128xf32> to vector<8x128xf32>
    %24 = arith.addf %22, %23 : vector<8x128xf32>
    %c0_8 = arith.constant 0 : index
    %c0_9 = arith.constant 0 : index
    %25 = vector.load %arg2[%c0_8, %c0_9] : memref<128x384xf32, #tpu.memory_space<vmem>>, vector<128x384xf32>
    %cst_10 = arith.constant dense<0.000000e+00> : vector<8x384xf32>
    %26 = tpu.matmul %24, %25, %cst_10 {dimension_numbers = #tpu.dot_dimension_numbers<[1], [0], [0], [1], [0, 0, 1, 1], [], []>} : vector<8x128xf32>, vector<128x384xf32>, vector<8x384xf32> -> vector<8x384xf32>
    %c0_11 = arith.constant 0 : index
    %c0_12 = arith.constant 0 : index
    %27 = vector.load %arg3[%c0_11, %c0_12] : memref<1x384xf32, #tpu.memory_space<vmem>>, vector<1x384xf32>
    %28 = vector.broadcast %27 : vector<1x384xf32> to vector<8x384xf32>
    %29 = arith.addf %26, %28 : vector<8x384xf32>
    %30 = vector.extract_strided_slice %29 {offsets = [0, 0], sizes = [8, 128], strides = [1, 1]} : vector<8x384xf32> to vector<8x128xf32>
    %31 = vector.extract_strided_slice %29 {offsets = [0, 128], sizes = [8, 128], strides = [1, 1]} : vector<8x384xf32> to vector<8x128xf32>
    %32 = vector.extract_strided_slice %29 {offsets = [0, 256], sizes = [8, 128], strides = [1, 1]} : vector<8x384xf32> to vector<8x128xf32>
    %cst_13 = arith.constant 0.000000e+00 : f32
    %33 = vector.broadcast %cst_13 : f32 to vector<8x128xf32>
    %34 = vector.extract_strided_slice %30 {offsets = [0, 0], sizes = [8, 32], strides = [1, 1]} : vector<8x128xf32> to vector<8x32xf32>
    %35 = vector.extract_strided_slice %31 {offsets = [0, 0], sizes = [8, 32], strides = [1, 1]} : vector<8x128xf32> to vector<8x32xf32>
    %36 = vector.extract_strided_slice %32 {offsets = [0, 0], sizes = [8, 32], strides = [1, 1]} : vector<8x128xf32> to vector<8x32xf32>
    %37 = tpu.transpose %35, [1, 0] : vector<8x32xf32> -> vector<32x8xf32>
    %cst_14 = arith.constant dense<0.000000e+00> : vector<8x8xf32>
    %38 = tpu.matmul %34, %37, %cst_14 {dimension_numbers = #tpu.dot_dimension_numbers<[1], [0], [0], [1], [0, 0, 1, 1], [], []>} : vector<8x32xf32>, vector<32x8xf32>, vector<8x8xf32> -> vector<8x8xf32>
    %cst_15 = arith.constant 0.176776692 : f32
    %39 = vector.broadcast %cst_15 : f32 to vector<8x8xf32>
    %40 = arith.mulf %38, %39 : vector<8x8xf32>
    %cst_16 = arith.constant dense<0xFF800000> : vector<8xf32>
    %41 = vector.multi_reduction <maximumf>, %40, %cst_16 [1] : vector<8x8xf32> to vector<8xf32>
    %42 = vector.shape_cast %41 : vector<8xf32> to vector<8x1xf32>
    %43 = vector.broadcast %42 : vector<8x1xf32> to vector<8x8xf32>
    %44 = arith.subf %40, %43 : vector<8x8xf32>
    %45 = math.exp %44 : vector<8x8xf32>
    %cst_17 = arith.constant dense<0.000000e+00> : vector<8xf32>
    %46 = vector.multi_reduction <add>, %45, %cst_17 [1] : vector<8x8xf32> to vector<8xf32>
    %47 = vector.shape_cast %46 : vector<8xf32> to vector<8x1xf32>
    %48 = tpu.reciprocal %47 {approx = true} : vector<8x1xf32> -> vector<8x1xf32>
    %49 = vector.broadcast %48 : vector<8x1xf32> to vector<8x8xf32>
    %50 = arith.mulf %45, %49 : vector<8x8xf32>
    %cst_18 = arith.constant dense<0.000000e+00> : vector<8x32xf32>
    %51 = tpu.matmul %50, %36, %cst_18 {dimension_numbers = #tpu.dot_dimension_numbers<[1], [0], [0], [1], [0, 0, 1, 1], [], []>} : vector<8x8xf32>, vector<8x32xf32>, vector<8x32xf32> -> vector<8x32xf32>
    %c0_19 = arith.constant 0 : index
    %c0_20 = arith.constant 0 : index
    %52 = vector.load %arg4[%c0_19, %c0_20] : memref<128x128xf32, #tpu.memory_space<vmem>>, vector<32x128xf32>
    %cst_21 = arith.constant dense<0.000000e+00> : vector<8x128xf32>
    %53 = tpu.matmul %51, %52, %cst_21 {dimension_numbers = #tpu.dot_dimension_numbers<[1], [0], [0], [1], [0, 0, 1, 1], [], []>} : vector<8x32xf32>, vector<32x128xf32>, vector<8x128xf32> -> vector<8x128xf32>
    %54 = arith.addf %33, %53 : vector<8x128xf32>
    %55 = vector.extract_strided_slice %30 {offsets = [0, 32], sizes = [8, 32], strides = [1, 1]} : vector<8x128xf32> to vector<8x32xf32>
    %56 = vector.extract_strided_slice %31 {offsets = [0, 32], sizes = [8, 32], strides = [1, 1]} : vector<8x128xf32> to vector<8x32xf32>
    %57 = vector.extract_strided_slice %32 {offsets = [0, 32], sizes = [8, 32], strides = [1, 1]} : vector<8x128xf32> to vector<8x32xf32>
    %58 = tpu.transpose %56, [1, 0] : vector<8x32xf32> -> vector<32x8xf32>
    %cst_22 = arith.constant dense<0.000000e+00> : vector<8x8xf32>
    %59 = tpu.matmul %55, %58, %cst_22 {dimension_numbers = #tpu.dot_dimension_numbers<[1], [0], [0], [1], [0, 0, 1, 1], [], []>} : vector<8x32xf32>, vector<32x8xf32>, vector<8x8xf32> -> vector<8x8xf32>
    %cst_23 = arith.constant 0.176776692 : f32
    %60 = vector.broadcast %cst_23 : f32 to vector<8x8xf32>
    %61 = arith.mulf %59, %60 : vector<8x8xf32>
    %cst_24 = arith.constant dense<0xFF800000> : vector<8xf32>
    %62 = vector.multi_reduction <maximumf>, %61, %cst_24 [1] : vector<8x8xf32> to vector<8xf32>
    %63 = vector.shape_cast %62 : vector<8xf32> to vector<8x1xf32>
    %64 = vector.broadcast %63 : vector<8x1xf32> to vector<8x8xf32>
    %65 = arith.subf %61, %64 : vector<8x8xf32>
    %66 = math.exp %65 : vector<8x8xf32>
    %cst_25 = arith.constant dense<0.000000e+00> : vector<8xf32>
    %67 = vector.multi_reduction <add>, %66, %cst_25 [1] : vector<8x8xf32> to vector<8xf32>
    %68 = vector.shape_cast %67 : vector<8xf32> to vector<8x1xf32>
    %69 = tpu.reciprocal %68 {approx = true} : vector<8x1xf32> -> vector<8x1xf32>
    %70 = vector.broadcast %69 : vector<8x1xf32> to vector<8x8xf32>
    %71 = arith.mulf %66, %70 : vector<8x8xf32>
    %cst_26 = arith.constant dense<0.000000e+00> : vector<8x32xf32>
    %72 = tpu.matmul %71, %57, %cst_26 {dimension_numbers = #tpu.dot_dimension_numbers<[1], [0], [0], [1], [0, 0, 1, 1], [], []>} : vector<8x8xf32>, vector<8x32xf32>, vector<8x32xf32> -> vector<8x32xf32>
    %c32 = arith.constant 32 : index
    %c0_27 = arith.constant 0 : index
    %73 = vector.load %arg4[%c32, %c0_27] : memref<128x128xf32, #tpu.memory_space<vmem>>, vector<32x128xf32>
    %cst_28 = arith.constant dense<0.000000e+00> : vector<8x128xf32>
    %74 = tpu.matmul %72, %73, %cst_28 {dimension_numbers = #tpu.dot_dimension_numbers<[1], [0], [0], [1], [0, 0, 1, 1], [], []>} : vector<8x32xf32>, vector<32x128xf32>, vector<8x128xf32> -> vector<8x128xf32>
    %75 = arith.addf %54, %74 : vector<8x128xf32>
    %76 = vector.extract_strided_slice %30 {offsets = [0, 64], sizes = [8, 32], strides = [1, 1]} : vector<8x128xf32> to vector<8x32xf32>
    %77 = vector.extract_strided_slice %31 {offsets = [0, 64], sizes = [8, 32], strides = [1, 1]} : vector<8x128xf32> to vector<8x32xf32>
    %78 = vector.extract_strided_slice %32 {offsets = [0, 64], sizes = [8, 32], strides = [1, 1]} : vector<8x128xf32> to vector<8x32xf32>
    %79 = tpu.transpose %77, [1, 0] : vector<8x32xf32> -> vector<32x8xf32>
    %cst_29 = arith.constant dense<0.000000e+00> : vector<8x8xf32>
    %80 = tpu.matmul %76, %79, %cst_29 {dimension_numbers = #tpu.dot_dimension_numbers<[1], [0], [0], [1], [0, 0, 1, 1], [], []>} : vector<8x32xf32>, vector<32x8xf32>, vector<8x8xf32> -> vector<8x8xf32>
    %cst_30 = arith.constant 0.176776692 : f32
    %81 = vector.broadcast %cst_30 : f32 to vector<8x8xf32>
    %82 = arith.mulf %80, %81 : vector<8x8xf32>
    %cst_31 = arith.constant dense<0xFF800000> : vector<8xf32>
    %83 = vector.multi_reduction <maximumf>, %82, %cst_31 [1] : vector<8x8xf32> to vector<8xf32>
    %84 = vector.shape_cast %83 : vector<8xf32> to vector<8x1xf32>
    %85 = vector.broadcast %84 : vector<8x1xf32> to vector<8x8xf32>
    %86 = arith.subf %82, %85 : vector<8x8xf32>
    %87 = math.exp %86 : vector<8x8xf32>
    %cst_32 = arith.constant dense<0.000000e+00> : vector<8xf32>
    %88 = vector.multi_reduction <add>, %87, %cst_32 [1] : vector<8x8xf32> to vector<8xf32>
    %89 = vector.shape_cast %88 : vector<8xf32> to vector<8x1xf32>
    %90 = tpu.reciprocal %89 {approx = true} : vector<8x1xf32> -> vector<8x1xf32>
    %91 = vector.broadcast %90 : vector<8x1xf32> to vector<8x8xf32>
    %92 = arith.mulf %87, %91 : vector<8x8xf32>
    %cst_33 = arith.constant dense<0.000000e+00> : vector<8x32xf32>
    %93 = tpu.matmul %92, %78, %cst_33 {dimension_numbers = #tpu.dot_dimension_numbers<[1], [0], [0], [1], [0, 0, 1, 1], [], []>} : vector<8x8xf32>, vector<8x32xf32>, vector<8x32xf32> -> vector<8x32xf32>
    %c64 = arith.constant 64 : index
    %c0_34 = arith.constant 0 : index
    %94 = vector.load %arg4[%c64, %c0_34] : memref<128x128xf32, #tpu.memory_space<vmem>>, vector<32x128xf32>
    %cst_35 = arith.constant dense<0.000000e+00> : vector<8x128xf32>
    %95 = tpu.matmul %93, %94, %cst_35 {dimension_numbers = #tpu.dot_dimension_numbers<[1], [0], [0], [1], [0, 0, 1, 1], [], []>} : vector<8x32xf32>, vector<32x128xf32>, vector<8x128xf32> -> vector<8x128xf32>
    %96 = arith.addf %75, %95 : vector<8x128xf32>
    %97 = vector.extract_strided_slice %30 {offsets = [0, 96], sizes = [8, 32], strides = [1, 1]} : vector<8x128xf32> to vector<8x32xf32>
    %98 = vector.extract_strided_slice %31 {offsets = [0, 96], sizes = [8, 32], strides = [1, 1]} : vector<8x128xf32> to vector<8x32xf32>
    %99 = vector.extract_strided_slice %32 {offsets = [0, 96], sizes = [8, 32], strides = [1, 1]} : vector<8x128xf32> to vector<8x32xf32>
    %100 = tpu.transpose %98, [1, 0] : vector<8x32xf32> -> vector<32x8xf32>
    %cst_36 = arith.constant dense<0.000000e+00> : vector<8x8xf32>
    %101 = tpu.matmul %97, %100, %cst_36 {dimension_numbers = #tpu.dot_dimension_numbers<[1], [0], [0], [1], [0, 0, 1, 1], [], []>} : vector<8x32xf32>, vector<32x8xf32>, vector<8x8xf32> -> vector<8x8xf32>
    %cst_37 = arith.constant 0.176776692 : f32
    %102 = vector.broadcast %cst_37 : f32 to vector<8x8xf32>
    %103 = arith.mulf %101, %102 : vector<8x8xf32>
    %cst_38 = arith.constant dense<0xFF800000> : vector<8xf32>
    %104 = vector.multi_reduction <maximumf>, %103, %cst_38 [1] : vector<8x8xf32> to vector<8xf32>
    %105 = vector.shape_cast %104 : vector<8xf32> to vector<8x1xf32>
    %106 = vector.broadcast %105 : vector<8x1xf32> to vector<8x8xf32>
    %107 = arith.subf %103, %106 : vector<8x8xf32>
    %108 = math.exp %107 : vector<8x8xf32>
    %cst_39 = arith.constant dense<0.000000e+00> : vector<8xf32>
    %109 = vector.multi_reduction <add>, %108, %cst_39 [1] : vector<8x8xf32> to vector<8xf32>
    %110 = vector.shape_cast %109 : vector<8xf32> to vector<8x1xf32>
    %111 = tpu.reciprocal %110 {approx = true} : vector<8x1xf32> -> vector<8x1xf32>
    %112 = vector.broadcast %111 : vector<8x1xf32> to vector<8x8xf32>
    %113 = arith.mulf %108, %112 : vector<8x8xf32>
    %cst_40 = arith.constant dense<0.000000e+00> : vector<8x32xf32>
    %114 = tpu.matmul %113, %99, %cst_40 {dimension_numbers = #tpu.dot_dimension_numbers<[1], [0], [0], [1], [0, 0, 1, 1], [], []>} : vector<8x8xf32>, vector<8x32xf32>, vector<8x32xf32> -> vector<8x32xf32>
    %c96 = arith.constant 96 : index
    %c0_41 = arith.constant 0 : index
    %115 = vector.load %arg4[%c96, %c0_41] : memref<128x128xf32, #tpu.memory_space<vmem>>, vector<32x128xf32>
    %cst_42 = arith.constant dense<0.000000e+00> : vector<8x128xf32>
    %116 = tpu.matmul %114, %115, %cst_42 {dimension_numbers = #tpu.dot_dimension_numbers<[1], [0], [0], [1], [0, 0, 1, 1], [], []>} : vector<8x32xf32>, vector<32x128xf32>, vector<8x128xf32> -> vector<8x128xf32>
    %117 = arith.addf %96, %116 : vector<8x128xf32>
    %c0_43 = arith.constant 0 : index
    %c0_44 = arith.constant 0 : index
    %118 = vector.load %arg5[%c0_43, %c0_44] : memref<1x128xf32, #tpu.memory_space<vmem>>, vector<1x128xf32>
    %119 = vector.broadcast %118 : vector<1x128xf32> to vector<8x128xf32>
    %120 = arith.addf %117, %119 : vector<8x128xf32>
    %121 = vector.extract_strided_slice %2 {offsets = [2, 0], sizes = [1, 128], strides = [1, 1]} : vector<8x128xf32> to vector<1x128xf32>
    %122 = vector.extract_strided_slice %2 {offsets = [3, 0], sizes = [1, 128], strides = [1, 1]} : vector<8x128xf32> to vector<1x128xf32>
    %cst_45 = arith.constant dense<0.000000e+00> : vector<8xf32>
    %123 = vector.multi_reduction <add>, %120, %cst_45 [1] : vector<8x128xf32> to vector<8xf32>
    %124 = vector.shape_cast %123 : vector<8xf32> to vector<8x1xf32>
    %cst_46 = arith.constant 1.280000e+02 : f32
    %125 = vector.broadcast %cst_46 : f32 to vector<8x1xf32>
    %126 = arith.divf %124, %125 : vector<8x1xf32>
    %127 = vector.broadcast %126 : vector<8x1xf32> to vector<8x128xf32>
    %128 = arith.subf %120, %127 : vector<8x128xf32>
    %129 = arith.mulf %128, %128 : vector<8x128xf32>
    %cst_47 = arith.constant dense<0.000000e+00> : vector<8xf32>
    %130 = vector.multi_reduction <add>, %129, %cst_47 [1] : vector<8x128xf32> to vector<8xf32>
    %131 = vector.shape_cast %130 : vector<8xf32> to vector<8x1xf32>
    %cst_48 = arith.constant 1.280000e+02 : f32
    %132 = vector.broadcast %cst_48 : f32 to vector<8x1xf32>
    %133 = arith.divf %131, %132 : vector<8x1xf32>
    %cst_49 = arith.constant 9.99999974E-6 : f32
    %134 = vector.broadcast %cst_49 : f32 to vector<8x1xf32>
    %135 = arith.addf %133, %134 : vector<8x1xf32>
    %136 = math.rsqrt %135 : vector<8x1xf32>
    %137 = vector.broadcast %136 : vector<8x1xf32> to vector<8x128xf32>
    %138 = arith.mulf %128, %137 : vector<8x128xf32>
    %139 = vector.broadcast %121 : vector<1x128xf32> to vector<8x128xf32>
    %140 = arith.mulf %138, %139 : vector<8x128xf32>
    %141 = vector.broadcast %122 : vector<1x128xf32> to vector<8x128xf32>
    %142 = arith.addf %140, %141 : vector<8x128xf32>
    %143 = arith.addf %1, %142 : vector<8x128xf32>
    %144 = vector.extract_strided_slice %2 {offsets = [4, 0], sizes = [1, 128], strides = [1, 1]} : vector<8x128xf32> to vector<1x128xf32>
    %145 = vector.extract_strided_slice %2 {offsets = [5, 0], sizes = [1, 128], strides = [1, 1]} : vector<8x128xf32> to vector<1x128xf32>
    %cst_50 = arith.constant dense<0.000000e+00> : vector<8xf32>
    %146 = vector.multi_reduction <add>, %143, %cst_50 [1] : vector<8x128xf32> to vector<8xf32>
    %147 = vector.shape_cast %146 : vector<8xf32> to vector<8x1xf32>
    %cst_51 = arith.constant 1.280000e+02 : f32
    %148 = vector.broadcast %cst_51 : f32 to vector<8x1xf32>
    %149 = arith.divf %147, %148 : vector<8x1xf32>
    %150 = vector.broadcast %149 : vector<8x1xf32> to vector<8x128xf32>
    %151 = arith.subf %143, %150 : vector<8x128xf32>
    %152 = arith.mulf %151, %151 : vector<8x128xf32>
    %cst_52 = arith.constant dense<0.000000e+00> : vector<8xf32>
    %153 = vector.multi_reduction <add>, %152, %cst_52 [1] : vector<8x128xf32> to vector<8xf32>
    %154 = vector.shape_cast %153 : vector<8xf32> to vector<8x1xf32>
    %cst_53 = arith.constant 1.280000e+02 : f32
    %155 = vector.broadcast %cst_53 : f32 to vector<8x1xf32>
    %156 = arith.divf %154, %155 : vector<8x1xf32>
    %cst_54 = arith.constant 9.99999974E-6 : f32
    %157 = vector.broadcast %cst_54 : f32 to vector<8x1xf32>
    %158 = arith.addf %156, %157 : vector<8x1xf32>
    %159 = math.rsqrt %158 : vector<8x1xf32>
    %160 = vector.broadcast %159 : vector<8x1xf32> to vector<8x128xf32>
    %161 = arith.mulf %151, %160 : vector<8x128xf32>
    %162 = vector.broadcast %144 : vector<1x128xf32> to vector<8x128xf32>
    %163 = arith.mulf %161, %162 : vector<8x128xf32>
    %164 = vector.broadcast %145 : vector<1x128xf32> to vector<8x128xf32>
    %165 = arith.addf %163, %164 : vector<8x128xf32>
    %c0_55 = arith.constant 0 : index
    %c0_56 = arith.constant 0 : index
    %166 = vector.load %arg6[%c0_55, %c0_56] : memref<128x512xf32, #tpu.memory_space<vmem>>, vector<128x512xf32>
    %cst_57 = arith.constant dense<0.000000e+00> : vector<8x512xf32>
    %167 = tpu.matmul %165, %166, %cst_57 {dimension_numbers = #tpu.dot_dimension_numbers<[1], [0], [0], [1], [0, 0, 1, 1], [], []>} : vector<8x128xf32>, vector<128x512xf32>, vector<8x512xf32> -> vector<8x512xf32>
    %c0_58 = arith.constant 0 : index
    %c0_59 = arith.constant 0 : index
    %168 = vector.load %arg7[%c0_58, %c0_59] : memref<1x512xf32, #tpu.memory_space<vmem>>, vector<1x512xf32>
    %169 = vector.broadcast %168 : vector<1x512xf32> to vector<8x512xf32>
    %170 = arith.addf %167, %169 : vector<8x512xf32>
    %cst_60 = arith.constant 0.000000e+00 : f32
    %171 = vector.broadcast %cst_60 : f32 to vector<8x512xf32>
    %172 = arith.maximumf %170, %171 : vector<8x512xf32>
    %c0_61 = arith.constant 0 : index
    %c0_62 = arith.constant 0 : index
    %173 = vector.load %arg8[%c0_61, %c0_62] : memref<512x128xf32, #tpu.memory_space<vmem>>, vector<512x128xf32>
    %cst_63 = arith.constant dense<0.000000e+00> : vector<8x128xf32>
    %174 = tpu.matmul %172, %173, %cst_63 {dimension_numbers = #tpu.dot_dimension_numbers<[1], [0], [0], [1], [0, 0, 1, 1], [], []>} : vector<8x512xf32>, vector<512x128xf32>, vector<8x128xf32> -> vector<8x128xf32>
    %c0_64 = arith.constant 0 : index
    %c0_65 = arith.constant 0 : index
    %175 = vector.load %arg9[%c0_64, %c0_65] : memref<1x128xf32, #tpu.memory_space<vmem>>, vector<1x128xf32>
    %176 = vector.broadcast %175 : vector<1x128xf32> to vector<8x128xf32>
    %177 = arith.addf %174, %176 : vector<8x128xf32>
    %178 = vector.extract_strided_slice %2 {offsets = [6, 0], sizes = [1, 128], strides = [1, 1]} : vector<8x128xf32> to vector<1x128xf32>
    %179 = vector.extract_strided_slice %2 {offsets = [7, 0], sizes = [1, 128], strides = [1, 1]} : vector<8x128xf32> to vector<1x128xf32>
    %cst_66 = arith.constant dense<0.000000e+00> : vector<8xf32>
    %180 = vector.multi_reduction <add>, %177, %cst_66 [1] : vector<8x128xf32> to vector<8xf32>
    %181 = vector.shape_cast %180 : vector<8xf32> to vector<8x1xf32>
    %cst_67 = arith.constant 1.280000e+02 : f32
    %182 = vector.broadcast %cst_67 : f32 to vector<8x1xf32>
    %183 = arith.divf %181, %182 : vector<8x1xf32>
    %184 = vector.broadcast %183 : vector<8x1xf32> to vector<8x128xf32>
    %185 = arith.subf %177, %184 : vector<8x128xf32>
    %186 = arith.mulf %185, %185 : vector<8x128xf32>
    %cst_68 = arith.constant dense<0.000000e+00> : vector<8xf32>
    %187 = vector.multi_reduction <add>, %186, %cst_68 [1] : vector<8x128xf32> to vector<8xf32>
    %188 = vector.shape_cast %187 : vector<8xf32> to vector<8x1xf32>
    %cst_69 = arith.constant 1.280000e+02 : f32
    %189 = vector.broadcast %cst_69 : f32 to vector<8x1xf32>
    %190 = arith.divf %188, %189 : vector<8x1xf32>
    %cst_70 = arith.constant 9.99999974E-6 : f32
    %191 = vector.broadcast %cst_70 : f32 to vector<8x1xf32>
    %192 = arith.addf %190, %191 : vector<8x1xf32>
    %193 = math.rsqrt %192 : vector<8x1xf32>
    %194 = vector.broadcast %193 : vector<8x1xf32> to vector<8x128xf32>
    %195 = arith.mulf %185, %194 : vector<8x128xf32>
    %196 = vector.broadcast %178 : vector<1x128xf32> to vector<8x128xf32>
    %197 = arith.mulf %195, %196 : vector<8x128xf32>
    %198 = vector.broadcast %179 : vector<1x128xf32> to vector<8x128xf32>
    %199 = arith.addf %197, %198 : vector<8x128xf32>
    %200 = arith.addf %143, %199 : vector<8x128xf32>
    %c0_71 = arith.constant 0 : index
    %c0_72 = arith.constant 0 : index
    %c0_73 = arith.constant 0 : index
    %201 = vector.load %arg11[%c0_71, %c0_72, %c0_73] : memref<1x8x128xf32, #tpu.memory_space<vmem>>, vector<1x8x128xf32>
    %202 = vector.shape_cast %201 : vector<1x8x128xf32> to vector<8x128xf32>
    %203 = vector.shape_cast %200 : vector<8x128xf32> to vector<1x8x128xf32>
    tpu.vector_store %arg11[%c0_71, %c0_72, %c0_73], %203 {strides = array<i32>} : memref<1x8x128xf32, #tpu.memory_space<vmem>>, vector<1x8x128xf32>,
    return
  }
  func.func @transform_0(%arg0: i32) -> (i32, i32, i32) {
    %c0_i32 = arith.constant 0 : i32
    %c0_i32_0 = arith.constant 0 : i32
    %c0_i32_1 = arith.constant 0 : i32
    return %arg0, %c0_i32, %c0_i32_0 : i32, i32, i32
  }
  func.func @transform_1(%arg0: i32) -> (i32, i32) {
    %c0_i32 = arith.constant 0 : i32
    %c0_i32_0 = arith.constant 0 : i32
    %c0_i32_1 = arith.constant 0 : i32
    return %c0_i32, %c0_i32_0 : i32, i32
  }
  func.func @transform_2(%arg0: i32) -> (i32, i32) {
    %c0_i32 = arith.constant 0 : i32
    %c0_i32_0 = arith.constant 0 : i32
    %c0_i32_1 = arith.constant 0 : i32
    return %c0_i32, %c0_i32_0 : i32, i32
  }
  func.func @transform_3(%arg0: i32) -> (i32, i32) {
    %c0_i32 = arith.constant 0 : i32
    %c0_i32_0 = arith.constant 0 : i32
    %c0_i32_1 = arith.constant 0 : i32
    return %c0_i32, %c0_i32_0 : i32, i32
  }
  func.func @transform_4(%arg0: i32) -> (i32, i32) {
    %c0_i32 = arith.constant 0 : i32
    %c0_i32_0 = arith.constant 0 : i32
    %c0_i32_1 = arith.constant 0 : i32
    return %c0_i32, %c0_i32_0 : i32, i32
  }
  func.func @transform_5(%arg0: i32) -> (i32, i32) {
    %c0_i32 = arith.constant 0 : i32
    %c0_i32_0 = arith.constant 0 : i32
    %c0_i32_1 = arith.constant 0 : i32
    return %c0_i32, %c0_i32_0 : i32, i32
  }
  func.func @transform_6(%arg0: i32) -> (i32, i32) {
    %c0_i32 = arith.constant 0 : i32
    %c0_i32_0 = arith.constant 0 : i32
    %c0_i32_1 = arith.constant 0 : i32
    return %c0_i32, %c0_i32_0 : i32, i32
  }
  func.func @transform_7(%arg0: i32) -> (i32, i32) {
    %c0_i32 = arith.constant 0 : i32
    %c0_i32_0 = arith.constant 0 : i32
    %c0_i32_1 = arith.constant 0 : i32
    return %c0_i32, %c0_i32_0 : i32, i32
  }
  func.func @transform_8(%arg0: i32) -> (i32, i32) {
    %c0_i32 = arith.constant 0 : i32
    %c0_i32_0 = arith.constant 0 : i32
    %c0_i32_1 = arith.constant 0 : i32
    return %c0_i32, %c0_i32_0 : i32, i32
  }
  func.func @transform_9(%arg0: i32) -> (i32, i32) {
    %c0_i32 = arith.constant 0 : i32
    %c0_i32_0 = arith.constant 0 : i32
    %c0_i32_1 = arith.constant 0 : i32
    return %c0_i32, %c0_i32_0 : i32, i32
  }
  func.func @transform_10(%arg0: i32) -> (i32, i32, i32) {
    %c0_i32 = arith.constant 0 : i32
    %c0_i32_0 = arith.constant 0 : i32
    %c0_i32_1 = arith.constant 0 : i32
    return %arg0, %c0_i32, %c0_i32_0 : i32, i32, i32
  }
}

module attributes {stable_mosaic.version = 11 : i64} {
  func.func @_fused_block_kernel(%arg0: i32, %arg1: memref<1x8x128xf32, #tpu.memory_space<vmem>>, %arg2: memref<128x384xf32, #tpu.memory_space<vmem>>, %arg3: memref<1x384xf32, #tpu.memory_space<vmem>>, %arg4: memref<128x128xf32, #tpu.memory_space<vmem>>, %arg5: memref<1x128xf32, #tpu.memory_space<vmem>>, %arg6: memref<128x512xf32, #tpu.memory_space<vmem>>, %arg7: memref<1x512xf32, #tpu.memory_space<vmem>>, %arg8: memref<512x128xf32, #tpu.memory_space<vmem>>, %arg9: memref<1x128xf32, #tpu.memory_space<vmem>>, %arg10: memref<8x128xf32, #tpu.memory_space<vmem>>, %arg11: memref<1x8x128xf32, #tpu.memory_space<vmem>>) attributes {dimension_semantics = [#tpu.dimension_semantics<parallel>], iteration_bounds = array<i64: 2>, scalar_prefetch = 0 : i64, scratch_operands = 0 : i64, tpu.core_type = #tpu.core_type<tc>, window_params = [{transform_indices = @transform_0, window_bounds = array<i64: 1, 8, 128>}, {pipeline_mode = #tpu.pipeline_mode<synchronous>, transform_indices = @transform_1, window_bounds = array<i64: 128, 384>}, {pipeline_mode = #tpu.pipeline_mode<synchronous>, transform_indices = @transform_2, window_bounds = array<i64: 1, 384>}, {pipeline_mode = #tpu.pipeline_mode<synchronous>, transform_indices = @transform_3, window_bounds = array<i64: 128, 128>}, {pipeline_mode = #tpu.pipeline_mode<synchronous>, transform_indices = @transform_4, window_bounds = array<i64: 1, 128>}, {pipeline_mode = #tpu.pipeline_mode<synchronous>, transform_indices = @transform_5, window_bounds = array<i64: 128, 512>}, {pipeline_mode = #tpu.pipeline_mode<synchronous>, transform_indices = @transform_6, window_bounds = array<i64: 1, 512>}, {pipeline_mode = #tpu.pipeline_mode<synchronous>, transform_indices = @transform_7, window_bounds = array<i64: 512, 128>}, {pipeline_mode = #tpu.pipeline_mode<synchronous>, transform_indices = @transform_8, window_bounds = array<i64: 1, 128>}, {pipeline_mode = #tpu.pipeline_mode<synchronous>, transform_indices = @transform_9, window_bounds = array<i64: 8, 128>}, {transform_indices = @transform_10, window_bounds = array<i64: 1, 8, 128>}]} {
    %c0 = arith.constant 0 : index
    %c0_0 = arith.constant 0 : index
    %c0_1 = arith.constant 0 : index
    %0 = vector.load %arg1[%c0, %c0_0, %c0_1] : memref<1x8x128xf32, #tpu.memory_space<vmem>>, vector<1x8x128xf32>
    %1 = vector.shape_cast %0 : vector<1x8x128xf32> to vector<8x128xf32>
    %c0_2 = arith.constant 0 : index
    %c0_3 = arith.constant 0 : index
    %2 = vector.load %arg10[%c0_2, %c0_3] : memref<8x128xf32, #tpu.memory_space<vmem>>, vector<8x128xf32>
    %3 = vector.extract_strided_slice %2 {offsets = [0, 0], sizes = [1, 128], strides = [1, 1]} : vector<8x128xf32> to vector<1x128xf32>
    %4 = vector.extract_strided_slice %2 {offsets = [1, 0], sizes = [1, 128], strides = [1, 1]} : vector<8x128xf32> to vector<1x128xf32>
    %cst = arith.constant dense<0.000000e+00> : vector<8xf32>
    %5 = vector.multi_reduction <add>, %1, %cst [1] : vector<8x128xf32> to vector<8xf32>
    %6 = vector.shape_cast %5 : vector<8xf32> to vector<8x1xf32>
    %cst_4 = arith.constant 1.280000e+02 : f32
    %7 = vector.broadcast %cst_4 : f32 to vector<8x1xf32>
    %8 = arith.divf %6, %7 : vector<8x1xf32>
    %9 = vector.broadcast %8 : vector<8x1xf32> to vector<8x128xf32>
    %10 = arith.subf %1, %9 : vector<8x128xf32>
    %11 = arith.mulf %10, %10 : vector<8x128xf32>
    %cst_5 = arith.constant dense<0.000000e+00> : vector<8xf32>
    %12 = vector.multi_reduction <add>, %11, %cst_5 [1] : vector<8x128xf32> to vector<8xf32>
    %13 = vector.shape_cast %12 : vector<8xf32> to vector<8x1xf32>
    %cst_6 = arith.constant 1.280000e+02 : f32
    %14 = vector.broadcast %cst_6 : f32 to vector<8x1xf32>
    %15 = arith.divf %13, %14 : vector<8x1xf32>
    %cst_7 = arith.constant 9.99999974E-6 : f32
    %16 = vector.broadcast %cst_7 : f32 to vector<8x1xf32>
    %17 = arith.addf %15, %16 : vector<8x1xf32>
    %18 = math.rsqrt %17 : vector<8x1xf32>
    %19 = vector.broadcast %18 : vector<8x1xf32> to vector<8x128xf32>
    %20 = arith.mulf %10, %19 : vector<8x128xf32>
    %21 = vector.broadcast %3 : vector<1x128xf32> to vector<8x128xf32>
    %22 = arith.mulf %20, %21 : vector<8x128xf32>
    %23 = vector.broadcast %4 : vector<1x128xf32> to vector<8x128xf32>
    %24 = arith.addf %22, %23 : vector<8x128xf32>
    %c0_8 = arith.constant 0 : index
    %c0_9 = arith.constant 0 : index
    %25 = vector.load %arg2[%c0_8, %c0_9] : memref<128x384xf32, #tpu.memory_space<vmem>>, vector<128x384xf32>
    %cst_10 = arith.constant dense<0.000000e+00> : vector<8x384xf32>
    %26 = tpu.matmul %24, %25, %cst_10 {dimension_numbers = #tpu.dot_dimension_numbers<[1], [0], [0], [1], [0, 0, 1, 1], [], []>} : vector<8x128xf32>, vector<128x384xf32>, vector<8x384xf32> -> vector<8x384xf32>
    %c0_11 = arith.constant 0 : index
    %c0_12 = arith.constant 0 : index
    %27 = vector.load %arg3[%c0_11, %c0_12] : memref<1x384xf32, #tpu.memory_space<vmem>>, vector<1x384xf32>
    %28 = vector.broadcast %27 : vector<1x384xf32> to vector<8x384xf32>
    %29 = arith.addf %26, %28 : vector<8x384xf32>
    %30 = vector.extract_strided_slice %29 {offsets = [0, 0], sizes = [8, 128], strides = [1, 1]} : vector<8x384xf32> to vector<8x128xf32>
    %31 = vector.extract_strided_slice %29 {offsets = [0, 128], sizes = [8, 128], strides = [1, 1]} : vector<8x384xf32> to vector<8x128xf32>
    %32 = vector.extract_strided_slice %29 {offsets = [0, 256], sizes = [8, 128], strides = [1, 1]} : vector<8x384xf32> to vector<8x128xf32>
    %cst_13 = arith.constant 0.000000e+00 : f32
    %33 = vector.broadcast %cst_13 : f32 to vector<8x128xf32>
    %34 = vector.extract_strided_slice %30 {offsets = [0, 0], sizes = [8, 32], strides = [1, 1]} : vector<8x128xf32> to vector<8x32xf32>
    %35 = vector.extract_strided_slice %31 {offsets = [0, 0], sizes = [8, 32], strides = [1, 1]} : vector<8x128xf32> to vector<8x32xf32>
    %36 = vector.extract_strided_slice %32 {offsets = [0, 0], sizes = [8, 32], strides = [1, 1]} : vector<8x128xf32> to vector<8x32xf32>
    %37 = tpu.transpose %35, [1, 0] : vector<8x32xf32> -> vector<32x8xf32>
    %cst_14 = arith.constant dense<0.000000e+00> : vector<8x8xf32>
    %38 = tpu.matmul %34, %37, %cst_14 {dimension_numbers = #tpu.dot_dimension_numbers<[1], [0], [0], [1], [0, 0, 1, 1], [], []>} : vector<8x32xf32>, vector<32x8xf32>, vector<8x8xf32> -> vector<8x8xf32>
    %cst_15 = arith.constant 0.176776692 : f32
    %39 = vector.broadcast %cst_15 : f32 to vector<8x8xf32>
    %40 = arith.mulf %38, %39 : vector<8x8xf32>
    %cst_16 = arith.constant dense<0xFF800000> : vector<8xf32>
    %41 = vector.multi_reduction <maximumf>, %40, %cst_16 [1] : vector<8x8xf32> to vector<8xf32>
    %42 = vector.shape_cast %41 : vector<8xf32> to vector<8x1xf32>
    %43 = vector.broadcast %42 : vector<8x1xf32> to vector<8x8xf32>
    %44 = arith.subf %40, %43 : vector<8x8xf32>
    %45 = math.exp %44 : vector<8x8xf32>
    %cst_17 = arith.constant dense<0.000000e+00> : vector<8xf32>
    %46 = vector.multi_reduction <add>, %45, %cst_17 [1] : vector<8x8xf32> to vector<8xf32>
    %47 = vector.shape_cast %46 : vector<8xf32> to vector<8x1xf32>
    %48 = tpu.reciprocal %47 {approx = true} : vector<8x1xf32> -> vector<8x1xf32>
    %49 = vector.broadcast %48 : vector<8x1xf32> to vector<8x8xf32>
    %50 = arith.mulf %45, %49 : vector<8x8xf32>
    %cst_18 = arith.constant dense<0.000000e+00> : vector<8x32xf32>
    %51 = tpu.matmul %50, %36, %cst_18 {dimension_numbers = #tpu.dot_dimension_numbers<[1], [0], [0], [1], [0, 0, 1, 1], [], []>} : vector<8x8xf32>, vector<8x32xf32>, vector<8x32xf32> -> vector<8x32xf32>
    %c0_19 = arith.constant 0 : index
    %c0_20 = arith.constant 0 : index
    %52 = vector.load %arg4[%c0_19, %c0_20] : memref<128x128xf32, #tpu.memory_space<vmem>>, vector<32x128xf32>
    %cst_21 = arith.constant dense<0.000000e+00> : vector<8x128xf32>
    %53 = tpu.matmul %51, %52, %cst_21 {dimension_numbers = #tpu.dot_dimension_numbers<[1], [0], [0], [1], [0, 0, 1, 1], [], []>} : vector<8x32xf32>, vector<32x128xf32>, vector<8x128xf32> -> vector<8x128xf32>
    %54 = arith.addf %33, %53 : vector<8x128xf32>
    %55 = vector.extract_strided_slice %30 {offsets = [0, 32], sizes = [8, 32], strides = [1, 1]} : vector<8x128xf32> to vector<8x32xf32>
    %56 = vector.extract_strided_slice %31 {offsets = [0, 32], sizes = [8, 32], strides = [1, 1]} : vector<8x128xf32> to vector<8x32xf32>
    %57 = vector.extract_strided_slice %32 {offsets = [0, 32], sizes = [8, 32], strides = [1, 1]} : vector<8x128xf32> to vector<8x32xf32>
    %58 = tpu.transpose %56, [1, 0] : vector<8x32xf32> -> vector<32x8xf32>
    %cst_22 = arith.constant dense<0.000000e+00> : vector<8x8xf32>
    %59 = tpu.matmul %55, %58, %cst_22 {dimension_numbers = #tpu.dot_dimension_numbers<[1], [0], [0], [1], [0, 0, 1, 1], [], []>} : vector<8x32xf32>, vector<32x8xf32>, vector<8x8xf32> -> vector<8x8xf32>
    %cst_23 = arith.constant 0.176776692 : f32
    %60 = vector.broadcast %cst_23 : f32 to vector<8x8xf32>
    %61 = arith.mulf %59, %60 : vector<8x8xf32>
    %cst_24 = arith.constant dense<0xFF800000> : vector<8xf32>
    %62 = vector.multi_reduction <maximumf>, %61, %cst_24 [1] : vector<8x8xf32> to vector<8xf32>
    %63 = vector.shape_cast %62 : vector<8xf32> to vector<8x1xf32>
    %64 = vector.broadcast %63 : vector<8x1xf32> to vector<8x8xf32>
    %65 = arith.subf %61, %64 : vector<8x8xf32>
    %66 = math.exp %65 : vector<8x8xf32>
    %cst_25 = arith.constant dense<0.000000e+00> : vector<8xf32>
    %67 = vector.multi_reduction <add>, %66, %cst_25 [1] : vector<8x8xf32> to vector<8xf32>
    %68 = vector.shape_cast %67 : vector<8xf32> to vector<8x1xf32>
    %69 = tpu.reciprocal %68 {approx = true} : vector<8x1xf32> -> vector<8x1xf32>
    %70 = vector.broadcast %69 : vector<8x1xf32> to vector<8x8xf32>
    %71 = arith.mulf %66, %70 : vector<8x8xf32>
    %cst_26 = arith.constant dense<0.000000e+00> : vector<8x32xf32>
    %72 = tpu.matmul %71, %57, %cst_26 {dimension_numbers = #tpu.dot_dimension_numbers<[1], [0], [0], [1], [0, 0, 1, 1], [], []>} : vector<8x8xf32>, vector<8x32xf32>, vector<8x32xf32> -> vector<8x32xf32>
    %c32 = arith.constant 32 : index
    %c0_27 = arith.constant 0 : index
    %73 = vector.load %arg4[%c32, %c0_27] : memref<128x128xf32, #tpu.memory_space<vmem>>, vector<32x128xf32>
    %cst_28 = arith.constant dense<0.000000e+00> : vector<8x128xf32>
    %74 = tpu.matmul %72, %73, %cst_28 {dimension_numbers = #tpu.dot_dimension_numbers<[1], [0], [0], [1], [0, 0, 1, 1], [], []>} : vector<8x32xf32>, vector<32x128xf32>, vector<8x128xf32> -> vector<8x128xf32>
    %75 = arith.addf %54, %74 : vector<8x128xf32>
    %76 = vector.extract_strided_slice %30 {offsets = [0, 64], sizes = [8, 32], strides = [1, 1]} : vector<8x128xf32> to vector<8x32xf32>
    %77 = vector.extract_strided_slice %31 {offsets = [0, 64], sizes = [8, 32], strides = [1, 1]} : vector<8x128xf32> to vector<8x32xf32>
    %78 = vector.extract_strided_slice %32 {offsets = [0, 64], sizes = [8, 32], strides = [1, 1]} : vector<8x128xf32> to vector<8x32xf32>
    %79 = tpu.transpose %77, [1, 0] : vector<8x32xf32> -> vector<32x8xf32>
    %cst_29 = arith.constant dense<0.000000e+00> : vector<8x8xf32>
    %80 = tpu.matmul %76, %79, %cst_29 {dimension_numbers = #tpu.dot_dimension_numbers<[1], [0], [0], [1], [0, 0, 1, 1], [], []>} : vector<8x32xf32>, vector<32x8xf32>, vector<8x8xf32> -> vector<8x8xf32>
    %cst_30 = arith.constant 0.176776692 : f32
    %81 = vector.broadcast %cst_30 : f32 to vector<8x8xf32>
    %82 = arith.mulf %80, %81 : vector<8x8xf32>
    %cst_31 = arith.constant dense<0xFF800000> : vector<8xf32>
    %83 = vector.multi_reduction <maximumf>, %82, %cst_31 [1] : vector<8x8xf32> to vector<8xf32>
    %84 = vector.shape_cast %83 : vector<8xf32> to vector<8x1xf32>
    %85 = vector.broadcast %84 : vector<8x1xf32> to vector<8x8xf32>
    %86 = arith.subf %82, %85 : vector<8x8xf32>
    %87 = math.exp %86 : vector<8x8xf32>
    %cst_32 = arith.constant dense<0.000000e+00> : vector<8xf32>
    %88 = vector.multi_reduction <add>, %87, %cst_32 [1] : vector<8x8xf32> to vector<8xf32>
    %89 = vector.shape_cast %88 : vector<8xf32> to vector<8x1xf32>
    %90 = tpu.reciprocal %89 {approx = true} : vector<8x1xf32> -> vector<8x1xf32>
    %91 = vector.broadcast %90 : vector<8x1xf32> to vector<8x8xf32>
    %92 = arith.mulf %87, %91 : vector<8x8xf32>
    %cst_33 = arith.constant dense<0.000000e+00> : vector<8x32xf32>
    %93 = tpu.matmul %92, %78, %cst_33 {dimension_numbers = #tpu.dot_dimension_numbers<[1], [0], [0], [1], [0, 0, 1, 1], [], []>} : vector<8x8xf32>, vector<8x32xf32>, vector<8x32xf32> -> vector<8x32xf32>
    %c64 = arith.constant 64 : index
    %c0_34 = arith.constant 0 : index
    %94 = vector.load %arg4[%c64, %c0_34] : memref<128x128xf32, #tpu.memory_space<vmem>>, vector<32x128xf32>
    %cst_35 = arith.constant dense<0.000000e+00> : vector<8x128xf32>
    %95 = tpu.matmul %93, %94, %cst_35 {dimension_numbers = #tpu.dot_dimension_numbers<[1], [0], [0], [1], [0, 0, 1, 1], [], []>} : vector<8x32xf32>, vector<32x128xf32>, vector<8x128xf32> -> vector<8x128xf32>
    %96 = arith.addf %75, %95 : vector<8x128xf32>
    %97 = vector.extract_strided_slice %30 {offsets = [0, 96], sizes = [8, 32], strides = [1, 1]} : vector<8x128xf32> to vector<8x32xf32>
    %98 = vector.extract_strided_slice %31 {offsets = [0, 96], sizes = [8, 32], strides = [1, 1]} : vector<8x128xf32> to vector<8x32xf32>
    %99 = vector.extract_strided_slice %32 {offsets = [0, 96], sizes = [8, 32], strides = [1, 1]} : vector<8x128xf32> to vector<8x32xf32>
    %100 = tpu.transpose %98, [1, 0] : vector<8x32xf32> -> vector<32x8xf32>
    %cst_36 = arith.constant dense<0.000000e+00> : vector<8x8xf32>
    %101 = tpu.matmul %97, %100, %cst_36 {dimension_numbers = #tpu.dot_dimension_numbers<[1], [0], [0], [1], [0, 0, 1, 1], [], []>} : vector<8x32xf32>, vector<32x8xf32>, vector<8x8xf32> -> vector<8x8xf32>
    %cst_37 = arith.constant 0.176776692 : f32
    %102 = vector.broadcast %cst_37 : f32 to vector<8x8xf32>
    %103 = arith.mulf %101, %102 : vector<8x8xf32>
    %cst_38 = arith.constant dense<0xFF800000> : vector<8xf32>
    %104 = vector.multi_reduction <maximumf>, %103, %cst_38 [1] : vector<8x8xf32> to vector<8xf32>
    %105 = vector.shape_cast %104 : vector<8xf32> to vector<8x1xf32>
    %106 = vector.broadcast %105 : vector<8x1xf32> to vector<8x8xf32>
    %107 = arith.subf %103, %106 : vector<8x8xf32>
    %108 = math.exp %107 : vector<8x8xf32>
    %cst_39 = arith.constant dense<0.000000e+00> : vector<8xf32>
    %109 = vector.multi_reduction <add>, %108, %cst_39 [1] : vector<8x8xf32> to vector<8xf32>
    %110 = vector.shape_cast %109 : vector<8xf32> to vector<8x1xf32>
    %111 = tpu.reciprocal %110 {approx = true} : vector<8x1xf32> -> vector<8x1xf32>
    %112 = vector.broadcast %111 : vector<8x1xf32> to vector<8x8xf32>
    %113 = arith.mulf %108, %112 : vector<8x8xf32>
    %cst_40 = arith.constant dense<0.000000e+00> : vector<8x32xf32>
    %114 = tpu.matmul %113, %99, %cst_40 {dimension_numbers = #tpu.dot_dimension_numbers<[1], [0], [0], [1], [0, 0, 1, 1], [], []>} : vector<8x8xf32>, vector<8x32xf32>, vector<8x32xf32> -> vector<8x32xf32>
    %c96 = arith.constant 96 : index
    %c0_41 = arith.constant 0 : index
    %115 = vector.load %arg4[%c96, %c0_41] : memref<128x128xf32, #tpu.memory_space<vmem>>, vector<32x128xf32>
    %cst_42 = arith.constant dense<0.000000e+00> : vector<8x128xf32>
    %116 = tpu.matmul %114, %115, %cst_42 {dimension_numbers = #tpu.dot_dimension_numbers<[1], [0], [0], [1], [0, 0, 1, 1], [], []>} : vector<8x32xf32>, vector<32x128xf32>, vector<8x128xf32> -> vector<8x128xf32>
    %117 = arith.addf %96, %116 : vector<8x128xf32>
    %c0_43 = arith.constant 0 : index
    %c0_44 = arith.constant 0 : index
    %118 = vector.load %arg5[%c0_43, %c0_44] : memref<1x128xf32, #tpu.memory_space<vmem>>, vector<1x128xf32>
    %119 = vector.broadcast %118 : vector<1x128xf32> to vector<8x128xf32>
    %120 = arith.addf %117, %119 : vector<8x128xf32>
    %121 = vector.extract_strided_slice %2 {offsets = [2, 0], sizes = [1, 128], strides = [1, 1]} : vector<8x128xf32> to vector<1x128xf32>
    %122 = vector.extract_strided_slice %2 {offsets = [3, 0], sizes = [1, 128], strides = [1, 1]} : vector<8x128xf32> to vector<1x128xf32>
    %cst_45 = arith.constant dense<0.000000e+00> : vector<8xf32>
    %123 = vector.multi_reduction <add>, %120, %cst_45 [1] : vector<8x128xf32> to vector<8xf32>
    %124 = vector.shape_cast %123 : vector<8xf32> to vector<8x1xf32>
    %cst_46 = arith.constant 1.280000e+02 : f32
    %125 = vector.broadcast %cst_46 : f32 to vector<8x1xf32>
    %126 = arith.divf %124, %125 : vector<8x1xf32>
    %127 = vector.broadcast %126 : vector<8x1xf32> to vector<8x128xf32>
    %128 = arith.subf %120, %127 : vector<8x128xf32>
    %129 = arith.mulf %128, %128 : vector<8x128xf32>
    %cst_47 = arith.constant dense<0.000000e+00> : vector<8xf32>
    %130 = vector.multi_reduction <add>, %129, %cst_47 [1] : vector<8x128xf32> to vector<8xf32>
    %131 = vector.shape_cast %130 : vector<8xf32> to vector<8x1xf32>
    %cst_48 = arith.constant 1.280000e+02 : f32
    %132 = vector.broadcast %cst_48 : f32 to vector<8x1xf32>
    %133 = arith.divf %131, %132 : vector<8x1xf32>
    %cst_49 = arith.constant 9.99999974E-6 : f32
    %134 = vector.broadcast %cst_49 : f32 to vector<8x1xf32>
    %135 = arith.addf %133, %134 : vector<8x1xf32>
    %136 = math.rsqrt %135 : vector<8x1xf32>
    %137 = vector.broadcast %136 : vector<8x1xf32> to vector<8x128xf32>
    %138 = arith.mulf %128, %137 : vector<8x128xf32>
    %139 = vector.broadcast %121 : vector<1x128xf32> to vector<8x128xf32>
    %140 = arith.mulf %138, %139 : vector<8x128xf32>
    %141 = vector.broadcast %122 : vector<1x128xf32> to vector<8x128xf32>
    %142 = arith.addf %140, %141 : vector<8x128xf32>
    %143 = arith.addf %1, %142 : vector<8x128xf32>
    %144 = vector.extract_strided_slice %2 {offsets = [4, 0], sizes = [1, 128], strides = [1, 1]} : vector<8x128xf32> to vector<1x128xf32>
    %145 = vector.extract_strided_slice %2 {offsets = [5, 0], sizes = [1, 128], strides = [1, 1]} : vector<8x128xf32> to vector<1x128xf32>
    %cst_50 = arith.constant dense<0.000000e+00> : vector<8xf32>
    %146 = vector.multi_reduction <add>, %143, %cst_50 [1] : vector<8x128xf32> to vector<8xf32>
    %147 = vector.shape_cast %146 : vector<8xf32> to vector<8x1xf32>
    %cst_51 = arith.constant 1.280000e+02 : f32
    %148 = vector.broadcast %cst_51 : f32 to vector<8x1xf32>
    %149 = arith.divf %147, %148 : vector<8x1xf32>
    %150 = vector.broadcast %149 : vector<8x1xf32> to vector<8x128xf32>
    %151 = arith.subf %143, %150 : vector<8x128xf32>
    %152 = arith.mulf %151, %151 : vector<8x128xf32>
    %cst_52 = arith.constant dense<0.000000e+00> : vector<8xf32>
    %153 = vector.multi_reduction <add>, %152, %cst_52 [1] : vector<8x128xf32> to vector<8xf32>
    %154 = vector.shape_cast %153 : vector<8xf32> to vector<8x1xf32>
    %cst_53 = arith.constant 1.280000e+02 : f32
    %155 = vector.broadcast %cst_53 : f32 to vector<8x1xf32>
    %156 = arith.divf %154, %155 : vector<8x1xf32>
    %cst_54 = arith.constant 9.99999974E-6 : f32
    %157 = vector.broadcast %cst_54 : f32 to vector<8x1xf32>
    %158 = arith.addf %156, %157 : vector<8x1xf32>
    %159 = math.rsqrt %158 : vector<8x1xf32>
    %160 = vector.broadcast %159 : vector<8x1xf32> to vector<8x128xf32>
    %161 = arith.mulf %151, %160 : vector<8x128xf32>
    %162 = vector.broadcast %144 : vector<1x128xf32> to vector<8x128xf32>
    %163 = arith.mulf %161, %162 : vector<8x128xf32>
    %164 = vector.broadcast %145 : vector<1x128xf32> to vector<8x128xf32>
    %165 = arith.addf %163, %164 : vector<8x128xf32>
    %c0_55 = arith.constant 0 : index
    %c0_56 = arith.constant 0 : index
    %166 = vector.load %arg6[%c0_55, %c0_56] : memref<128x512xf32, #tpu.memory_space<vmem>>, vector<128x512xf32>
    %cst_57 = arith.constant dense<0.000000e+00> : vector<8x512xf32>
    %167 = tpu.matmul %165, %166, %cst_57 {dimension_numbers = #tpu.dot_dimension_numbers<[1], [0], [0], [1], [0, 0, 1, 1], [], []>} : vector<8x128xf32>, vector<128x512xf32>, vector<8x512xf32> -> vector<8x512xf32>
    %c0_58 = arith.constant 0 : index
    %c0_59 = arith.constant 0 : index
    %168 = vector.load %arg7[%c0_58, %c0_59] : memref<1x512xf32, #tpu.memory_space<vmem>>, vector<1x512xf32>
    %169 = vector.broadcast %168 : vector<1x512xf32> to vector<8x512xf32>
    %170 = arith.addf %167, %169 : vector<8x512xf32>
    %cst_60 = arith.constant 0.000000e+00 : f32
    %171 = vector.broadcast %cst_60 : f32 to vector<8x512xf32>
    %172 = arith.maximumf %170, %171 : vector<8x512xf32>
    %c0_61 = arith.constant 0 : index
    %c0_62 = arith.constant 0 : index
    %173 = vector.load %arg8[%c0_61, %c0_62] : memref<512x128xf32, #tpu.memory_space<vmem>>, vector<512x128xf32>
    %cst_63 = arith.constant dense<0.000000e+00> : vector<8x128xf32>
    %174 = tpu.matmul %172, %173, %cst_63 {dimension_numbers = #tpu.dot_dimension_numbers<[1], [0], [0], [1], [0, 0, 1, 1], [], []>} : vector<8x512xf32>, vector<512x128xf32>, vector<8x128xf32> -> vector<8x128xf32>
    %c0_64 = arith.constant 0 : index
    %c0_65 = arith.constant 0 : index
    %175 = vector.load %arg9[%c0_64, %c0_65] : memref<1x128xf32, #tpu.memory_space<vmem>>, vector<1x128xf32>
    %176 = vector.broadcast %175 : vector<1x128xf32> to vector<8x128xf32>
    %177 = arith.addf %174, %176 : vector<8x128xf32>
    %178 = vector.extract_strided_slice %2 {offsets = [6, 0], sizes = [1, 128], strides = [1, 1]} : vector<8x128xf32> to vector<1x128xf32>
    %179 = vector.extract_strided_slice %2 {offsets = [7, 0], sizes = [1, 128], strides = [1, 1]} : vector<8x128xf32> to vector<1x128xf32>
    %cst_66 = arith.constant dense<0.000000e+00> : vector<8xf32>
    %180 = vector.multi_reduction <add>, %177, %cst_66 [1] : vector<8x128xf32> to vector<8xf32>
    %181 = vector.shape_cast %180 : vector<8xf32> to vector<8x1xf32>
    %cst_67 = arith.constant 1.280000e+02 : f32
    %182 = vector.broadcast %cst_67 : f32 to vector<8x1xf32>
    %183 = arith.divf %181, %182 : vector<8x1xf32>
    %184 = vector.broadcast %183 : vector<8x1xf32> to vector<8x128xf32>
    %185 = arith.subf %177, %184 : vector<8x128xf32>
    %186 = arith.mulf %185, %185 : vector<8x128xf32>
    %cst_68 = arith.constant dense<0.000000e+00> : vector<8xf32>
    %187 = vector.multi_reduction <add>, %186, %cst_68 [1] : vector<8x128xf32> to vector<8xf32>
    %188 = vector.shape_cast %187 : vector<8xf32> to vector<8x1xf32>
    %cst_69 = arith.constant 1.280000e+02 : f32
    %189 = vector.broadcast %cst_69 : f32 to vector<8x1xf32>
    %190 = arith.divf %188, %189 : vector<8x1xf32>
    %cst_70 = arith.constant 9.99999974E-6 : f32
    %191 = vector.broadcast %cst_70 : f32 to vector<8x1xf32>
    %192 = arith.addf %190, %191 : vector<8x1xf32>
    %193 = math.rsqrt %192 : vector<8x1xf32>
    %194 = vector.broadcast %193 : vector<8x1xf32> to vector<8x128xf32>
    %195 = arith.mulf %185, %194 : vector<8x128xf32>
    %196 = vector.broadcast %178 : vector<1x128xf32> to vector<8x128xf32>
    %197 = arith.mulf %195, %196 : vector<8x128xf32>
    %198 = vector.broadcast %179 : vector<1x128xf32> to vector<8x128xf32>
    %199 = arith.addf %197, %198 : vector<8x128xf32>
    %200 = arith.addf %143, %199 : vector<8x128xf32>
    %c0_71 = arith.constant 0 : index
    %c0_72 = arith.constant 0 : index
    %c0_73 = arith.constant 0 : index
    %201 = vector.load %arg11[%c0_71, %c0_72, %c0_73] : memref<1x8x128xf32, #tpu.memory_space<vmem>>, vector<1x8x128xf32>
    %202 = vector.shape_cast %201 : vector<1x8x128xf32> to vector<8x128xf32>
    %203 = vector.shape_cast %200 : vector<8x128xf32> to vector<1x8x128xf32>
    tpu.vector_store %arg11[%c0_71, %c0_72, %c0_73], %203 {strides = array<i32>} : memref<1x8x128xf32, #tpu.memory_space<vmem>>, vector<1x8x128xf32>,
    return
  }
  func.func @transform_0(%arg0: i32) -> (i32, i32, i32) {
    %c0_i32 = arith.constant 0 : i32
    %c0_i32_0 = arith.constant 0 : i32
    %c0_i32_1 = arith.constant 0 : i32
    return %arg0, %c0_i32, %c0_i32_0 : i32, i32, i32
  }
  func.func @transform_1(%arg0: i32) -> (i32, i32) {
    %c0_i32 = arith.constant 0 : i32
    %c0_i32_0 = arith.constant 0 : i32
    %c0_i32_1 = arith.constant 0 : i32
    return %c0_i32, %c0_i32_0 : i32, i32
  }
  func.func @transform_2(%arg0: i32) -> (i32, i32) {
    %c0_i32 = arith.constant 0 : i32
    %c0_i32_0 = arith.constant 0 : i32
    %c0_i32_1 = arith.constant 0 : i32
    return %c0_i32, %c0_i32_0 : i32, i32
  }
  func.func @transform_3(%arg0: i32) -> (i32, i32) {
    %c0_i32 = arith.constant 0 : i32
    %c0_i32_0 = arith.constant 0 : i32
    %c0_i32_1 = arith.constant 0 : i32
    return %c0_i32, %c0_i32_0 : i32, i32
  }
  func.func @transform_4(%arg0: i32) -> (i32, i32) {
    %c0_i32 = arith.constant 0 : i32
    %c0_i32_0 = arith.constant 0 : i32
    %c0_i32_1 = arith.constant 0 : i32
    return %c0_i32, %c0_i32_0 : i32, i32
  }
  func.func @transform_5(%arg0: i32) -> (i32, i32) {
    %c0_i32 = arith.constant 0 : i32
    %c0_i32_0 = arith.constant 0 : i32
    %c0_i32_1 = arith.constant 0 : i32
    return %c0_i32, %c0_i32_0 : i32, i32
  }
  func.func @transform_6(%arg0: i32) -> (i32, i32) {
    %c0_i32 = arith.constant 0 : i32
    %c0_i32_0 = arith.constant 0 : i32
    %c0_i32_1 = arith.constant 0 : i32
    return %c0_i32, %c0_i32_0 : i32, i32
  }
  func.func @transform_7(%arg0: i32) -> (i32, i32) {
    %c0_i32 = arith.constant 0 : i32
    %c0_i32_0 = arith.constant 0 : i32
    %c0_i32_1 = arith.constant 0 : i32
    return %c0_i32, %c0_i32_0 : i32, i32
  }
  func.func @transform_8(%arg0: i32) -> (i32, i32) {
    %c0_i32 = arith.constant 0 : i32
    %c0_i32_0 = arith.constant 0 : i32
    %c0_i32_1 = arith.constant 0 : i32
    return %c0_i32, %c0_i32_0 : i32, i32
  }
  func.func @transform_9(%arg0: i32) -> (i32, i32) {
    %c0_i32 = arith.constant 0 : i32
    %c0_i32_0 = arith.constant 0 : i32
    %c0_i32_1 = arith.constant 0 : i32
    return %c0_i32, %c0_i32_0 : i32, i32
  }
  func.func @transform_10(%arg0: i32) -> (i32, i32, i32) {
    %c0_i32 = arith.constant 0 : i32
    %c0_i32_0 = arith.constant 0 : i32
    %c0_i32_1 = arith.constant 0 : i32
    return %arg0, %c0_i32, %c0_i32_0 : i32, i32, i32
  }
}

module attributes {stable_mosaic.version = 11 : i64} {
  func.func @_stem_kernel(%arg0: i32, %arg1: memref<1x7x64xf32, #tpu.memory_space<vmem>>, %arg2: memref<64x128xf32, #tpu.memory_space<vmem>>, %arg3: memref<1x128xf32, #tpu.memory_space<vmem>>, %arg4: memref<1x128xf32, #tpu.memory_space<vmem>>, %arg5: memref<8x128xf32, #tpu.memory_space<vmem>>, %arg6: memref<2x128xf32, #tpu.memory_space<vmem>>, %arg7: memref<2x128xf32, #tpu.memory_space<vmem>>, %arg8: memref<1x8x128xf32, #tpu.memory_space<vmem>>) attributes {dimension_semantics = [#tpu.dimension_semantics<parallel>], iteration_bounds = array<i64: 2>, scalar_prefetch = 0 : i64, scratch_operands = 0 : i64, tpu.core_type = #tpu.core_type<tc>, window_params = [{transform_indices = @transform_0, window_bounds = array<i64: 1, 7, 64>}, {pipeline_mode = #tpu.pipeline_mode<synchronous>, transform_indices = @transform_1, window_bounds = array<i64: 64, 128>}, {pipeline_mode = #tpu.pipeline_mode<synchronous>, transform_indices = @transform_2, window_bounds = array<i64: 1, 128>}, {pipeline_mode = #tpu.pipeline_mode<synchronous>, transform_indices = @transform_3, window_bounds = array<i64: 1, 128>}, {pipeline_mode = #tpu.pipeline_mode<synchronous>, transform_indices = @transform_4, window_bounds = array<i64: 8, 128>}, {pipeline_mode = #tpu.pipeline_mode<synchronous>, transform_indices = @transform_5, window_bounds = array<i64: 2, 128>}, {pipeline_mode = #tpu.pipeline_mode<synchronous>, transform_indices = @transform_6, window_bounds = array<i64: 2, 128>}, {transform_indices = @transform_7, window_bounds = array<i64: 1, 8, 128>}]} {
    %c0 = arith.constant 0 : index
    %c0_0 = arith.constant 0 : index
    %c0_1 = arith.constant 0 : index
    %0 = vector.load %arg1[%c0, %c0_0, %c0_1] : memref<1x7x64xf32, #tpu.memory_space<vmem>>, vector<1x7x64xf32>
    %1 = vector.shape_cast %0 : vector<1x7x64xf32> to vector<7x64xf32>
    %c0_2 = arith.constant 0 : index
    %c0_3 = arith.constant 0 : index
    %2 = vector.load %arg2[%c0_2, %c0_3] : memref<64x128xf32, #tpu.memory_space<vmem>>, vector<64x128xf32>
    %cst = arith.constant dense<0.000000e+00> : vector<7x128xf32>
    %3 = tpu.matmul %1, %2, %cst {dimension_numbers = #tpu.dot_dimension_numbers<[1], [0], [0], [1], [0, 0, 1, 1], [], []>} : vector<7x64xf32>, vector<64x128xf32>, vector<7x128xf32> -> vector<7x128xf32>
    %c0_4 = arith.constant 0 : index
    %c0_5 = arith.constant 0 : index
    %4 = vector.load %arg3[%c0_4, %c0_5] : memref<1x128xf32, #tpu.memory_space<vmem>>, vector<1x128xf32>
    %5 = vector.broadcast %4 : vector<1x128xf32> to vector<7x128xf32>
    %6 = arith.addf %3, %5 : vector<7x128xf32>
    %c0_6 = arith.constant 0 : index
    %c0_7 = arith.constant 0 : index
    %7 = vector.load %arg4[%c0_6, %c0_7] : memref<1x128xf32, #tpu.memory_space<vmem>>, vector<1x128xf32>
    %8 = tpu.concatenate %7, %6 in 0 : vector<1x128xf32>, vector<7x128xf32> -> vector<8x128xf32>
    %cst_8 = arith.constant 11.3137083 : f32
    %9 = vector.broadcast %cst_8 : f32 to vector<8x128xf32>
    %10 = arith.mulf %8, %9 : vector<8x128xf32>
    %c0_9 = arith.constant 0 : index
    %c0_10 = arith.constant 0 : index
    %11 = vector.load %arg6[%c0_9, %c0_10] : memref<2x128xf32, #tpu.memory_space<vmem>>, vector<2x128xf32>
    %c0_11 = arith.constant 0 : index
    %c0_12 = arith.constant 0 : index
    %12 = vector.load %arg7[%c0_11, %c0_12] : memref<2x128xf32, #tpu.memory_space<vmem>>, vector<2x128xf32>
    %13 = vector.extract_strided_slice %11 {offsets = [0, 0], sizes = [1, 128], strides = [1, 1]} : vector<2x128xf32> to vector<1x128xf32>
    %14 = vector.extract_strided_slice %11 {offsets = [1, 0], sizes = [1, 128], strides = [1, 1]} : vector<2x128xf32> to vector<1x128xf32>
    %cst_13 = arith.constant dense<0.000000e+00> : vector<8xf32>
    %15 = vector.multi_reduction <add>, %10, %cst_13 [1] : vector<8x128xf32> to vector<8xf32>
    %16 = vector.shape_cast %15 : vector<8xf32> to vector<8x1xf32>
    %cst_14 = arith.constant 1.280000e+02 : f32
    %17 = vector.broadcast %cst_14 : f32 to vector<8x1xf32>
    %18 = arith.divf %16, %17 : vector<8x1xf32>
    %19 = vector.broadcast %18 : vector<8x1xf32> to vector<8x128xf32>
    %20 = arith.subf %10, %19 : vector<8x128xf32>
    %21 = arith.mulf %20, %20 : vector<8x128xf32>
    %cst_15 = arith.constant dense<0.000000e+00> : vector<8xf32>
    %22 = vector.multi_reduction <add>, %21, %cst_15 [1] : vector<8x128xf32> to vector<8xf32>
    %23 = vector.shape_cast %22 : vector<8xf32> to vector<8x1xf32>
    %cst_16 = arith.constant 1.280000e+02 : f32
    %24 = vector.broadcast %cst_16 : f32 to vector<8x1xf32>
    %25 = arith.divf %23, %24 : vector<8x1xf32>
    %cst_17 = arith.constant 9.99999974E-6 : f32
    %26 = vector.broadcast %cst_17 : f32 to vector<8x1xf32>
    %27 = arith.addf %25, %26 : vector<8x1xf32>
    %28 = math.rsqrt %27 : vector<8x1xf32>
    %29 = vector.broadcast %28 : vector<8x1xf32> to vector<8x128xf32>
    %30 = arith.mulf %20, %29 : vector<8x128xf32>
    %31 = vector.broadcast %13 : vector<1x128xf32> to vector<8x128xf32>
    %32 = arith.mulf %30, %31 : vector<8x128xf32>
    %33 = vector.broadcast %14 : vector<1x128xf32> to vector<8x128xf32>
    %34 = arith.addf %32, %33 : vector<8x128xf32>
    %c0_18 = arith.constant 0 : index
    %c0_19 = arith.constant 0 : index
    %35 = vector.load %arg5[%c0_18, %c0_19] : memref<8x128xf32, #tpu.memory_space<vmem>>, vector<8x128xf32>
    %36 = arith.addf %34, %35 : vector<8x128xf32>
    %37 = vector.extract_strided_slice %12 {offsets = [0, 0], sizes = [1, 128], strides = [1, 1]} : vector<2x128xf32> to vector<1x128xf32>
    %38 = vector.extract_strided_slice %12 {offsets = [1, 0], sizes = [1, 128], strides = [1, 1]} : vector<2x128xf32> to vector<1x128xf32>
    %cst_20 = arith.constant dense<0.000000e+00> : vector<8xf32>
    %39 = vector.multi_reduction <add>, %36, %cst_20 [1] : vector<8x128xf32> to vector<8xf32>
    %40 = vector.shape_cast %39 : vector<8xf32> to vector<8x1xf32>
    %cst_21 = arith.constant 1.280000e+02 : f32
    %41 = vector.broadcast %cst_21 : f32 to vector<8x1xf32>
    %42 = arith.divf %40, %41 : vector<8x1xf32>
    %43 = vector.broadcast %42 : vector<8x1xf32> to vector<8x128xf32>
    %44 = arith.subf %36, %43 : vector<8x128xf32>
    %45 = arith.mulf %44, %44 : vector<8x128xf32>
    %cst_22 = arith.constant dense<0.000000e+00> : vector<8xf32>
    %46 = vector.multi_reduction <add>, %45, %cst_22 [1] : vector<8x128xf32> to vector<8xf32>
    %47 = vector.shape_cast %46 : vector<8xf32> to vector<8x1xf32>
    %cst_23 = arith.constant 1.280000e+02 : f32
    %48 = vector.broadcast %cst_23 : f32 to vector<8x1xf32>
    %49 = arith.divf %47, %48 : vector<8x1xf32>
    %cst_24 = arith.constant 9.99999974E-6 : f32
    %50 = vector.broadcast %cst_24 : f32 to vector<8x1xf32>
    %51 = arith.addf %49, %50 : vector<8x1xf32>
    %52 = math.rsqrt %51 : vector<8x1xf32>
    %53 = vector.broadcast %52 : vector<8x1xf32> to vector<8x128xf32>
    %54 = arith.mulf %44, %53 : vector<8x128xf32>
    %55 = vector.broadcast %37 : vector<1x128xf32> to vector<8x128xf32>
    %56 = arith.mulf %54, %55 : vector<8x128xf32>
    %57 = vector.broadcast %38 : vector<1x128xf32> to vector<8x128xf32>
    %58 = arith.addf %56, %57 : vector<8x128xf32>
    %c0_25 = arith.constant 0 : index
    %c0_26 = arith.constant 0 : index
    %c0_27 = arith.constant 0 : index
    %59 = vector.load %arg8[%c0_25, %c0_26, %c0_27] : memref<1x8x128xf32, #tpu.memory_space<vmem>>, vector<1x8x128xf32>
    %60 = vector.shape_cast %59 : vector<1x8x128xf32> to vector<8x128xf32>
    %61 = vector.shape_cast %58 : vector<8x128xf32> to vector<1x8x128xf32>
    tpu.vector_store %arg8[%c0_25, %c0_26, %c0_27], %61 {strides = array<i32>} : memref<1x8x128xf32, #tpu.memory_space<vmem>>, vector<1x8x128xf32>,
    return
  }
  func.func @transform_0(%arg0: i32) -> (i32, i32, i32) {
    %c0_i32 = arith.constant 0 : i32
    %c0_i32_0 = arith.constant 0 : i32
    %c0_i32_1 = arith.constant 0 : i32
    return %arg0, %c0_i32, %c0_i32_0 : i32, i32, i32
  }
  func.func @transform_1(%arg0: i32) -> (i32, i32) {
    %c0_i32 = arith.constant 0 : i32
    %c0_i32_0 = arith.constant 0 : i32
    %c0_i32_1 = arith.constant 0 : i32
    return %c0_i32, %c0_i32_0 : i32, i32
  }
  func.func @transform_2(%arg0: i32) -> (i32, i32) {
    %c0_i32 = arith.constant 0 : i32
    %c0_i32_0 = arith.constant 0 : i32
    %c0_i32_1 = arith.constant 0 : i32
    return %c0_i32, %c0_i32_0 : i32, i32
  }
  func.func @transform_3(%arg0: i32) -> (i32, i32) {
    %c0_i32 = arith.constant 0 : i32
    %c0_i32_0 = arith.constant 0 : i32
    %c0_i32_1 = arith.constant 0 : i32
    return %c0_i32, %c0_i32_0 : i32, i32
  }
  func.func @transform_4(%arg0: i32) -> (i32, i32) {
    %c0_i32 = arith.constant 0 : i32
    %c0_i32_0 = arith.constant 0 : i32
    %c0_i32_1 = arith.constant 0 : i32
    return %c0_i32, %c0_i32_0 : i32, i32
  }
  func.func @transform_5(%arg0: i32) -> (i32, i32) {
    %c0_i32 = arith.constant 0 : i32
    %c0_i32_0 = arith.constant 0 : i32
    %c0_i32_1 = arith.constant 0 : i32
    return %c0_i32, %c0_i32_0 : i32, i32
  }
  func.func @transform_6(%arg0: i32) -> (i32, i32) {
    %c0_i32 = arith.constant 0 : i32
    %c0_i32_0 = arith.constant 0 : i32
    %c0_i32_1 = arith.constant 0 : i32
    return %c0_i32, %c0_i32_0 : i32, i32
  }
  func.func @transform_7(%arg0: i32) -> (i32, i32, i32) {
    %c0_i32 = arith.constant 0 : i32
    %c0_i32_0 = arith.constant 0 : i32
    %c0_i32_1 = arith.constant 0 : i32
    return %arg0, %c0_i32, %c0_i32_0 : i32, i32, i32
  }
}

</mosaic_0001>

<llo_original>
// kernel: emo_model_forward.9
$region0: #{emo_model_forward.9}
  #allocation0 [shape = 'u32[]', space=smem, size = 0x4, offset = 0x4, fixed_abs, tag = 'smem constant byte address 0x4 - core index']
  #allocation1 [shape = 'u32[144,128]{1,0:T(1,128)}', space=vmem, size = 0x12000, scoped, tag = 'internal scratch']
  %s0 = inlined_call_operand.vmem [shape: f32[2,7,128], index: 0, kind: input, shape index: {}]
  %s1 = inlined_call_operand.vmem [shape: f32[128,128], index: 1, kind: input, shape index: {}]
  %s2 = inlined_call_operand.vmem [shape: f32[1,128], index: 2, kind: input, shape index: {}]
  %s3 = inlined_call_operand.vmem [shape: f32[1,128], index: 3, kind: input, shape index: {}]
  %s4 = inlined_call_operand.vmem [shape: f32[8,128], index: 4, kind: input, shape index: {}]
  %s5 = inlined_call_operand.vmem [shape: f32[2,128], index: 5, kind: input, shape index: {}]
  %s6 = inlined_call_operand.vmem [shape: f32[2,128], index: 6, kind: input, shape index: {}]
  %s7 = inlined_call_operand.vmem [shape: f32[2,8,128], index: 7, kind: output, shape index: {}]
  %s8 = sld [smem:[#allocation0]]
  $region61: #{emo_model_forward.9} parent=0
    _
  %s10 = ssub.s32 1, %s8
  %s11 = scalar_select 0, %s10, %s8
  loop: start=0, step=1, limit=4
  $region2: #{emo_model_forward.9} parent=0 // loop_pre_header
    _
  $region3: #{emo_model_forward.9} parent=0 // loop_header
    %s13 = sphi 0, %s17
    %p14 = scmp.ge.s32.totalorder %s13, 4
    %s23 = sphi 0, %s25
    %s26 = sphi 0, %s23
    %s27 = sphi 0, %s26
    %s43 = sphi 0, %s27
    %s47 = sphi 0, %s47
    %s49 = sphi 0, %s47
    %s50 = sphi 0, %s49
    %s64 = sphi 0, %s50
    %s68 = sphi 0, %s68
    %s70 = sphi 0, %s68
    %s71 = sphi 0, %s70
    %s85 = sphi 0, %s71
    %s89 = sphi 0, %s89
    %s91 = sphi 0, %s89
    %s92 = sphi 0, %s91
    %s106 = sphi 0, %s92
    %s110 = sphi 0, %s110
    %s112 = sphi 0, %s110
    %s113 = sphi 0, %s112
    %s127 = sphi 0, %s113
    %s131 = sphi 0, %s131
    %s133 = sphi 0, %s131
    %s134 = sphi 0, %s133
    %s148 = sphi 0, %s134
    %s152 = sphi 0, %s152
    %s154 = sphi 0, %s152
    %s155 = sphi 0, %s154
    %s169 = sphi 0, %s155
    %s175 = sphi 0, %s177
    %s178 = sphi 0, %s175
    %s179 = sphi 0, %s178
    %s195 = sphi 0, %s179
  $region4: #{emo_model_forward.9} parent=0 // loop_header_branch
    %16 = sbr.rel (%p14) target = $region8
  $region5: #{emo_model_forward.9} parent=0 // loop_body
    %s18 = ssub.s32 %s13, 1
    %s19 = ssub.s32 %s13, 2
    %s20 = sadd.s32 %s13, 1
    %s21 = ssub.s32 %s13, %s20
    %p22 = scmp.eq.s32.totalorder %s21, 0
    %s24 = sadd.s32 %s23, 1
    %s25 = scalar_select %p22, %s23, %s24
    %p28 = pneg %p22
    %p29 = scmp.eq.s32.totalorder %s13, 1
    %p30 = por %p28, %p29
    %p31 = scmp.ne.s32.totalorder %s23, %s26
    %p32 = scmp.eq.s32.totalorder %s13, 0
    %p33 = por %p31, %p32
    %p34 = scmp.ne.s32.totalorder %s23, %s26
    %p35 = scmp.eq.s32.totalorder %s18, 1
    %p36 = por %p34, %p35
    %p37 = scmp.ne.s32.totalorder %s26, %s27
    %p38 = scmp.eq.s32.totalorder %s18, 0
    %p39 = por %p37, %p38
    %p40 = scmp.ne.s32.totalorder %s26, %s27
    %p41 = scmp.eq.s32.totalorder %s19, 1
    %p42 = por %p40, %p41
    %p44 = scmp.ne.s32.totalorder %s27, %s43
    %p45 = scmp.eq.s32.totalorder %s19, 0
    %p46 = por %p44, %p45
    %s48 = sadd.s32 %s47, 1
    %p51 = scmp.eq.s32.totalorder %s13, 1
    %p52 = scmp.ne.s32.totalorder %s47, %s49
    %p53 = scmp.eq.s32.totalorder %s13, 0
    %p54 = por %p52, %p53
    %p55 = scmp.ne.s32.totalorder %s47, %s49
    %p56 = scmp.eq.s32.totalorder %s18, 1
    %p57 = por %p55, %p56
    %p58 = scmp.ne.s32.totalorder %s49, %s50
    %p59 = scmp.eq.s32.totalorder %s18, 0
    %p60 = por %p58, %p59
    %p61 = scmp.ne.s32.totalorder %s49, %s50
    %p62 = scmp.eq.s32.totalorder %s19, 1
    %p63 = por %p61, %p62
    %p65 = scmp.ne.s32.totalorder %s50, %s64
    %p66 = scmp.eq.s32.totalorder %s19, 0
    %p67 = por %p65, %p66
    %s69 = sadd.s32 %s68, 1
    %p72 = scmp.eq.s32.totalorder %s13, 1
    %p73 = scmp.ne.s32.totalorder %s68, %s70
    %p74 = scmp.eq.s32.totalorder %s13, 0
    %p75 = por %p73, %p74
    %p76 = scmp.ne.s32.totalorder %s68, %s70
    %p77 = scmp.eq.s32.totalorder %s18, 1
    %p78 = por %p76, %p77
    %p79 = scmp.ne.s32.totalorder %s70, %s71
    %p80 = scmp.eq.s32.totalorder %s18, 0
    %p81 = por %p79, %p80
    %p82 = scmp.ne.s32.totalorder %s70, %s71
    %p83 = scmp.eq.s32.totalorder %s19, 1
    %p84 = por %p82, %p83
    %p86 = scmp.ne.s32.totalorder %s71, %s85
    %p87 = scmp.eq.s32.totalorder %s19, 0
    %p88 = por %p86, %p87
    %s90 = sadd.s32 %s89, 1
    %p93 = scmp.eq.s32.totalorder %s13, 1
    %p94 = scmp.ne.s32.totalorder %s89, %s91
    %p95 = scmp.eq.s32.totalorder %s13, 0
    %p96 = por %p94, %p95
    %p97 = scmp.ne.s32.totalorder %s89, %s91
    %p98 = scmp.eq.s32.totalorder %s18, 1
    %p99 = por %p97, %p98
    %p100 = scmp.ne.s32.totalorder %s91, %s92
    %p101 = scmp.eq.s32.totalorder %s18, 0
    %p102 = por %p100, %p101
    %p103 = scmp.ne.s32.totalorder %s91, %s92
    %p104 = scmp.eq.s32.totalorder %s19, 1
    %p105 = por %p103, %p104
    %p107 = scmp.ne.s32.totalorder %s92, %s106
    %p108 = scmp.eq.s32.totalorder %s19, 0
    %p109 = por %p107, %p108
    %s111 = sadd.s32 %s110, 1
    %p114 = scmp.eq.s32.totalorder %s13, 1
    %p115 = scmp.ne.s32.totalorder %s110, %s112
    %p116 = scmp.eq.s32.totalorder %s13, 0
    %p117 = por %p115, %p116
    %p118 = scmp.ne.s32.totalorder %s110, %s112
    %p119 = scmp.eq.s32.totalorder %s18, 1
    %p120 = por %p118, %p119
    %p121 = scmp.ne.s32.totalorder %s112, %s113
    %p122 = scmp.eq.s32.totalorder %s18, 0
    %p123 = por %p121, %p122
    %p124 = scmp.ne.s32.totalorder %s112, %s113
    %p125 = scmp.eq.s32.totalorder %s19, 1
    %p126 = por %p124, %p125
    %p128 = scmp.ne.s32.totalorder %s113, %s127
    %p129 = scmp.eq.s32.totalorder %s19, 0
    %p130 = por %p128, %p129
    %s132 = sadd.s32 %s131, 1
    %p135 = scmp.eq.s32.totalorder %s13, 1
    %p136 = scmp.ne.s32.totalorder %s131, %s133
    %p137 = scmp.eq.s32.totalorder %s13, 0
    %p138 = por %p136, %p137
    %p139 = scmp.ne.s32.totalorder %s131, %s133
    %p140 = scmp.eq.s32.totalorder %s18, 1
    %p141 = por %p139, %p140
    %p142 = scmp.ne.s32.totalorder %s133, %s134
    %p143 = scmp.eq.s32.totalorder %s18, 0
    %p144 = por %p142, %p143
    %p145 = scmp.ne.s32.totalorder %s133, %s134
    %p146 = scmp.eq.s32.totalorder %s19, 1
    %p147 = por %p145, %p146
    %p149 = scmp.ne.s32.totalorder %s134, %s148
    %p150 = scmp.eq.s32.totalorder %s19, 0
    %p151 = por %p149, %p150
    %s153 = sadd.s32 %s152, 1
    %p156 = scmp.eq.s32.totalorder %s13, 1
    %p157 = scmp.ne.s32.totalorder %s152, %s154
    %p158 = scmp.eq.s32.totalorder %s13, 0
    %p159 = por %p157, %p158
    %p160 = scmp.ne.s32.totalorder %s152, %s154
    %p161 = scmp.eq.s32.totalorder %s18, 1
    %p162 = por %p160, %p161
    %p163 = scmp.ne.s32.totalorder %s154, %s155
    %p164 = scmp.eq.s32.totalorder %s18, 0
    %p165 = por %p163, %p164
    %p166 = scmp.ne.s32.totalorder %s154, %s155
    %p167 = scmp.eq.s32.totalorder %s19, 1
    %p168 = por %p166, %p167
    %p170 = scmp.ne.s32.totalorder %s155, %s169
    %p171 = scmp.eq.s32.totalorder %s19, 0
    %p172 = por %p170, %p171
    %s173 = ssub.s32 %s13, %s20
    %p174 = scmp.eq.s32.totalorder %s173, 0
    %s176 = sadd.s32 %s175, 1
    %s177 = scalar_select %p174, %s175, %s176
    %p180 = pneg %p174
    %p181 = scmp.eq.s32.totalorder %s13, 1
    %p182 = por %p180, %p181
    %p183 = scmp.ne.s32.totalorder %s175, %s178
    %p184 = scmp.eq.s32.totalorder %s13, 0
    %p185 = por %p183, %p184
    %p186 = scmp.ne.s32.totalorder %s175, %s178
    %p187 = scmp.eq.s32.totalorder %s18, 1
    %p188 = por %p186, %p187
    %p189 = scmp.ne.s32.totalorder %s178, %s179
    %p190 = scmp.eq.s32.totalorder %s18, 0
    %p191 = por %p189, %p190
    %p192 = scmp.ne.s32.totalorder %s178, %s179
    %p193 = scmp.eq.s32.totalorder %s19, 1
    %p194 = por %p192, %p193
    %p196 = scmp.ne.s32.totalorder %s179, %s195
    %p197 = scmp.eq.s32.totalorder %s19, 0
    %p198 = por %p196, %p197
    %p199 = scmp.le.s32.totalorder 1, %s13
    %p200 = scmp.lt.s32.totalorder %s13, 3
    %p201 = pnand %p199, %p200
    %p202 = pneg %p201
    // Predicated region
    $region9: #{emo_model_forward.9} parent=5 // pred_check
      _
    $region10: #{emo_model_forward.9} parent=5 // pred_check_branch
      %204 = sbr.rel (%p201) target = $region12
    $region11: #{emo_model_forward.9} parent=5 // pred_region
      %s205 = ssub.s32 %s13, 1
      // Predicated region
      $region13: #{emo_model_forward.9} parent=11 // pred_check
        %p206 = pneg %p60
      $region14: #{emo_model_forward.9} parent=11 // pred_check_branch
        %208 = sbr.rel (%p206) target = $region16
      $region15: #{emo_model_forward.9} parent=11 // pred_region
        _
      $region16: #{emo_model_forward.9} parent=11 // pred_fallthru
        _
      // Predicated region
      $region17: #{emo_model_forward.9} parent=11 // pred_check
        %p209 = pneg %p81
      $region18: #{emo_model_forward.9} parent=11 // pred_check_branch
        %211 = sbr.rel (%p209) target = $region20
      $region19: #{emo_model_forward.9} parent=11 // pred_region
        _
      $region20: #{emo_model_forward.9} parent=11 // pred_fallthru
        _
      // Predicated region
      $region21: #{emo_model_forward.9} parent=11 // pred_check
        %p212 = pneg %p102
      $region22: #{emo_model_forward.9} parent=11 // pred_check_branch
        %214 = sbr.rel (%p212) target = $region24
      $region23: #{emo_model_forward.9} parent=11 // pred_region
        _
      $region24: #{emo_model_forward.9} parent=11 // pred_fallthru
        _
      // Predicated region
      $region25: #{emo_model_forward.9} parent=11 // pred_check
        %p215 = pneg %p123
      $region26: #{emo_model_forward.9} parent=11 // pred_check_branch
        %217 = sbr.rel (%p215) target = $region28
      $region27: #{emo_model_forward.9} parent=11 // pred_region
        _
      $region28: #{emo_model_forward.9} parent=11 // pred_fallthru
        _
      // Predicated region
      $region29: #{emo_model_forward.9} parent=11 // pred_check
        %p218 = pneg %p144
      $region30: #{emo_model_forward.9} parent=11 // pred_check_branch
        %220 = sbr.rel (%p218) target = $region32
      $region31: #{emo_model_forward.9} parent=11 // pred_region
        _
      $region32: #{emo_model_forward.9} parent=11 // pred_fallthru
        _
      // Predicated region
      $region33: #{emo_model_forward.9} parent=11 // pred_check
        %p221 = pneg %p165
      $region34: #{emo_model_forward.9} parent=11 // pred_check_branch
        %223 = sbr.rel (%p221) target = $region36
      $region35: #{emo_model_forward.9} parent=11 // pred_region
        _
      $region36: #{emo_model_forward.9} parent=11 // pred_fallthru
        _
    $region12: #{emo_model_forward.9} parent=5 // pred_fallthru
      _
    %p224 = scmp.lt.s32.totalorder %s13, 2
    // Predicated region
    $region37: #{emo_model_forward.9} parent=5 // pred_check
      %p225 = pneg %p224
    $region38: #{emo_model_forward.9} parent=5 // pred_check_branch
      %227 = sbr.rel (%p225) target = $region40
    $region39: #{emo_model_forward.9} parent=5 // pred_region
      // Predicated region
      $region41: #{emo_model_forward.9} parent=39 // pred_check
        %p228 = pneg %p33
      $region42: #{emo_model_forward.9} parent=39 // pred_check_branch
        %230 = sbr.rel (%p228) target = $region44
      $region43: #{emo_model_forward.9} parent=39 // pred_region
        %p231 = scmp.lt.s32.totalorder %s13, 1
        %s232 = scalar_select %p231, %s13, 1
        %s233 = smul.addr %s232, 8
        %s234 = scalar_lea.vmem %s0, %s233
      $region44: #{emo_model_forward.9} parent=39 // pred_fallthru
        _
    $region40: #{emo_model_forward.9} parent=5 // pred_fallthru
      _
    %p235 = scmp.le.s32.totalorder 1, %s13
    %p236 = scmp.lt.s32.totalorder %s13, 3
    %p237 = pnand %p235, %p236
    %p238 = pneg %p237
    // Predicated region
    $region45: #{emo_model_forward.9} parent=5 // pred_check
      _
    $region46: #{emo_model_forward.9} parent=5 // pred_check_branch
      %240 = sbr.rel (%p237) target = $region48
    $region47: #{emo_model_forward.9} parent=5 // pred_region
      %s241 = ssub.s32 %s13, 1
      %p242 = scmp.lt.s32.totalorder %s18, 1
      %s243 = scalar_select %p242, %s18, 1
      %s244 = smul.addr %s243, 8
      %s245 = scalar_lea.vmem %s0, %s244
      %p246 = pneg %p39
      %p247 = pneg %p36
      %p248 = pneg %p60
      %p249 = pneg %p57
      %p250 = pneg %p81
      %p251 = pneg %p78
      %p252 = pneg %p102
      %p253 = pneg %p99
      %p254 = pneg %p123
      %p255 = pneg %p120
      %p256 = pneg %p144
      %p257 = pneg %p141
      %p258 = pneg %p165
      %p259 = pneg %p162
      %p260 = pneg %p191
      %p261 = pneg %p188
      %p262 = scmp.lt.s32.totalorder %s18, 1
      %s263 = scalar_select %p262, %s18, 1
      %s264 = smul.addr %s263, 8
      %s265 = scalar_lea.vmem %s7, %s264
      %p266 = scmp.lt.s32.totalorder %s18, 1
      %s267 = scalar_select %p266, %s18, 1
      %s268 = smul.addr %s267, 8
      %s269 = scalar_lea.vmem %s0, %s268
      %p270 = scmp.lt.s32.totalorder %s18, 1
      %s271 = scalar_select %p270, %s18, 1
      %s272 = smul.addr %s271, 8
      %s273 = scalar_lea.vmem %s7, %s272
      %v274 = vld [vmem:[%s269] sm:$0x7f]
      %v275 = vld [vmem:[%s1] sm:$0xff]
      %v276 = vld [vmem:[%s1 + $0x8] sm:$0xff]
      %v277 = vld [vmem:[%s1 + $0x10] sm:$0xff]
      %v278 = vld [vmem:[%s1 + $0x18] sm:$0xff]
      %v279 = vld [vmem:[%s1 + $0x20] sm:$0xff]
      %v280 = vld [vmem:[%s1 + $0x28] sm:$0xff]
      %v281 = vld [vmem:[%s1 + $0x30] sm:$0xff]
      %v282 = vld [vmem:[%s1 + $0x38] sm:$0xff]
      %v283 = vld [vmem:[%s1 + $0x40] sm:$0xff]
      %v284 = vld [vmem:[%s1 + $0x48] sm:$0xff]
      %v285 = vld [vmem:[%s1 + $0x50] sm:$0xff]
      %v286 = vld [vmem:[%s1 + $0x58] sm:$0xff]
      %v287 = vld [vmem:[%s1 + $0x60] sm:$0xff]
      %v288 = vld [vmem:[%s1 + $0x68] sm:$0xff]
      %v289 = vld [vmem:[%s1 + $0x70] sm:$0xff]
      %v290 = vld [vmem:[%s1 + $0x78] sm:$0xff]
      %v291 = vld [vmem:[%s2] sm:$0x1]
      %v293 = vlaneseq
      %v294 = vshrl.u32 %v293, 7
      %v295 = vsub.s32 0, %v294
      %v296 = vrot.slane %v291, %v295
      %298 = vmatprep.subr.mxu0 0.0
      %299 = vmatpush1.msra.mxu0 %v275
      %300 = vmatprep.subr.mxu0 0.0
      %301 = vmatpush1.msra.mxu0 %v276
      %302 = vmatprep.subr.mxu0 0.0
      %303 = vmatpush1.msra.mxu0 %v277
      %304 = vmatprep.subr.mxu0 0.0
      %305 = vmatpush1.msra.mxu0 %v278
      %306 = vmatprep.subr.mxu0 0.0
      %307 = vmatpush1.msra.mxu0 %v279
      %308 = vmatprep.subr.mxu0 0.0
      %309 = vmatpush1.msra.mxu0 %v280
      %310 = vmatprep.subr.mxu0 0.0
      %311 = vmatpush1.msra.mxu0 %v281
      %312 = vmatprep.subr.mxu0 0.0
      %313 = vmatpush1.msra.mxu0 %v282
      %314 = vmatprep.subr.mxu0 0.0
      %315 = vmatpush1.msra.mxu0 %v283
      %316 = vmatprep.subr.mxu0 0.0
      %317 = vmatpush1.msra.mxu0 %v284
      %318 = vmatprep.subr.mxu0 0.0
      %319 = vmatpush1.msra.mxu0 %v285
      %320 = vmatprep.subr.mxu0 0.0
      %321 = vmatpush1.msra.mxu0 %v286
      %322 = vmatprep.subr.mxu0 0.0
      %323 = vmatpush1.msra.mxu0 %v287
      %324 = vmatprep.subr.mxu0 0.0
      %325 = vmatpush1.msra.mxu0 %v288
      %326 = vmatprep.subr.mxu0 0.0
      %327 = vmatpush1.msra.mxu0 %v289
      %328 = vmatprep.subr.mxu0 0.0
      %329 = vmatpush1.msra.mxu0 %v290
      %330 = vmatprep.subr.mxu0 0.0
      %331 = vmatpush1.msra.mxu0 0.0
      %332 = vmatprep.subr.mxu0 0.0
      %333 = vmatpush1.msra.mxu0 0.0
      %334 = vmatprep.subr.mxu0 0.0
      %335 = vmatpush1.msra.mxu0 0.0
      %336 = vmatprep.subr.mxu0 0.0
      %337 = vmatpush1.msra.mxu0 0.0
      %338 = vmatprep.subr.mxu0 0.0
      %339 = vmatpush1.msra.mxu0 0.0
      %340 = vmatprep.subr.mxu0 0.0
      %341 = vmatpush1.msra.mxu0 0.0
      %342 = vmatprep.subr.mxu0 0.0
      %343 = vmatpush1.msra.mxu0 0.0
      %344 = vmatprep.subr.mxu0 0.0
      %345 = vmatpush1.msra.mxu0 0.0
      %346 = vmatprep.subr.mxu0 0.0
      %347 = vmatpush1.msra.mxu0 0.0
      %348 = vmatprep.subr.mxu0 0.0
      %349 = vmatpush1.msra.mxu0 0.0
      %350 = vmatprep.subr.mxu0 0.0
      %351 = vmatpush1.msra.mxu0 0.0
      %352 = vmatprep.subr.mxu0 0.0
      %353 = vmatpush1.msra.mxu0 0.0
      %354 = vmatprep.subr.mxu0 0.0
      %355 = vmatpush1.msra.mxu0 0.0
      %356 = vmatprep.subr.mxu0 0.0
      %357 = vmatpush1.msra.mxu0 0.0
      %358 = vmatprep.subr.mxu0 0.0
      %359 = vmatpush1.msra.mxu0 0.0
      %360 = vmatprep.subr.mxu0 0.0
      %361 = vmatpush1.msra.mxu0 0.0
      %362 = vmatprep.mubr.f32.mxu0 0.0
      %363 = vmatmul.mubr.f32.gmra.mrb[0].mxu0 %v274
      %v364 = vpop.f32.mrb[0].mxu0
      %v365 = vadd.f32 %v296, %v364
      %v366 = vpop.f32.mrb[0].mxu0
      %367 = vdwg.mxu0
      %v368 = vld [vmem:[%s3] sm:$0x1]
      %v370 = vrot.slane %v365, 7
      %vm372 = vcmask 1040384
      %v373 = vsel %vm372, %v368, %v370
      %v374 = vmul.f32 %v373, 11.313708
      %v375 = vld [vmem:[%s5] sm:$0x3]
      %v376 = vld [vmem:[%s6] sm:$0x3]
      %377 = vadd.xlane.f32.xlu0 %v374
      %v378 = vpop.xlane.xlu0 %377
      %v379 = vrcp.pop 128.0
      %v380 = vmul.f32 %v378, %v379
      %v381 = vsub.f32 %v374, %v380
      %v382 = vmul.f32 %v381, %v381
      %383 = vadd.xlane.f32.xlu0 %v382
      %v384 = vpop.xlane.xlu0 %383
      %v385 = vmul.f32 %v384, %v379
      %v386 = vadd.f32 %v385, 1e-05
      %v387 = vrsqrt.pop %v386
      %v388 = vmul.f32 %v381, %v387
      %v389 = vlaneseq
      %v390 = vshrl.u32 %v389, 7
      %v391 = vsub.s32 0, %v390
      %v392 = vrot.slane %v375, %v391
      %v393 = vmul.f32 %v388, %v392
      %v394 = vlaneseq
      %v395 = vshrl.u32 %v394, 7
      %v396 = vsub.s32 1, %v395
      %v397 = vrot.slane %v375, %v396
      %v398 = vadd.f32 %v393, %v397
      %v399 = vld [vmem:[%s4] sm:$0xff]
      %v400 = vadd.f32 %v398, %v399
      %401 = vadd.xlane.f32.xlu0 %v400
      %v402 = vpop.xlane.xlu0 %401
      %v403 = vmul.f32 %v402, %v379
      %v404 = vsub.f32 %v400, %v403
      %v405 = vmul.f32 %v404, %v404
      %406 = vadd.xlane.f32.xlu0 %v405
      %v407 = vpop.xlane.xlu0 %406
      %v408 = vmul.f32 %v407, %v379
      %v409 = vadd.f32 %v408, 1e-05
      %v410 = vrsqrt.pop %v409
      %v411 = vmul.f32 %v404, %v410
      %v412 = vlaneseq
      %v413 = vshrl.u32 %v412, 7
      %v414 = vsub.s32 0, %v413
      %v415 = vrot.slane %v376, %v414
      %v416 = vmul.f32 %v411, %v415
      %v417 = vlaneseq
      %v418 = vshrl.u32 %v417, 7
      %v419 = vsub.s32 1, %v418
      %v420 = vrot.slane %v376, %v419
      %v421 = vadd.f32 %v416, %v420
      %422 = vst [vmem:[%s273] sm:$0xff] %v421
      %p423 = scmp.lt.s32.totalorder %s18, 1
      %s424 = scalar_select %p423, %s18, 1
      %s425 = smul.addr %s424, 8
      %s426 = scalar_lea.vmem %s7, %s425
      // Predicated region
      $region49: #{emo_model_forward.9} parent=47 // pred_check
        %p427 = pneg %p188
      $region50: #{emo_model_forward.9} parent=47 // pred_check_branch
        %429 = sbr.rel (%p427) target = $region52
      $region51: #{emo_model_forward.9} parent=47 // pred_region
        _
      $region52: #{emo_model_forward.9} parent=47 // pred_fallthru
        _
    $region48: #{emo_model_forward.9} parent=5 // pred_fallthru
      _
    %p430 = scmp.le.s32.totalorder 2, %s13
    // Predicated region
    $region53: #{emo_model_forward.9} parent=5 // pred_check
      %p431 = pneg %p430
    $region54: #{emo_model_forward.9} parent=5 // pred_check_branch
      %433 = sbr.rel (%p431) target = $region56
    $region55: #{emo_model_forward.9} parent=5 // pred_region
      %s434 = ssub.s32 %s13, 2
      // Predicated region
      $region57: #{emo_model_forward.9} parent=55 // pred_check
        %p435 = pneg %p194
      $region58: #{emo_model_forward.9} parent=55 // pred_check_branch
        %437 = sbr.rel (%p435) target = $region60
      $region59: #{emo_model_forward.9} parent=55 // pred_region
        %p438 = scmp.lt.s32.totalorder %s19, 1
        %s439 = scalar_select %p438, %s19, 1
        %s440 = smul.addr %s439, 8
        %s441 = scalar_lea.vmem %s7, %s440
      $region60: #{emo_model_forward.9} parent=55 // pred_fallthru
        _
    $region56: #{emo_model_forward.9} parent=5 // pred_fallthru
      _
  $region6: #{emo_model_forward.9} parent=0 // loop_footer
    %s17 = sadd.s32 1, %s13
  $region7: #{emo_model_forward.9} parent=0 // loop_footer_branch
    %12 = sbr.rel target = $region3
  $region8: #{emo_model_forward.9} parent=0 // loop_exit
    _

// kernel: emo_model_forward.7
$region0: #{emo_model_forward.7}
  #allocation0 [shape = 'u32[]', space=smem, size = 0x4, offset = 0x4, fixed_abs, tag = 'smem constant byte address 0x4 - core index']
  #allocation1 [shape = 'u32[144,128]{1,0:T(1,128)}', space=vmem, size = 0x12000, scoped, tag = 'internal scratch']
  %s0 = inlined_call_operand.vmem [shape: f32[2,7,64], index: 0, kind: input, shape index: {}]
  %s1 = inlined_call_operand.vmem [shape: f32[64,128], index: 1, kind: input, shape index: {}]
  %s2 = inlined_call_operand.vmem [shape: f32[1,128], index: 2, kind: input, shape index: {}]
  %s3 = inlined_call_operand.vmem [shape: f32[1,128], index: 3, kind: input, shape index: {}]
  %s4 = inlined_call_operand.vmem [shape: f32[8,128], index: 4, kind: input, shape index: {}]
  %s5 = inlined_call_operand.vmem [shape: f32[2,128], index: 5, kind: input, shape index: {}]
  %s6 = inlined_call_operand.vmem [shape: f32[2,128], index: 6, kind: input, shape index: {}]
  %s7 = inlined_call_operand.vmem [shape: f32[2,8,128], index: 7, kind: output, shape index: {}]
  %s8 = sld [smem:[#allocation0]]
  $region61: #{emo_model_forward.7} parent=0
    _
  %s10 = ssub.s32 1, %s8
  %s11 = scalar_select 0, %s10, %s8
  loop: start=0, step=1, limit=4
  $region2: #{emo_model_forward.7} parent=0 // loop_pre_header
    _
  $region3: #{emo_model_forward.7} parent=0 // loop_header
    %s13 = sphi 0, %s17
    %p14 = scmp.ge.s32.totalorder %s13, 4
    %s23 = sphi 0, %s25
    %s26 = sphi 0, %s23
    %s27 = sphi 0, %s26
    %s43 = sphi 0, %s27
    %s47 = sphi 0, %s47
    %s49 = sphi 0, %s47
    %s50 = sphi 0, %s49
    %s64 = sphi 0, %s50
    %s68 = sphi 0, %s68
    %s70 = sphi 0, %s68
    %s71 = sphi 0, %s70
    %s85 = sphi 0, %s71
    %s89 = sphi 0, %s89
    %s91 = sphi 0, %s89
    %s92 = sphi 0, %s91
    %s106 = sphi 0, %s92
    %s110 = sphi 0, %s110
    %s112 = sphi 0, %s110
    %s113 = sphi 0, %s112
    %s127 = sphi 0, %s113
    %s131 = sphi 0, %s131
    %s133 = sphi 0, %s131
    %s134 = sphi 0, %s133
    %s148 = sphi 0, %s134
    %s152 = sphi 0, %s152
    %s154 = sphi 0, %s152
    %s155 = sphi 0, %s154
    %s169 = sphi 0, %s155
    %s175 = sphi 0, %s177
    %s178 = sphi 0, %s175
    %s179 = sphi 0, %s178
    %s195 = sphi 0, %s179
  $region4: #{emo_model_forward.7} parent=0 // loop_header_branch
    %16 = sbr.rel (%p14) target = $region8
  $region5: #{emo_model_forward.7} parent=0 // loop_body
    %s18 = ssub.s32 %s13, 1
    %s19 = ssub.s32 %s13, 2
    %s20 = sadd.s32 %s13, 1
    %s21 = ssub.s32 %s13, %s20
    %p22 = scmp.eq.s32.totalorder %s21, 0
    %s24 = sadd.s32 %s23, 1
    %s25 = scalar_select %p22, %s23, %s24
    %p28 = pneg %p22
    %p29 = scmp.eq.s32.totalorder %s13, 1
    %p30 = por %p28, %p29
    %p31 = scmp.ne.s32.totalorder %s23, %s26
    %p32 = scmp.eq.s32.totalorder %s13, 0
    %p33 = por %p31, %p32
    %p34 = scmp.ne.s32.totalorder %s23, %s26
    %p35 = scmp.eq.s32.totalorder %s18, 1
    %p36 = por %p34, %p35
    %p37 = scmp.ne.s32.totalorder %s26, %s27
    %p38 = scmp.eq.s32.totalorder %s18, 0
    %p39 = por %p37, %p38
    %p40 = scmp.ne.s32.totalorder %s26, %s27
    %p41 = scmp.eq.s32.totalorder %s19, 1
    %p42 = por %p40, %p41
    %p44 = scmp.ne.s32.totalorder %s27, %s43
    %p45 = scmp.eq.s32.totalorder %s19, 0
    %p46 = por %p44, %p45
    %s48 = sadd.s32 %s47, 1
    %p51 = scmp.eq.s32.totalorder %s13, 1
    %p52 = scmp.ne.s32.totalorder %s47, %s49
    %p53 = scmp.eq.s32.totalorder %s13, 0
    %p54 = por %p52, %p53
    %p55 = scmp.ne.s32.totalorder %s47, %s49
    %p56 = scmp.eq.s32.totalorder %s18, 1
    %p57 = por %p55, %p56
    %p58 = scmp.ne.s32.totalorder %s49, %s50
    %p59 = scmp.eq.s32.totalorder %s18, 0
    %p60 = por %p58, %p59
    %p61 = scmp.ne.s32.totalorder %s49, %s50
    %p62 = scmp.eq.s32.totalorder %s19, 1
    %p63 = por %p61, %p62
    %p65 = scmp.ne.s32.totalorder %s50, %s64
    %p66 = scmp.eq.s32.totalorder %s19, 0
    %p67 = por %p65, %p66
    %s69 = sadd.s32 %s68, 1
    %p72 = scmp.eq.s32.totalorder %s13, 1
    %p73 = scmp.ne.s32.totalorder %s68, %s70
    %p74 = scmp.eq.s32.totalorder %s13, 0
    %p75 = por %p73, %p74
    %p76 = scmp.ne.s32.totalorder %s68, %s70
    %p77 = scmp.eq.s32.totalorder %s18, 1
    %p78 = por %p76, %p77
    %p79 = scmp.ne.s32.totalorder %s70, %s71
    %p80 = scmp.eq.s32.totalorder %s18, 0
    %p81 = por %p79, %p80
    %p82 = scmp.ne.s32.totalorder %s70, %s71
    %p83 = scmp.eq.s32.totalorder %s19, 1
    %p84 = por %p82, %p83
    %p86 = scmp.ne.s32.totalorder %s71, %s85
    %p87 = scmp.eq.s32.totalorder %s19, 0
    %p88 = por %p86, %p87
    %s90 = sadd.s32 %s89, 1
    %p93 = scmp.eq.s32.totalorder %s13, 1
    %p94 = scmp.ne.s32.totalorder %s89, %s91
    %p95 = scmp.eq.s32.totalorder %s13, 0
    %p96 = por %p94, %p95
    %p97 = scmp.ne.s32.totalorder %s89, %s91
    %p98 = scmp.eq.s32.totalorder %s18, 1
    %p99 = por %p97, %p98
    %p100 = scmp.ne.s32.totalorder %s91, %s92
    %p101 = scmp.eq.s32.totalorder %s18, 0
    %p102 = por %p100, %p101
    %p103 = scmp.ne.s32.totalorder %s91, %s92
    %p104 = scmp.eq.s32.totalorder %s19, 1
    %p105 = por %p103, %p104
    %p107 = scmp.ne.s32.totalorder %s92, %s106
    %p108 = scmp.eq.s32.totalorder %s19, 0
    %p109 = por %p107, %p108
    %s111 = sadd.s32 %s110, 1
    %p114 = scmp.eq.s32.totalorder %s13, 1
    %p115 = scmp.ne.s32.totalorder %s110, %s112
    %p116 = scmp.eq.s32.totalorder %s13, 0
    %p117 = por %p115, %p116
    %p118 = scmp.ne.s32.totalorder %s110, %s112
    %p119 = scmp.eq.s32.totalorder %s18, 1
    %p120 = por %p118, %p119
    %p121 = scmp.ne.s32.totalorder %s112, %s113
    %p122 = scmp.eq.s32.totalorder %s18, 0
    %p123 = por %p121, %p122
    %p124 = scmp.ne.s32.totalorder %s112, %s113
    %p125 = scmp.eq.s32.totalorder %s19, 1
    %p126 = por %p124, %p125
    %p128 = scmp.ne.s32.totalorder %s113, %s127
    %p129 = scmp.eq.s32.totalorder %s19, 0
    %p130 = por %p128, %p129
    %s132 = sadd.s32 %s131, 1
    %p135 = scmp.eq.s32.totalorder %s13, 1
    %p136 = scmp.ne.s32.totalorder %s131, %s133
    %p137 = scmp.eq.s32.totalorder %s13, 0
    %p138 = por %p136, %p137
    %p139 = scmp.ne.s32.totalorder %s131, %s133
    %p140 = scmp.eq.s32.totalorder %s18, 1
    %p141 = por %p139, %p140
    %p142 = scmp.ne.s32.totalorder %s133, %s134
    %p143 = scmp.eq.s32.totalorder %s18, 0
    %p144 = por %p142, %p143
    %p145 = scmp.ne.s32.totalorder %s133, %s134
    %p146 = scmp.eq.s32.totalorder %s19, 1
    %p147 = por %p145, %p146
    %p149 = scmp.ne.s32.totalorder %s134, %s148
    %p150 = scmp.eq.s32.totalorder %s19, 0
    %p151 = por %p149, %p150
    %s153 = sadd.s32 %s152, 1
    %p156 = scmp.eq.s32.totalorder %s13, 1
    %p157 = scmp.ne.s32.totalorder %s152, %s154
    %p158 = scmp.eq.s32.totalorder %s13, 0
    %p159 = por %p157, %p158
    %p160 = scmp.ne.s32.totalorder %s152, %s154
    %p161 = scmp.eq.s32.totalorder %s18, 1
    %p162 = por %p160, %p161
    %p163 = scmp.ne.s32.totalorder %s154, %s155
    %p164 = scmp.eq.s32.totalorder %s18, 0
    %p165 = por %p163, %p164
    %p166 = scmp.ne.s32.totalorder %s154, %s155
    %p167 = scmp.eq.s32.totalorder %s19, 1
    %p168 = por %p166, %p167
    %p170 = scmp.ne.s32.totalorder %s155, %s169
    %p171 = scmp.eq.s32.totalorder %s19, 0
    %p172 = por %p170, %p171
    %s173 = ssub.s32 %s13, %s20
    %p174 = scmp.eq.s32.totalorder %s173, 0
    %s176 = sadd.s32 %s175, 1
    %s177 = scalar_select %p174, %s175, %s176
    %p180 = pneg %p174
    %p181 = scmp.eq.s32.totalorder %s13, 1
    %p182 = por %p180, %p181
    %p183 = scmp.ne.s32.totalorder %s175, %s178
    %p184 = scmp.eq.s32.totalorder %s13, 0
    %p185 = por %p183, %p184
    %p186 = scmp.ne.s32.totalorder %s175, %s178
    %p187 = scmp.eq.s32.totalorder %s18, 1
    %p188 = por %p186, %p187
    %p189 = scmp.ne.s32.totalorder %s178, %s179
    %p190 = scmp.eq.s32.totalorder %s18, 0
    %p191 = por %p189, %p190
    %p192 = scmp.ne.s32.totalorder %s178, %s179
    %p193 = scmp.eq.s32.totalorder %s19, 1
    %p194 = por %p192, %p193
    %p196 = scmp.ne.s32.totalorder %s179, %s195
    %p197 = scmp.eq.s32.totalorder %s19, 0
    %p198 = por %p196, %p197
    %p199 = scmp.le.s32.totalorder 1, %s13
    %p200 = scmp.lt.s32.totalorder %s13, 3
    %p201 = pnand %p199, %p200
    %p202 = pneg %p201
    // Predicated region
    $region9: #{emo_model_forward.7} parent=5 // pred_check
      _
    $region10: #{emo_model_forward.7} parent=5 // pred_check_branch
      %204 = sbr.rel (%p201) target = $region12
    $region11: #{emo_model_forward.7} parent=5 // pred_region
      %s205 = ssub.s32 %s13, 1
      // Predicated region
      $region13: #{emo_model_forward.7} parent=11 // pred_check
        %p206 = pneg %p60
      $region14: #{emo_model_forward.7} parent=11 // pred_check_branch
        %208 = sbr.rel (%p206) target = $region16
      $region15: #{emo_model_forward.7} parent=11 // pred_region
        _
      $region16: #{emo_model_forward.7} parent=11 // pred_fallthru
        _
      // Predicated region
      $region17: #{emo_model_forward.7} parent=11 // pred_check
        %p209 = pneg %p81
      $region18: #{emo_model_forward.7} parent=11 // pred_check_branch
        %211 = sbr.rel (%p209) target = $region20
      $region19: #{emo_model_forward.7} parent=11 // pred_region
        _
      $region20: #{emo_model_forward.7} parent=11 // pred_fallthru
        _
      // Predicated region
      $region21: #{emo_model_forward.7} parent=11 // pred_check
        %p212 = pneg %p102
      $region22: #{emo_model_forward.7} parent=11 // pred_check_branch
        %214 = sbr.rel (%p212) target = $region24
      $region23: #{emo_model_forward.7} parent=11 // pred_region
        _
      $region24: #{emo_model_forward.7} parent=11 // pred_fallthru
        _
      // Predicated region
      $region25: #{emo_model_forward.7} parent=11 // pred_check
        %p215 = pneg %p123
      $region26: #{emo_model_forward.7} parent=11 // pred_check_branch
        %217 = sbr.rel (%p215) target = $region28
      $region27: #{emo_model_forward.7} parent=11 // pred_region
        _
      $region28: #{emo_model_forward.7} parent=11 // pred_fallthru
        _
      // Predicated region
      $region29: #{emo_model_forward.7} parent=11 // pred_check
        %p218 = pneg %p144
      $region30: #{emo_model_forward.7} parent=11 // pred_check_branch
        %220 = sbr.rel (%p218) target = $region32
      $region31: #{emo_model_forward.7} parent=11 // pred_region
        _
      $region32: #{emo_model_forward.7} parent=11 // pred_fallthru
        _
      // Predicated region
      $region33: #{emo_model_forward.7} parent=11 // pred_check
        %p221 = pneg %p165
      $region34: #{emo_model_forward.7} parent=11 // pred_check_branch
        %223 = sbr.rel (%p221) target = $region36
      $region35: #{emo_model_forward.7} parent=11 // pred_region
        _
      $region36: #{emo_model_forward.7} parent=11 // pred_fallthru
        _
    $region12: #{emo_model_forward.7} parent=5 // pred_fallthru
      _
    %p224 = scmp.lt.s32.totalorder %s13, 2
    // Predicated region
    $region37: #{emo_model_forward.7} parent=5 // pred_check
      %p225 = pneg %p224
    $region38: #{emo_model_forward.7} parent=5 // pred_check_branch
      %227 = sbr.rel (%p225) target = $region40
    $region39: #{emo_model_forward.7} parent=5 // pred_region
      // Predicated region
      $region41: #{emo_model_forward.7} parent=39 // pred_check
        %p228 = pneg %p33
      $region42: #{emo_model_forward.7} parent=39 // pred_check_branch
        %230 = sbr.rel (%p228) target = $region44
      $region43: #{emo_model_forward.7} parent=39 // pred_region
        %p231 = scmp.lt.s32.totalorder %s13, 1
        %s232 = scalar_select %p231, %s13, 1
        %s233 = smul.addr %s232, 8
        %s234 = scalar_lea.vmem %s0, %s233
      $region44: #{emo_model_forward.7} parent=39 // pred_fallthru
        _
    $region40: #{emo_model_forward.7} parent=5 // pred_fallthru
      _
    %p235 = scmp.le.s32.totalorder 1, %s13
    %p236 = scmp.lt.s32.totalorder %s13, 3
    %p237 = pnand %p235, %p236
    %p238 = pneg %p237
    // Predicated region
    $region45: #{emo_model_forward.7} parent=5 // pred_check
      _
    $region46: #{emo_model_forward.7} parent=5 // pred_check_branch
      %240 = sbr.rel (%p237) target = $region48
    $region47: #{emo_model_forward.7} parent=5 // pred_region
      %s241 = ssub.s32 %s13, 1
      %p242 = scmp.lt.s32.totalorder %s18, 1
      %s243 = scalar_select %p242, %s18, 1
      %s244 = smul.addr %s243, 8
      %s245 = scalar_lea.vmem %s0, %s244
      %p246 = pneg %p39
      %p247 = pneg %p36
      %p248 = pneg %p60
      %p249 = pneg %p57
      %p250 = pneg %p81
      %p251 = pneg %p78
      %p252 = pneg %p102
      %p253 = pneg %p99
      %p254 = pneg %p123
      %p255 = pneg %p120
      %p256 = pneg %p144
      %p257 = pneg %p141
      %p258 = pneg %p165
      %p259 = pneg %p162
      %p260 = pneg %p191
      %p261 = pneg %p188
      %p262 = scmp.lt.s32.totalorder %s18, 1
      %s263 = scalar_select %p262, %s18, 1
      %s264 = smul.addr %s263, 8
      %s265 = scalar_lea.vmem %s7, %s264
      %p266 = scmp.lt.s32.totalorder %s18, 1
      %s267 = scalar_select %p266, %s18, 1
      %s268 = smul.addr %s267, 8
      %s269 = scalar_lea.vmem %s0, %s268
      %p270 = scmp.lt.s32.totalorder %s18, 1
      %s271 = scalar_select %p270, %s18, 1
      %s272 = smul.addr %s271, 8
      %s273 = scalar_lea.vmem %s7, %s272
      %v274 = vld [vmem:[%s269] sm:$0x7f]
      %v275 = vld [vmem:[%s1] sm:$0xff]
      %v276 = vld [vmem:[%s1 + $0x8] sm:$0xff]
      %v277 = vld [vmem:[%s1 + $0x10] sm:$0xff]
      %v278 = vld [vmem:[%s1 + $0x18] sm:$0xff]
      %v279 = vld [vmem:[%s1 + $0x20] sm:$0xff]
      %v280 = vld [vmem:[%s1 + $0x28] sm:$0xff]
      %v281 = vld [vmem:[%s1 + $0x30] sm:$0xff]
      %v282 = vld [vmem:[%s1 + $0x38] sm:$0xff]
      %v283 = vld [vmem:[%s2] sm:$0x1]
      %v285 = vlaneseq
      %v286 = vshrl.u32 %v285, 7
      %v287 = vsub.s32 0, %v286
      %v288 = vrot.slane %v283, %v287
      %vm290 = vcmask 523264
      %v292 = vsel %vm290, %v274, 0
      %294 = vmatprep.subr.mxu0 0.0
      %295 = vmatpush1.msra.mxu0 %v275
      %296 = vmatprep.subr.mxu0 0.0
      %297 = vmatpush1.msra.mxu0 %v276
      %298 = vmatprep.subr.mxu0 0.0
      %299 = vmatpush1.msra.mxu0 %v277
      %300 = vmatprep.subr.mxu0 0.0
      %301 = vmatpush1.msra.mxu0 %v278
      %302 = vmatprep.subr.mxu0 0.0
      %303 = vmatpush1.msra.mxu0 %v279
      %304 = vmatprep.subr.mxu0 0.0
      %305 = vmatpush1.msra.mxu0 %v280
      %306 = vmatprep.subr.mxu0 0.0
      %307 = vmatpush1.msra.mxu0 %v281
      %308 = vmatprep.subr.mxu0 0.0
      %309 = vmatpush1.msra.mxu0 %v282
      %310 = vmatprep.subr.mxu0 0.0
      %311 = vmatpush1.msra.mxu0 0.0
      %312 = vmatprep.subr.mxu0 0.0
      %313 = vmatpush1.msra.mxu0 0.0
      %314 = vmatprep.subr.mxu0 0.0
      %315 = vmatpush1.msra.mxu0 0.0
      %316 = vmatprep.subr.mxu0 0.0
      %317 = vmatpush1.msra.mxu0 0.0
      %318 = vmatprep.subr.mxu0 0.0
      %319 = vmatpush1.msra.mxu0 0.0
      %320 = vmatprep.subr.mxu0 0.0
      %321 = vmatpush1.msra.mxu0 0.0
      %322 = vmatprep.subr.mxu0 0.0
      %323 = vmatpush1.msra.mxu0 0.0
      %324 = vmatprep.subr.mxu0 0.0
      %325 = vmatpush1.msra.mxu0 0.0
      %326 = vmatprep.subr.mxu0 0.0
      %327 = vmatpush1.msra.mxu0 0.0
      %328 = vmatprep.subr.mxu0 0.0
      %329 = vmatpush1.msra.mxu0 0.0
      %330 = vmatprep.subr.mxu0 0.0
      %331 = vmatpush1.msra.mxu0 0.0
      %332 = vmatprep.subr.mxu0 0.0
      %333 = vmatpush1.msra.mxu0 0.0
      %334 = vmatprep.subr.mxu0 0.0
      %335 = vmatpush1.msra.mxu0 0.0
      %336 = vmatprep.subr.mxu0 0.0
      %337 = vmatpush1.msra.mxu0 0.0
      %338 = vmatprep.subr.mxu0 0.0
      %339 = vmatpush1.msra.mxu0 0.0
      %340 = vmatprep.subr.mxu0 0.0
      %341 = vmatpush1.msra.mxu0 0.0
      %342 = vmatprep.subr.mxu0 0.0
      %343 = vmatpush1.msra.mxu0 0.0
      %344 = vmatprep.subr.mxu0 0.0
      %345 = vmatpush1.msra.mxu0 0.0
      %346 = vmatprep.subr.mxu0 0.0
      %347 = vmatpush1.msra.mxu0 0.0
      %348 = vmatprep.subr.mxu0 0.0
      %349 = vmatpush1.msra.mxu0 0.0
      %350 = vmatprep.subr.mxu0 0.0
      %351 = vmatpush1.msra.mxu0 0.0
      %352 = vmatprep.subr.mxu0 0.0
      %353 = vmatpush1.msra.mxu0 0.0
      %354 = vmatprep.subr.mxu0 0.0
      %355 = vmatpush1.msra.mxu0 0.0
      %356 = vmatprep.subr.mxu0 0.0
      %357 = vmatpush1.msra.mxu0 0.0
      %358 = vmatprep.mubr.f32.mxu0 0.0
      %359 = vmatmul.mubr.f32.gmra.mrb[0].mxu0 %v292
      %v360 = vpop.f32.mrb[0].mxu0
      %v361 = vadd.f32 %v288, %v360
      %v362 = vpop.f32.mrb[0].mxu0
      %363 = vdwg.mxu0
      %v364 = vld [vmem:[%s3] sm:$0x1]
      %v366 = vrot.slane %v361, 7
      %vm368 = vcmask 1040384
      %v369 = vsel %vm368, %v364, %v366
      %v370 = vmul.f32 %v369, 11.313708
      %v371 = vld [vmem:[%s5] sm:$0x3]
      %v372 = vld [vmem:[%s6] sm:$0x3]
      %373 = vadd.xlane.f32.xlu0 %v370
      %v374 = vpop.xlane.xlu0 %373
      %v375 = vrcp.pop 128.0
      %v376 = vmul.f32 %v374, %v375
      %v377 = vsub.f32 %v370, %v376
      %v378 = vmul.f32 %v377, %v377
      %379 = vadd.xlane.f32.xlu0 %v378
      %v380 = vpop.xlane.xlu0 %379
      %v381 = vmul.f32 %v380, %v375
      %v382 = vadd.f32 %v381, 1e-05
      %v383 = vrsqrt.pop %v382
      %v384 = vmul.f32 %v377, %v383
      %v385 = vlaneseq
      %v386 = vshrl.u32 %v385, 7
      %v387 = vsub.s32 0, %v386
      %v388 = vrot.slane %v371, %v387
      %v389 = vmul.f32 %v384, %v388
      %v390 = vlaneseq
      %v391 = vshrl.u32 %v390, 7
      %v392 = vsub.s32 1, %v391
      %v393 = vrot.slane %v371, %v392
      %v394 = vadd.f32 %v389, %v393
      %v395 = vld [vmem:[%s4] sm:$0xff]
      %v396 = vadd.f32 %v394, %v395
      %397 = vadd.xlane.f32.xlu0 %v396
      %v398 = vpop.xlane.xlu0 %397
      %v399 = vmul.f32 %v398, %v375
      %v400 = vsub.f32 %v396, %v399
      %v401 = vmul.f32 %v400, %v400
      %402 = vadd.xlane.f32.xlu0 %v401
      %v403 = vpop.xlane.xlu0 %402
      %v404 = vmul.f32 %v403, %v375
      %v405 = vadd.f32 %v404, 1e-05
      %v406 = vrsqrt.pop %v405
      %v407 = vmul.f32 %v400, %v406
      %v408 = vlaneseq
      %v409 = vshrl.u32 %v408, 7
      %v410 = vsub.s32 0, %v409
      %v411 = vrot.slane %v372, %v410
      %v412 = vmul.f32 %v407, %v411
      %v413 = vlaneseq
      %v414 = vshrl.u32 %v413, 7
      %v415 = vsub.s32 1, %v414
      %v416 = vrot.slane %v372, %v415
      %v417 = vadd.f32 %v412, %v416
      %418 = vst [vmem:[%s273] sm:$0xff] %v417
      %p419 = scmp.lt.s32.totalorder %s18, 1
      %s420 = scalar_select %p419, %s18, 1
      %s421 = smul.addr %s420, 8
      %s422 = scalar_lea.vmem %s7, %s421
      // Predicated region
      $region49: #{emo_model_forward.7} parent=47 // pred_check
        %p423 = pneg %p188
      $region50: #{emo_model_forward.7} parent=47 // pred_check_branch
        %425 = sbr.rel (%p423) target = $region52
      $region51: #{emo_model_forward.7} parent=47 // pred_region
        _
      $region52: #{emo_model_forward.7} parent=47 // pred_fallthru
        _
    $region48: #{emo_model_forward.7} parent=5 // pred_fallthru
      _
    %p426 = scmp.le.s32.totalorder 2, %s13
    // Predicated region
    $region53: #{emo_model_forward.7} parent=5 // pred_check
      %p427 = pneg %p426
    $region54: #{emo_model_forward.7} parent=5 // pred_check_branch
      %429 = sbr.rel (%p427) target = $region56
    $region55: #{emo_model_forward.7} parent=5 // pred_region
      %s430 = ssub.s32 %s13, 2
      // Predicated region
      $region57: #{emo_model_forward.7} parent=55 // pred_check
        %p431 = pneg %p194
      $region58: #{emo_model_forward.7} parent=55 // pred_check_branch
        %433 = sbr.rel (%p431) target = $region60
      $region59: #{emo_model_forward.7} parent=55 // pred_region
        %p434 = scmp.lt.s32.totalorder %s19, 1
        %s435 = scalar_select %p434, %s19, 1
        %s436 = smul.addr %s435, 8
        %s437 = scalar_lea.vmem %s7, %s436
      $region60: #{emo_model_forward.7} parent=55 // pred_fallthru
        _
    $region56: #{emo_model_forward.7} parent=5 // pred_fallthru
      _
  $region6: #{emo_model_forward.7} parent=0 // loop_footer
    %s17 = sadd.s32 1, %s13
  $region7: #{emo_model_forward.7} parent=0 // loop_footer_branch
    %12 = sbr.rel target = $region3
  $region8: #{emo_model_forward.7} parent=0 // loop_exit
    _

// kernel: emo_model_forward.12
$region0: #{emo_model_forward.12}
  #allocation0 [shape = 'u32[]', space=smem, size = 0x4, offset = 0x4, fixed_abs, tag = 'smem constant byte address 0x4 - core index']
  #allocation1 [shape = 'u32[144,128]{1,0:T(1,128)}', space=vmem, size = 0x12000, scoped, tag = 'internal scratch']
  %s0 = inlined_call_operand.vmem [shape: f32[2,8,128], index: 0, kind: input, shape index: {}]
  %s1 = inlined_call_operand.hbm [shape: f32[128,384], index: 1, kind: input, shape index: {}]
  %s2 = inlined_call_operand.vmem [shape: f32[1,384], index: 2, kind: input, shape index: {}]
  %s3 = inlined_call_operand.hbm [shape: f32[128,128], index: 3, kind: input, shape index: {}]
  %s4 = inlined_call_operand.hbm [shape: f32[1,128], index: 4, kind: input, shape index: {}]
  %s5 = inlined_call_operand.vmem [shape: f32[128,512], index: 5, kind: input, shape index: {}]
  %s6 = inlined_call_operand.hbm [shape: f32[1,512], index: 6, kind: input, shape index: {}]
  %s7 = inlined_call_operand.hbm [shape: f32[512,128], index: 7, kind: input, shape index: {}]
  %s8 = inlined_call_operand.hbm [shape: f32[1,128], index: 8, kind: input, shape index: {}]
  %s9 = inlined_call_operand.vmem [shape: f32[8,128], index: 9, kind: input, shape index: {}]
  %s10 = inlined_call_operand.vmem [shape: f32[2,8,128], index: 10, kind: output, shape index: {}]
  %s11 = sld [smem:[#allocation0]]
  $region97: #{emo_model_forward.12} parent=0
    _
  %s13 = ssub.s32 1, %s11
  %s14 = scalar_select 0, %s13, %s11
  $region1: #{emo_model_forward.12} parent=0
    #allocation2 [shape = 'u8[196608]{0}', space=vmem, size = 0x30000, scoped, tag = 'input window, operand 1, single buffered']
    #allocation3 [shape = 's32[2]{0}', space=sflag, size = 0x8, scoped, tag = 'scoped memory for emo_model_forward.12']
    #allocation4 [shape = 'u8[65536]{0}', space=vmem, size = 0x10000, scoped, tag = 'input window, operand 3, single buffered']
    #allocation5 [shape = 's32[1]{0}', space=sflag, size = 0x4, scoped, tag = 'scoped memory for emo_model_forward.12']
    #allocation6 [shape = 'u8[512]{0}', space=vmem, size = 0x400, scoped, tag = 'input window, operand 4, single buffered']
    #allocation7 [shape = 'u8[2048]{0}', space=vmem, size = 0x800, scoped, tag = 'input window, operand 6, single buffered']
    #allocation8 [shape = 's32[1]{0}', space=sflag, size = 0x4, scoped, tag = 'scoped memory for emo_model_forward.12']
    #allocation9 [shape = 'u8[262144]{0}', space=vmem, size = 0x40000, scoped, tag = 'input window, operand 7, single buffered']
    #allocation10 [shape = 'u8[512]{0}', space=vmem, size = 0x400, scoped, tag = 'input window, operand 8, single buffered']
    #allocation11 [shape = 's32[1]{0}', space=sflag, size = 0x4, scoped, tag = 'scoped memory for emo_model_forward.12']
    %15 = vsyncpa [#allocation3], 0
    %16 = vsyncpa [#allocation5], 0
    %17 = vsyncpa [#allocation8], 0
    %18 = vsyncpa [#allocation11], 0
    loop: start=0, step=1, limit=4
    $region2: #{emo_model_forward.12} parent=1 // loop_pre_header
      _
    $region3: #{emo_model_forward.12} parent=1 // loop_header
      %s20 = sphi 0, %s24
      %p21 = scmp.ge.s32.totalorder %s20, 4
      %s30 = sphi 0, %s32
      %s33 = sphi 0, %s30
      %s34 = sphi 0, %s33
      %s50 = sphi 0, %s34
      %s54 = sphi 0, %s54
      %s56 = sphi 0, %s54
      %s57 = sphi 0, %s56
      %s71 = sphi 0, %s57
      %s75 = sphi 0, %s75
      %s77 = sphi 0, %s75
      %s78 = sphi 0, %s77
      %s92 = sphi 0, %s78
      %s96 = sphi 0, %s96
      %s98 = sphi 0, %s96
      %s99 = sphi 0, %s98
      %s113 = sphi 0, %s99
      %s117 = sphi 0, %s117
      %s119 = sphi 0, %s117
      %s120 = sphi 0, %s119
      %s134 = sphi 0, %s120
      %s138 = sphi 0, %s138
      %s140 = sphi 0, %s138
      %s141 = sphi 0, %s140
      %s155 = sphi 0, %s141
      %s159 = sphi 0, %s159
      %s161 = sphi 0, %s159
      %s162 = sphi 0, %s161
      %s176 = sphi 0, %s162
      %s180 = sphi 0, %s180
      %s182 = sphi 0, %s180
      %s183 = sphi 0, %s182
      %s197 = sphi 0, %s183
      %s201 = sphi 0, %s201
      %s203 = sphi 0, %s201
      %s204 = sphi 0, %s203
      %s218 = sphi 0, %s204
      %s222 = sphi 0, %s222
      %s224 = sphi 0, %s222
      %s225 = sphi 0, %s224
      %s239 = sphi 0, %s225
      %s245 = sphi 0, %s247
      %s248 = sphi 0, %s245
      %s249 = sphi 0, %s248
      %s265 = sphi 0, %s249
    $region4: #{emo_model_forward.12} parent=1 // loop_header_branch
      %23 = sbr.rel (%p21) target = $region8
    $region5: #{emo_model_forward.12} parent=1 // loop_body
      %s25 = ssub.s32 %s20, 1
      %s26 = ssub.s32 %s20, 2
      %s27 = sadd.s32 %s20, 1
      %s28 = ssub.s32 %s20, %s27
      %p29 = scmp.eq.s32.totalorder %s28, 0
      %s31 = sadd.s32 %s30, 1
      %s32 = scalar_select %p29, %s30, %s31
      %p35 = pneg %p29
      %p36 = scmp.eq.s32.totalorder %s20, 1
      %p37 = por %p35, %p36
      %p38 = scmp.ne.s32.totalorder %s30, %s33
      %p39 = scmp.eq.s32.totalorder %s20, 0
      %p40 = por %p38, %p39
      %p41 = scmp.ne.s32.totalorder %s30, %s33
      %p42 = scmp.eq.s32.totalorder %s25, 1
      %p43 = por %p41, %p42
      %p44 = scmp.ne.s32.totalorder %s33, %s34
      %p45 = scmp.eq.s32.totalorder %s25, 0
      %p46 = por %p44, %p45
      %p47 = scmp.ne.s32.totalorder %s33, %s34
      %p48 = scmp.eq.s32.totalorder %s26, 1
      %p49 = por %p47, %p48
      %p51 = scmp.ne.s32.totalorder %s34, %s50
      %p52 = scmp.eq.s32.totalorder %s26, 0
      %p53 = por %p51, %p52
      %s55 = sadd.s32 %s54, 1
      %p58 = scmp.eq.s32.totalorder %s20, 1
      %p59 = scmp.ne.s32.totalorder %s54, %s56
      %p60 = scmp.eq.s32.totalorder %s20, 0
      %p61 = por %p59, %p60
      %p62 = scmp.ne.s32.totalorder %s54, %s56
      %p63 = scmp.eq.s32.totalorder %s25, 1
      %p64 = por %p62, %p63
      %p65 = scmp.ne.s32.totalorder %s56, %s57
      %p66 = scmp.eq.s32.totalorder %s25, 0
      %p67 = por %p65, %p66
      %p68 = scmp.ne.s32.totalorder %s56, %s57
      %p69 = scmp.eq.s32.totalorder %s26, 1
      %p70 = por %p68, %p69
      %p72 = scmp.ne.s32.totalorder %s57, %s71
      %p73 = scmp.eq.s32.totalorder %s26, 0
      %p74 = por %p72, %p73
      %s76 = sadd.s32 %s75, 1
      %p79 = scmp.eq.s32.totalorder %s20, 1
      %p80 = scmp.ne.s32.totalorder %s75, %s77
      %p81 = scmp.eq.s32.totalorder %s20, 0
      %p82 = por %p80, %p81
      %p83 = scmp.ne.s32.totalorder %s75, %s77
      %p84 = scmp.eq.s32.totalorder %s25, 1
      %p85 = por %p83, %p84
      %p86 = scmp.ne.s32.totalorder %s77, %s78
      %p87 = scmp.eq.s32.totalorder %s25, 0
      %p88 = por %p86, %p87
      %p89 = scmp.ne.s32.totalorder %s77, %s78
      %p90 = scmp.eq.s32.totalorder %s26, 1
      %p91 = por %p89, %p90
      %p93 = scmp.ne.s32.totalorder %s78, %s92
      %p94 = scmp.eq.s32.totalorder %s26, 0
      %p95 = por %p93, %p94
      %s97 = sadd.s32 %s96, 1
      %p100 = scmp.eq.s32.totalorder %s20, 1
      %p101 = scmp.ne.s32.totalorder %s96, %s98
      %p102 = scmp.eq.s32.totalorder %s20, 0
      %p103 = por %p101, %p102
      %p104 = scmp.ne.s32.totalorder %s96, %s98
      %p105 = scmp.eq.s32.totalorder %s25, 1
      %p106 = por %p104, %p105
      %p107 = scmp.ne.s32.totalorder %s98, %s99
      %p108 = scmp.eq.s32.totalorder %s25, 0
      %p109 = por %p107, %p108
      %p110 = scmp.ne.s32.totalorder %s98, %s99
      %p111 = scmp.eq.s32.totalorder %s26, 1
      %p112 = por %p110, %p111
      %p114 = scmp.ne.s32.totalorder %s99, %s113
      %p115 = scmp.eq.s32.totalorder %s26, 0
      %p116 = por %p114, %p115
      %s118 = sadd.s32 %s117, 1
      %p121 = scmp.eq.s32.totalorder %s20, 1
      %p122 = scmp.ne.s32.totalorder %s117, %s119
      %p123 = scmp.eq.s32.totalorder %s20, 0
      %p124 = por %p122, %p123
      %p125 = scmp.ne.s32.totalorder %s117, %s119
      %p126 = scmp.eq.s32.totalorder %s25, 1
      %p127 = por %p125, %p126
      %p128 = scmp.ne.s32.totalorder %s119, %s120
      %p129 = scmp.eq.s32.totalorder %s25, 0
      %p130 = por %p128, %p129
      %p131 = scmp.ne.s32.totalorder %s119, %s120
      %p132 = scmp.eq.s32.totalorder %s26, 1
      %p133 = por %p131, %p132
      %p135 = scmp.ne.s32.totalorder %s120, %s134
      %p136 = scmp.eq.s32.totalorder %s26, 0
      %p137 = por %p135, %p136
      %s139 = sadd.s32 %s138, 1
      %p142 = scmp.eq.s32.totalorder %s20, 1
      %p143 = scmp.ne.s32.totalorder %s138, %s140
      %p144 = scmp.eq.s32.totalorder %s20, 0
      %p145 = por %p143, %p144
      %p146 = scmp.ne.s32.totalorder %s138, %s140
      %p147 = scmp.eq.s32.totalorder %s25, 1
      %p148 = por %p146, %p147
      %p149 = scmp.ne.s32.totalorder %s140, %s141
      %p150 = scmp.eq.s32.totalorder %s25, 0
      %p151 = por %p149, %p150
      %p152 = scmp.ne.s32.totalorder %s140, %s141
      %p153 = scmp.eq.s32.totalorder %s26, 1
      %p154 = por %p152, %p153
      %p156 = scmp.ne.s32.totalorder %s141, %s155
      %p157 = scmp.eq.s32.totalorder %s26, 0
      %p158 = por %p156, %p157
      %s160 = sadd.s32 %s159, 1
      %p163 = scmp.eq.s32.totalorder %s20, 1
      %p164 = scmp.ne.s32.totalorder %s159, %s161
      %p165 = scmp.eq.s32.totalorder %s20, 0
      %p166 = por %p164, %p165
      %p167 = scmp.ne.s32.totalorder %s159, %s161
      %p168 = scmp.eq.s32.totalorder %s25, 1
      %p169 = por %p167, %p168
      %p170 = scmp.ne.s32.totalorder %s161, %s162
      %p171 = scmp.eq.s32.totalorder %s25, 0
      %p172 = por %p170, %p171
      %p173 = scmp.ne.s32.totalorder %s161, %s162
      %p174 = scmp.eq.s32.totalorder %s26, 1
      %p175 = por %p173, %p174
      %p177 = scmp.ne.s32.totalorder %s162, %s176
      %p178 = scmp.eq.s32.totalorder %s26, 0
      %p179 = por %p177, %p178
      %s181 = sadd.s32 %s180, 1
      %p184 = scmp.eq.s32.totalorder %s20, 1
      %p185 = scmp.ne.s32.totalorder %s180, %s182
      %p186 = scmp.eq.s32.totalorder %s20, 0
      %p187 = por %p185, %p186
      %p188 = scmp.ne.s32.totalorder %s180, %s182
      %p189 = scmp.eq.s32.totalorder %s25, 1
      %p190 = por %p188, %p189
      %p191 = scmp.ne.s32.totalorder %s182, %s183
      %p192 = scmp.eq.s32.totalorder %s25, 0
      %p193 = por %p191, %p192
      %p194 = scmp.ne.s32.totalorder %s182, %s183
      %p195 = scmp.eq.s32.totalorder %s26, 1
      %p196 = por %p194, %p195
      %p198 = scmp.ne.s32.totalorder %s183, %s197
      %p199 = scmp.eq.s32.totalorder %s26, 0
      %p200 = por %p198, %p199
      %s202 = sadd.s32 %s201, 1
      %p205 = scmp.eq.s32.totalorder %s20, 1
      %p206 = scmp.ne.s32.totalorder %s201, %s203
      %p207 = scmp.eq.s32.totalorder %s20, 0
      %p208 = por %p206, %p207
      %p209 = scmp.ne.s32.totalorder %s201, %s203
      %p210 = scmp.eq.s32.totalorder %s25, 1
      %p211 = por %p209, %p210
      %p212 = scmp.ne.s32.totalorder %s203, %s204
      %p213 = scmp.eq.s32.totalorder %s25, 0
      %p214 = por %p212, %p213
      %p215 = scmp.ne.s32.totalorder %s203, %s204
      %p216 = scmp.eq.s32.totalorder %s26, 1
      %p217 = por %p215, %p216
      %p219 = scmp.ne.s32.totalorder %s204, %s218
      %p220 = scmp.eq.s32.totalorder %s26, 0
      %p221 = por %p219, %p220
      %s223 = sadd.s32 %s222, 1
      %p226 = scmp.eq.s32.totalorder %s20, 1
      %p227 = scmp.ne.s32.totalorder %s222, %s224
      %p228 = scmp.eq.s32.totalorder %s20, 0
      %p229 = por %p227, %p228
      %p230 = scmp.ne.s32.totalorder %s222, %s224
      %p231 = scmp.eq.s32.totalorder %s25, 1
      %p232 = por %p230, %p231
      %p233 = scmp.ne.s32.totalorder %s224, %s225
      %p234 = scmp.eq.s32.totalorder %s25, 0
      %p235 = por %p233, %p234
      %p236 = scmp.ne.s32.totalorder %s224, %s225
      %p237 = scmp.eq.s32.totalorder %s26, 1
      %p238 = por %p236, %p237
      %p240 = scmp.ne.s32.totalorder %s225, %s239
      %p241 = scmp.eq.s32.totalorder %s26, 0
      %p242 = por %p240, %p241
      %s243 = ssub.s32 %s20, %s27
      %p244 = scmp.eq.s32.totalorder %s243, 0
      %s246 = sadd.s32 %s245, 1
      %s247 = scalar_select %p244, %s245, %s246
      %p250 = pneg %p244
      %p251 = scmp.eq.s32.totalorder %s20, 1
      %p252 = por %p250, %p251
      %p253 = scmp.ne.s32.totalorder %s245, %s248
      %p254 = scmp.eq.s32.totalorder %s20, 0
      %p255 = por %p253, %p254
      %p256 = scmp.ne.s32.totalorder %s245, %s248
      %p257 = scmp.eq.s32.totalorder %s25, 1
      %p258 = por %p256, %p257
      %p259 = scmp.ne.s32.totalorder %s248, %s249
      %p260 = scmp.eq.s32.totalorder %s25, 0
      %p261 = por %p259, %p260
      %p262 = scmp.ne.s32.totalorder %s248, %s249
      %p263 = scmp.eq.s32.totalorder %s26, 1
      %p264 = por %p262, %p263
      %p266 = scmp.ne.s32.totalorder %s249, %s265
      %p267 = scmp.eq.s32.totalorder %s26, 0
      %p268 = por %p266, %p267
      %p269 = scmp.le.s32.totalorder 1, %s20
      %p270 = scmp.lt.s32.totalorder %s20, 3
      %p271 = pnand %p269, %p270
      %p272 = pneg %p271
      // Predicated region
      $region9: #{emo_model_forward.12} parent=5 // pred_check
        _
      $region10: #{emo_model_forward.12} parent=5 // pred_check_branch
        %274 = sbr.rel (%p271) target = $region12
      $region11: #{emo_model_forward.12} parent=5 // pred_region
        %s275 = ssub.s32 %s20, 1
        // Predicated region
        $region13: #{emo_model_forward.12} parent=11 // pred_check
          %p276 = pneg %p67
        $region14: #{emo_model_forward.12} parent=11 // pred_check_branch
          %278 = sbr.rel (%p276) target = $region16
        $region15: #{emo_model_forward.12} parent=11 // pred_region
          %s280 = ssub.s32 6144, 6144
          %281 = vsyncadd [#allocation3], %s280
          %s282 = sshll.u32 [#allocation2], 4
          %s283 = int_to_ptr.vmem [resolvable:$true] %s282
          %288 = dma.hbm_to_vmem [thread:$0]  %s1, 6144, %s283, [#allocation3], 384, 384, 24
        $region16: #{emo_model_forward.12} parent=11 // pred_fallthru
          _
        // Predicated region
        $region17: #{emo_model_forward.12} parent=11 // pred_check
          %p289 = pneg %p88
        $region18: #{emo_model_forward.12} parent=11 // pred_check_branch
          %291 = sbr.rel (%p289) target = $region20
        $region19: #{emo_model_forward.12} parent=11 // pred_region
          _
        $region20: #{emo_model_forward.12} parent=11 // pred_fallthru
          _
        // Predicated region
        $region21: #{emo_model_forward.12} parent=11 // pred_check
          %p292 = pneg %p109
        $region22: #{emo_model_forward.12} parent=11 // pred_check_branch
          %294 = sbr.rel (%p292) target = $region24
        $region23: #{emo_model_forward.12} parent=11 // pred_region
          %s296 = ssub.s32 2048, 2048
          %297 = vsyncadd [#allocation5], %s296
          %s298 = sshll.u32 [#allocation4], 4
          %s299 = int_to_ptr.vmem [resolvable:$true] %s298
          %304 = dma.hbm_to_vmem [thread:$0]  %s3, 2048, %s299, [#allocation5], 128, 128, 8
        $region24: #{emo_model_forward.12} parent=11 // pred_fallthru
          _
        // Predicated region
        $region25: #{emo_model_forward.12} parent=11 // pred_check
          %p305 = pneg %p130
        $region26: #{emo_model_forward.12} parent=11 // pred_check_branch
          %307 = sbr.rel (%p305) target = $region28
        $region27: #{emo_model_forward.12} parent=11 // pred_region
          %s309 = ssub.s32 16, 16
          %310 = vsyncadd [#allocation5], %s309
          %s312 = sshll.u32 [#allocation6], 4
          %s313 = int_to_ptr.vmem [resolvable:$true] %s312
          %315 = dma.hbm_to_vmem [thread:$0]  %s4, 16, %s313, [#allocation5]
        $region28: #{emo_model_forward.12} parent=11 // pred_fallthru
          _
        // Predicated region
        $region29: #{emo_model_forward.12} parent=11 // pred_check
          %p316 = pneg %p151
        $region30: #{emo_model_forward.12} parent=11 // pred_check_branch
          %318 = sbr.rel (%p316) target = $region32
        $region31: #{emo_model_forward.12} parent=11 // pred_region
          _
        $region32: #{emo_model_forward.12} parent=11 // pred_fallthru
          _
        // Predicated region
        $region33: #{emo_model_forward.12} parent=11 // pred_check
          %p319 = pneg %p172
        $region34: #{emo_model_forward.12} parent=11 // pred_check_branch
          %321 = sbr.rel (%p319) target = $region36
        $region35: #{emo_model_forward.12} parent=11 // pred_region
          %s323 = ssub.s32 64, 64
          %324 = vsyncadd [#allocation8], %s323
          %s326 = sshll.u32 [#allocation7], 4
          %s327 = int_to_ptr.vmem [resolvable:$true] %s326
          %329 = dma.hbm_to_vmem [thread:$0]  %s6, 64, %s327, [#allocation8]
        $region36: #{emo_model_forward.12} parent=11 // pred_fallthru
          _
        // Predicated region
        $region37: #{emo_model_forward.12} parent=11 // pred_check
          %p330 = pneg %p193
        $region38: #{emo_model_forward.12} parent=11 // pred_check_branch
          %332 = sbr.rel (%p330) target = $region40
        $region39: #{emo_model_forward.12} parent=11 // pred_region
          %s334 = ssub.s32 8192, 8192
          %335 = vsyncadd [#allocation8], %s334
          %s336 = sshll.u32 [#allocation9], 4
          %s337 = int_to_ptr.vmem [resolvable:$true] %s336
          %342 = dma.hbm_to_vmem [thread:$0]  %s7, 8192, %s337, [#allocation8], 128, 128, 8
        $region40: #{emo_model_forward.12} parent=11 // pred_fallthru
          _
        // Predicated region
        $region41: #{emo_model_forward.12} parent=11 // pred_check
          %p343 = pneg %p214
        $region42: #{emo_model_forward.12} parent=11 // pred_check_branch
          %345 = sbr.rel (%p343) target = $region44
        $region43: #{emo_model_forward.12} parent=11 // pred_region
          %s347 = ssub.s32 16, 16
          %348 = vsyncadd [#allocation11], %s347
          %s350 = sshll.u32 [#allocation10], 4
          %s351 = int_to_ptr.vmem [resolvable:$true] %s350
          %353 = dma.hbm_to_vmem [thread:$0]  %s8, 16, %s351, [#allocation11]
        $region44: #{emo_model_forward.12} parent=11 // pred_fallthru
          _
        // Predicated region
        $region45: #{emo_model_forward.12} parent=11 // pred_check
          %p354 = pneg %p235
        $region46: #{emo_model_forward.12} parent=11 // pred_check_branch
          %356 = sbr.rel (%p354) target = $region48
        $region47: #{emo_model_forward.12} parent=11 // pred_region
          _
        $region48: #{emo_model_forward.12} parent=11 // pred_fallthru
          _
      $region12: #{emo_model_forward.12} parent=5 // pred_fallthru
        _
      %p357 = scmp.lt.s32.totalorder %s20, 2
      // Predicated region
      $region49: #{emo_model_forward.12} parent=5 // pred_check
        %p358 = pneg %p357
      $region50: #{emo_model_forward.12} parent=5 // pred_check_branch
        %360 = sbr.rel (%p358) target = $region52
      $region51: #{emo_model_forward.12} parent=5 // pred_region
        // Predicated region
        $region53: #{emo_model_forward.12} parent=51 // pred_check
          %p361 = pneg %p40
        $region54: #{emo_model_forward.12} parent=51 // pred_check_branch
          %363 = sbr.rel (%p361) target = $region56
        $region55: #{emo_model_forward.12} parent=51 // pred_region
          %p364 = scmp.lt.s32.totalorder %s20, 1
          %s365 = scalar_select %p364, %s20, 1
          %s366 = smul.addr %s365, 8
          %s367 = scalar_lea.vmem %s0, %s366
        $region56: #{emo_model_forward.12} parent=51 // pred_fallthru
          _
      $region52: #{emo_model_forward.12} parent=5 // pred_fallthru
        _
      %p368 = scmp.le.s32.totalorder 1, %s20
      %p369 = scmp.lt.s32.totalorder %s20, 3
      %p370 = pnand %p368, %p369
      %p371 = pneg %p370
      // Predicated region
      $region57: #{emo_model_forward.12} parent=5 // pred_check
        _
      $region58: #{emo_model_forward.12} parent=5 // pred_check_branch
        %373 = sbr.rel (%p370) target = $region60
      $region59: #{emo_model_forward.12} parent=5 // pred_region
        %s374 = ssub.s32 %s20, 1
        // Predicated region
        $region61: #{emo_model_forward.12} parent=59 // pred_check
          %p375 = pneg %p67
        $region62: #{emo_model_forward.12} parent=59 // pred_check_branch
          %377 = sbr.rel (%p375) target = $region64
        $region63: #{emo_model_forward.12} parent=59 // pred_region
          %378 = dma.done [#allocation3], 6144
        $region64: #{emo_model_forward.12} parent=59 // pred_fallthru
          _
        // Predicated region
        $region65: #{emo_model_forward.12} parent=59 // pred_check
          %p379 = pneg %p109
        $region66: #{emo_model_forward.12} parent=59 // pred_check_branch
          %381 = sbr.rel (%p379) target = $region68
        $region67: #{emo_model_forward.12} parent=59 // pred_region
          %382 = dma.done [#allocation5], 2048
        $region68: #{emo_model_forward.12} parent=59 // pred_fallthru
          _
        // Predicated region
        $region69: #{emo_model_forward.12} parent=59 // pred_check
          %p383 = pneg %p130
        $region70: #{emo_model_forward.12} parent=59 // pred_check_branch
          %385 = sbr.rel (%p383) target = $region72
        $region71: #{emo_model_forward.12} parent=59 // pred_region
          %386 = dma.done [#allocation5], 16
        $region72: #{emo_model_forward.12} parent=59 // pred_fallthru
          _
        // Predicated region
        $region73: #{emo_model_forward.12} parent=59 // pred_check
          %p387 = pneg %p172
        $region74: #{emo_model_forward.12} parent=59 // pred_check_branch
          %389 = sbr.rel (%p387) target = $region76
        $region75: #{emo_model_forward.12} parent=59 // pred_region
          %390 = dma.done [#allocation8], 64
        $region76: #{emo_model_forward.12} parent=59 // pred_fallthru
          _
        // Predicated region
        $region77: #{emo_model_forward.12} parent=59 // pred_check
          %p391 = pneg %p193
        $region78: #{emo_model_forward.12} parent=59 // pred_check_branch
          %393 = sbr.rel (%p391) target = $region80
        $region79: #{emo_model_forward.12} parent=59 // pred_region
          %394 = dma.done [#allocation8], 8192
        $region80: #{emo_model_forward.12} parent=59 // pred_fallthru
          _
        // Predicated region
        $region81: #{emo_model_forward.12} parent=59 // pred_check
          %p395 = pneg %p214
        $region82: #{emo_model_forward.12} parent=59 // pred_check_branch
          %397 = sbr.rel (%p395) target = $region84
        $region83: #{emo_model_forward.12} parent=59 // pred_region
          %398 = dma.done [#allocation11], 16
        $region84: #{emo_model_forward.12} parent=59 // pred_fallthru
          _
        %p399 = scmp.lt.s32.totalorder %s25, 1
        %s400 = scalar_select %p399, %s25, 1
        %s401 = smul.addr %s400, 8
        %s402 = scalar_lea.vmem %s0, %s401
        %p403 = pneg %p46
        %p404 = pneg %p43
        %p405 = pneg %p67
        %p406 = pneg %p64
        %p407 = pneg %p88
        %p408 = pneg %p85
        %p409 = pneg %p109
        %p410 = pneg %p106
        %p411 = pneg %p130
        %p412 = pneg %p127
        %p413 = pneg %p151
        %p414 = pneg %p148
        %p415 = pneg %p172
        %p416 = pneg %p169
        %p417 = pneg %p193
        %p418 = pneg %p190
        %p419 = pneg %p214
        %p420 = pneg %p211
        %p421 = pneg %p235
        %p422 = pneg %p232
        %p423 = pneg %p261
        %p424 = pneg %p258
        %p425 = scmp.lt.s32.totalorder %s25, 1
        %s426 = scalar_select %p425, %s25, 1
        %s427 = smul.addr %s426, 8
        %s428 = scalar_lea.vmem %s10, %s427
        %p429 = scmp.lt.s32.totalorder %s25, 1
        %s430 = scalar_select %p429, %s25, 1
        %s431 = smul.addr %s430, 8
        %s432 = scalar_lea.vmem %s0, %s431
        %p433 = scmp.lt.s32.totalorder %s25, 1
        %s434 = scalar_select %p433, %s25, 1
        %s435 = smul.addr %s434, 8
        %s436 = scalar_lea.vmem %s10, %s435
        %v437 = vld [vmem:[%s432] sm:$0xff]
        %v438 = vld [vmem:[%s9] sm:$0xff]
        %439 = vadd.xlane.f32.xlu0 %v437
        %v440 = vpop.xlane.xlu0 %439
        %v441 = vrcp.pop 128.0
        %v442 = vmul.f32 %v440, %v441
        %v443 = vsub.f32 %v437, %v442
        %v444 = vmul.f32 %v443, %v443
        %445 = vadd.xlane.f32.xlu0 %v444
        %v446 = vpop.xlane.xlu0 %445
        %v447 = vmul.f32 %v446, %v441
        %v448 = vadd.f32 %v447, 1e-05
        %v449 = vrsqrt.pop %v448
        %v450 = vmul.f32 %v443, %v449
        %v451 = vlaneseq
        %v452 = vshrl.u32 %v451, 7
        %v453 = vsub.s32 0, %v452
        %v454 = vrot.slane %v438, %v453
        %v455 = vmul.f32 %v450, %v454
        %v456 = vlaneseq
        %v457 = vshrl.u32 %v456, 7
        %v458 = vsub.s32 1, %v457
        %v459 = vrot.slane %v438, %v458
        %v460 = vadd.f32 %v455, %v459
        %v461 = vld [vmem:[#allocation2] sm:$0xff]
        %v462 = vld [vmem:[#allocation2 + $0x8] sm:$0xff]
        %v463 = vld [vmem:[#allocation2 + $0x10] sm:$0xff]
        %v464 = vld [vmem:[#allocation2 + $0x18] sm:$0xff]
        %v465 = vld [vmem:[#allocation2 + $0x20] sm:$0xff]
        %v466 = vld [vmem:[#allocation2 + $0x28] sm:$0xff]
        %v467 = vld [vmem:[#allocation2 + $0x30] sm:$0xff]
        %v468 = vld [vmem:[#allocation2 + $0x38] sm:$0xff]
        %v469 = vld [vmem:[#allocation2 + $0x40] sm:$0xff]
        %v470 = vld [vmem:[#allocation2 + $0x48] sm:$0xff]
        %v471 = vld [vmem:[#allocation2 + $0x50] sm:$0xff]
        %v472 = vld [vmem:[#allocation2 + $0x58] sm:$0xff]
        %v473 = vld [vmem:[#allocation2 + $0x60] sm:$0xff]
        %v474 = vld [vmem:[#allocation2 + $0x68] sm:$0xff]
        %v475 = vld [vmem:[#allocation2 + $0x70] sm:$0xff]
        %v476 = vld [vmem:[#allocation2 + $0x78] sm:$0xff]
        %v477 = vld [vmem:[#allocation2 + $0x80] sm:$0xff]
        %v478 = vld [vmem:[#allocation2 + $0x88] sm:$0xff]
        %v479 = vld [vmem:[#allocation2 + $0x90] sm:$0xff]
        %v480 = vld [vmem:[#allocation2 + $0x98] sm:$0xff]
        %v481 = vld [vmem:[#allocation2 + $0xa0] sm:$0xff]
        %v482 = vld [vmem:[#allocation2 + $0xa8] sm:$0xff]
        %v483 = vld [vmem:[#allocation2 + $0xb0] sm:$0xff]
        %v484 = vld [vmem:[#allocation2 + $0xb8] sm:$0xff]
        %v485 = vld [vmem:[#allocation2 + $0xc0] sm:$0xff]
        %v486 = vld [vmem:[#allocation2 + $0xc8] sm:$0xff]
        %v487 = vld [vmem:[#allocation2 + $0xd0] sm:$0xff]
        %v488 = vld [vmem:[#allocation2 + $0xd8] sm:$0xff]
        %v489 = vld [vmem:[#allocation2 + $0xe0] sm:$0xff]
        %v490 = vld [vmem:[#allocation2 + $0xe8] sm:$0xff]
        %v491 = vld [vmem:[#allocation2 + $0xf0] sm:$0xff]
        %v492 = vld [vmem:[#allocation2 + $0xf8] sm:$0xff]
        %v493 = vld [vmem:[#allocation2 + $0x100] sm:$0xff]
        %v494 = vld [vmem:[#allocation2 + $0x108] sm:$0xff]
        %v495 = vld [vmem:[#allocation2 + $0x110] sm:$0xff]
        %v496 = vld [vmem:[#allocation2 + $0x118] sm:$0xff]
        %v497 = vld [vmem:[#allocation2 + $0x120] sm:$0xff]
        %v498 = vld [vmem:[#allocation2 + $0x128] sm:$0xff]
        %v499 = vld [vmem:[#allocation2 + $0x130] sm:$0xff]
        %v500 = vld [vmem:[#allocation2 + $0x138] sm:$0xff]
        %v501 = vld [vmem:[#allocation2 + $0x140] sm:$0xff]
        %v502 = vld [vmem:[#allocation2 + $0x148] sm:$0xff]
        %v503 = vld [vmem:[#allocation2 + $0x150] sm:$0xff]
        %v504 = vld [vmem:[#allocation2 + $0x158] sm:$0xff]
        %v505 = vld [vmem:[#allocation2 + $0x160] sm:$0xff]
        %v506 = vld [vmem:[#allocation2 + $0x168] sm:$0xff]
        %v507 = vld [vmem:[#allocation2 + $0x170] sm:$0xff]
        %v508 = vld [vmem:[#allocation2 + $0x178] sm:$0xff]
        %v509 = vld [vmem:[%s2] sm:$0x7]
        %v511 = vlaneseq
        %v512 = vshrl.u32 %v511, 7
        %v513 = vsub.s32 0, %v512
        %v514 = vrot.slane %v509, %v513
        %v515 = vlaneseq
        %v516 = vshrl.u32 %v515, 7
        %v517 = vsub.s32 1, %v516
        %v518 = vrot.slane %v509, %v517
        %v519 = vlaneseq
        %v520 = vshrl.u32 %v519, 7
        %v521 = vsub.s32 2, %v520
        %v522 = vrot.slane %v509, %v521
        %526 = vmatprep.subr.mxu0 %v462
        %527 = vmatpush1.msra.mxu0 %v461
        %528 = vmatprep.subr.mxu0 %v465
        %529 = vmatpush1.msra.mxu0 %v464
        %530 = vmatprep.subr.mxu0 %v468
        %531 = vmatpush1.msra.mxu0 %v467
        %532 = vmatprep.subr.mxu0 %v471
        %533 = vmatpush1.msra.mxu0 %v470
        %534 = vmatprep.subr.mxu0 %v474
        %535 = vmatpush1.msra.mxu0 %v473
        %536 = vmatprep.subr.mxu0 %v477
        %537 = vmatpush1.msra.mxu0 %v476
        %538 = vmatprep.subr.mxu0 %v480
        %539 = vmatpush1.msra.mxu0 %v479
        %540 = vmatprep.subr.mxu0 %v483
        %541 = vmatpush1.msra.mxu0 %v482
        %542 = vmatprep.subr.mxu0 %v486
        %543 = vmatpush1.msra.mxu0 %v485
        %544 = vmatprep.subr.mxu0 %v489
        %545 = vmatpush1.msra.mxu0 %v488
        %546 = vmatprep.subr.mxu0 %v492
        %547 = vmatpush1.msra.mxu0 %v491
        %548 = vmatprep.subr.mxu0 %v495
        %549 = vmatpush1.msra.mxu0 %v494
        %550 = vmatprep.subr.mxu0 %v498
        %551 = vmatpush1.msra.mxu0 %v497
        %552 = vmatprep.subr.mxu0 %v501
        %553 = vmatpush1.msra.mxu0 %v500
        %554 = vmatprep.subr.mxu0 %v504
        %555 = vmatpush1.msra.mxu0 %v503
        %556 = vmatprep.subr.mxu0 %v507
        %557 = vmatpush1.msra.mxu0 %v506
        %558 = vmatprep.subr.mxu0 0.0
        %559 = vmatpush1.msra.mxu0 0.0
        %560 = vmatprep.subr.mxu0 0.0
        %561 = vmatpush1.msra.mxu0 0.0
        %562 = vmatprep.subr.mxu0 0.0
        %563 = vmatpush1.msra.mxu0 0.0
        %564 = vmatprep.subr.mxu0 0.0
        %565 = vmatpush1.msra.mxu0 0.0
        %566 = vmatprep.subr.mxu0 0.0
        %567 = vmatpush1.msra.mxu0 0.0
        %568 = vmatprep.subr.mxu0 0.0
        %569 = vmatpush1.msra.mxu0 0.0
        %570 = vmatprep.subr.mxu0 0.0
        %571 = vmatpush1.msra.mxu0 0.0
        %572 = vmatprep.subr.mxu0 0.0
        %573 = vmatpush1.msra.mxu0 0.0
        %574 = vmatprep.subr.mxu0 0.0
        %575 = vmatpush1.msra.mxu0 0.0
        %576 = vmatprep.subr.mxu0 0.0
        %577 = vmatpush1.msra.mxu0 0.0
        %578 = vmatprep.subr.mxu0 0.0
        %579 = vmatpush1.msra.mxu0 0.0
        %580 = vmatprep.subr.mxu0 0.0
        %581 = vmatpush1.msra.mxu0 0.0
        %582 = vmatprep.subr.mxu0 0.0
        %583 = vmatpush1.msra.mxu0 0.0
        %584 = vmatprep.subr.mxu0 0.0
        %585 = vmatpush1.msra.mxu0 0.0
        %586 = vmatprep.subr.mxu0 0.0
        %587 = vmatpush1.msra.mxu0 0.0
        %588 = vmatprep.subr.mxu0 0.0
        %589 = vmatpush1.msra.mxu0 0.0
        %590 = vmatprep.mubr.f32.mxu0 0.0
        %591 = vmatmul.mubr.f32.gmra.mrb[0].mxu0 %v460
        %v592 = vpop.f32.mrb[0].mxu0
        %v593 = vadd.f32 %v514, %v592
        %v594 = vpop.f32.mrb[0].mxu0
        %v595 = vadd.f32 %v518, %v594
        %596 = vdwg.mxu0
        %597 = vmatprep.subr.mxu0 0.0
        %598 = vmatpush1.msra.mxu0 %v463
        %599 = vmatprep.subr.mxu0 0.0
        %600 = vmatpush1.msra.mxu0 %v466
        %601 = vmatprep.subr.mxu0 0.0
        %602 = vmatpush1.msra.mxu0 %v469
        %603 = vmatprep.subr.mxu0 0.0
        %604 = vmatpush1.msra.mxu0 %v472
        %605 = vmatprep.subr.mxu0 0.0
        %606 = vmatpush1.msra.mxu0 %v475
        %607 = vmatprep.subr.mxu0 0.0
        %608 = vmatpush1.msra.mxu0 %v478
        %609 = vmatprep.subr.mxu0 0.0
        %610 = vmatpush1.msra.mxu0 %v481
        %611 = vmatprep.subr.mxu0 0.0
        %612 = vmatpush1.msra.mxu0 %v484
        %613 = vmatprep.subr.mxu0 0.0
        %614 = vmatpush1.msra.mxu0 %v487
        %615 = vmatprep.subr.mxu0 0.0
        %616 = vmatpush1.msra.mxu0 %v490
        %617 = vmatprep.subr.mxu0 0.0
        %618 = vmatpush1.msra.mxu0 %v493
        %619 = vmatprep.subr.mxu0 0.0
        %620 = vmatpush1.msra.mxu0 %v496
        %621 = vmatprep.subr.mxu0 0.0
        %622 = vmatpush1.msra.mxu0 %v499
        %623 = vmatprep.subr.mxu0 0.0
        %624 = vmatpush1.msra.mxu0 %v502
        %625 = vmatprep.subr.mxu0 0.0
        %626 = vmatpush1.msra.mxu0 %v505
        %627 = vmatprep.subr.mxu0 0.0
        %628 = vmatpush1.msra.mxu0 %v508
        %629 = vmatprep.subr.mxu0 0.0
        %630 = vmatpush1.msra.mxu0 0.0
        %631 = vmatprep.subr.mxu0 0.0
        %632 = vmatpush1.msra.mxu0 0.0
        %633 = vmatprep.subr.mxu0 0.0
        %634 = vmatpush1.msra.mxu0 0.0
        %635 = vmatprep.subr.mxu0 0.0
        %636 = vmatpush1.msra.mxu0 0.0
        %637 = vmatprep.subr.mxu0 0.0
        %638 = vmatpush1.msra.mxu0 0.0
        %639 = vmatprep.subr.mxu0 0.0
        %640 = vmatpush1.msra.mxu0 0.0
        %641 = vmatprep.subr.mxu0 0.0
        %642 = vmatpush1.msra.mxu0 0.0
        %643 = vmatprep.subr.mxu0 0.0
        %644 = vmatpush1.msra.mxu0 0.0
        %645 = vmatprep.subr.mxu0 0.0
        %646 = vmatpush1.msra.mxu0 0.0
        %647 = vmatprep.subr.mxu0 0.0
        %648 = vmatpush1.msra.mxu0 0.0
        %649 = vmatprep.subr.mxu0 0.0
        %650 = vmatpush1.msra.mxu0 0.0
        %651 = vmatprep.subr.mxu0 0.0
        %652 = vmatpush1.msra.mxu0 0.0
        %653 = vmatprep.subr.mxu0 0.0
        %654 = vmatpush1.msra.mxu0 0.0
        %655 = vmatprep.subr.mxu0 0.0
        %656 = vmatpush1.msra.mxu0 0.0
        %657 = vmatprep.subr.mxu0 0.0
        %658 = vmatpush1.msra.mxu0 0.0
        %659 = vmatprep.subr.mxu0 0.0
        %660 = vmatpush1.msra.mxu0 0.0
        %661 = vmatprep.mubr.f32.mxu0 0.0
        %662 = vmatmul.mubr.f32.gmra.mrb[0].mxu0 %v460
        %v663 = vpop.f32.mrb[0].mxu0
        %v664 = vadd.f32 %v522, %v663
        %v665 = vpop.f32.mrb[0].mxu0
        %666 = vdwg.mxu0
        %vm667 = vcmask 261120
        %v669 = vsel %vm667, %v593, 0
        %v672 = vsel %vm667, %v595, 0
        %674 = vmatprep.subr.mxu0 0.0
        %675 = vmatpush1.xpose.msra.mxu0 %v672
        %676 = vmatprep.subr.mxu0 0.0
        %677 = vmatpush1.xpose.msra.mxu0 0.0
        %678 = vmatprep.subr.mxu0 0.0
        %679 = vmatpush1.xpose.msra.mxu0 0.0
        %680 = vmatprep.subr.mxu0 0.0
        %681 = vmatpush1.xpose.msra.mxu0 0.0
        %682 = vmatprep.subr.mxu0 0.0
        %683 = vmatpush1.xpose.msra.mxu0 0.0
        %684 = vmatprep.subr.mxu0 0.0
        %685 = vmatpush1.xpose.msra.mxu0 0.0
        %686 = vmatprep.subr.mxu0 0.0
        %687 = vmatpush1.xpose.msra.mxu0 0.0
        %688 = vmatprep.subr.mxu0 0.0
        %689 = vmatpush1.xpose.msra.mxu0 0.0
        %690 = vmatprep.subr.mxu0 0.0
        %691 = vmatpush1.xpose.msra.mxu0 0.0
        %692 = vmatprep.subr.mxu0 0.0
        %693 = vmatpush1.xpose.msra.mxu0 0.0
        %694 = vmatprep.subr.mxu0 0.0
        %695 = vmatpush1.xpose.msra.mxu0 0.0
        %696 = vmatprep.subr.mxu0 0.0
        %697 = vmatpush1.xpose.msra.mxu0 0.0
        %698 = vmatprep.subr.mxu0 0.0
        %699 = vmatpush1.xpose.msra.mxu0 0.0
        %700 = vmatprep.subr.mxu0 0.0
        %701 = vmatpush1.xpose.msra.mxu0 0.0
        %702 = vmatprep.subr.mxu0 0.0
        %703 = vmatpush1.xpose.msra.mxu0 0.0
        %704 = vmatprep.subr.mxu0 0.0
        %705 = vmatpush1.xpose.msra.mxu0 0.0
        %706 = vmatprep.subr.mxu0 0.0
        %707 = vmatpush1.xpose.msra.mxu0 0.0
        %708 = vmatprep.subr.mxu0 0.0
        %709 = vmatpush1.xpose.msra.mxu0 0.0
        %710 = vmatprep.subr.mxu0 0.0
        %711 = vmatpush1.xpose.msra.mxu0 0.0
        %712 = vmatprep.subr.mxu0 0.0
        %713 = vmatpush1.xpose.msra.mxu0 0.0
        %714 = vmatprep.subr.mxu0 0.0
        %715 = vmatpush1.xpose.msra.mxu0 0.0
        %716 = vmatprep.subr.mxu0 0.0
        %717 = vmatpush1.xpose.msra.mxu0 0.0
        %718 = vmatprep.subr.mxu0 0.0
        %719 = vmatpush1.xpose.msra.mxu0 0.0
        %720 = vmatprep.subr.mxu0 0.0
        %721 = vmatpush1.xpose.msra.mxu0 0.0
        %722 = vmatprep.subr.mxu0 0.0
        %723 = vmatpush1.xpose.msra.mxu0 0.0
        %724 = vmatprep.subr.mxu0 0.0
        %725 = vmatpush1.xpose.msra.mxu0 0.0
        %726 = vmatprep.subr.mxu0 0.0
        %727 = vmatpush1.xpose.msra.mxu0 0.0
        %728 = vmatprep.subr.mxu0 0.0
        %729 = vmatpush1.xpose.msra.mxu0 0.0
        %730 = vmatprep.subr.mxu0 0.0
        %731 = vmatpush1.xpose.msra.mxu0 0.0
        %732 = vmatprep.subr.mxu0 0.0
        %733 = vmatpush1.xpose.msra.mxu0 0.0
        %734 = vmatprep.subr.mxu0 0.0
        %735 = vmatpush1.xpose.msra.mxu0 0.0
        %736 = vmatprep.subr.mxu0 0.0
        %737 = vmatpush1.xpose.msra.mxu0 0.0
        %738 = vmatprep.mubr.f32.mxu0 0.0
        %739 = vmatmul.mubr.f32.gmra.mrb[0].mxu0 %v669
        %v740 = vpop.f32.mrb[0].mxu0
        %v741 = vadd.f32 0.0, %v740
        %v742 = vpop.f32.mrb[0].mxu0
        %743 = vdwg.mxu0
        %v744 = vmul.f32 %v741, 0.17677669
        %vm745 = vcmask 64512
        %v746 = vsel %vm745, %v744, -inf
        %747 = vmax.xlane.f32.xlu0 %v746
        %v748 = vpop.xlane.xlu0 %747
        %v749 = vsub.f32 %v744, %v748
        %v750 = vmul.f32 %v749, 1.442695
        %v751 = vpow.pop %v750
        %v752 = vsel %vm745, %v751, 0.0
        %753 = vadd.xlane.f32.xlu0 %v752
        %v754 = vpop.xlane.xlu0 %753
        %v755 = vrcp.pop %v754
        %v756 = vmul.f32 %v751, %v755
        %v758 = vsel %vm745, %v756, 0
        %760 = vmatprep.subr.mxu0 0.0
        %761 = vmatpush1.msra.mxu0 %v664
        %762 = vmatprep.subr.mxu0 0.0
        %763 = vmatpush1.msra.mxu0 0.0
        %764 = vmatprep.subr.mxu0 0.0
        %765 = vmatpush1.msra.mxu0 0.0
        %766 = vmatprep.subr.mxu0 0.0
        %767 = vmatpush1.msra.mxu0 0.0
        %768 = vmatprep.subr.mxu0 0.0
        %769 = vmatpush1.msra.mxu0 0.0
        %770 = vmatprep.subr.mxu0 0.0
        %771 = vmatpush1.msra.mxu0 0.0
        %772 = vmatprep.subr.mxu0 0.0
        %773 = vmatpush1.msra.mxu0 0.0
        %774 = vmatprep.subr.mxu0 0.0
        %775 = vmatpush1.msra.mxu0 0.0
        %776 = vmatprep.subr.mxu0 0.0
        %777 = vmatpush1.msra.mxu0 0.0
        %778 = vmatprep.subr.mxu0 0.0
        %779 = vmatpush1.msra.mxu0 0.0
        %780 = vmatprep.subr.mxu0 0.0
        %781 = vmatpush1.msra.mxu0 0.0
        %782 = vmatprep.subr.mxu0 0.0
        %783 = vmatpush1.msra.mxu0 0.0
        %784 = vmatprep.subr.mxu0 0.0
        %785 = vmatpush1.msra.mxu0 0.0
        %786 = vmatprep.subr.mxu0 0.0
        %787 = vmatpush1.msra.mxu0 0.0
        %788 = vmatprep.subr.mxu0 0.0
        %789 = vmatpush1.msra.mxu0 0.0
        %790 = vmatprep.subr.mxu0 0.0
        %791 = vmatpush1.msra.mxu0 0.0
        %792 = vmatprep.subr.mxu0 0.0
        %793 = vmatpush1.msra.mxu0 0.0
        %794 = vmatprep.subr.mxu0 0.0
        %795 = vmatpush1.msra.mxu0 0.0
        %796 = vmatprep.subr.mxu0 0.0
        %797 = vmatpush1.msra.mxu0 0.0
        %798 = vmatprep.subr.mxu0 0.0
        %799 = vmatpush1.msra.mxu0 0.0
        %800 = vmatprep.subr.mxu0 0.0
        %801 = vmatpush1.msra.mxu0 0.0
        %802 = vmatprep.subr.mxu0 0.0
        %803 = vmatpush1.msra.mxu0 0.0
        %804 = vmatprep.subr.mxu0 0.0
        %805 = vmatpush1.msra.mxu0 0.0
        %806 = vmatprep.subr.mxu0 0.0
        %807 = vmatpush1.msra.mxu0 0.0
        %808 = vmatprep.subr.mxu0 0.0
        %809 = vmatpush1.msra.mxu0 0.0
        %810 = vmatprep.subr.mxu0 0.0
        %811 = vmatpush1.msra.mxu0 0.0
        %812 = vmatprep.subr.mxu0 0.0
        %813 = vmatpush1.msra.mxu0 0.0
        %814 = vmatprep.subr.mxu0 0.0
        %815 = vmatpush1.msra.mxu0 0.0
        %816 = vmatprep.subr.mxu0 0.0
        %817 = vmatpush1.msra.mxu0 0.0
        %818 = vmatprep.subr.mxu0 0.0
        %819 = vmatpush1.msra.mxu0 0.0
        %820 = vmatprep.subr.mxu0 0.0
        %821 = vmatpush1.msra.mxu0 0.0
        %822 = vmatprep.subr.mxu0 0.0
        %823 = vmatpush1.msra.mxu0 0.0
        %824 = vmatprep.mubr.f32.mxu0 0.0
        %825 = vmatmul.mubr.f32.gmra.mrb[0].mxu0 %v758
        %v826 = vpop.f32.mrb[0].mxu0
        %v827 = vadd.f32 0.0, %v826
        %v828 = vpop.f32.mrb[0].mxu0
        %829 = vdwg.mxu0
        %v830 = vld [vmem:[#allocation4] sm:$0xff]
        %v831 = vld [vmem:[#allocation4 + $0x8] sm:$0xff]
        %v832 = vld [vmem:[#allocation4 + $0x10] sm:$0xff]
        %v833 = vld [vmem:[#allocation4 + $0x18] sm:$0xff]
        %834 = vrot.lane.b32.xlu0 %v593, 96
        %v835 = vpop.permute.xlu0 %834
        %836 = vrot.lane.b32.xlu0 %v595, 96
        %v837 = vpop.permute.xlu0 %836
        %v838 = vsel %vm667, %v835, 0
        %v840 = vsel %vm667, %v837, 0
        %842 = vmatprep.subr.mxu0 0.0
        %843 = vmatpush1.xpose.msra.mxu0 %v840
        %844 = vmatprep.subr.mxu0 0.0
        %845 = vmatpush1.xpose.msra.mxu0 0.0
        %846 = vmatprep.subr.mxu0 0.0
        %847 = vmatpush1.xpose.msra.mxu0 0.0
        %848 = vmatprep.subr.mxu0 0.0
        %849 = vmatpush1.xpose.msra.mxu0 0.0
        %850 = vmatprep.subr.mxu0 0.0
        %851 = vmatpush1.xpose.msra.mxu0 0.0
        %852 = vmatprep.subr.mxu0 0.0
        %853 = vmatpush1.xpose.msra.mxu0 0.0
        %854 = vmatprep.subr.mxu0 0.0
        %855 = vmatpush1.xpose.msra.mxu0 0.0
        %856 = vmatprep.subr.mxu0 0.0
        %857 = vmatpush1.xpose.msra.mxu0 0.0
        %858 = vmatprep.subr.mxu0 0.0
        %859 = vmatpush1.xpose.msra.mxu0 0.0
        %860 = vmatprep.subr.mxu0 0.0
        %861 = vmatpush1.xpose.msra.mxu0 0.0
        %862 = vmatprep.subr.mxu0 0.0
        %863 = vmatpush1.xpose.msra.mxu0 0.0
        %864 = vmatprep.subr.mxu0 0.0
        %865 = vmatpush1.xpose.msra.mxu0 0.0
        %866 = vmatprep.subr.mxu0 0.0
        %867 = vmatpush1.xpose.msra.mxu0 0.0
        %868 = vmatprep.subr.mxu0 0.0
        %869 = vmatpush1.xpose.msra.mxu0 0.0
        %870 = vmatprep.subr.mxu0 0.0
        %871 = vmatpush1.xpose.msra.mxu0 0.0
        %872 = vmatprep.subr.mxu0 0.0
        %873 = vmatpush1.xpose.msra.mxu0 0.0
        %874 = vmatprep.subr.mxu0 0.0
        %875 = vmatpush1.xpose.msra.mxu0 0.0
        %876 = vmatprep.subr.mxu0 0.0
        %877 = vmatpush1.xpose.msra.mxu0 0.0
        %878 = vmatprep.subr.mxu0 0.0
        %879 = vmatpush1.xpose.msra.mxu0 0.0
        %880 = vmatprep.subr.mxu0 0.0
        %881 = vmatpush1.xpose.msra.mxu0 0.0
        %882 = vmatprep.subr.mxu0 0.0
        %883 = vmatpush1.xpose.msra.mxu0 0.0
        %884 = vmatprep.subr.mxu0 0.0
        %885 = vmatpush1.xpose.msra.mxu0 0.0
        %886 = vmatprep.subr.mxu0 0.0
        %887 = vmatpush1.xpose.msra.mxu0 0.0
        %888 = vmatprep.subr.mxu0 0.0
        %889 = vmatpush1.xpose.msra.mxu0 0.0
        %890 = vmatprep.subr.mxu0 0.0
        %891 = vmatpush1.xpose.msra.mxu0 0.0
        %892 = vmatprep.subr.mxu0 0.0
        %893 = vmatpush1.xpose.msra.mxu0 0.0
        %894 = vmatprep.subr.mxu0 0.0
        %895 = vmatpush1.xpose.msra.mxu0 0.0
        %896 = vmatprep.subr.mxu0 0.0
        %897 = vmatpush1.xpose.msra.mxu0 0.0
        %898 = vmatprep.subr.mxu0 0.0
        %899 = vmatpush1.xpose.msra.mxu0 0.0
        %900 = vmatprep.subr.mxu0 0.0
        %901 = vmatpush1.xpose.msra.mxu0 0.0
        %902 = vmatprep.subr.mxu0 0.0
        %903 = vmatpush1.xpose.msra.mxu0 0.0
        %904 = vmatprep.subr.mxu0 0.0
        %905 = vmatpush1.xpose.msra.mxu0 0.0
        %906 = vmatprep.mubr.f32.mxu0 0.0
        %907 = vmatmul.mubr.f32.gmra.mrb[0].mxu0 %v838
        %v908 = vpop.f32.mrb[0].mxu0
        %v909 = vadd.f32 0.0, %v908
        %v910 = vpop.f32.mrb[0].mxu0
        %911 = vdwg.mxu0
        %v912 = vmul.f32 %v909, 0.17677669
        %v913 = vsel %vm745, %v912, -inf
        %914 = vmax.xlane.f32.xlu0 %v913
        %v915 = vpop.xlane.xlu0 %914
        %v916 = vsub.f32 %v912, %v915
        %v917 = vmul.f32 %v916, 1.442695
        %v918 = vpow.pop %v917
        %v919 = vsel %vm745, %v918, 0.0
        %920 = vadd.xlane.f32.xlu0 %v919
        %v921 = vpop.xlane.xlu0 %920
        %v922 = vrcp.pop %v921
        %v923 = vmul.f32 %v918, %v922
        %925 = vrot.lane.b32.xlu0 %v664, 96
        %v926 = vpop.permute.xlu0 %925
        %v929 = vsel %vm745, %v923, 0
        %931 = vmatprep.subr.mxu0 0.0
        %932 = vmatpush1.msra.mxu0 %v926
        %933 = vmatprep.subr.mxu0 0.0
        %934 = vmatpush1.msra.mxu0 0.0
        %935 = vmatprep.subr.mxu0 0.0
        %936 = vmatpush1.msra.mxu0 0.0
        %937 = vmatprep.subr.mxu0 0.0
        %938 = vmatpush1.msra.mxu0 0.0
        %939 = vmatprep.subr.mxu0 0.0
        %940 = vmatpush1.msra.mxu0 0.0
        %941 = vmatprep.subr.mxu0 0.0
        %942 = vmatpush1.msra.mxu0 0.0
        %943 = vmatprep.subr.mxu0 0.0
        %944 = vmatpush1.msra.mxu0 0.0
        %945 = vmatprep.subr.mxu0 0.0
        %946 = vmatpush1.msra.mxu0 0.0
        %947 = vmatprep.subr.mxu0 0.0
        %948 = vmatpush1.msra.mxu0 0.0
        %949 = vmatprep.subr.mxu0 0.0
        %950 = vmatpush1.msra.mxu0 0.0
        %951 = vmatprep.subr.mxu0 0.0
        %952 = vmatpush1.msra.mxu0 0.0
        %953 = vmatprep.subr.mxu0 0.0
        %954 = vmatpush1.msra.mxu0 0.0
        %955 = vmatprep.subr.mxu0 0.0
        %956 = vmatpush1.msra.mxu0 0.0
        %957 = vmatprep.subr.mxu0 0.0
        %958 = vmatpush1.msra.mxu0 0.0
        %959 = vmatprep.subr.mxu0 0.0
        %960 = vmatpush1.msra.mxu0 0.0
        %961 = vmatprep.subr.mxu0 0.0
        %962 = vmatpush1.msra.mxu0 0.0
        %963 = vmatprep.subr.mxu0 0.0
        %964 = vmatpush1.msra.mxu0 0.0
        %965 = vmatprep.subr.mxu0 0.0
        %966 = vmatpush1.msra.mxu0 0.0
        %967 = vmatprep.subr.mxu0 0.0
        %968 = vmatpush1.msra.mxu0 0.0
        %969 = vmatprep.subr.mxu0 0.0
        %970 = vmatpush1.msra.mxu0 0.0
        %971 = vmatprep.subr.mxu0 0.0
        %972 = vmatpush1.msra.mxu0 0.0
        %973 = vmatprep.subr.mxu0 0.0
        %974 = vmatpush1.msra.mxu0 0.0
        %975 = vmatprep.subr.mxu0 0.0
        %976 = vmatpush1.msra.mxu0 0.0
        %977 = vmatprep.subr.mxu0 0.0
        %978 = vmatpush1.msra.mxu0 0.0
        %979 = vmatprep.subr.mxu0 0.0
        %980 = vmatpush1.msra.mxu0 0.0
        %981 = vmatprep.subr.mxu0 0.0
        %982 = vmatpush1.msra.mxu0 0.0
        %983 = vmatprep.subr.mxu0 0.0
        %984 = vmatpush1.msra.mxu0 0.0
        %985 = vmatprep.subr.mxu0 0.0
        %986 = vmatpush1.msra.mxu0 0.0
        %987 = vmatprep.subr.mxu0 0.0
        %988 = vmatpush1.msra.mxu0 0.0
        %989 = vmatprep.subr.mxu0 0.0
        %990 = vmatpush1.msra.mxu0 0.0
        %991 = vmatprep.subr.mxu0 0.0
        %992 = vmatpush1.msra.mxu0 0.0
        %993 = vmatprep.subr.mxu0 0.0
        %994 = vmatpush1.msra.mxu0 0.0
        %995 = vmatprep.mubr.f32.mxu0 0.0
        %996 = vmatmul.mubr.f32.gmra.mrb[0].mxu0 %v929
        %v997 = vpop.f32.mrb[0].mxu0
        %v998 = vadd.f32 0.0, %v997
        %v999 = vpop.f32.mrb[0].mxu0
        %1000 = vdwg.mxu0
        %v1001 = vld [vmem:[#allocation4 + $0x20] sm:$0xff]
        %v1002 = vld [vmem:[#allocation4 + $0x28] sm:$0xff]
        %v1003 = vld [vmem:[#allocation4 + $0x30] sm:$0xff]
        %v1004 = vld [vmem:[#allocation4 + $0x38] sm:$0xff]
        %v1006 = vsel %vm667, %v998, 0
        %1008 = vmatprep.subr.mxu0 0.0
        %1009 = vmatpush1.msra.mxu0 %v1001
        %1010 = vmatprep.subr.mxu0 0.0
        %1011 = vmatpush1.msra.mxu0 %v1002
        %1012 = vmatprep.subr.mxu0 0.0
        %1013 = vmatpush1.msra.mxu0 %v1003
        %1014 = vmatprep.subr.mxu0 0.0
        %1015 = vmatpush1.msra.mxu0 %v1004
        %1016 = vmatprep.subr.mxu0 0.0
        %1017 = vmatpush1.msra.mxu0 0.0
        %1018 = vmatprep.subr.mxu0 0.0
        %1019 = vmatpush1.msra.mxu0 0.0
        %1020 = vmatprep.subr.mxu0 0.0
        %1021 = vmatpush1.msra.mxu0 0.0
        %1022 = vmatprep.subr.mxu0 0.0
        %1023 = vmatpush1.msra.mxu0 0.0
        %1024 = vmatprep.subr.mxu0 0.0
        %1025 = vmatpush1.msra.mxu0 0.0
        %1026 = vmatprep.subr.mxu0 0.0
        %1027 = vmatpush1.msra.mxu0 0.0
        %1028 = vmatprep.subr.mxu0 0.0
        %1029 = vmatpush1.msra.mxu0 0.0
        %1030 = vmatprep.subr.mxu0 0.0
        %1031 = vmatpush1.msra.mxu0 0.0
        %1032 = vmatprep.subr.mxu0 0.0
        %1033 = vmatpush1.msra.mxu0 0.0
        %1034 = vmatprep.subr.mxu0 0.0
        %1035 = vmatpush1.msra.mxu0 0.0
        %1036 = vmatprep.subr.mxu0 0.0
        %1037 = vmatpush1.msra.mxu0 0.0
        %1038 = vmatprep.subr.mxu0 0.0
        %1039 = vmatpush1.msra.mxu0 0.0
        %1040 = vmatprep.subr.mxu0 0.0
        %1041 = vmatpush1.msra.mxu0 0.0
        %1042 = vmatprep.subr.mxu0 0.0
        %1043 = vmatpush1.msra.mxu0 0.0
        %1044 = vmatprep.subr.mxu0 0.0
        %1045 = vmatpush1.msra.mxu0 0.0
        %1046 = vmatprep.subr.mxu0 0.0
        %1047 = vmatpush1.msra.mxu0 0.0
        %1048 = vmatprep.subr.mxu0 0.0
        %1049 = vmatpush1.msra.mxu0 0.0
        %1050 = vmatprep.subr.mxu0 0.0
        %1051 = vmatpush1.msra.mxu0 0.0
        %1052 = vmatprep.subr.mxu0 0.0
        %1053 = vmatpush1.msra.mxu0 0.0
        %1054 = vmatprep.subr.mxu0 0.0
        %1055 = vmatpush1.msra.mxu0 0.0
        %1056 = vmatprep.subr.mxu0 0.0
        %1057 = vmatpush1.msra.mxu0 0.0
        %1058 = vmatprep.subr.mxu0 0.0
        %1059 = vmatpush1.msra.mxu0 0.0
        %1060 = vmatprep.subr.mxu0 0.0
        %1061 = vmatpush1.msra.mxu0 0.0
        %1062 = vmatprep.subr.mxu0 0.0
        %1063 = vmatpush1.msra.mxu0 0.0
        %1064 = vmatprep.subr.mxu0 0.0
        %1065 = vmatpush1.msra.mxu0 0.0
        %1066 = vmatprep.subr.mxu0 0.0
        %1067 = vmatpush1.msra.mxu0 0.0
        %1068 = vmatprep.subr.mxu0 0.0
        %1069 = vmatpush1.msra.mxu0 0.0
        %1070 = vmatprep.subr.mxu0 0.0
        %1071 = vmatpush1.msra.mxu0 0.0
        %1072 = vmatprep.mubr.f32.mxu0 0.0
        %1073 = vmatmul.mubr.f32.gmra.mrb[0].mxu0 %v1006
        %v1074 = vpop.f32.mrb[0].mxu0
        %v1075 = vadd.f32 0.0, %v1074
        %v1076 = vpop.f32.mrb[0].mxu0
        %1077 = vdwg.mxu0
        %v1079 = vsel %vm667, %v827, 0
        %1081 = vmatprep.subr.mxu0 0.0
        %1082 = vmatpush1.msra.mxu0 %v830
        %1083 = vmatprep.subr.mxu0 0.0
        %1084 = vmatpush1.msra.mxu0 %v831
        %1085 = vmatprep.subr.mxu0 0.0
        %1086 = vmatpush1.msra.mxu0 %v832
        %1087 = vmatprep.subr.mxu0 0.0
        %1088 = vmatpush1.msra.mxu0 %v833
        %1089 = vmatprep.subr.mxu0 0.0
        %1090 = vmatpush1.msra.mxu0 0.0
        %1091 = vmatprep.subr.mxu0 0.0
        %1092 = vmatpush1.msra.mxu0 0.0
        %1093 = vmatprep.subr.mxu0 0.0
        %1094 = vmatpush1.msra.mxu0 0.0
        %1095 = vmatprep.subr.mxu0 0.0
        %1096 = vmatpush1.msra.mxu0 0.0
        %1097 = vmatprep.subr.mxu0 0.0
        %1098 = vmatpush1.msra.mxu0 0.0
        %1099 = vmatprep.subr.mxu0 0.0
        %1100 = vmatpush1.msra.mxu0 0.0
        %1101 = vmatprep.subr.mxu0 0.0
        %1102 = vmatpush1.msra.mxu0 0.0
        %1103 = vmatprep.subr.mxu0 0.0
        %1104 = vmatpush1.msra.mxu0 0.0
        %1105 = vmatprep.subr.mxu0 0.0
        %1106 = vmatpush1.msra.mxu0 0.0
        %1107 = vmatprep.subr.mxu0 0.0
        %1108 = vmatpush1.msra.mxu0 0.0
        %1109 = vmatprep.subr.mxu0 0.0
        %1110 = vmatpush1.msra.mxu0 0.0
        %1111 = vmatprep.subr.mxu0 0.0
        %1112 = vmatpush1.msra.mxu0 0.0
        %1113 = vmatprep.subr.mxu0 0.0
        %1114 = vmatpush1.msra.mxu0 0.0
        %1115 = vmatprep.subr.mxu0 0.0
        %1116 = vmatpush1.msra.mxu0 0.0
        %1117 = vmatprep.subr.mxu0 0.0
        %1118 = vmatpush1.msra.mxu0 0.0
        %1119 = vmatprep.subr.mxu0 0.0
        %1120 = vmatpush1.msra.mxu0 0.0
        %1121 = vmatprep.subr.mxu0 0.0
        %1122 = vmatpush1.msra.mxu0 0.0
        %1123 = vmatprep.subr.mxu0 0.0
        %1124 = vmatpush1.msra.mxu0 0.0
        %1125 = vmatprep.subr.mxu0 0.0
        %1126 = vmatpush1.msra.mxu0 0.0
        %1127 = vmatprep.subr.mxu0 0.0
        %1128 = vmatpush1.msra.mxu0 0.0
        %1129 = vmatprep.subr.mxu0 0.0
        %1130 = vmatpush1.msra.mxu0 0.0
        %1131 = vmatprep.subr.mxu0 0.0
        %1132 = vmatpush1.msra.mxu0 0.0
        %1133 = vmatprep.subr.mxu0 0.0
        %1134 = vmatpush1.msra.mxu0 0.0
        %1135 = vmatprep.subr.mxu0 0.0
        %1136 = vmatpush1.msra.mxu0 0.0
        %1137 = vmatprep.subr.mxu0 0.0
        %1138 = vmatpush1.msra.mxu0 0.0
        %1139 = vmatprep.subr.mxu0 0.0
        %1140 = vmatpush1.msra.mxu0 0.0
        %1141 = vmatprep.subr.mxu0 0.0
        %1142 = vmatpush1.msra.mxu0 0.0
        %1143 = vmatprep.subr.mxu0 0.0
        %1144 = vmatpush1.msra.mxu0 0.0
        %1145 = vmatprep.mubr.f32.mxu0 0.0
        %1146 = vmatmul.mubr.f32.gmra.mrb[0].mxu0 %v1079
        %v1147 = vpop.f32.mrb[0].mxu0
        %v1148 = vadd.f32 %v1075, %v1147
        %v1149 = vpop.f32.mrb[0].mxu0
        %1150 = vdwg.mxu0
        %1151 = vrot.lane.b32.xlu0 %v593, 64
        %v1152 = vpop.permute.xlu0 %1151
        %1153 = vrot.lane.b32.xlu0 %v595, 64
        %v1154 = vpop.permute.xlu0 %1153
        %v1155 = vsel %vm667, %v1152, 0
        %v1157 = vsel %vm667, %v1154, 0
        %1159 = vmatprep.subr.mxu0 0.0
        %1160 = vmatpush1.xpose.msra.mxu0 %v1157
        %1161 = vmatprep.subr.mxu0 0.0
        %1162 = vmatpush1.xpose.msra.mxu0 0.0
        %1163 = vmatprep.subr.mxu0 0.0
        %1164 = vmatpush1.xpose.msra.mxu0 0.0
        %1165 = vmatprep.subr.mxu0 0.0
        %1166 = vmatpush1.xpose.msra.mxu0 0.0
        %1167 = vmatprep.subr.mxu0 0.0
        %1168 = vmatpush1.xpose.msra.mxu0 0.0
        %1169 = vmatprep.subr.mxu0 0.0
        %1170 = vmatpush1.xpose.msra.mxu0 0.0
        %1171 = vmatprep.subr.mxu0 0.0
        %1172 = vmatpush1.xpose.msra.mxu0 0.0
        %1173 = vmatprep.subr.mxu0 0.0
        %1174 = vmatpush1.xpose.msra.mxu0 0.0
        %1175 = vmatprep.subr.mxu0 0.0
        %1176 = vmatpush1.xpose.msra.mxu0 0.0
        %1177 = vmatprep.subr.mxu0 0.0
        %1178 = vmatpush1.xpose.msra.mxu0 0.0
        %1179 = vmatprep.subr.mxu0 0.0
        %1180 = vmatpush1.xpose.msra.mxu0 0.0
        %1181 = vmatprep.subr.mxu0 0.0
        %1182 = vmatpush1.xpose.msra.mxu0 0.0
        %1183 = vmatprep.subr.mxu0 0.0
        %1184 = vmatpush1.xpose.msra.mxu0 0.0
        %1185 = vmatprep.subr.mxu0 0.0
        %1186 = vmatpush1.xpose.msra.mxu0 0.0
        %1187 = vmatprep.subr.mxu0 0.0
        %1188 = vmatpush1.xpose.msra.mxu0 0.0
        %1189 = vmatprep.subr.mxu0 0.0
        %1190 = vmatpush1.xpose.msra.mxu0 0.0
        %1191 = vmatprep.subr.mxu0 0.0
        %1192 = vmatpush1.xpose.msra.mxu0 0.0
        %1193 = vmatprep.subr.mxu0 0.0
        %1194 = vmatpush1.xpose.msra.mxu0 0.0
        %1195 = vmatprep.subr.mxu0 0.0
        %1196 = vmatpush1.xpose.msra.mxu0 0.0
        %1197 = vmatprep.subr.mxu0 0.0
        %1198 = vmatpush1.xpose.msra.mxu0 0.0
        %1199 = vmatprep.subr.mxu0 0.0
        %1200 = vmatpush1.xpose.msra.mxu0 0.0
        %1201 = vmatprep.subr.mxu0 0.0
        %1202 = vmatpush1.xpose.msra.mxu0 0.0
        %1203 = vmatprep.subr.mxu0 0.0
        %1204 = vmatpush1.xpose.msra.mxu0 0.0
        %1205 = vmatprep.subr.mxu0 0.0
        %1206 = vmatpush1.xpose.msra.mxu0 0.0
        %1207 = vmatprep.subr.mxu0 0.0
        %1208 = vmatpush1.xpose.msra.mxu0 0.0
        %1209 = vmatprep.subr.mxu0 0.0
        %1210 = vmatpush1.xpose.msra.mxu0 0.0
        %1211 = vmatprep.subr.mxu0 0.0
        %1212 = vmatpush1.xpose.msra.mxu0 0.0
        %1213 = vmatprep.subr.mxu0 0.0
        %1214 = vmatpush1.xpose.msra.mxu0 0.0
        %1215 = vmatprep.subr.mxu0 0.0
        %1216 = vmatpush1.xpose.msra.mxu0 0.0
        %1217 = vmatprep.subr.mxu0 0.0
        %1218 = vmatpush1.xpose.msra.mxu0 0.0
        %1219 = vmatprep.subr.mxu0 0.0
        %1220 = vmatpush1.xpose.msra.mxu0 0.0
        %1221 = vmatprep.subr.mxu0 0.0
        %1222 = vmatpush1.xpose.msra.mxu0 0.0
        %1223 = vmatprep.mubr.f32.mxu0 0.0
        %1224 = vmatmul.mubr.f32.gmra.mrb[0].mxu0 %v1155
        %v1225 = vpop.f32.mrb[0].mxu0
        %v1226 = vadd.f32 0.0, %v1225
        %v1227 = vpop.f32.mrb[0].mxu0
        %1228 = vdwg.mxu0
        %v1229 = vmul.f32 %v1226, 0.17677669
        %v1230 = vsel %vm745, %v1229, -inf
        %1231 = vmax.xlane.f32.xlu0 %v1230
        %v1232 = vpop.xlane.xlu0 %1231
        %v1233 = vsub.f32 %v1229, %v1232
        %v1234 = vmul.f32 %v1233, 1.442695
        %v1235 = vpow.pop %v1234
        %v1236 = vsel %vm745, %v1235, 0.0
        %1237 = vadd.xlane.f32.xlu0 %v1236
        %v1238 = vpop.xlane.xlu0 %1237
        %v1239 = vrcp.pop %v1238
        %v1240 = vmul.f32 %v1235, %v1239
        %1241 = vrot.lane.b32.xlu0 %v664, 64
        %v1242 = vpop.permute.xlu0 %1241
        %v1245 = vsel %vm745, %v1240, 0
        %1247 = vmatprep.subr.mxu0 0.0
        %1248 = vmatpush1.msra.mxu0 %v1242
        %1249 = vmatprep.subr.mxu0 0.0
        %1250 = vmatpush1.msra.mxu0 0.0
        %1251 = vmatprep.subr.mxu0 0.0
        %1252 = vmatpush1.msra.mxu0 0.0
        %1253 = vmatprep.subr.mxu0 0.0
        %1254 = vmatpush1.msra.mxu0 0.0
        %1255 = vmatprep.subr.mxu0 0.0
        %1256 = vmatpush1.msra.mxu0 0.0
        %1257 = vmatprep.subr.mxu0 0.0
        %1258 = vmatpush1.msra.mxu0 0.0
        %1259 = vmatprep.subr.mxu0 0.0
        %1260 = vmatpush1.msra.mxu0 0.0
        %1261 = vmatprep.subr.mxu0 0.0
        %1262 = vmatpush1.msra.mxu0 0.0
        %1263 = vmatprep.subr.mxu0 0.0
        %1264 = vmatpush1.msra.mxu0 0.0
        %1265 = vmatprep.subr.mxu0 0.0
        %1266 = vmatpush1.msra.mxu0 0.0
        %1267 = vmatprep.subr.mxu0 0.0
        %1268 = vmatpush1.msra.mxu0 0.0
        %1269 = vmatprep.subr.mxu0 0.0
        %1270 = vmatpush1.msra.mxu0 0.0
        %1271 = vmatprep.subr.mxu0 0.0
        %1272 = vmatpush1.msra.mxu0 0.0
        %1273 = vmatprep.subr.mxu0 0.0
        %1274 = vmatpush1.msra.mxu0 0.0
        %1275 = vmatprep.subr.mxu0 0.0
        %1276 = vmatpush1.msra.mxu0 0.0
        %1277 = vmatprep.subr.mxu0 0.0
        %1278 = vmatpush1.msra.mxu0 0.0
        %1279 = vmatprep.subr.mxu0 0.0
        %1280 = vmatpush1.msra.mxu0 0.0
        %1281 = vmatprep.subr.mxu0 0.0
        %1282 = vmatpush1.msra.mxu0 0.0
        %1283 = vmatprep.subr.mxu0 0.0
        %1284 = vmatpush1.msra.mxu0 0.0
        %1285 = vmatprep.subr.mxu0 0.0
        %1286 = vmatpush1.msra.mxu0 0.0
        %1287 = vmatprep.subr.mxu0 0.0
        %1288 = vmatpush1.msra.mxu0 0.0
        %1289 = vmatprep.subr.mxu0 0.0
        %1290 = vmatpush1.msra.mxu0 0.0
        %1291 = vmatprep.subr.mxu0 0.0
        %1292 = vmatpush1.msra.mxu0 0.0
        %1293 = vmatprep.subr.mxu0 0.0
        %1294 = vmatpush1.msra.mxu0 0.0
        %1295 = vmatprep.subr.mxu0 0.0
        %1296 = vmatpush1.msra.mxu0 0.0
        %1297 = vmatprep.subr.mxu0 0.0
        %1298 = vmatpush1.msra.mxu0 0.0
        %1299 = vmatprep.subr.mxu0 0.0
        %1300 = vmatpush1.msra.mxu0 0.0
        %1301 = vmatprep.subr.mxu0 0.0
        %1302 = vmatpush1.msra.mxu0 0.0
        %1303 = vmatprep.subr.mxu0 0.0
        %1304 = vmatpush1.msra.mxu0 0.0
        %1305 = vmatprep.subr.mxu0 0.0
        %1306 = vmatpush1.msra.mxu0 0.0
        %1307 = vmatprep.subr.mxu0 0.0
        %1308 = vmatpush1.msra.mxu0 0.0
        %1309 = vmatprep.subr.mxu0 0.0
        %1310 = vmatpush1.msra.mxu0 0.0
        %1311 = vmatprep.mubr.f32.mxu0 0.0
        %1312 = vmatmul.mubr.f32.gmra.mrb[0].mxu0 %v1245
        %v1313 = vpop.f32.mrb[0].mxu0
        %v1314 = vadd.f32 0.0, %v1313
        %v1315 = vpop.f32.mrb[0].mxu0
        %1316 = vdwg.mxu0
        %v1317 = vld [vmem:[#allocation4 + $0x40] sm:$0xff]
        %v1318 = vld [vmem:[#allocation4 + $0x48] sm:$0xff]
        %v1319 = vld [vmem:[#allocation4 + $0x50] sm:$0xff]
        %v1320 = vld [vmem:[#allocation4 + $0x58] sm:$0xff]
        %v1322 = vsel %vm667, %v1314, 0
        %1324 = vmatprep.subr.mxu0 0.0
        %1325 = vmatpush1.msra.mxu0 %v1317
        %1326 = vmatprep.subr.mxu0 0.0
        %1327 = vmatpush1.msra.mxu0 %v1318
        %1328 = vmatprep.subr.mxu0 0.0
        %1329 = vmatpush1.msra.mxu0 %v1319
        %1330 = vmatprep.subr.mxu0 0.0
        %1331 = vmatpush1.msra.mxu0 %v1320
        %1332 = vmatprep.subr.mxu0 0.0
        %1333 = vmatpush1.msra.mxu0 0.0
        %1334 = vmatprep.subr.mxu0 0.0
        %1335 = vmatpush1.msra.mxu0 0.0
        %1336 = vmatprep.subr.mxu0 0.0
        %1337 = vmatpush1.msra.mxu0 0.0
        %1338 = vmatprep.subr.mxu0 0.0
        %1339 = vmatpush1.msra.mxu0 0.0
        %1340 = vmatprep.subr.mxu0 0.0
        %1341 = vmatpush1.msra.mxu0 0.0
        %1342 = vmatprep.subr.mxu0 0.0
        %1343 = vmatpush1.msra.mxu0 0.0
        %1344 = vmatprep.subr.mxu0 0.0
        %1345 = vmatpush1.msra.mxu0 0.0
        %1346 = vmatprep.subr.mxu0 0.0
        %1347 = vmatpush1.msra.mxu0 0.0
        %1348 = vmatprep.subr.mxu0 0.0
        %1349 = vmatpush1.msra.mxu0 0.0
        %1350 = vmatprep.subr.mxu0 0.0
        %1351 = vmatpush1.msra.mxu0 0.0
        %1352 = vmatprep.subr.mxu0 0.0
        %1353 = vmatpush1.msra.mxu0 0.0
        %1354 = vmatprep.subr.mxu0 0.0
        %1355 = vmatpush1.msra.mxu0 0.0
        %1356 = vmatprep.subr.mxu0 0.0
        %1357 = vmatpush1.msra.mxu0 0.0
        %1358 = vmatprep.subr.mxu0 0.0
        %1359 = vmatpush1.msra.mxu0 0.0
        %1360 = vmatprep.subr.mxu0 0.0
        %1361 = vmatpush1.msra.mxu0 0.0
        %1362 = vmatprep.subr.mxu0 0.0
        %1363 = vmatpush1.msra.mxu0 0.0
        %1364 = vmatprep.subr.mxu0 0.0
        %1365 = vmatpush1.msra.mxu0 0.0
        %1366 = vmatprep.subr.mxu0 0.0
        %1367 = vmatpush1.msra.mxu0 0.0
        %1368 = vmatprep.subr.mxu0 0.0
        %1369 = vmatpush1.msra.mxu0 0.0
        %1370 = vmatprep.subr.mxu0 0.0
        %1371 = vmatpush1.msra.mxu0 0.0
        %1372 = vmatprep.subr.mxu0 0.0
        %1373 = vmatpush1.msra.mxu0 0.0
        %1374 = vmatprep.subr.mxu0 0.0
        %1375 = vmatpush1.msra.mxu0 0.0
        %1376 = vmatprep.subr.mxu0 0.0
        %1377 = vmatpush1.msra.mxu0 0.0
        %1378 = vmatprep.subr.mxu0 0.0
        %1379 = vmatpush1.msra.mxu0 0.0
        %1380 = vmatprep.subr.mxu0 0.0
        %1381 = vmatpush1.msra.mxu0 0.0
        %1382 = vmatprep.subr.mxu0 0.0
        %1383 = vmatpush1.msra.mxu0 0.0
        %1384 = vmatprep.subr.mxu0 0.0
        %1385 = vmatpush1.msra.mxu0 0.0
        %1386 = vmatprep.subr.mxu0 0.0
        %1387 = vmatpush1.msra.mxu0 0.0
        %1388 = vmatprep.mubr.f32.mxu0 0.0
        %1389 = vmatmul.mubr.f32.gmra.mrb[0].mxu0 %v1322
        %v1390 = vpop.f32.mrb[0].mxu0
        %v1391 = vadd.f32 0.0, %v1390
        %v1392 = vpop.f32.mrb[0].mxu0
        %1393 = vdwg.mxu0
        %v1394 = vadd.f32 %v1148, %v1391
        %1395 = vrot.lane.b32.xlu0 %v593, 32
        %v1396 = vpop.permute.xlu0 %1395
        %1397 = vrot.lane.b32.xlu0 %v595, 32
        %v1398 = vpop.permute.xlu0 %1397
        %v1399 = vsel %vm667, %v1396, 0
        %v1401 = vsel %vm667, %v1398, 0
        %1403 = vmatprep.subr.mxu0 0.0
        %1404 = vmatpush1.xpose.msra.mxu0 %v1401
        %1405 = vmatprep.subr.mxu0 0.0
        %1406 = vmatpush1.xpose.msra.mxu0 0.0
        %1407 = vmatprep.subr.mxu0 0.0
        %1408 = vmatpush1.xpose.msra.mxu0 0.0
        %1409 = vmatprep.subr.mxu0 0.0
        %1410 = vmatpush1.xpose.msra.mxu0 0.0
        %1411 = vmatprep.subr.mxu0 0.0
        %1412 = vmatpush1.xpose.msra.mxu0 0.0
        %1413 = vmatprep.subr.mxu0 0.0
        %1414 = vmatpush1.xpose.msra.mxu0 0.0
        %1415 = vmatprep.subr.mxu0 0.0
        %1416 = vmatpush1.xpose.msra.mxu0 0.0
        %1417 = vmatprep.subr.mxu0 0.0
        %1418 = vmatpush1.xpose.msra.mxu0 0.0
        %1419 = vmatprep.subr.mxu0 0.0
        %1420 = vmatpush1.xpose.msra.mxu0 0.0
        %1421 = vmatprep.subr.mxu0 0.0
        %1422 = vmatpush1.xpose.msra.mxu0 0.0
        %1423 = vmatprep.subr.mxu0 0.0
        %1424 = vmatpush1.xpose.msra.mxu0 0.0
        %1425 = vmatprep.subr.mxu0 0.0
        %1426 = vmatpush1.xpose.msra.mxu0 0.0
        %1427 = vmatprep.subr.mxu0 0.0
        %1428 = vmatpush1.xpose.msra.mxu0 0.0
        %1429 = vmatprep.subr.mxu0 0.0
        %1430 = vmatpush1.xpose.msra.mxu0 0.0
        %1431 = vmatprep.subr.mxu0 0.0
        %1432 = vmatpush1.xpose.msra.mxu0 0.0
        %1433 = vmatprep.subr.mxu0 0.0
        %1434 = vmatpush1.xpose.msra.mxu0 0.0
        %1435 = vmatprep.subr.mxu0 0.0
        %1436 = vmatpush1.xpose.msra.mxu0 0.0
        %1437 = vmatprep.subr.mxu0 0.0
        %1438 = vmatpush1.xpose.msra.mxu0 0.0
        %1439 = vmatprep.subr.mxu0 0.0
        %1440 = vmatpush1.xpose.msra.mxu0 0.0
        %1441 = vmatprep.subr.mxu0 0.0
        %1442 = vmatpush1.xpose.msra.mxu0 0.0
        %1443 = vmatprep.subr.mxu0 0.0
        %1444 = vmatpush1.xpose.msra.mxu0 0.0
        %1445 = vmatprep.subr.mxu0 0.0
        %1446 = vmatpush1.xpose.msra.mxu0 0.0
        %1447 = vmatprep.subr.mxu0 0.0
        %1448 = vmatpush1.xpose.msra.mxu0 0.0
        %1449 = vmatprep.subr.mxu0 0.0
        %1450 = vmatpush1.xpose.msra.mxu0 0.0
        %1451 = vmatprep.subr.mxu0 0.0
        %1452 = vmatpush1.xpose.msra.mxu0 0.0
        %1453 = vmatprep.subr.mxu0 0.0
        %1454 = vmatpush1.xpose.msra.mxu0 0.0
        %1455 = vmatprep.subr.mxu0 0.0
        %1456 = vmatpush1.xpose.msra.mxu0 0.0
        %1457 = vmatprep.subr.mxu0 0.0
        %1458 = vmatpush1.xpose.msra.mxu0 0.0
        %1459 = vmatprep.subr.mxu0 0.0
        %1460 = vmatpush1.xpose.msra.mxu0 0.0
        %1461 = vmatprep.subr.mxu0 0.0
        %1462 = vmatpush1.xpose.msra.mxu0 0.0
        %1463 = vmatprep.subr.mxu0 0.0
        %1464 = vmatpush1.xpose.msra.mxu0 0.0
        %1465 = vmatprep.subr.mxu0 0.0
        %1466 = vmatpush1.xpose.msra.mxu0 0.0
        %1467 = vmatprep.mubr.f32.mxu0 0.0
        %1468 = vmatmul.mubr.f32.gmra.mrb[0].mxu0 %v1399
        %v1469 = vpop.f32.mrb[0].mxu0
        %v1470 = vadd.f32 0.0, %v1469
        %v1471 = vpop.f32.mrb[0].mxu0
        %1472 = vdwg.mxu0
        %v1473 = vmul.f32 %v1470, 0.17677669
        %v1474 = vsel %vm745, %v1473, -inf
        %1475 = vmax.xlane.f32.xlu0 %v1474
        %v1476 = vpop.xlane.xlu0 %1475
        %v1477 = vsub.f32 %v1473, %v1476
        %v1478 = vmul.f32 %v1477, 1.442695
        %v1479 = vpow.pop %v1478
        %v1480 = vsel %vm745, %v1479, 0.0
        %1481 = vadd.xlane.f32.xlu0 %v1480
        %v1482 = vpop.xlane.xlu0 %1481
        %v1483 = vrcp.pop %v1482
        %v1484 = vmul.f32 %v1479, %v1483
        %1485 = vrot.lane.b32.xlu0 %v664, 32
        %v1486 = vpop.permute.xlu0 %1485
        %v1489 = vsel %vm745, %v1484, 0
        %1491 = vmatprep.subr.mxu0 0.0
        %1492 = vmatpush1.msra.mxu0 %v1486
        %1493 = vmatprep.subr.mxu0 0.0
        %1494 = vmatpush1.msra.mxu0 0.0
        %1495 = vmatprep.subr.mxu0 0.0
        %1496 = vmatpush1.msra.mxu0 0.0
        %1497 = vmatprep.subr.mxu0 0.0
        %1498 = vmatpush1.msra.mxu0 0.0
        %1499 = vmatprep.subr.mxu0 0.0
        %1500 = vmatpush1.msra.mxu0 0.0
        %1501 = vmatprep.subr.mxu0 0.0
        %1502 = vmatpush1.msra.mxu0 0.0
        %1503 = vmatprep.subr.mxu0 0.0
        %1504 = vmatpush1.msra.mxu0 0.0
        %1505 = vmatprep.subr.mxu0 0.0
        %1506 = vmatpush1.msra.mxu0 0.0
        %1507 = vmatprep.subr.mxu0 0.0
        %1508 = vmatpush1.msra.mxu0 0.0
        %1509 = vmatprep.subr.mxu0 0.0
        %1510 = vmatpush1.msra.mxu0 0.0
        %1511 = vmatprep.subr.mxu0 0.0
        %1512 = vmatpush1.msra.mxu0 0.0
        %1513 = vmatprep.subr.mxu0 0.0
        %1514 = vmatpush1.msra.mxu0 0.0
        %1515 = vmatprep.subr.mxu0 0.0
        %1516 = vmatpush1.msra.mxu0 0.0
        %1517 = vmatprep.subr.mxu0 0.0
        %1518 = vmatpush1.msra.mxu0 0.0
        %1519 = vmatprep.subr.mxu0 0.0
        %1520 = vmatpush1.msra.mxu0 0.0
        %1521 = vmatprep.subr.mxu0 0.0
        %1522 = vmatpush1.msra.mxu0 0.0
        %1523 = vmatprep.subr.mxu0 0.0
        %1524 = vmatpush1.msra.mxu0 0.0
        %1525 = vmatprep.subr.mxu0 0.0
        %1526 = vmatpush1.msra.mxu0 0.0
        %1527 = vmatprep.subr.mxu0 0.0
        %1528 = vmatpush1.msra.mxu0 0.0
        %1529 = vmatprep.subr.mxu0 0.0
        %1530 = vmatpush1.msra.mxu0 0.0
        %1531 = vmatprep.subr.mxu0 0.0
        %1532 = vmatpush1.msra.mxu0 0.0
        %1533 = vmatprep.subr.mxu0 0.0
        %1534 = vmatpush1.msra.mxu0 0.0
        %1535 = vmatprep.subr.mxu0 0.0
        %1536 = vmatpush1.msra.mxu0 0.0
        %1537 = vmatprep.subr.mxu0 0.0
        %1538 = vmatpush1.msra.mxu0 0.0
        %1539 = vmatprep.subr.mxu0 0.0
        %1540 = vmatpush1.msra.mxu0 0.0
        %1541 = vmatprep.subr.mxu0 0.0
        %1542 = vmatpush1.msra.mxu0 0.0
        %1543 = vmatprep.subr.mxu0 0.0
        %1544 = vmatpush1.msra.mxu0 0.0
        %1545 = vmatprep.subr.mxu0 0.0
        %1546 = vmatpush1.msra.mxu0 0.0
        %1547 = vmatprep.subr.mxu0 0.0
        %1548 = vmatpush1.msra.mxu0 0.0
        %1549 = vmatprep.subr.mxu0 0.0
        %1550 = vmatpush1.msra.mxu0 0.0
        %1551 = vmatprep.subr.mxu0 0.0
        %1552 = vmatpush1.msra.mxu0 0.0
        %1553 = vmatprep.subr.mxu0 0.0
        %1554 = vmatpush1.msra.mxu0 0.0
        %1555 = vmatprep.mubr.f32.mxu0 0.0
        %1556 = vmatmul.mubr.f32.gmra.mrb[0].mxu0 %v1489
        %v1557 = vpop.f32.mrb[0].mxu0
        %v1558 = vadd.f32 0.0, %v1557
        %v1559 = vpop.f32.mrb[0].mxu0
        %1560 = vdwg.mxu0
        %v1561 = vld [vmem:[#allocation4 + $0x60] sm:$0xff]
        %v1562 = vld [vmem:[#allocation4 + $0x68] sm:$0xff]
        %v1563 = vld [vmem:[#allocation4 + $0x70] sm:$0xff]
        %v1564 = vld [vmem:[#allocation4 + $0x78] sm:$0xff]
        %v1566 = vsel %vm667, %v1558, 0
        %1568 = vmatprep.subr.mxu0 0.0
        %1569 = vmatpush1.msra.mxu0 %v1561
        %1570 = vmatprep.subr.mxu0 0.0
        %1571 = vmatpush1.msra.mxu0 %v1562
        %1572 = vmatprep.subr.mxu0 0.0
        %1573 = vmatpush1.msra.mxu0 %v1563
        %1574 = vmatprep.subr.mxu0 0.0
        %1575 = vmatpush1.msra.mxu0 %v1564
        %1576 = vmatprep.subr.mxu0 0.0
        %1577 = vmatpush1.msra.mxu0 0.0
        %1578 = vmatprep.subr.mxu0 0.0
        %1579 = vmatpush1.msra.mxu0 0.0
        %1580 = vmatprep.subr.mxu0 0.0
        %1581 = vmatpush1.msra.mxu0 0.0
        %1582 = vmatprep.subr.mxu0 0.0
        %1583 = vmatpush1.msra.mxu0 0.0
        %1584 = vmatprep.subr.mxu0 0.0
        %1585 = vmatpush1.msra.mxu0 0.0
        %1586 = vmatprep.subr.mxu0 0.0
        %1587 = vmatpush1.msra.mxu0 0.0
        %1588 = vmatprep.subr.mxu0 0.0
        %1589 = vmatpush1.msra.mxu0 0.0
        %1590 = vmatprep.subr.mxu0 0.0
        %1591 = vmatpush1.msra.mxu0 0.0
        %1592 = vmatprep.subr.mxu0 0.0
        %1593 = vmatpush1.msra.mxu0 0.0
        %1594 = vmatprep.subr.mxu0 0.0
        %1595 = vmatpush1.msra.mxu0 0.0
        %1596 = vmatprep.subr.mxu0 0.0
        %1597 = vmatpush1.msra.mxu0 0.0
        %1598 = vmatprep.subr.mxu0 0.0
        %1599 = vmatpush1.msra.mxu0 0.0
        %1600 = vmatprep.subr.mxu0 0.0
        %1601 = vmatpush1.msra.mxu0 0.0
        %1602 = vmatprep.subr.mxu0 0.0
        %1603 = vmatpush1.msra.mxu0 0.0
        %1604 = vmatprep.subr.mxu0 0.0
        %1605 = vmatpush1.msra.mxu0 0.0
        %1606 = vmatprep.subr.mxu0 0.0
        %1607 = vmatpush1.msra.mxu0 0.0
        %1608 = vmatprep.subr.mxu0 0.0
        %1609 = vmatpush1.msra.mxu0 0.0
        %1610 = vmatprep.subr.mxu0 0.0
        %1611 = vmatpush1.msra.mxu0 0.0
        %1612 = vmatprep.subr.mxu0 0.0
        %1613 = vmatpush1.msra.mxu0 0.0
        %1614 = vmatprep.subr.mxu0 0.0
        %1615 = vmatpush1.msra.mxu0 0.0
        %1616 = vmatprep.subr.mxu0 0.0
        %1617 = vmatpush1.msra.mxu0 0.0
        %1618 = vmatprep.subr.mxu0 0.0
        %1619 = vmatpush1.msra.mxu0 0.0
        %1620 = vmatprep.subr.mxu0 0.0
        %1621 = vmatpush1.msra.mxu0 0.0
        %1622 = vmatprep.subr.mxu0 0.0
        %1623 = vmatpush1.msra.mxu0 0.0
        %1624 = vmatprep.subr.mxu0 0.0
        %1625 = vmatpush1.msra.mxu0 0.0
        %1626 = vmatprep.subr.mxu0 0.0
        %1627 = vmatpush1.msra.mxu0 0.0
        %1628 = vmatprep.subr.mxu0 0.0
        %1629 = vmatpush1.msra.mxu0 0.0
        %1630 = vmatprep.subr.mxu0 0.0
        %1631 = vmatpush1.msra.mxu0 0.0
        %1632 = vmatprep.mubr.f32.mxu0 0.0
        %1633 = vmatmul.mubr.f32.gmra.mrb[0].mxu0 %v1566
        %v1634 = vpop.f32.mrb[0].mxu0
        %v1635 = vadd.f32 0.0, %v1634
        %v1636 = vpop.f32.mrb[0].mxu0
        %1637 = vdwg.mxu0
        %v1638 = vadd.f32 %v1394, %v1635
        %v1639 = vld [vmem:[#allocation6] sm:$0x1]
        %v1641 = vlaneseq
        %v1642 = vshrl.u32 %v1641, 7
        %v1643 = vsub.s32 0, %v1642
        %v1644 = vrot.slane %v1639, %v1643
        %v1646 = vadd.f32 %v1638, %v1644
        %1647 = vadd.xlane.f32.xlu0 %v1646
        %v1648 = vpop.xlane.xlu0 %1647
        %v1649 = vmul.f32 %v1648, %v441
        %v1650 = vsub.f32 %v1646, %v1649
        %v1651 = vmul.f32 %v1650, %v1650
        %1652 = vadd.xlane.f32.xlu0 %v1651
        %v1653 = vpop.xlane.xlu0 %1652
        %v1654 = vmul.f32 %v1653, %v441
        %v1655 = vadd.f32 %v1654, 1e-05
        %v1656 = vrsqrt.pop %v1655
        %v1657 = vmul.f32 %v1650, %v1656
        %v1658 = vlaneseq
        %v1659 = vshrl.u32 %v1658, 7
        %v1660 = vsub.s32 2, %v1659
        %v1661 = vrot.slane %v438, %v1660
        %v1662 = vmul.f32 %v1657, %v1661
        %v1663 = vlaneseq
        %v1664 = vshrl.u32 %v1663, 7
        %v1665 = vsub.s32 3, %v1664
        %v1666 = vrot.slane %v438, %v1665
        %v1667 = vadd.f32 %v1662, %v1666
        %v1668 = vadd.f32 %v437, %v1667
        %1669 = vadd.xlane.f32.xlu0 %v1668
        %v1670 = vpop.xlane.xlu0 %1669
        %v1671 = vmul.f32 %v1670, %v441
        %v1672 = vsub.f32 %v1668, %v1671
        %v1673 = vmul.f32 %v1672, %v1672
        %1674 = vadd.xlane.f32.xlu0 %v1673
        %v1675 = vpop.xlane.xlu0 %1674
        %v1676 = vmul.f32 %v1675, %v441
        %v1677 = vadd.f32 %v1676, 1e-05
        %v1678 = vrsqrt.pop %v1677
        %v1679 = vmul.f32 %v1672, %v1678
        %v1680 = vlaneseq
        %v1681 = vshrl.u32 %v1680, 7
        %v1682 = vsub.s32 4, %v1681
        %v1683 = vrot.slane %v438, %v1682
        %v1684 = vmul.f32 %v1679, %v1683
        %v1685 = vlaneseq
        %v1686 = vshrl.u32 %v1685, 7
        %v1687 = vsub.s32 5, %v1686
        %v1688 = vrot.slane %v438, %v1687
        %v1689 = vadd.f32 %v1684, %v1688
        %v1690 = vld [vmem:[%s5] sm:$0xff]
        %v1691 = vld [vmem:[%s5 + $0x8] sm:$0xff]
        %v1692 = vld [vmem:[%s5 + $0x10] sm:$0xff]
        %v1693 = vld [vmem:[%s5 + $0x18] sm:$0xff]
        %v1694 = vld [vmem:[%s5 + $0x20] sm:$0xff]
        %v1695 = vld [vmem:[%s5 + $0x28] sm:$0xff]
        %v1696 = vld [vmem:[%s5 + $0x30] sm:$0xff]
        %v1697 = vld [vmem:[%s5 + $0x38] sm:$0xff]
        %v1698 = vld [vmem:[%s5 + $0x40] sm:$0xff]
        %v1699 = vld [vmem:[%s5 + $0x48] sm:$0xff]
        %v1700 = vld [vmem:[%s5 + $0x50] sm:$0xff]
        %v1701 = vld [vmem:[%s5 + $0x58] sm:$0xff]
        %v1702 = vld [vmem:[%s5 + $0x60] sm:$0xff]
        %v1703 = vld [vmem:[%s5 + $0x68] sm:$0xff]
        %v1704 = vld [vmem:[%s5 + $0x70] sm:$0xff]
        %v1705 = vld [vmem:[%s5 + $0x78] sm:$0xff]
        %v1706 = vld [vmem:[%s5 + $0x80] sm:$0xff]
        %v1707 = vld [vmem:[%s5 + $0x88] sm:$0xff]
        %v1708 = vld [vmem:[%s5 + $0x90] sm:$0xff]
        %v1709 = vld [vmem:[%s5 + $0x98] sm:$0xff]
        %v1710 = vld [vmem:[%s5 + $0xa0] sm:$0xff]
        %v1711 = vld [vmem:[%s5 + $0xa8] sm:$0xff]
        %v1712 = vld [vmem:[%s5 + $0xb0] sm:$0xff]
        %v1713 = vld [vmem:[%s5 + $0xb8] sm:$0xff]
        %v1714 = vld [vmem:[%s5 + $0xc0] sm:$0xff]
        %v1715 = vld [vmem:[%s5 + $0xc8] sm:$0xff]
        %v1716 = vld [vmem:[%s5 + $0xd0] sm:$0xff]
        %v1717 = vld [vmem:[%s5 + $0xd8] sm:$0xff]
        %v1718 = vld [vmem:[%s5 + $0xe0] sm:$0xff]
        %v1719 = vld [vmem:[%s5 + $0xe8] sm:$0xff]
        %v1720 = vld [vmem:[%s5 + $0xf0] sm:$0xff]
        %v1721 = vld [vmem:[%s5 + $0xf8] sm:$0xff]
        %v1722 = vld [vmem:[%s5 + $0x100] sm:$0xff]
        %v1723 = vld [vmem:[%s5 + $0x108] sm:$0xff]
        %v1724 = vld [vmem:[%s5 + $0x110] sm:$0xff]
        %v1725 = vld [vmem:[%s5 + $0x118] sm:$0xff]
        %v1726 = vld [vmem:[%s5 + $0x120] sm:$0xff]
        %v1727 = vld [vmem:[%s5 + $0x128] sm:$0xff]
        %v1728 = vld [vmem:[%s5 + $0x130] sm:$0xff]
        %v1729 = vld [vmem:[%s5 + $0x138] sm:$0xff]
        %v1730 = vld [vmem:[%s5 + $0x140] sm:$0xff]
        %v1731 = vld [vmem:[%s5 + $0x148] sm:$0xff]
        %v1732 = vld [vmem:[%s5 + $0x150] sm:$0xff]
        %v1733 = vld [vmem:[%s5 + $0x158] sm:$0xff]
        %v1734 = vld [vmem:[%s5 + $0x160] sm:$0xff]
        %v1735 = vld [vmem:[%s5 + $0x168] sm:$0xff]
        %v1736 = vld [vmem:[%s5 + $0x170] sm:$0xff]
        %v1737 = vld [vmem:[%s5 + $0x178] sm:$0xff]
        %v1738 = vld [vmem:[%s5 + $0x180] sm:$0xff]
        %v1739 = vld [vmem:[%s5 + $0x188] sm:$0xff]
        %v1740 = vld [vmem:[%s5 + $0x190] sm:$0xff]
        %v1741 = vld [vmem:[%s5 + $0x198] sm:$0xff]
        %v1742 = vld [vmem:[%s5 + $0x1a0] sm:$0xff]
        %v1743 = vld [vmem:[%s5 + $0x1a8] sm:$0xff]
        %v1744 = vld [vmem:[%s5 + $0x1b0] sm:$0xff]
        %v1745 = vld [vmem:[%s5 + $0x1b8] sm:$0xff]
        %v1746 = vld [vmem:[%s5 + $0x1c0] sm:$0xff]
        %v1747 = vld [vmem:[%s5 + $0x1c8] sm:$0xff]
        %v1748 = vld [vmem:[%s5 + $0x1d0] sm:$0xff]
        %v1749 = vld [vmem:[%s5 + $0x1d8] sm:$0xff]
        %v1750 = vld [vmem:[%s5 + $0x1e0] sm:$0xff]
        %v1751 = vld [vmem:[%s5 + $0x1e8] sm:$0xff]
        %v1752 = vld [vmem:[%s5 + $0x1f0] sm:$0xff]
        %v1753 = vld [vmem:[%s5 + $0x1f8] sm:$0xff]
        %v1754 = vld [vmem:[#allocation7] sm:$0xf]
        %v1756 = vlaneseq
        %v1757 = vshrl.u32 %v1756, 7
        %v1758 = vsub.s32 0, %v1757
        %v1759 = vrot.slane %v1754, %v1758
        %v1760 = vlaneseq
        %v1761 = vshrl.u32 %v1760, 7
        %v1762 = vsub.s32 1, %v1761
        %v1763 = vrot.slane %v1754, %v1762
        %v1764 = vlaneseq
        %v1765 = vshrl.u32 %v1764, 7
        %v1766 = vsub.s32 2, %v1765
        %v1767 = vrot.slane %v1754, %v1766
        %v1768 = vlaneseq
        %v1769 = vshrl.u32 %v1768, 7
        %v1770 = vsub.s32 3, %v1769
        %v1771 = vrot.slane %v1754, %v1770
        %1776 = vmatprep.subr.mxu0 %v1691
        %1777 = vmatpush1.msra.mxu0 %v1690
        %1778 = vmatprep.subr.mxu0 %v1695
        %1779 = vmatpush1.msra.mxu0 %v1694
        %1780 = vmatprep.subr.mxu0 %v1699
        %1781 = vmatpush1.msra.mxu0 %v1698
        %1782 = vmatprep.subr.mxu0 %v1703
        %1783 = vmatpush1.msra.mxu0 %v1702
        %1784 = vmatprep.subr.mxu0 %v1707
        %1785 = vmatpush1.msra.mxu0 %v1706
        %1786 = vmatprep.subr.mxu0 %v1711
        %1787 = vmatpush1.msra.mxu0 %v1710
        %1788 = vmatprep.subr.mxu0 %v1715
        %1789 = vmatpush1.msra.mxu0 %v1714
        %1790 = vmatprep.subr.mxu0 %v1719
        %1791 = vmatpush1.msra.mxu0 %v1718
        %1792 = vmatprep.subr.mxu0 %v1723
        %1793 = vmatpush1.msra.mxu0 %v1722
        %1794 = vmatprep.subr.mxu0 %v1727
        %1795 = vmatpush1.msra.mxu0 %v1726
        %1796 = vmatprep.subr.mxu0 %v1731
        %1797 = vmatpush1.msra.mxu0 %v1730
        %1798 = vmatprep.subr.mxu0 %v1735
        %1799 = vmatpush1.msra.mxu0 %v1734
        %1800 = vmatprep.subr.mxu0 %v1739
        %1801 = vmatpush1.msra.mxu0 %v1738
        %1802 = vmatprep.subr.mxu0 %v1743
        %1803 = vmatpush1.msra.mxu0 %v1742
        %1804 = vmatprep.subr.mxu0 %v1747
        %1805 = vmatpush1.msra.mxu0 %v1746
        %1806 = vmatprep.subr.mxu0 %v1751
        %1807 = vmatpush1.msra.mxu0 %v1750
        %1808 = vmatprep.subr.mxu0 0.0
        %1809 = vmatpush1.msra.mxu0 0.0
        %1810 = vmatprep.subr.mxu0 0.0
        %1811 = vmatpush1.msra.mxu0 0.0
        %1812 = vmatprep.subr.mxu0 0.0
        %1813 = vmatpush1.msra.mxu0 0.0
        %1814 = vmatprep.subr.mxu0 0.0
        %1815 = vmatpush1.msra.mxu0 0.0
        %1816 = vmatprep.subr.mxu0 0.0
        %1817 = vmatpush1.msra.mxu0 0.0
        %1818 = vmatprep.subr.mxu0 0.0
        %1819 = vmatpush1.msra.mxu0 0.0
        %1820 = vmatprep.subr.mxu0 0.0
        %1821 = vmatpush1.msra.mxu0 0.0
        %1822 = vmatprep.subr.mxu0 0.0
        %1823 = vmatpush1.msra.mxu0 0.0
        %1824 = vmatprep.subr.mxu0 0.0
        %1825 = vmatpush1.msra.mxu0 0.0
        %1826 = vmatprep.subr.mxu0 0.0
        %1827 = vmatpush1.msra.mxu0 0.0
        %1828 = vmatprep.subr.mxu0 0.0
        %1829 = vmatpush1.msra.mxu0 0.0
        %1830 = vmatprep.subr.mxu0 0.0
        %1831 = vmatpush1.msra.mxu0 0.0
        %1832 = vmatprep.subr.mxu0 0.0
        %1833 = vmatpush1.msra.mxu0 0.0
        %1834 = vmatprep.subr.mxu0 0.0
        %1835 = vmatpush1.msra.mxu0 0.0
        %1836 = vmatprep.subr.mxu0 0.0
        %1837 = vmatpush1.msra.mxu0 0.0
        %1838 = vmatprep.subr.mxu0 0.0
        %1839 = vmatpush1.msra.mxu0 0.0
        %1840 = vmatprep.mubr.f32.mxu0 0.0
        %1841 = vmatmul.mubr.f32.gmra.mrb[0].mxu0 %v1689
        %v1842 = vpop.f32.mrb[0].mxu0
        %v1843 = vadd.f32 %v1759, %v1842
        %v1844 = vpop.f32.mrb[0].mxu0
        %v1845 = vadd.f32 %v1763, %v1844
        %1846 = vdwg.mxu0
        %1847 = vmatprep.subr.mxu0 %v1693
        %1848 = vmatpush1.msra.mxu0 %v1692
        %1849 = vmatprep.subr.mxu0 %v1697
        %1850 = vmatpush1.msra.mxu0 %v1696
        %1851 = vmatprep.subr.mxu0 %v1701
        %1852 = vmatpush1.msra.mxu0 %v1700
        %1853 = vmatprep.subr.mxu0 %v1705
        %1854 = vmatpush1.msra.mxu0 %v1704
        %1855 = vmatprep.subr.mxu0 %v1709
        %1856 = vmatpush1.msra.mxu0 %v1708
        %1857 = vmatprep.subr.mxu0 %v1713
        %1858 = vmatpush1.msra.mxu0 %v1712
        %1859 = vmatprep.subr.mxu0 %v1717
        %1860 = vmatpush1.msra.mxu0 %v1716
        %1861 = vmatprep.subr.mxu0 %v1721
        %1862 = vmatpush1.msra.mxu0 %v1720
        %1863 = vmatprep.subr.mxu0 %v1725
        %1864 = vmatpush1.msra.mxu0 %v1724
        %1865 = vmatprep.subr.mxu0 %v1729
        %1866 = vmatpush1.msra.mxu0 %v1728
        %1867 = vmatprep.subr.mxu0 %v1733
        %1868 = vmatpush1.msra.mxu0 %v1732
        %1869 = vmatprep.subr.mxu0 %v1737
        %1870 = vmatpush1.msra.mxu0 %v1736
        %1871 = vmatprep.subr.mxu0 %v1741
        %1872 = vmatpush1.msra.mxu0 %v1740
        %1873 = vmatprep.subr.mxu0 %v1745
        %1874 = vmatpush1.msra.mxu0 %v1744
        %1875 = vmatprep.subr.mxu0 %v1749
        %1876 = vmatpush1.msra.mxu0 %v1748
        %1877 = vmatprep.subr.mxu0 %v1753
        %1878 = vmatpush1.msra.mxu0 %v1752
        %1879 = vmatprep.subr.mxu0 0.0
        %1880 = vmatpush1.msra.mxu0 0.0
        %1881 = vmatprep.subr.mxu0 0.0
        %1882 = vmatpush1.msra.mxu0 0.0
        %1883 = vmatprep.subr.mxu0 0.0
        %1884 = vmatpush1.msra.mxu0 0.0
        %1885 = vmatprep.subr.mxu0 0.0
        %1886 = vmatpush1.msra.mxu0 0.0
        %1887 = vmatprep.subr.mxu0 0.0
        %1888 = vmatpush1.msra.mxu0 0.0
        %1889 = vmatprep.subr.mxu0 0.0
        %1890 = vmatpush1.msra.mxu0 0.0
        %1891 = vmatprep.subr.mxu0 0.0
        %1892 = vmatpush1.msra.mxu0 0.0
        %1893 = vmatprep.subr.mxu0 0.0
        %1894 = vmatpush1.msra.mxu0 0.0
        %1895 = vmatprep.subr.mxu0 0.0
        %1896 = vmatpush1.msra.mxu0 0.0
        %1897 = vmatprep.subr.mxu0 0.0
        %1898 = vmatpush1.msra.mxu0 0.0
        %1899 = vmatprep.subr.mxu0 0.0
        %1900 = vmatpush1.msra.mxu0 0.0
        %1901 = vmatprep.subr.mxu0 0.0
        %1902 = vmatpush1.msra.mxu0 0.0
        %1903 = vmatprep.subr.mxu0 0.0
        %1904 = vmatpush1.msra.mxu0 0.0
        %1905 = vmatprep.subr.mxu0 0.0
        %1906 = vmatpush1.msra.mxu0 0.0
        %1907 = vmatprep.subr.mxu0 0.0
        %1908 = vmatpush1.msra.mxu0 0.0
        %1909 = vmatprep.subr.mxu0 0.0
        %1910 = vmatpush1.msra.mxu0 0.0
        %1911 = vmatprep.mubr.f32.mxu0 0.0
        %1912 = vmatmul.mubr.f32.gmra.mrb[0].mxu0 %v1689
        %v1913 = vpop.f32.mrb[0].mxu0
        %v1914 = vadd.f32 %v1767, %v1913
        %v1915 = vpop.f32.mrb[0].mxu0
        %v1916 = vadd.f32 %v1771, %v1915
        %1917 = vdwg.mxu0
        %v1918 = vmax.f32 %v1843, 0.0
        %v1919 = vmax.f32 %v1845, 0.0
        %v1920 = vmax.f32 %v1914, 0.0
        %v1921 = vmax.f32 %v1916, 0.0
        %v1922 = vld [vmem:[#allocation9] sm:$0xff]
        %v1923 = vld [vmem:[#allocation9 + $0x8] sm:$0xff]
        %v1924 = vld [vmem:[#allocation9 + $0x10] sm:$0xff]
        %v1925 = vld [vmem:[#allocation9 + $0x18] sm:$0xff]
        %v1926 = vld [vmem:[#allocation9 + $0x20] sm:$0xff]
        %v1927 = vld [vmem:[#allocation9 + $0x28] sm:$0xff]
        %v1928 = vld [vmem:[#allocation9 + $0x30] sm:$0xff]
        %v1929 = vld [vmem:[#allocation9 + $0x38] sm:$0xff]
        %v1930 = vld [vmem:[#allocation9 + $0x40] sm:$0xff]
        %v1931 = vld [vmem:[#allocation9 + $0x48] sm:$0xff]
        %v1932 = vld [vmem:[#allocation9 + $0x50] sm:$0xff]
        %v1933 = vld [vmem:[#allocation9 + $0x58] sm:$0xff]
        %v1934 = vld [vmem:[#allocation9 + $0x60] sm:$0xff]
        %v1935 = vld [vmem:[#allocation9 + $0x68] sm:$0xff]
        %v1936 = vld [vmem:[#allocation9 + $0x70] sm:$0xff]
        %v1937 = vld [vmem:[#allocation9 + $0x78] sm:$0xff]
        %v1938 = vld [vmem:[#allocation9 + $0x80] sm:$0xff]
        %v1939 = vld [vmem:[#allocation9 + $0x88] sm:$0xff]
        %v1940 = vld [vmem:[#allocation9 + $0x90] sm:$0xff]
        %v1941 = vld [vmem:[#allocation9 + $0x98] sm:$0xff]
        %v1942 = vld [vmem:[#allocation9 + $0xa0] sm:$0xff]
        %v1943 = vld [vmem:[#allocation9 + $0xa8] sm:$0xff]
        %v1944 = vld [vmem:[#allocation9 + $0xb0] sm:$0xff]
        %v1945 = vld [vmem:[#allocation9 + $0xb8] sm:$0xff]
        %v1946 = vld [vmem:[#allocation9 + $0xc0] sm:$0xff]
        %v1947 = vld [vmem:[#allocation9 + $0xc8] sm:$0xff]
        %v1948 = vld [vmem:[#allocation9 + $0xd0] sm:$0xff]
        %v1949 = vld [vmem:[#allocation9 + $0xd8] sm:$0xff]
        %v1950 = vld [vmem:[#allocation9 + $0xe0] sm:$0xff]
        %v1951 = vld [vmem:[#allocation9 + $0xe8] sm:$0xff]
        %v1952 = vld [vmem:[#allocation9 + $0xf0] sm:$0xff]
        %v1953 = vld [vmem:[#allocation9 + $0xf8] sm:$0xff]
        %v1954 = vld [vmem:[#allocation9 + $0x100] sm:$0xff]
        %v1955 = vld [vmem:[#allocation9 + $0x108] sm:$0xff]
        %v1956 = vld [vmem:[#allocation9 + $0x110] sm:$0xff]
        %v1957 = vld [vmem:[#allocation9 + $0x118] sm:$0xff]
        %v1958 = vld [vmem:[#allocation9 + $0x120] sm:$0xff]
        %v1959 = vld [vmem:[#allocation9 + $0x128] sm:$0xff]
        %v1960 = vld [vmem:[#allocation9 + $0x130] sm:$0xff]
        %v1961 = vld [vmem:[#allocation9 + $0x138] sm:$0xff]
        %v1962 = vld [vmem:[#allocation9 + $0x140] sm:$0xff]
        %v1963 = vld [vmem:[#allocation9 + $0x148] sm:$0xff]
        %v1964 = vld [vmem:[#allocation9 + $0x150] sm:$0xff]
        %v1965 = vld [vmem:[#allocation9 + $0x158] sm:$0xff]
        %v1966 = vld [vmem:[#allocation9 + $0x160] sm:$0xff]
        %v1967 = vld [vmem:[#allocation9 + $0x168] sm:$0xff]
        %v1968 = vld [vmem:[#allocation9 + $0x170] sm:$0xff]
        %v1969 = vld [vmem:[#allocation9 + $0x178] sm:$0xff]
        %v1970 = vld [vmem:[#allocation9 + $0x180] sm:$0xff]
        %v1971 = vld [vmem:[#allocation9 + $0x188] sm:$0xff]
        %v1972 = vld [vmem:[#allocation9 + $0x190] sm:$0xff]
        %v1973 = vld [vmem:[#allocation9 + $0x198] sm:$0xff]
        %v1974 = vld [vmem:[#allocation9 + $0x1a0] sm:$0xff]
        %v1975 = vld [vmem:[#allocation9 + $0x1a8] sm:$0xff]
        %v1976 = vld [vmem:[#allocation9 + $0x1b0] sm:$0xff]
        %v1977 = vld [vmem:[#allocation9 + $0x1b8] sm:$0xff]
        %v1978 = vld [vmem:[#allocation9 + $0x1c0] sm:$0xff]
        %v1979 = vld [vmem:[#allocation9 + $0x1c8] sm:$0xff]
        %v1980 = vld [vmem:[#allocation9 + $0x1d0] sm:$0xff]
        %v1981 = vld [vmem:[#allocation9 + $0x1d8] sm:$0xff]
        %v1982 = vld [vmem:[#allocation9 + $0x1e0] sm:$0xff]
        %v1983 = vld [vmem:[#allocation9 + $0x1e8] sm:$0xff]
        %v1984 = vld [vmem:[#allocation9 + $0x1f0] sm:$0xff]
        %v1985 = vld [vmem:[#allocation9 + $0x1f8] sm:$0xff]
        %v1986 = vld [vmem:[#allocation10] sm:$0x1]
        %v1988 = vlaneseq
        %v1989 = vshrl.u32 %v1988, 7
        %v1990 = vsub.s32 0, %v1989
        %v1991 = vrot.slane %v1986, %v1990
        %1993 = vmatprep.subr.mxu0 0.0
        %1994 = vmatpush1.msra.mxu0 %v1922
        %1995 = vmatprep.subr.mxu0 0.0
        %1996 = vmatpush1.msra.mxu0 %v1923
        %1997 = vmatprep.subr.mxu0 0.0
        %1998 = vmatpush1.msra.mxu0 %v1924
        %1999 = vmatprep.subr.mxu0 0.0
        %2000 = vmatpush1.msra.mxu0 %v1925
        %2001 = vmatprep.subr.mxu0 0.0
        %2002 = vmatpush1.msra.mxu0 %v1926
        %2003 = vmatprep.subr.mxu0 0.0
        %2004 = vmatpush1.msra.mxu0 %v1927
        %2005 = vmatprep.subr.mxu0 0.0
        %2006 = vmatpush1.msra.mxu0 %v1928
        %2007 = vmatprep.subr.mxu0 0.0
        %2008 = vmatpush1.msra.mxu0 %v1929
        %2009 = vmatprep.subr.mxu0 0.0
        %2010 = vmatpush1.msra.mxu0 %v1930
        %2011 = vmatprep.subr.mxu0 0.0
        %2012 = vmatpush1.msra.mxu0 %v1931
        %2013 = vmatprep.subr.mxu0 0.0
        %2014 = vmatpush1.msra.mxu0 %v1932
        %2015 = vmatprep.subr.mxu0 0.0
        %2016 = vmatpush1.msra.mxu0 %v1933
        %2017 = vmatprep.subr.mxu0 0.0
        %2018 = vmatpush1.msra.mxu0 %v1934
        %2019 = vmatprep.subr.mxu0 0.0
        %2020 = vmatpush1.msra.mxu0 %v1935
        %2021 = vmatprep.subr.mxu0 0.0
        %2022 = vmatpush1.msra.mxu0 %v1936
        %2023 = vmatprep.subr.mxu0 0.0
        %2024 = vmatpush1.msra.mxu0 %v1937
        %2025 = vmatprep.subr.mxu0 0.0
        %2026 = vmatpush1.msra.mxu0 %v1938
        %2027 = vmatprep.subr.mxu0 0.0
        %2028 = vmatpush1.msra.mxu0 %v1939
        %2029 = vmatprep.subr.mxu0 0.0
        %2030 = vmatpush1.msra.mxu0 %v1940
        %2031 = vmatprep.subr.mxu0 0.0
        %2032 = vmatpush1.msra.mxu0 %v1941
        %2033 = vmatprep.subr.mxu0 0.0
        %2034 = vmatpush1.msra.mxu0 %v1942
        %2035 = vmatprep.subr.mxu0 0.0
        %2036 = vmatpush1.msra.mxu0 %v1943
        %2037 = vmatprep.subr.mxu0 0.0
        %2038 = vmatpush1.msra.mxu0 %v1944
        %2039 = vmatprep.subr.mxu0 0.0
        %2040 = vmatpush1.msra.mxu0 %v1945
        %2041 = vmatprep.subr.mxu0 0.0
        %2042 = vmatpush1.msra.mxu0 %v1946
        %2043 = vmatprep.subr.mxu0 0.0
        %2044 = vmatpush1.msra.mxu0 %v1947
        %2045 = vmatprep.subr.mxu0 0.0
        %2046 = vmatpush1.msra.mxu0 %v1948
        %2047 = vmatprep.subr.mxu0 0.0
        %2048 = vmatpush1.msra.mxu0 %v1949
        %2049 = vmatprep.subr.mxu0 0.0
        %2050 = vmatpush1.msra.mxu0 %v1950
        %2051 = vmatprep.subr.mxu0 0.0
        %2052 = vmatpush1.msra.mxu0 %v1951
        %2053 = vmatprep.subr.mxu0 0.0
        %2054 = vmatpush1.msra.mxu0 %v1952
        %2055 = vmatprep.subr.mxu0 0.0
        %2056 = vmatpush1.msra.mxu0 %v1953
        %2057 = vmatprep.mubr.f32.mxu0 %v1919
        %2058 = vmatmul.mubr.f32.gmra.mrb[0].mxu0 %v1918
        %v2059 = vpop.f32.mrb[0].mxu0
        %v2060 = vadd.f32 %v1991, %v2059
        %v2061 = vpop.f32.mrb[0].mxu0
        %2062 = vdwg.mxu0
        %2063 = vmatprep.subr.mxu0 0.0
        %2064 = vmatpush1.msra.mxu0 %v1954
        %2065 = vmatprep.subr.mxu0 0.0
        %2066 = vmatpush1.msra.mxu0 %v1955
        %2067 = vmatprep.subr.mxu0 0.0
        %2068 = vmatpush1.msra.mxu0 %v1956
        %2069 = vmatprep.subr.mxu0 0.0
        %2070 = vmatpush1.msra.mxu0 %v1957
        %2071 = vmatprep.subr.mxu0 0.0
        %2072 = vmatpush1.msra.mxu0 %v1958
        %2073 = vmatprep.subr.mxu0 0.0
        %2074 = vmatpush1.msra.mxu0 %v1959
        %2075 = vmatprep.subr.mxu0 0.0
        %2076 = vmatpush1.msra.mxu0 %v1960
        %2077 = vmatprep.subr.mxu0 0.0
        %2078 = vmatpush1.msra.mxu0 %v1961
        %2079 = vmatprep.subr.mxu0 0.0
        %2080 = vmatpush1.msra.mxu0 %v1962
        %2081 = vmatprep.subr.mxu0 0.0
        %2082 = vmatpush1.msra.mxu0 %v1963
        %2083 = vmatprep.subr.mxu0 0.0
        %2084 = vmatpush1.msra.mxu0 %v1964
        %2085 = vmatprep.subr.mxu0 0.0
        %2086 = vmatpush1.msra.mxu0 %v1965
        %2087 = vmatprep.subr.mxu0 0.0
        %2088 = vmatpush1.msra.mxu0 %v1966
        %2089 = vmatprep.subr.mxu0 0.0
        %2090 = vmatpush1.msra.mxu0 %v1967
        %2091 = vmatprep.subr.mxu0 0.0
        %2092 = vmatpush1.msra.mxu0 %v1968
        %2093 = vmatprep.subr.mxu0 0.0
        %2094 = vmatpush1.msra.mxu0 %v1969
        %2095 = vmatprep.subr.mxu0 0.0
        %2096 = vmatpush1.msra.mxu0 %v1970
        %2097 = vmatprep.subr.mxu0 0.0
        %2098 = vmatpush1.msra.mxu0 %v1971
        %2099 = vmatprep.subr.mxu0 0.0
        %2100 = vmatpush1.msra.mxu0 %v1972
        %2101 = vmatprep.subr.mxu0 0.0
        %2102 = vmatpush1.msra.mxu0 %v1973
        %2103 = vmatprep.subr.mxu0 0.0
        %2104 = vmatpush1.msra.mxu0 %v1974
        %2105 = vmatprep.subr.mxu0 0.0
        %2106 = vmatpush1.msra.mxu0 %v1975
        %2107 = vmatprep.subr.mxu0 0.0
        %2108 = vmatpush1.msra.mxu0 %v1976
        %2109 = vmatprep.subr.mxu0 0.0
        %2110 = vmatpush1.msra.mxu0 %v1977
        %2111 = vmatprep.subr.mxu0 0.0
        %2112 = vmatpush1.msra.mxu0 %v1978
        %2113 = vmatprep.subr.mxu0 0.0
        %2114 = vmatpush1.msra.mxu0 %v1979
        %2115 = vmatprep.subr.mxu0 0.0
        %2116 = vmatpush1.msra.mxu0 %v1980
        %2117 = vmatprep.subr.mxu0 0.0
        %2118 = vmatpush1.msra.mxu0 %v1981
        %2119 = vmatprep.subr.mxu0 0.0
        %2120 = vmatpush1.msra.mxu0 %v1982
        %2121 = vmatprep.subr.mxu0 0.0
        %2122 = vmatpush1.msra.mxu0 %v1983
        %2123 = vmatprep.subr.mxu0 0.0
        %2124 = vmatpush1.msra.mxu0 %v1984
        %2125 = vmatprep.subr.mxu0 0.0
        %2126 = vmatpush1.msra.mxu0 %v1985
        %2127 = vmatprep.mubr.f32.mxu0 %v1921
        %2128 = vmatmul.mubr.f32.gmra.mrb[0].mxu0 %v1920
        %v2129 = vpop.f32.mrb[0].mxu0
        %v2130 = vadd.f32 %v2060, %v2129
        %v2131 = vpop.f32.mrb[0].mxu0
        %2132 = vdwg.mxu0
        %2133 = vadd.xlane.f32.xlu0 %v2130
        %v2134 = vpop.xlane.xlu0 %2133
        %v2135 = vmul.f32 %v2134, %v441
        %v2136 = vsub.f32 %v2130, %v2135
        %v2137 = vmul.f32 %v2136, %v2136
        %2138 = vadd.xlane.f32.xlu0 %v2137
        %v2139 = vpop.xlane.xlu0 %2138
        %v2140 = vmul.f32 %v2139, %v441
        %v2141 = vadd.f32 %v2140, 1e-05
        %v2142 = vrsqrt.pop %v2141
        %v2143 = vmul.f32 %v2136, %v2142
        %v2144 = vlaneseq
        %v2145 = vshrl.u32 %v2144, 7
        %v2146 = vsub.s32 6, %v2145
        %v2147 = vrot.slane %v438, %v2146
        %v2148 = vmul.f32 %v2143, %v2147
        %v2149 = vlaneseq
        %v2150 = vshrl.u32 %v2149, 7
        %v2151 = vsub.s32 7, %v2150
        %v2152 = vrot.slane %v438, %v2151
        %v2153 = vadd.f32 %v2148, %v2152
        %v2154 = vadd.f32 %v1668, %v2153
        %2155 = vst [vmem:[%s436] sm:$0xff] %v2154
        %p2156 = scmp.lt.s32.totalorder %s25, 1
        %s2157 = scalar_select %p2156, %s25, 1
        %s2158 = smul.addr %s2157, 8
        %s2159 = scalar_lea.vmem %s10, %s2158
        // Predicated region
        $region85: #{emo_model_forward.12} parent=59 // pred_check
          %p2160 = pneg %p258
        $region86: #{emo_model_forward.12} parent=59 // pred_check_branch
          %2162 = sbr.rel (%p2160) target = $region88
        $region87: #{emo_model_forward.12} parent=59 // pred_region
          _
        $region88: #{emo_model_forward.12} parent=59 // pred_fallthru
          _
      $region60: #{emo_model_forward.12} parent=5 // pred_fallthru
        _
      %p2163 = scmp.le.s32.totalorder 2, %s20
      // Predicated region
      $region89: #{emo_model_forward.12} parent=5 // pred_check
        %p2164 = pneg %p2163
      $region90: #{emo_model_forward.12} parent=5 // pred_check_branch
        %2166 = sbr.rel (%p2164) target = $region92
      $region91: #{emo_model_forward.12} parent=5 // pred_region
        %s2167 = ssub.s32 %s20, 2
        // Predicated region
        $region93: #{emo_model_forward.12} parent=91 // pred_check
          %p2168 = pneg %p264
        $region94: #{emo_model_forward.12} parent=91 // pred_check_branch
          %2170 = sbr.rel (%p2168) target = $region96
        $region95: #{emo_model_forward.12} parent=91 // pred_region
          %p2171 = scmp.lt.s32.totalorder %s26, 1
          %s2172 = scalar_select %p2171, %s26, 1
          %s2173 = smul.addr %s2172, 8
          %s2174 = scalar_lea.vmem %s10, %s2173
        $region96: #{emo_model_forward.12} parent=91 // pred_fallthru
          _
      $region92: #{emo_model_forward.12} parent=5 // pred_fallthru
        _
    $region6: #{emo_model_forward.12} parent=1 // loop_footer
      %s24 = sadd.s32 1, %s20
    $region7: #{emo_model_forward.12} parent=1 // loop_footer_branch
      %19 = sbr.rel target = $region3
    $region8: #{emo_model_forward.12} parent=1 // loop_exit
      _
    %2175 = vsyncpa [#allocation3], 1
    %s2176 = scalar_lea.sflag [#allocation3], 1
    %2177 = vsyncpa %s2176, 1
    %2178 = vsyncpa [#allocation5], 1
    %2179 = vsyncpa [#allocation8], 1
    %2180 = vsyncpa [#allocation11], 1

// kernel: emo_model_forward.13
$region0: #{emo_model_forward.13}
  #allocation0 [shape = 'u32[]', space=smem, size = 0x4, offset = 0x4, fixed_abs, tag = 'smem constant byte address 0x4 - core index']
  #allocation1 [shape = 'u32[144,128]{1,0:T(1,128)}', space=vmem, size = 0x12000, scoped, tag = 'internal scratch']
  %s0 = inlined_call_operand.vmem [shape: f32[2,8,128], index: 0, kind: input, shape index: {}]
  %s1 = inlined_call_operand.vmem [shape: f32[128,384], index: 1, kind: input, shape index: {}]
  %s2 = inlined_call_operand.vmem [shape: f32[1,384], index: 2, kind: input, shape index: {}]
  %s3 = inlined_call_operand.vmem [shape: f32[128,128], index: 3, kind: input, shape index: {}]
  %s4 = inlined_call_operand.vmem [shape: f32[1,128], index: 4, kind: input, shape index: {}]
  %s5 = inlined_call_operand.vmem [shape: f32[128,512], index: 5, kind: input, shape index: {}]
  %s6 = inlined_call_operand.vmem [shape: f32[1,512], index: 6, kind: input, shape index: {}]
  %s7 = inlined_call_operand.vmem [shape: f32[512,128], index: 7, kind: input, shape index: {}]
  %s8 = inlined_call_operand.vmem [shape: f32[1,128], index: 8, kind: input, shape index: {}]
  %s9 = inlined_call_operand.vmem [shape: f32[8,128], index: 9, kind: input, shape index: {}]
  %s10 = inlined_call_operand.vmem [shape: f32[2,8,128], index: 10, kind: output, shape index: {}]
  %s11 = sld [smem:[#allocation0]]
  $region73: #{emo_model_forward.13} parent=0
    _
  %s13 = ssub.s32 1, %s11
  %s14 = scalar_select 0, %s13, %s11
  loop: start=0, step=1, limit=4
  $region2: #{emo_model_forward.13} parent=0 // loop_pre_header
    _
  $region3: #{emo_model_forward.13} parent=0 // loop_header
    %s16 = sphi 0, %s20
    %p17 = scmp.ge.s32.totalorder %s16, 4
    %s26 = sphi 0, %s28
    %s29 = sphi 0, %s26
    %s30 = sphi 0, %s29
    %s46 = sphi 0, %s30
    %s50 = sphi 0, %s50
    %s52 = sphi 0, %s50
    %s53 = sphi 0, %s52
    %s67 = sphi 0, %s53
    %s71 = sphi 0, %s71
    %s73 = sphi 0, %s71
    %s74 = sphi 0, %s73
    %s88 = sphi 0, %s74
    %s92 = sphi 0, %s92
    %s94 = sphi 0, %s92
    %s95 = sphi 0, %s94
    %s109 = sphi 0, %s95
    %s113 = sphi 0, %s113
    %s115 = sphi 0, %s113
    %s116 = sphi 0, %s115
    %s130 = sphi 0, %s116
    %s134 = sphi 0, %s134
    %s136 = sphi 0, %s134
    %s137 = sphi 0, %s136
    %s151 = sphi 0, %s137
    %s155 = sphi 0, %s155
    %s157 = sphi 0, %s155
    %s158 = sphi 0, %s157
    %s172 = sphi 0, %s158
    %s176 = sphi 0, %s176
    %s178 = sphi 0, %s176
    %s179 = sphi 0, %s178
    %s193 = sphi 0, %s179
    %s197 = sphi 0, %s197
    %s199 = sphi 0, %s197
    %s200 = sphi 0, %s199
    %s214 = sphi 0, %s200
    %s218 = sphi 0, %s218
    %s220 = sphi 0, %s218
    %s221 = sphi 0, %s220
    %s235 = sphi 0, %s221
    %s241 = sphi 0, %s243
    %s244 = sphi 0, %s241
    %s245 = sphi 0, %s244
    %s261 = sphi 0, %s245
  $region4: #{emo_model_forward.13} parent=0 // loop_header_branch
    %19 = sbr.rel (%p17) target = $region8
  $region5: #{emo_model_forward.13} parent=0 // loop_body
    %s21 = ssub.s32 %s16, 1
    %s22 = ssub.s32 %s16, 2
    %s23 = sadd.s32 %s16, 1
    %s24 = ssub.s32 %s16, %s23
    %p25 = scmp.eq.s32.totalorder %s24, 0
    %s27 = sadd.s32 %s26, 1
    %s28 = scalar_select %p25, %s26, %s27
    %p31 = pneg %p25
    %p32 = scmp.eq.s32.totalorder %s16, 1
    %p33 = por %p31, %p32
    %p34 = scmp.ne.s32.totalorder %s26, %s29
    %p35 = scmp.eq.s32.totalorder %s16, 0
    %p36 = por %p34, %p35
    %p37 = scmp.ne.s32.totalorder %s26, %s29
    %p38 = scmp.eq.s32.totalorder %s21, 1
    %p39 = por %p37, %p38
    %p40 = scmp.ne.s32.totalorder %s29, %s30
    %p41 = scmp.eq.s32.totalorder %s21, 0
    %p42 = por %p40, %p41
    %p43 = scmp.ne.s32.totalorder %s29, %s30
    %p44 = scmp.eq.s32.totalorder %s22, 1
    %p45 = por %p43, %p44
    %p47 = scmp.ne.s32.totalorder %s30, %s46
    %p48 = scmp.eq.s32.totalorder %s22, 0
    %p49 = por %p47, %p48
    %s51 = sadd.s32 %s50, 1
    %p54 = scmp.eq.s32.totalorder %s16, 1
    %p55 = scmp.ne.s32.totalorder %s50, %s52
    %p56 = scmp.eq.s32.totalorder %s16, 0
    %p57 = por %p55, %p56
    %p58 = scmp.ne.s32.totalorder %s50, %s52
    %p59 = scmp.eq.s32.totalorder %s21, 1
    %p60 = por %p58, %p59
    %p61 = scmp.ne.s32.totalorder %s52, %s53
    %p62 = scmp.eq.s32.totalorder %s21, 0
    %p63 = por %p61, %p62
    %p64 = scmp.ne.s32.totalorder %s52, %s53
    %p65 = scmp.eq.s32.totalorder %s22, 1
    %p66 = por %p64, %p65
    %p68 = scmp.ne.s32.totalorder %s53, %s67
    %p69 = scmp.eq.s32.totalorder %s22, 0
    %p70 = por %p68, %p69
    %s72 = sadd.s32 %s71, 1
    %p75 = scmp.eq.s32.totalorder %s16, 1
    %p76 = scmp.ne.s32.totalorder %s71, %s73
    %p77 = scmp.eq.s32.totalorder %s16, 0
    %p78 = por %p76, %p77
    %p79 = scmp.ne.s32.totalorder %s71, %s73
    %p80 = scmp.eq.s32.totalorder %s21, 1
    %p81 = por %p79, %p80
    %p82 = scmp.ne.s32.totalorder %s73, %s74
    %p83 = scmp.eq.s32.totalorder %s21, 0
    %p84 = por %p82, %p83
    %p85 = scmp.ne.s32.totalorder %s73, %s74
    %p86 = scmp.eq.s32.totalorder %s22, 1
    %p87 = por %p85, %p86
    %p89 = scmp.ne.s32.totalorder %s74, %s88
    %p90 = scmp.eq.s32.totalorder %s22, 0
    %p91 = por %p89, %p90
    %s93 = sadd.s32 %s92, 1
    %p96 = scmp.eq.s32.totalorder %s16, 1
    %p97 = scmp.ne.s32.totalorder %s92, %s94
    %p98 = scmp.eq.s32.totalorder %s16, 0
    %p99 = por %p97, %p98
    %p100 = scmp.ne.s32.totalorder %s92, %s94
    %p101 = scmp.eq.s32.totalorder %s21, 1
    %p102 = por %p100, %p101
    %p103 = scmp.ne.s32.totalorder %s94, %s95
    %p104 = scmp.eq.s32.totalorder %s21, 0
    %p105 = por %p103, %p104
    %p106 = scmp.ne.s32.totalorder %s94, %s95
    %p107 = scmp.eq.s32.totalorder %s22, 1
    %p108 = por %p106, %p107
    %p110 = scmp.ne.s32.totalorder %s95, %s109
    %p111 = scmp.eq.s32.totalorder %s22, 0
    %p112 = por %p110, %p111
    %s114 = sadd.s32 %s113, 1
    %p117 = scmp.eq.s32.totalorder %s16, 1
    %p118 = scmp.ne.s32.totalorder %s113, %s115
    %p119 = scmp.eq.s32.totalorder %s16, 0
    %p120 = por %p118, %p119
    %p121 = scmp.ne.s32.totalorder %s113, %s115
    %p122 = scmp.eq.s32.totalorder %s21, 1
    %p123 = por %p121, %p122
    %p124 = scmp.ne.s32.totalorder %s115, %s116
    %p125 = scmp.eq.s32.totalorder %s21, 0
    %p126 = por %p124, %p125
    %p127 = scmp.ne.s32.totalorder %s115, %s116
    %p128 = scmp.eq.s32.totalorder %s22, 1
    %p129 = por %p127, %p128
    %p131 = scmp.ne.s32.totalorder %s116, %s130
    %p132 = scmp.eq.s32.totalorder %s22, 0
    %p133 = por %p131, %p132
    %s135 = sadd.s32 %s134, 1
    %p138 = scmp.eq.s32.totalorder %s16, 1
    %p139 = scmp.ne.s32.totalorder %s134, %s136
    %p140 = scmp.eq.s32.totalorder %s16, 0
    %p141 = por %p139, %p140
    %p142 = scmp.ne.s32.totalorder %s134, %s136
    %p143 = scmp.eq.s32.totalorder %s21, 1
    %p144 = por %p142, %p143
    %p145 = scmp.ne.s32.totalorder %s136, %s137
    %p146 = scmp.eq.s32.totalorder %s21, 0
    %p147 = por %p145, %p146
    %p148 = scmp.ne.s32.totalorder %s136, %s137
    %p149 = scmp.eq.s32.totalorder %s22, 1
    %p150 = por %p148, %p149
    %p152 = scmp.ne.s32.totalorder %s137, %s151
    %p153 = scmp.eq.s32.totalorder %s22, 0
    %p154 = por %p152, %p153
    %s156 = sadd.s32 %s155, 1
    %p159 = scmp.eq.s32.totalorder %s16, 1
    %p160 = scmp.ne.s32.totalorder %s155, %s157
    %p161 = scmp.eq.s32.totalorder %s16, 0
    %p162 = por %p160, %p161
    %p163 = scmp.ne.s32.totalorder %s155, %s157
    %p164 = scmp.eq.s32.totalorder %s21, 1
    %p165 = por %p163, %p164
    %p166 = scmp.ne.s32.totalorder %s157, %s158
    %p167 = scmp.eq.s32.totalorder %s21, 0
    %p168 = por %p166, %p167
    %p169 = scmp.ne.s32.totalorder %s157, %s158
    %p170 = scmp.eq.s32.totalorder %s22, 1
    %p171 = por %p169, %p170
    %p173 = scmp.ne.s32.totalorder %s158, %s172
    %p174 = scmp.eq.s32.totalorder %s22, 0
    %p175 = por %p173, %p174
    %s177 = sadd.s32 %s176, 1
    %p180 = scmp.eq.s32.totalorder %s16, 1
    %p181 = scmp.ne.s32.totalorder %s176, %s178
    %p182 = scmp.eq.s32.totalorder %s16, 0
    %p183 = por %p181, %p182
    %p184 = scmp.ne.s32.totalorder %s176, %s178
    %p185 = scmp.eq.s32.totalorder %s21, 1
    %p186 = por %p184, %p185
    %p187 = scmp.ne.s32.totalorder %s178, %s179
    %p188 = scmp.eq.s32.totalorder %s21, 0
    %p189 = por %p187, %p188
    %p190 = scmp.ne.s32.totalorder %s178, %s179
    %p191 = scmp.eq.s32.totalorder %s22, 1
    %p192 = por %p190, %p191
    %p194 = scmp.ne.s32.totalorder %s179, %s193
    %p195 = scmp.eq.s32.totalorder %s22, 0
    %p196 = por %p194, %p195
    %s198 = sadd.s32 %s197, 1
    %p201 = scmp.eq.s32.totalorder %s16, 1
    %p202 = scmp.ne.s32.totalorder %s197, %s199
    %p203 = scmp.eq.s32.totalorder %s16, 0
    %p204 = por %p202, %p203
    %p205 = scmp.ne.s32.totalorder %s197, %s199
    %p206 = scmp.eq.s32.totalorder %s21, 1
    %p207 = por %p205, %p206
    %p208 = scmp.ne.s32.totalorder %s199, %s200
    %p209 = scmp.eq.s32.totalorder %s21, 0
    %p210 = por %p208, %p209
    %p211 = scmp.ne.s32.totalorder %s199, %s200
    %p212 = scmp.eq.s32.totalorder %s22, 1
    %p213 = por %p211, %p212
    %p215 = scmp.ne.s32.totalorder %s200, %s214
    %p216 = scmp.eq.s32.totalorder %s22, 0
    %p217 = por %p215, %p216
    %s219 = sadd.s32 %s218, 1
    %p222 = scmp.eq.s32.totalorder %s16, 1
    %p223 = scmp.ne.s32.totalorder %s218, %s220
    %p224 = scmp.eq.s32.totalorder %s16, 0
    %p225 = por %p223, %p224
    %p226 = scmp.ne.s32.totalorder %s218, %s220
    %p227 = scmp.eq.s32.totalorder %s21, 1
    %p228 = por %p226, %p227
    %p229 = scmp.ne.s32.totalorder %s220, %s221
    %p230 = scmp.eq.s32.totalorder %s21, 0
    %p231 = por %p229, %p230
    %p232 = scmp.ne.s32.totalorder %s220, %s221
    %p233 = scmp.eq.s32.totalorder %s22, 1
    %p234 = por %p232, %p233
    %p236 = scmp.ne.s32.totalorder %s221, %s235
    %p237 = scmp.eq.s32.totalorder %s22, 0
    %p238 = por %p236, %p237
    %s239 = ssub.s32 %s16, %s23
    %p240 = scmp.eq.s32.totalorder %s239, 0
    %s242 = sadd.s32 %s241, 1
    %s243 = scalar_select %p240, %s241, %s242
    %p246 = pneg %p240
    %p247 = scmp.eq.s32.totalorder %s16, 1
    %p248 = por %p246, %p247
    %p249 = scmp.ne.s32.totalorder %s241, %s244
    %p250 = scmp.eq.s32.totalorder %s16, 0
    %p251 = por %p249, %p250
    %p252 = scmp.ne.s32.totalorder %s241, %s244
    %p253 = scmp.eq.s32.totalorder %s21, 1
    %p254 = por %p252, %p253
    %p255 = scmp.ne.s32.totalorder %s244, %s245
    %p256 = scmp.eq.s32.totalorder %s21, 0
    %p257 = por %p255, %p256
    %p258 = scmp.ne.s32.totalorder %s244, %s245
    %p259 = scmp.eq.s32.totalorder %s22, 1
    %p260 = por %p258, %p259
    %p262 = scmp.ne.s32.totalorder %s245, %s261
    %p263 = scmp.eq.s32.totalorder %s22, 0
    %p264 = por %p262, %p263
    %p265 = scmp.le.s32.totalorder 1, %s16
    %p266 = scmp.lt.s32.totalorder %s16, 3
    %p267 = pnand %p265, %p266
    %p268 = pneg %p267
    // Predicated region
    $region9: #{emo_model_forward.13} parent=5 // pred_check
      _
    $region10: #{emo_model_forward.13} parent=5 // pred_check_branch
      %270 = sbr.rel (%p267) target = $region12
    $region11: #{emo_model_forward.13} parent=5 // pred_region
      %s271 = ssub.s32 %s16, 1
      // Predicated region
      $region13: #{emo_model_forward.13} parent=11 // pred_check
        %p272 = pneg %p63
      $region14: #{emo_model_forward.13} parent=11 // pred_check_branch
        %274 = sbr.rel (%p272) target = $region16
      $region15: #{emo_model_forward.13} parent=11 // pred_region
        _
      $region16: #{emo_model_forward.13} parent=11 // pred_fallthru
        _
      // Predicated region
      $region17: #{emo_model_forward.13} parent=11 // pred_check
        %p275 = pneg %p84
      $region18: #{emo_model_forward.13} parent=11 // pred_check_branch
        %277 = sbr.rel (%p275) target = $region20
      $region19: #{emo_model_forward.13} parent=11 // pred_region
        _
      $region20: #{emo_model_forward.13} parent=11 // pred_fallthru
        _
      // Predicated region
      $region21: #{emo_model_forward.13} parent=11 // pred_check
        %p278 = pneg %p105
      $region22: #{emo_model_forward.13} parent=11 // pred_check_branch
        %280 = sbr.rel (%p278) target = $region24
      $region23: #{emo_model_forward.13} parent=11 // pred_region
        _
      $region24: #{emo_model_forward.13} parent=11 // pred_fallthru
        _
      // Predicated region
      $region25: #{emo_model_forward.13} parent=11 // pred_check
        %p281 = pneg %p126
      $region26: #{emo_model_forward.13} parent=11 // pred_check_branch
        %283 = sbr.rel (%p281) target = $region28
      $region27: #{emo_model_forward.13} parent=11 // pred_region
        _
      $region28: #{emo_model_forward.13} parent=11 // pred_fallthru
        _
      // Predicated region
      $region29: #{emo_model_forward.13} parent=11 // pred_check
        %p284 = pneg %p147
      $region30: #{emo_model_forward.13} parent=11 // pred_check_branch
        %286 = sbr.rel (%p284) target = $region32
      $region31: #{emo_model_forward.13} parent=11 // pred_region
        _
      $region32: #{emo_model_forward.13} parent=11 // pred_fallthru
        _
      // Predicated region
      $region33: #{emo_model_forward.13} parent=11 // pred_check
        %p287 = pneg %p168
      $region34: #{emo_model_forward.13} parent=11 // pred_check_branch
        %289 = sbr.rel (%p287) target = $region36
      $region35: #{emo_model_forward.13} parent=11 // pred_region
        _
      $region36: #{emo_model_forward.13} parent=11 // pred_fallthru
        _
      // Predicated region
      $region37: #{emo_model_forward.13} parent=11 // pred_check
        %p290 = pneg %p189
      $region38: #{emo_model_forward.13} parent=11 // pred_check_branch
        %292 = sbr.rel (%p290) target = $region40
      $region39: #{emo_model_forward.13} parent=11 // pred_region
        _
      $region40: #{emo_model_forward.13} parent=11 // pred_fallthru
        _
      // Predicated region
      $region41: #{emo_model_forward.13} parent=11 // pred_check
        %p293 = pneg %p210
      $region42: #{emo_model_forward.13} parent=11 // pred_check_branch
        %295 = sbr.rel (%p293) target = $region44
      $region43: #{emo_model_forward.13} parent=11 // pred_region
        _
      $region44: #{emo_model_forward.13} parent=11 // pred_fallthru
        _
      // Predicated region
      $region45: #{emo_model_forward.13} parent=11 // pred_check
        %p296 = pneg %p231
      $region46: #{emo_model_forward.13} parent=11 // pred_check_branch
        %298 = sbr.rel (%p296) target = $region48
      $region47: #{emo_model_forward.13} parent=11 // pred_region
        _
      $region48: #{emo_model_forward.13} parent=11 // pred_fallthru
        _
    $region12: #{emo_model_forward.13} parent=5 // pred_fallthru
      _
    %p299 = scmp.lt.s32.totalorder %s16, 2
    // Predicated region
    $region49: #{emo_model_forward.13} parent=5 // pred_check
      %p300 = pneg %p299
    $region50: #{emo_model_forward.13} parent=5 // pred_check_branch
      %302 = sbr.rel (%p300) target = $region52
    $region51: #{emo_model_forward.13} parent=5 // pred_region
      // Predicated region
      $region53: #{emo_model_forward.13} parent=51 // pred_check
        %p303 = pneg %p36
      $region54: #{emo_model_forward.13} parent=51 // pred_check_branch
        %305 = sbr.rel (%p303) target = $region56
      $region55: #{emo_model_forward.13} parent=51 // pred_region
        %p306 = scmp.lt.s32.totalorder %s16, 1
        %s307 = scalar_select %p306, %s16, 1
        %s308 = smul.addr %s307, 8
        %s309 = scalar_lea.vmem %s0, %s308
      $region56: #{emo_model_forward.13} parent=51 // pred_fallthru
        _
    $region52: #{emo_model_forward.13} parent=5 // pred_fallthru
      _
    %p310 = scmp.le.s32.totalorder 1, %s16
    %p311 = scmp.lt.s32.totalorder %s16, 3
    %p312 = pnand %p310, %p311
    %p313 = pneg %p312
    // Predicated region
    $region57: #{emo_model_forward.13} parent=5 // pred_check
      _
    $region58: #{emo_model_forward.13} parent=5 // pred_check_branch
      %315 = sbr.rel (%p312) target = $region60
    $region59: #{emo_model_forward.13} parent=5 // pred_region
      %s316 = ssub.s32 %s16, 1
      %p317 = scmp.lt.s32.totalorder %s21, 1
      %s318 = scalar_select %p317, %s21, 1
      %s319 = smul.addr %s318, 8
      %s320 = scalar_lea.vmem %s0, %s319
      %p321 = pneg %p42
      %p322 = pneg %p39
      %p323 = pneg %p63
      %p324 = pneg %p60
      %p325 = pneg %p84
      %p326 = pneg %p81
      %p327 = pneg %p105
      %p328 = pneg %p102
      %p329 = pneg %p126
      %p330 = pneg %p123
      %p331 = pneg %p147
      %p332 = pneg %p144
      %p333 = pneg %p168
      %p334 = pneg %p165
      %p335 = pneg %p189
      %p336 = pneg %p186
      %p337 = pneg %p210
      %p338 = pneg %p207
      %p339 = pneg %p231
      %p340 = pneg %p228
      %p341 = pneg %p257
      %p342 = pneg %p254
      %p343 = scmp.lt.s32.totalorder %s21, 1
      %s344 = scalar_select %p343, %s21, 1
      %s345 = smul.addr %s344, 8
      %s346 = scalar_lea.vmem %s10, %s345
      %p347 = scmp.lt.s32.totalorder %s21, 1
      %s348 = scalar_select %p347, %s21, 1
      %s349 = smul.addr %s348, 8
      %s350 = scalar_lea.vmem %s0, %s349
      %p351 = scmp.lt.s32.totalorder %s21, 1
      %s352 = scalar_select %p351, %s21, 1
      %s353 = smul.addr %s352, 8
      %s354 = scalar_lea.vmem %s10, %s353
      %v355 = vld [vmem:[%s350] sm:$0xff]
      %v356 = vld [vmem:[%s9] sm:$0xff]
      %357 = vadd.xlane.f32.xlu0 %v355
      %v358 = vpop.xlane.xlu0 %357
      %v359 = vrcp.pop 128.0
      %v360 = vmul.f32 %v358, %v359
      %v361 = vsub.f32 %v355, %v360
      %v362 = vmul.f32 %v361, %v361
      %363 = vadd.xlane.f32.xlu0 %v362
      %v364 = vpop.xlane.xlu0 %363
      %v365 = vmul.f32 %v364, %v359
      %v366 = vadd.f32 %v365, 1e-05
      %v367 = vrsqrt.pop %v366
      %v368 = vmul.f32 %v361, %v367
      %v369 = vlaneseq
      %v370 = vshrl.u32 %v369, 7
      %v371 = vsub.s32 0, %v370
      %v372 = vrot.slane %v356, %v371
      %v373 = vmul.f32 %v368, %v372
      %v374 = vlaneseq
      %v375 = vshrl.u32 %v374, 7
      %v376 = vsub.s32 1, %v375
      %v377 = vrot.slane %v356, %v376
      %v378 = vadd.f32 %v373, %v377
      %v379 = vld [vmem:[%s1] sm:$0xff]
      %v380 = vld [vmem:[%s1 + $0x8] sm:$0xff]
      %v381 = vld [vmem:[%s1 + $0x10] sm:$0xff]
      %v382 = vld [vmem:[%s1 + $0x18] sm:$0xff]
      %v383 = vld [vmem:[%s1 + $0x20] sm:$0xff]
      %v384 = vld [vmem:[%s1 + $0x28] sm:$0xff]
      %v385 = vld [vmem:[%s1 + $0x30] sm:$0xff]
      %v386 = vld [vmem:[%s1 + $0x38] sm:$0xff]
      %v387 = vld [vmem:[%s1 + $0x40] sm:$0xff]
      %v388 = vld [vmem:[%s1 + $0x48] sm:$0xff]
      %v389 = vld [vmem:[%s1 + $0x50] sm:$0xff]
      %v390 = vld [vmem:[%s1 + $0x58] sm:$0xff]
      %v391 = vld [vmem:[%s1 + $0x60] sm:$0xff]
      %v392 = vld [vmem:[%s1 + $0x68] sm:$0xff]
      %v393 = vld [vmem:[%s1 + $0x70] sm:$0xff]
      %v394 = vld [vmem:[%s1 + $0x78] sm:$0xff]
      %v395 = vld [vmem:[%s1 + $0x80] sm:$0xff]
      %v396 = vld [vmem:[%s1 + $0x88] sm:$0xff]
      %v397 = vld [vmem:[%s1 + $0x90] sm:$0xff]
      %v398 = vld [vmem:[%s1 + $0x98] sm:$0xff]
      %v399 = vld [vmem:[%s1 + $0xa0] sm:$0xff]
      %v400 = vld [vmem:[%s1 + $0xa8] sm:$0xff]
      %v401 = vld [vmem:[%s1 + $0xb0] sm:$0xff]
      %v402 = vld [vmem:[%s1 + $0xb8] sm:$0xff]
      %v403 = vld [vmem:[%s1 + $0xc0] sm:$0xff]
      %v404 = vld [vmem:[%s1 + $0xc8] sm:$0xff]
      %v405 = vld [vmem:[%s1 + $0xd0] sm:$0xff]
      %v406 = vld [vmem:[%s1 + $0xd8] sm:$0xff]
      %v407 = vld [vmem:[%s1 + $0xe0] sm:$0xff]
      %v408 = vld [vmem:[%s1 + $0xe8] sm:$0xff]
      %v409 = vld [vmem:[%s1 + $0xf0] sm:$0xff]
      %v410 = vld [vmem:[%s1 + $0xf8] sm:$0xff]
      %v411 = vld [vmem:[%s1 + $0x100] sm:$0xff]
      %v412 = vld [vmem:[%s1 + $0x108] sm:$0xff]
      %v413 = vld [vmem:[%s1 + $0x110] sm:$0xff]
      %v414 = vld [vmem:[%s1 + $0x118] sm:$0xff]
      %v415 = vld [vmem:[%s1 + $0x120] sm:$0xff]
      %v416 = vld [vmem:[%s1 + $0x128] sm:$0xff]
      %v417 = vld [vmem:[%s1 + $0x130] sm:$0xff]
      %v418 = vld [vmem:[%s1 + $0x138] sm:$0xff]
      %v419 = vld [vmem:[%s1 + $0x140] sm:$0xff]
      %v420 = vld [vmem:[%s1 + $0x148] sm:$0xff]
      %v421 = vld [vmem:[%s1 + $0x150] sm:$0xff]
      %v422 = vld [vmem:[%s1 + $0x158] sm:$0xff]
      %v423 = vld [vmem:[%s1 + $0x160] sm:$0xff]
      %v424 = vld [vmem:[%s1 + $0x168] sm:$0xff]
      %v425 = vld [vmem:[%s1 + $0x170] sm:$0xff]
      %v426 = vld [vmem:[%s1 + $0x178] sm:$0xff]
      %v427 = vld [vmem:[%s2] sm:$0x7]
      %v429 = vlaneseq
      %v430 = vshrl.u32 %v429, 7
      %v431 = vsub.s32 0, %v430
      %v432 = vrot.slane %v427, %v431
      %v433 = vlaneseq
      %v434 = vshrl.u32 %v433, 7
      %v435 = vsub.s32 1, %v434
      %v436 = vrot.slane %v427, %v435
      %v437 = vlaneseq
      %v438 = vshrl.u32 %v437, 7
      %v439 = vsub.s32 2, %v438
      %v440 = vrot.slane %v427, %v439
      %444 = vmatprep.subr.mxu0 %v380
      %445 = vmatpush1.msra.mxu0 %v379
      %446 = vmatprep.subr.mxu0 %v383
      %447 = vmatpush1.msra.mxu0 %v382
      %448 = vmatprep.subr.mxu0 %v386
      %449 = vmatpush1.msra.mxu0 %v385
      %450 = vmatprep.subr.mxu0 %v389
      %451 = vmatpush1.msra.mxu0 %v388
      %452 = vmatprep.subr.mxu0 %v392
      %453 = vmatpush1.msra.mxu0 %v391
      %454 = vmatprep.subr.mxu0 %v395
      %455 = vmatpush1.msra.mxu0 %v394
      %456 = vmatprep.subr.mxu0 %v398
      %457 = vmatpush1.msra.mxu0 %v397
      %458 = vmatprep.subr.mxu0 %v401
      %459 = vmatpush1.msra.mxu0 %v400
      %460 = vmatprep.subr.mxu0 %v404
      %461 = vmatpush1.msra.mxu0 %v403
      %462 = vmatprep.subr.mxu0 %v407
      %463 = vmatpush1.msra.mxu0 %v406
      %464 = vmatprep.subr.mxu0 %v410
      %465 = vmatpush1.msra.mxu0 %v409
      %466 = vmatprep.subr.mxu0 %v413
      %467 = vmatpush1.msra.mxu0 %v412
      %468 = vmatprep.subr.mxu0 %v416
      %469 = vmatpush1.msra.mxu0 %v415
      %470 = vmatprep.subr.mxu0 %v419
      %471 = vmatpush1.msra.mxu0 %v418
      %472 = vmatprep.subr.mxu0 %v422
      %473 = vmatpush1.msra.mxu0 %v421
      %474 = vmatprep.subr.mxu0 %v425
      %475 = vmatpush1.msra.mxu0 %v424
      %476 = vmatprep.subr.mxu0 0.0
      %477 = vmatpush1.msra.mxu0 0.0
      %478 = vmatprep.subr.mxu0 0.0
      %479 = vmatpush1.msra.mxu0 0.0
      %480 = vmatprep.subr.mxu0 0.0
      %481 = vmatpush1.msra.mxu0 0.0
      %482 = vmatprep.subr.mxu0 0.0
      %483 = vmatpush1.msra.mxu0 0.0
      %484 = vmatprep.subr.mxu0 0.0
      %485 = vmatpush1.msra.mxu0 0.0
      %486 = vmatprep.subr.mxu0 0.0
      %487 = vmatpush1.msra.mxu0 0.0
      %488 = vmatprep.subr.mxu0 0.0
      %489 = vmatpush1.msra.mxu0 0.0
      %490 = vmatprep.subr.mxu0 0.0
      %491 = vmatpush1.msra.mxu0 0.0
      %492 = vmatprep.subr.mxu0 0.0
      %493 = vmatpush1.msra.mxu0 0.0
      %494 = vmatprep.subr.mxu0 0.0
      %495 = vmatpush1.msra.mxu0 0.0
      %496 = vmatprep.subr.mxu0 0.0
      %497 = vmatpush1.msra.mxu0 0.0
      %498 = vmatprep.subr.mxu0 0.0
      %499 = vmatpush1.msra.mxu0 0.0
      %500 = vmatprep.subr.mxu0 0.0
      %501 = vmatpush1.msra.mxu0 0.0
      %502 = vmatprep.subr.mxu0 0.0
      %503 = vmatpush1.msra.mxu0 0.0
      %504 = vmatprep.subr.mxu0 0.0
      %505 = vmatpush1.msra.mxu0 0.0
      %506 = vmatprep.subr.mxu0 0.0
      %507 = vmatpush1.msra.mxu0 0.0
      %508 = vmatprep.mubr.f32.mxu0 0.0
      %509 = vmatmul.mubr.f32.gmra.mrb[0].mxu0 %v378
      %v510 = vpop.f32.mrb[0].mxu0
      %v511 = vadd.f32 %v432, %v510
      %v512 = vpop.f32.mrb[0].mxu0
      %v513 = vadd.f32 %v436, %v512
      %514 = vdwg.mxu0
      %515 = vmatprep.subr.mxu0 0.0
      %516 = vmatpush1.msra.mxu0 %v381
      %517 = vmatprep.subr.mxu0 0.0
      %518 = vmatpush1.msra.mxu0 %v384
      %519 = vmatprep.subr.mxu0 0.0
      %520 = vmatpush1.msra.mxu0 %v387
      %521 = vmatprep.subr.mxu0 0.0
      %522 = vmatpush1.msra.mxu0 %v390
      %523 = vmatprep.subr.mxu0 0.0
      %524 = vmatpush1.msra.mxu0 %v393
      %525 = vmatprep.subr.mxu0 0.0
      %526 = vmatpush1.msra.mxu0 %v396
      %527 = vmatprep.subr.mxu0 0.0
      %528 = vmatpush1.msra.mxu0 %v399
      %529 = vmatprep.subr.mxu0 0.0
      %530 = vmatpush1.msra.mxu0 %v402
      %531 = vmatprep.subr.mxu0 0.0
      %532 = vmatpush1.msra.mxu0 %v405
      %533 = vmatprep.subr.mxu0 0.0
      %534 = vmatpush1.msra.mxu0 %v408
      %535 = vmatprep.subr.mxu0 0.0
      %536 = vmatpush1.msra.mxu0 %v411
      %537 = vmatprep.subr.mxu0 0.0
      %538 = vmatpush1.msra.mxu0 %v414
      %539 = vmatprep.subr.mxu0 0.0
      %540 = vmatpush1.msra.mxu0 %v417
      %541 = vmatprep.subr.mxu0 0.0
      %542 = vmatpush1.msra.mxu0 %v420
      %543 = vmatprep.subr.mxu0 0.0
      %544 = vmatpush1.msra.mxu0 %v423
      %545 = vmatprep.subr.mxu0 0.0
      %546 = vmatpush1.msra.mxu0 %v426
      %547 = vmatprep.subr.mxu0 0.0
      %548 = vmatpush1.msra.mxu0 0.0
      %549 = vmatprep.subr.mxu0 0.0
      %550 = vmatpush1.msra.mxu0 0.0
      %551 = vmatprep.subr.mxu0 0.0
      %552 = vmatpush1.msra.mxu0 0.0
      %553 = vmatprep.subr.mxu0 0.0
      %554 = vmatpush1.msra.mxu0 0.0
      %555 = vmatprep.subr.mxu0 0.0
      %556 = vmatpush1.msra.mxu0 0.0
      %557 = vmatprep.subr.mxu0 0.0
      %558 = vmatpush1.msra.mxu0 0.0
      %559 = vmatprep.subr.mxu0 0.0
      %560 = vmatpush1.msra.mxu0 0.0
      %561 = vmatprep.subr.mxu0 0.0
      %562 = vmatpush1.msra.mxu0 0.0
      %563 = vmatprep.subr.mxu0 0.0
      %564 = vmatpush1.msra.mxu0 0.0
      %565 = vmatprep.subr.mxu0 0.0
      %566 = vmatpush1.msra.mxu0 0.0
      %567 = vmatprep.subr.mxu0 0.0
      %568 = vmatpush1.msra.mxu0 0.0
      %569 = vmatprep.subr.mxu0 0.0
      %570 = vmatpush1.msra.mxu0 0.0
      %571 = vmatprep.subr.mxu0 0.0
      %572 = vmatpush1.msra.mxu0 0.0
      %573 = vmatprep.subr.mxu0 0.0
      %574 = vmatpush1.msra.mxu0 0.0
      %575 = vmatprep.subr.mxu0 0.0
      %576 = vmatpush1.msra.mxu0 0.0
      %577 = vmatprep.subr.mxu0 0.0
      %578 = vmatpush1.msra.mxu0 0.0
      %579 = vmatprep.mubr.f32.mxu0 0.0
      %580 = vmatmul.mubr.f32.gmra.mrb[0].mxu0 %v378
      %v581 = vpop.f32.mrb[0].mxu0
      %v582 = vadd.f32 %v440, %v581
      %v583 = vpop.f32.mrb[0].mxu0
      %584 = vdwg.mxu0
      %vm585 = vcmask 261120
      %v587 = vsel %vm585, %v511, 0
      %v590 = vsel %vm585, %v513, 0
      %592 = vmatprep.subr.mxu0 0.0
      %593 = vmatpush1.xpose.msra.mxu0 %v590
      %594 = vmatprep.subr.mxu0 0.0
      %595 = vmatpush1.xpose.msra.mxu0 0.0
      %596 = vmatprep.subr.mxu0 0.0
      %597 = vmatpush1.xpose.msra.mxu0 0.0
      %598 = vmatprep.subr.mxu0 0.0
      %599 = vmatpush1.xpose.msra.mxu0 0.0
      %600 = vmatprep.subr.mxu0 0.0
      %601 = vmatpush1.xpose.msra.mxu0 0.0
      %602 = vmatprep.subr.mxu0 0.0
      %603 = vmatpush1.xpose.msra.mxu0 0.0
      %604 = vmatprep.subr.mxu0 0.0
      %605 = vmatpush1.xpose.msra.mxu0 0.0
      %606 = vmatprep.subr.mxu0 0.0
      %607 = vmatpush1.xpose.msra.mxu0 0.0
      %608 = vmatprep.subr.mxu0 0.0
      %609 = vmatpush1.xpose.msra.mxu0 0.0
      %610 = vmatprep.subr.mxu0 0.0
      %611 = vmatpush1.xpose.msra.mxu0 0.0
      %612 = vmatprep.subr.mxu0 0.0
      %613 = vmatpush1.xpose.msra.mxu0 0.0
      %614 = vmatprep.subr.mxu0 0.0
      %615 = vmatpush1.xpose.msra.mxu0 0.0
      %616 = vmatprep.subr.mxu0 0.0
      %617 = vmatpush1.xpose.msra.mxu0 0.0
      %618 = vmatprep.subr.mxu0 0.0
      %619 = vmatpush1.xpose.msra.mxu0 0.0
      %620 = vmatprep.subr.mxu0 0.0
      %621 = vmatpush1.xpose.msra.mxu0 0.0
      %622 = vmatprep.subr.mxu0 0.0
      %623 = vmatpush1.xpose.msra.mxu0 0.0
      %624 = vmatprep.subr.mxu0 0.0
      %625 = vmatpush1.xpose.msra.mxu0 0.0
      %626 = vmatprep.subr.mxu0 0.0
      %627 = vmatpush1.xpose.msra.mxu0 0.0
      %628 = vmatprep.subr.mxu0 0.0
      %629 = vmatpush1.xpose.msra.mxu0 0.0
      %630 = vmatprep.subr.mxu0 0.0
      %631 = vmatpush1.xpose.msra.mxu0 0.0
      %632 = vmatprep.subr.mxu0 0.0
      %633 = vmatpush1.xpose.msra.mxu0 0.0
      %634 = vmatprep.subr.mxu0 0.0
      %635 = vmatpush1.xpose.msra.mxu0 0.0
      %636 = vmatprep.subr.mxu0 0.0
      %637 = vmatpush1.xpose.msra.mxu0 0.0
      %638 = vmatprep.subr.mxu0 0.0
      %639 = vmatpush1.xpose.msra.mxu0 0.0
      %640 = vmatprep.subr.mxu0 0.0
      %641 = vmatpush1.xpose.msra.mxu0 0.0
      %642 = vmatprep.subr.mxu0 0.0
      %643 = vmatpush1.xpose.msra.mxu0 0.0
      %644 = vmatprep.subr.mxu0 0.0
      %645 = vmatpush1.xpose.msra.mxu0 0.0
      %646 = vmatprep.subr.mxu0 0.0
      %647 = vmatpush1.xpose.msra.mxu0 0.0
      %648 = vmatprep.subr.mxu0 0.0
      %649 = vmatpush1.xpose.msra.mxu0 0.0
      %650 = vmatprep.subr.mxu0 0.0
      %651 = vmatpush1.xpose.msra.mxu0 0.0
      %652 = vmatprep.subr.mxu0 0.0
      %653 = vmatpush1.xpose.msra.mxu0 0.0
      %654 = vmatprep.subr.mxu0 0.0
      %655 = vmatpush1.xpose.msra.mxu0 0.0
      %656 = vmatprep.mubr.f32.mxu0 0.0
      %657 = vmatmul.mubr.f32.gmra.mrb[0].mxu0 %v587
      %v658 = vpop.f32.mrb[0].mxu0
      %v659 = vadd.f32 0.0, %v658
      %v660 = vpop.f32.mrb[0].mxu0
      %661 = vdwg.mxu0
      %v662 = vmul.f32 %v659, 0.17677669
      %vm663 = vcmask 64512
      %v664 = vsel %vm663, %v662, -inf
      %665 = vmax.xlane.f32.xlu0 %v664
      %v666 = vpop.xlane.xlu0 %665
      %v667 = vsub.f32 %v662, %v666
      %v668 = vmul.f32 %v667, 1.442695
      %v669 = vpow.pop %v668
      %v670 = vsel %vm663, %v669, 0.0
      %671 = vadd.xlane.f32.xlu0 %v670
      %v672 = vpop.xlane.xlu0 %671
      %v673 = vrcp.pop %v672
      %v674 = vmul.f32 %v669, %v673
      %v676 = vsel %vm663, %v674, 0
      %678 = vmatprep.subr.mxu0 0.0
      %679 = vmatpush1.msra.mxu0 %v582
      %680 = vmatprep.subr.mxu0 0.0
      %681 = vmatpush1.msra.mxu0 0.0
      %682 = vmatprep.subr.mxu0 0.0
      %683 = vmatpush1.msra.mxu0 0.0
      %684 = vmatprep.subr.mxu0 0.0
      %685 = vmatpush1.msra.mxu0 0.0
      %686 = vmatprep.subr.mxu0 0.0
      %687 = vmatpush1.msra.mxu0 0.0
      %688 = vmatprep.subr.mxu0 0.0
      %689 = vmatpush1.msra.mxu0 0.0
      %690 = vmatprep.subr.mxu0 0.0
      %691 = vmatpush1.msra.mxu0 0.0
      %692 = vmatprep.subr.mxu0 0.0
      %693 = vmatpush1.msra.mxu0 0.0
      %694 = vmatprep.subr.mxu0 0.0
      %695 = vmatpush1.msra.mxu0 0.0
      %696 = vmatprep.subr.mxu0 0.0
      %697 = vmatpush1.msra.mxu0 0.0
      %698 = vmatprep.subr.mxu0 0.0
      %699 = vmatpush1.msra.mxu0 0.0
      %700 = vmatprep.subr.mxu0 0.0
      %701 = vmatpush1.msra.mxu0 0.0
      %702 = vmatprep.subr.mxu0 0.0
      %703 = vmatpush1.msra.mxu0 0.0
      %704 = vmatprep.subr.mxu0 0.0
      %705 = vmatpush1.msra.mxu0 0.0
      %706 = vmatprep.subr.mxu0 0.0
      %707 = vmatpush1.msra.mxu0 0.0
      %708 = vmatprep.subr.mxu0 0.0
      %709 = vmatpush1.msra.mxu0 0.0
      %710 = vmatprep.subr.mxu0 0.0
      %711 = vmatpush1.msra.mxu0 0.0
      %712 = vmatprep.subr.mxu0 0.0
      %713 = vmatpush1.msra.mxu0 0.0
      %714 = vmatprep.subr.mxu0 0.0
      %715 = vmatpush1.msra.mxu0 0.0
      %716 = vmatprep.subr.mxu0 0.0
      %717 = vmatpush1.msra.mxu0 0.0
      %718 = vmatprep.subr.mxu0 0.0
      %719 = vmatpush1.msra.mxu0 0.0
      %720 = vmatprep.subr.mxu0 0.0
      %721 = vmatpush1.msra.mxu0 0.0
      %722 = vmatprep.subr.mxu0 0.0
      %723 = vmatpush1.msra.mxu0 0.0
      %724 = vmatprep.subr.mxu0 0.0
      %725 = vmatpush1.msra.mxu0 0.0
      %726 = vmatprep.subr.mxu0 0.0
      %727 = vmatpush1.msra.mxu0 0.0
      %728 = vmatprep.subr.mxu0 0.0
      %729 = vmatpush1.msra.mxu0 0.0
      %730 = vmatprep.subr.mxu0 0.0
      %731 = vmatpush1.msra.mxu0 0.0
      %732 = vmatprep.subr.mxu0 0.0
      %733 = vmatpush1.msra.mxu0 0.0
      %734 = vmatprep.subr.mxu0 0.0
      %735 = vmatpush1.msra.mxu0 0.0
      %736 = vmatprep.subr.mxu0 0.0
      %737 = vmatpush1.msra.mxu0 0.0
      %738 = vmatprep.subr.mxu0 0.0
      %739 = vmatpush1.msra.mxu0 0.0
      %740 = vmatprep.subr.mxu0 0.0
      %741 = vmatpush1.msra.mxu0 0.0
      %742 = vmatprep.mubr.f32.mxu0 0.0
      %743 = vmatmul.mubr.f32.gmra.mrb[0].mxu0 %v676
      %v744 = vpop.f32.mrb[0].mxu0
      %v745 = vadd.f32 0.0, %v744
      %v746 = vpop.f32.mrb[0].mxu0
      %747 = vdwg.mxu0
      %v748 = vld [vmem:[%s3] sm:$0xff]
      %v749 = vld [vmem:[%s3 + $0x8] sm:$0xff]
      %v750 = vld [vmem:[%s3 + $0x10] sm:$0xff]
      %v751 = vld [vmem:[%s3 + $0x18] sm:$0xff]
      %752 = vrot.lane.b32.xlu0 %v511, 96
      %v753 = vpop.permute.xlu0 %752
      %754 = vrot.lane.b32.xlu0 %v513, 96
      %v755 = vpop.permute.xlu0 %754
      %v756 = vsel %vm585, %v753, 0
      %v758 = vsel %vm585, %v755, 0
      %760 = vmatprep.subr.mxu0 0.0
      %761 = vmatpush1.xpose.msra.mxu0 %v758
      %762 = vmatprep.subr.mxu0 0.0
      %763 = vmatpush1.xpose.msra.mxu0 0.0
      %764 = vmatprep.subr.mxu0 0.0
      %765 = vmatpush1.xpose.msra.mxu0 0.0
      %766 = vmatprep.subr.mxu0 0.0
      %767 = vmatpush1.xpose.msra.mxu0 0.0
      %768 = vmatprep.subr.mxu0 0.0
      %769 = vmatpush1.xpose.msra.mxu0 0.0
      %770 = vmatprep.subr.mxu0 0.0
      %771 = vmatpush1.xpose.msra.mxu0 0.0
      %772 = vmatprep.subr.mxu0 0.0
      %773 = vmatpush1.xpose.msra.mxu0 0.0
      %774 = vmatprep.subr.mxu0 0.0
      %775 = vmatpush1.xpose.msra.mxu0 0.0
      %776 = vmatprep.subr.mxu0 0.0
      %777 = vmatpush1.xpose.msra.mxu0 0.0
      %778 = vmatprep.subr.mxu0 0.0
      %779 = vmatpush1.xpose.msra.mxu0 0.0
      %780 = vmatprep.subr.mxu0 0.0
      %781 = vmatpush1.xpose.msra.mxu0 0.0
      %782 = vmatprep.subr.mxu0 0.0
      %783 = vmatpush1.xpose.msra.mxu0 0.0
      %784 = vmatprep.subr.mxu0 0.0
      %785 = vmatpush1.xpose.msra.mxu0 0.0
      %786 = vmatprep.subr.mxu0 0.0
      %787 = vmatpush1.xpose.msra.mxu0 0.0
      %788 = vmatprep.subr.mxu0 0.0
      %789 = vmatpush1.xpose.msra.mxu0 0.0
      %790 = vmatprep.subr.mxu0 0.0
      %791 = vmatpush1.xpose.msra.mxu0 0.0
      %792 = vmatprep.subr.mxu0 0.0
      %793 = vmatpush1.xpose.msra.mxu0 0.0
      %794 = vmatprep.subr.mxu0 0.0
      %795 = vmatpush1.xpose.msra.mxu0 0.0
      %796 = vmatprep.subr.mxu0 0.0
      %797 = vmatpush1.xpose.msra.mxu0 0.0
      %798 = vmatprep.subr.mxu0 0.0
      %799 = vmatpush1.xpose.msra.mxu0 0.0
      %800 = vmatprep.subr.mxu0 0.0
      %801 = vmatpush1.xpose.msra.mxu0 0.0
      %802 = vmatprep.subr.mxu0 0.0
      %803 = vmatpush1.xpose.msra.mxu0 0.0
      %804 = vmatprep.subr.mxu0 0.0
      %805 = vmatpush1.xpose.msra.mxu0 0.0
      %806 = vmatprep.subr.mxu0 0.0
      %807 = vmatpush1.xpose.msra.mxu0 0.0
      %808 = vmatprep.subr.mxu0 0.0
      %809 = vmatpush1.xpose.msra.mxu0 0.0
      %810 = vmatprep.subr.mxu0 0.0
      %811 = vmatpush1.xpose.msra.mxu0 0.0
      %812 = vmatprep.subr.mxu0 0.0
      %813 = vmatpush1.xpose.msra.mxu0 0.0
      %814 = vmatprep.subr.mxu0 0.0
      %815 = vmatpush1.xpose.msra.mxu0 0.0
      %816 = vmatprep.subr.mxu0 0.0
      %817 = vmatpush1.xpose.msra.mxu0 0.0
      %818 = vmatprep.subr.mxu0 0.0
      %819 = vmatpush1.xpose.msra.mxu0 0.0
      %820 = vmatprep.subr.mxu0 0.0
      %821 = vmatpush1.xpose.msra.mxu0 0.0
      %822 = vmatprep.subr.mxu0 0.0
      %823 = vmatpush1.xpose.msra.mxu0 0.0
      %824 = vmatprep.mubr.f32.mxu0 0.0
      %825 = vmatmul.mubr.f32.gmra.mrb[0].mxu0 %v756
      %v826 = vpop.f32.mrb[0].mxu0
      %v827 = vadd.f32 0.0, %v826
      %v828 = vpop.f32.mrb[0].mxu0
      %829 = vdwg.mxu0
      %v830 = vmul.f32 %v827, 0.17677669
      %v831 = vsel %vm663, %v830, -inf
      %832 = vmax.xlane.f32.xlu0 %v831
      %v833 = vpop.xlane.xlu0 %832
      %v834 = vsub.f32 %v830, %v833
      %v835 = vmul.f32 %v834, 1.442695
      %v836 = vpow.pop %v835
      %v837 = vsel %vm663, %v836, 0.0
      %838 = vadd.xlane.f32.xlu0 %v837
      %v839 = vpop.xlane.xlu0 %838
      %v840 = vrcp.pop %v839
      %v841 = vmul.f32 %v836, %v840
      %843 = vrot.lane.b32.xlu0 %v582, 96
      %v844 = vpop.permute.xlu0 %843
      %v847 = vsel %vm663, %v841, 0
      %849 = vmatprep.subr.mxu0 0.0
      %850 = vmatpush1.msra.mxu0 %v844
      %851 = vmatprep.subr.mxu0 0.0
      %852 = vmatpush1.msra.mxu0 0.0
      %853 = vmatprep.subr.mxu0 0.0
      %854 = vmatpush1.msra.mxu0 0.0
      %855 = vmatprep.subr.mxu0 0.0
      %856 = vmatpush1.msra.mxu0 0.0
      %857 = vmatprep.subr.mxu0 0.0
      %858 = vmatpush1.msra.mxu0 0.0
      %859 = vmatprep.subr.mxu0 0.0
      %860 = vmatpush1.msra.mxu0 0.0
      %861 = vmatprep.subr.mxu0 0.0
      %862 = vmatpush1.msra.mxu0 0.0
      %863 = vmatprep.subr.mxu0 0.0
      %864 = vmatpush1.msra.mxu0 0.0
      %865 = vmatprep.subr.mxu0 0.0
      %866 = vmatpush1.msra.mxu0 0.0
      %867 = vmatprep.subr.mxu0 0.0
      %868 = vmatpush1.msra.mxu0 0.0
      %869 = vmatprep.subr.mxu0 0.0
      %870 = vmatpush1.msra.mxu0 0.0
      %871 = vmatprep.subr.mxu0 0.0
      %872 = vmatpush1.msra.mxu0 0.0
      %873 = vmatprep.subr.mxu0 0.0
      %874 = vmatpush1.msra.mxu0 0.0
      %875 = vmatprep.subr.mxu0 0.0
      %876 = vmatpush1.msra.mxu0 0.0
      %877 = vmatprep.subr.mxu0 0.0
      %878 = vmatpush1.msra.mxu0 0.0
      %879 = vmatprep.subr.mxu0 0.0
      %880 = vmatpush1.msra.mxu0 0.0
      %881 = vmatprep.subr.mxu0 0.0
      %882 = vmatpush1.msra.mxu0 0.0
      %883 = vmatprep.subr.mxu0 0.0
      %884 = vmatpush1.msra.mxu0 0.0
      %885 = vmatprep.subr.mxu0 0.0
      %886 = vmatpush1.msra.mxu0 0.0
      %887 = vmatprep.subr.mxu0 0.0
      %888 = vmatpush1.msra.mxu0 0.0
      %889 = vmatprep.subr.mxu0 0.0
      %890 = vmatpush1.msra.mxu0 0.0
      %891 = vmatprep.subr.mxu0 0.0
      %892 = vmatpush1.msra.mxu0 0.0
      %893 = vmatprep.subr.mxu0 0.0
      %894 = vmatpush1.msra.mxu0 0.0
      %895 = vmatprep.subr.mxu0 0.0
      %896 = vmatpush1.msra.mxu0 0.0
      %897 = vmatprep.subr.mxu0 0.0
      %898 = vmatpush1.msra.mxu0 0.0
      %899 = vmatprep.subr.mxu0 0.0
      %900 = vmatpush1.msra.mxu0 0.0
      %901 = vmatprep.subr.mxu0 0.0
      %902 = vmatpush1.msra.mxu0 0.0
      %903 = vmatprep.subr.mxu0 0.0
      %904 = vmatpush1.msra.mxu0 0.0
      %905 = vmatprep.subr.mxu0 0.0
      %906 = vmatpush1.msra.mxu0 0.0
      %907 = vmatprep.subr.mxu0 0.0
      %908 = vmatpush1.msra.mxu0 0.0
      %909 = vmatprep.subr.mxu0 0.0
      %910 = vmatpush1.msra.mxu0 0.0
      %911 = vmatprep.subr.mxu0 0.0
      %912 = vmatpush1.msra.mxu0 0.0
      %913 = vmatprep.mubr.f32.mxu0 0.0
      %914 = vmatmul.mubr.f32.gmra.mrb[0].mxu0 %v847
      %v915 = vpop.f32.mrb[0].mxu0
      %v916 = vadd.f32 0.0, %v915
      %v917 = vpop.f32.mrb[0].mxu0
      %918 = vdwg.mxu0
      %v919 = vld [vmem:[%s3 + $0x20] sm:$0xff]
      %v920 = vld [vmem:[%s3 + $0x28] sm:$0xff]
      %v921 = vld [vmem:[%s3 + $0x30] sm:$0xff]
      %v922 = vld [vmem:[%s3 + $0x38] sm:$0xff]
      %v924 = vsel %vm585, %v916, 0
      %926 = vmatprep.subr.mxu0 0.0
      %927 = vmatpush1.msra.mxu0 %v919
      %928 = vmatprep.subr.mxu0 0.0
      %929 = vmatpush1.msra.mxu0 %v920
      %930 = vmatprep.subr.mxu0 0.0
      %931 = vmatpush1.msra.mxu0 %v921
      %932 = vmatprep.subr.mxu0 0.0
      %933 = vmatpush1.msra.mxu0 %v922
      %934 = vmatprep.subr.mxu0 0.0
      %935 = vmatpush1.msra.mxu0 0.0
      %936 = vmatprep.subr.mxu0 0.0
      %937 = vmatpush1.msra.mxu0 0.0
      %938 = vmatprep.subr.mxu0 0.0
      %939 = vmatpush1.msra.mxu0 0.0
      %940 = vmatprep.subr.mxu0 0.0
      %941 = vmatpush1.msra.mxu0 0.0
      %942 = vmatprep.subr.mxu0 0.0
      %943 = vmatpush1.msra.mxu0 0.0
      %944 = vmatprep.subr.mxu0 0.0
      %945 = vmatpush1.msra.mxu0 0.0
      %946 = vmatprep.subr.mxu0 0.0
      %947 = vmatpush1.msra.mxu0 0.0
      %948 = vmatprep.subr.mxu0 0.0
      %949 = vmatpush1.msra.mxu0 0.0
      %950 = vmatprep.subr.mxu0 0.0
      %951 = vmatpush1.msra.mxu0 0.0
      %952 = vmatprep.subr.mxu0 0.0
      %953 = vmatpush1.msra.mxu0 0.0
      %954 = vmatprep.subr.mxu0 0.0
      %955 = vmatpush1.msra.mxu0 0.0
      %956 = vmatprep.subr.mxu0 0.0
      %957 = vmatpush1.msra.mxu0 0.0
      %958 = vmatprep.subr.mxu0 0.0
      %959 = vmatpush1.msra.mxu0 0.0
      %960 = vmatprep.subr.mxu0 0.0
      %961 = vmatpush1.msra.mxu0 0.0
      %962 = vmatprep.subr.mxu0 0.0
      %963 = vmatpush1.msra.mxu0 0.0
      %964 = vmatprep.subr.mxu0 0.0
      %965 = vmatpush1.msra.mxu0 0.0
      %966 = vmatprep.subr.mxu0 0.0
      %967 = vmatpush1.msra.mxu0 0.0
      %968 = vmatprep.subr.mxu0 0.0
      %969 = vmatpush1.msra.mxu0 0.0
      %970 = vmatprep.subr.mxu0 0.0
      %971 = vmatpush1.msra.mxu0 0.0
      %972 = vmatprep.subr.mxu0 0.0
      %973 = vmatpush1.msra.mxu0 0.0
      %974 = vmatprep.subr.mxu0 0.0
      %975 = vmatpush1.msra.mxu0 0.0
      %976 = vmatprep.subr.mxu0 0.0
      %977 = vmatpush1.msra.mxu0 0.0
      %978 = vmatprep.subr.mxu0 0.0
      %979 = vmatpush1.msra.mxu0 0.0
      %980 = vmatprep.subr.mxu0 0.0
      %981 = vmatpush1.msra.mxu0 0.0
      %982 = vmatprep.subr.mxu0 0.0
      %983 = vmatpush1.msra.mxu0 0.0
      %984 = vmatprep.subr.mxu0 0.0
      %985 = vmatpush1.msra.mxu0 0.0
      %986 = vmatprep.subr.mxu0 0.0
      %987 = vmatpush1.msra.mxu0 0.0
      %988 = vmatprep.subr.mxu0 0.0
      %989 = vmatpush1.msra.mxu0 0.0
      %990 = vmatprep.mubr.f32.mxu0 0.0
      %991 = vmatmul.mubr.f32.gmra.mrb[0].mxu0 %v924
      %v992 = vpop.f32.mrb[0].mxu0
      %v993 = vadd.f32 0.0, %v992
      %v994 = vpop.f32.mrb[0].mxu0
      %995 = vdwg.mxu0
      %v997 = vsel %vm585, %v745, 0
      %999 = vmatprep.subr.mxu0 0.0
      %1000 = vmatpush1.msra.mxu0 %v748
      %1001 = vmatprep.subr.mxu0 0.0
      %1002 = vmatpush1.msra.mxu0 %v749
      %1003 = vmatprep.subr.mxu0 0.0
      %1004 = vmatpush1.msra.mxu0 %v750
      %1005 = vmatprep.subr.mxu0 0.0
      %1006 = vmatpush1.msra.mxu0 %v751
      %1007 = vmatprep.subr.mxu0 0.0
      %1008 = vmatpush1.msra.mxu0 0.0
      %1009 = vmatprep.subr.mxu0 0.0
      %1010 = vmatpush1.msra.mxu0 0.0
      %1011 = vmatprep.subr.mxu0 0.0
      %1012 = vmatpush1.msra.mxu0 0.0
      %1013 = vmatprep.subr.mxu0 0.0
      %1014 = vmatpush1.msra.mxu0 0.0
      %1015 = vmatprep.subr.mxu0 0.0
      %1016 = vmatpush1.msra.mxu0 0.0
      %1017 = vmatprep.subr.mxu0 0.0
      %1018 = vmatpush1.msra.mxu0 0.0
      %1019 = vmatprep.subr.mxu0 0.0
      %1020 = vmatpush1.msra.mxu0 0.0
      %1021 = vmatprep.subr.mxu0 0.0
      %1022 = vmatpush1.msra.mxu0 0.0
      %1023 = vmatprep.subr.mxu0 0.0
      %1024 = vmatpush1.msra.mxu0 0.0
      %1025 = vmatprep.subr.mxu0 0.0
      %1026 = vmatpush1.msra.mxu0 0.0
      %1027 = vmatprep.subr.mxu0 0.0
      %1028 = vmatpush1.msra.mxu0 0.0
      %1029 = vmatprep.subr.mxu0 0.0
      %1030 = vmatpush1.msra.mxu0 0.0
      %1031 = vmatprep.subr.mxu0 0.0
      %1032 = vmatpush1.msra.mxu0 0.0
      %1033 = vmatprep.subr.mxu0 0.0
      %1034 = vmatpush1.msra.mxu0 0.0
      %1035 = vmatprep.subr.mxu0 0.0
      %1036 = vmatpush1.msra.mxu0 0.0
      %1037 = vmatprep.subr.mxu0 0.0
      %1038 = vmatpush1.msra.mxu0 0.0
      %1039 = vmatprep.subr.mxu0 0.0
      %1040 = vmatpush1.msra.mxu0 0.0
      %1041 = vmatprep.subr.mxu0 0.0
      %1042 = vmatpush1.msra.mxu0 0.0
      %1043 = vmatprep.subr.mxu0 0.0
      %1044 = vmatpush1.msra.mxu0 0.0
      %1045 = vmatprep.subr.mxu0 0.0
      %1046 = vmatpush1.msra.mxu0 0.0
      %1047 = vmatprep.subr.mxu0 0.0
      %1048 = vmatpush1.msra.mxu0 0.0
      %1049 = vmatprep.subr.mxu0 0.0
      %1050 = vmatpush1.msra.mxu0 0.0
      %1051 = vmatprep.subr.mxu0 0.0
      %1052 = vmatpush1.msra.mxu0 0.0
      %1053 = vmatprep.subr.mxu0 0.0
      %1054 = vmatpush1.msra.mxu0 0.0
      %1055 = vmatprep.subr.mxu0 0.0
      %1056 = vmatpush1.msra.mxu0 0.0
      %1057 = vmatprep.subr.mxu0 0.0
      %1058 = vmatpush1.msra.mxu0 0.0
      %1059 = vmatprep.subr.mxu0 0.0
      %1060 = vmatpush1.msra.mxu0 0.0
      %1061 = vmatprep.subr.mxu0 0.0
      %1062 = vmatpush1.msra.mxu0 0.0
      %1063 = vmatprep.mubr.f32.mxu0 0.0
      %1064 = vmatmul.mubr.f32.gmra.mrb[0].mxu0 %v997
      %v1065 = vpop.f32.mrb[0].mxu0
      %v1066 = vadd.f32 %v993, %v1065
      %v1067 = vpop.f32.mrb[0].mxu0
      %1068 = vdwg.mxu0
      %1069 = vrot.lane.b32.xlu0 %v511, 64
      %v1070 = vpop.permute.xlu0 %1069
      %1071 = vrot.lane.b32.xlu0 %v513, 64
      %v1072 = vpop.permute.xlu0 %1071
      %v1073 = vsel %vm585, %v1070, 0
      %v1075 = vsel %vm585, %v1072, 0
      %1077 = vmatprep.subr.mxu0 0.0
      %1078 = vmatpush1.xpose.msra.mxu0 %v1075
      %1079 = vmatprep.subr.mxu0 0.0
      %1080 = vmatpush1.xpose.msra.mxu0 0.0
      %1081 = vmatprep.subr.mxu0 0.0
      %1082 = vmatpush1.xpose.msra.mxu0 0.0
      %1083 = vmatprep.subr.mxu0 0.0
      %1084 = vmatpush1.xpose.msra.mxu0 0.0
      %1085 = vmatprep.subr.mxu0 0.0
      %1086 = vmatpush1.xpose.msra.mxu0 0.0
      %1087 = vmatprep.subr.mxu0 0.0
      %1088 = vmatpush1.xpose.msra.mxu0 0.0
      %1089 = vmatprep.subr.mxu0 0.0
      %1090 = vmatpush1.xpose.msra.mxu0 0.0
      %1091 = vmatprep.subr.mxu0 0.0
      %1092 = vmatpush1.xpose.msra.mxu0 0.0
      %1093 = vmatprep.subr.mxu0 0.0
      %1094 = vmatpush1.xpose.msra.mxu0 0.0
      %1095 = vmatprep.subr.mxu0 0.0
      %1096 = vmatpush1.xpose.msra.mxu0 0.0
      %1097 = vmatprep.subr.mxu0 0.0
      %1098 = vmatpush1.xpose.msra.mxu0 0.0
      %1099 = vmatprep.subr.mxu0 0.0
      %1100 = vmatpush1.xpose.msra.mxu0 0.0
      %1101 = vmatprep.subr.mxu0 0.0
      %1102 = vmatpush1.xpose.msra.mxu0 0.0
      %1103 = vmatprep.subr.mxu0 0.0
      %1104 = vmatpush1.xpose.msra.mxu0 0.0
      %1105 = vmatprep.subr.mxu0 0.0
      %1106 = vmatpush1.xpose.msra.mxu0 0.0
      %1107 = vmatprep.subr.mxu0 0.0
      %1108 = vmatpush1.xpose.msra.mxu0 0.0
      %1109 = vmatprep.subr.mxu0 0.0
      %1110 = vmatpush1.xpose.msra.mxu0 0.0
      %1111 = vmatprep.subr.mxu0 0.0
      %1112 = vmatpush1.xpose.msra.mxu0 0.0
      %1113 = vmatprep.subr.mxu0 0.0
      %1114 = vmatpush1.xpose.msra.mxu0 0.0
      %1115 = vmatprep.subr.mxu0 0.0
      %1116 = vmatpush1.xpose.msra.mxu0 0.0
      %1117 = vmatprep.subr.mxu0 0.0
      %1118 = vmatpush1.xpose.msra.mxu0 0.0
      %1119 = vmatprep.subr.mxu0 0.0
      %1120 = vmatpush1.xpose.msra.mxu0 0.0
      %1121 = vmatprep.subr.mxu0 0.0
      %1122 = vmatpush1.xpose.msra.mxu0 0.0
      %1123 = vmatprep.subr.mxu0 0.0
      %1124 = vmatpush1.xpose.msra.mxu0 0.0
      %1125 = vmatprep.subr.mxu0 0.0
      %1126 = vmatpush1.xpose.msra.mxu0 0.0
      %1127 = vmatprep.subr.mxu0 0.0
      %1128 = vmatpush1.xpose.msra.mxu0 0.0
      %1129 = vmatprep.subr.mxu0 0.0
      %1130 = vmatpush1.xpose.msra.mxu0 0.0
      %1131 = vmatprep.subr.mxu0 0.0
      %1132 = vmatpush1.xpose.msra.mxu0 0.0
      %1133 = vmatprep.subr.mxu0 0.0
      %1134 = vmatpush1.xpose.msra.mxu0 0.0
      %1135 = vmatprep.subr.mxu0 0.0
      %1136 = vmatpush1.xpose.msra.mxu0 0.0
      %1137 = vmatprep.subr.mxu0 0.0
      %1138 = vmatpush1.xpose.msra.mxu0 0.0
      %1139 = vmatprep.subr.mxu0 0.0
      %1140 = vmatpush1.xpose.msra.mxu0 0.0
      %1141 = vmatprep.mubr.f32.mxu0 0.0
      %1142 = vmatmul.mubr.f32.gmra.mrb[0].mxu0 %v1073
      %v1143 = vpop.f32.mrb[0].mxu0
      %v1144 = vadd.f32 0.0, %v1143
      %v1145 = vpop.f32.mrb[0].mxu0
      %1146 = vdwg.mxu0
      %v1147 = vmul.f32 %v1144, 0.17677669
      %v1148 = vsel %vm663, %v1147, -inf
      %1149 = vmax.xlane.f32.xlu0 %v1148
      %v1150 = vpop.xlane.xlu0 %1149
      %v1151 = vsub.f32 %v1147, %v1150
      %v1152 = vmul.f32 %v1151, 1.442695
      %v1153 = vpow.pop %v1152
      %v1154 = vsel %vm663, %v1153, 0.0
      %1155 = vadd.xlane.f32.xlu0 %v1154
      %v1156 = vpop.xlane.xlu0 %1155
      %v1157 = vrcp.pop %v1156
      %v1158 = vmul.f32 %v1153, %v1157
      %1159 = vrot.lane.b32.xlu0 %v582, 64
      %v1160 = vpop.permute.xlu0 %1159
      %v1163 = vsel %vm663, %v1158, 0
      %1165 = vmatprep.subr.mxu0 0.0
      %1166 = vmatpush1.msra.mxu0 %v1160
      %1167 = vmatprep.subr.mxu0 0.0
      %1168 = vmatpush1.msra.mxu0 0.0
      %1169 = vmatprep.subr.mxu0 0.0
      %1170 = vmatpush1.msra.mxu0 0.0
      %1171 = vmatprep.subr.mxu0 0.0
      %1172 = vmatpush1.msra.mxu0 0.0
      %1173 = vmatprep.subr.mxu0 0.0
      %1174 = vmatpush1.msra.mxu0 0.0
      %1175 = vmatprep.subr.mxu0 0.0
      %1176 = vmatpush1.msra.mxu0 0.0
      %1177 = vmatprep.subr.mxu0 0.0
      %1178 = vmatpush1.msra.mxu0 0.0
      %1179 = vmatprep.subr.mxu0 0.0
      %1180 = vmatpush1.msra.mxu0 0.0
      %1181 = vmatprep.subr.mxu0 0.0
      %1182 = vmatpush1.msra.mxu0 0.0
      %1183 = vmatprep.subr.mxu0 0.0
      %1184 = vmatpush1.msra.mxu0 0.0
      %1185 = vmatprep.subr.mxu0 0.0
      %1186 = vmatpush1.msra.mxu0 0.0
      %1187 = vmatprep.subr.mxu0 0.0
      %1188 = vmatpush1.msra.mxu0 0.0
      %1189 = vmatprep.subr.mxu0 0.0
      %1190 = vmatpush1.msra.mxu0 0.0
      %1191 = vmatprep.subr.mxu0 0.0
      %1192 = vmatpush1.msra.mxu0 0.0
      %1193 = vmatprep.subr.mxu0 0.0
      %1194 = vmatpush1.msra.mxu0 0.0
      %1195 = vmatprep.subr.mxu0 0.0
      %1196 = vmatpush1.msra.mxu0 0.0
      %1197 = vmatprep.subr.mxu0 0.0
      %1198 = vmatpush1.msra.mxu0 0.0
      %1199 = vmatprep.subr.mxu0 0.0
      %1200 = vmatpush1.msra.mxu0 0.0
      %1201 = vmatprep.subr.mxu0 0.0
      %1202 = vmatpush1.msra.mxu0 0.0
      %1203 = vmatprep.subr.mxu0 0.0
      %1204 = vmatpush1.msra.mxu0 0.0
      %1205 = vmatprep.subr.mxu0 0.0
      %1206 = vmatpush1.msra.mxu0 0.0
      %1207 = vmatprep.subr.mxu0 0.0
      %1208 = vmatpush1.msra.mxu0 0.0
      %1209 = vmatprep.subr.mxu0 0.0
      %1210 = vmatpush1.msra.mxu0 0.0
      %1211 = vmatprep.subr.mxu0 0.0
      %1212 = vmatpush1.msra.mxu0 0.0
      %1213 = vmatprep.subr.mxu0 0.0
      %1214 = vmatpush1.msra.mxu0 0.0
      %1215 = vmatprep.subr.mxu0 0.0
      %1216 = vmatpush1.msra.mxu0 0.0
      %1217 = vmatprep.subr.mxu0 0.0
      %1218 = vmatpush1.msra.mxu0 0.0
      %1219 = vmatprep.subr.mxu0 0.0
      %1220 = vmatpush1.msra.mxu0 0.0
      %1221 = vmatprep.subr.mxu0 0.0
      %1222 = vmatpush1.msra.mxu0 0.0
      %1223 = vmatprep.subr.mxu0 0.0
      %1224 = vmatpush1.msra.mxu0 0.0
      %1225 = vmatprep.subr.mxu0 0.0
      %1226 = vmatpush1.msra.mxu0 0.0
      %1227 = vmatprep.subr.mxu0 0.0
      %1228 = vmatpush1.msra.mxu0 0.0
      %1229 = vmatprep.mubr.f32.mxu0 0.0
      %1230 = vmatmul.mubr.f32.gmra.mrb[0].mxu0 %v1163
      %v1231 = vpop.f32.mrb[0].mxu0
      %v1232 = vadd.f32 0.0, %v1231
      %v1233 = vpop.f32.mrb[0].mxu0
      %1234 = vdwg.mxu0
      %v1235 = vld [vmem:[%s3 + $0x40] sm:$0xff]
      %v1236 = vld [vmem:[%s3 + $0x48] sm:$0xff]
      %v1237 = vld [vmem:[%s3 + $0x50] sm:$0xff]
      %v1238 = vld [vmem:[%s3 + $0x58] sm:$0xff]
      %v1240 = vsel %vm585, %v1232, 0
      %1242 = vmatprep.subr.mxu0 0.0
      %1243 = vmatpush1.msra.mxu0 %v1235
      %1244 = vmatprep.subr.mxu0 0.0
      %1245 = vmatpush1.msra.mxu0 %v1236
      %1246 = vmatprep.subr.mxu0 0.0
      %1247 = vmatpush1.msra.mxu0 %v1237
      %1248 = vmatprep.subr.mxu0 0.0
      %1249 = vmatpush1.msra.mxu0 %v1238
      %1250 = vmatprep.subr.mxu0 0.0
      %1251 = vmatpush1.msra.mxu0 0.0
      %1252 = vmatprep.subr.mxu0 0.0
      %1253 = vmatpush1.msra.mxu0 0.0
      %1254 = vmatprep.subr.mxu0 0.0
      %1255 = vmatpush1.msra.mxu0 0.0
      %1256 = vmatprep.subr.mxu0 0.0
      %1257 = vmatpush1.msra.mxu0 0.0
      %1258 = vmatprep.subr.mxu0 0.0
      %1259 = vmatpush1.msra.mxu0 0.0
      %1260 = vmatprep.subr.mxu0 0.0
      %1261 = vmatpush1.msra.mxu0 0.0
      %1262 = vmatprep.subr.mxu0 0.0
      %1263 = vmatpush1.msra.mxu0 0.0
      %1264 = vmatprep.subr.mxu0 0.0
      %1265 = vmatpush1.msra.mxu0 0.0
      %1266 = vmatprep.subr.mxu0 0.0
      %1267 = vmatpush1.msra.mxu0 0.0
      %1268 = vmatprep.subr.mxu0 0.0
      %1269 = vmatpush1.msra.mxu0 0.0
      %1270 = vmatprep.subr.mxu0 0.0
      %1271 = vmatpush1.msra.mxu0 0.0
      %1272 = vmatprep.subr.mxu0 0.0
      %1273 = vmatpush1.msra.mxu0 0.0
      %1274 = vmatprep.subr.mxu0 0.0
      %1275 = vmatpush1.msra.mxu0 0.0
      %1276 = vmatprep.subr.mxu0 0.0
      %1277 = vmatpush1.msra.mxu0 0.0
      %1278 = vmatprep.subr.mxu0 0.0
      %1279 = vmatpush1.msra.mxu0 0.0
      %1280 = vmatprep.subr.mxu0 0.0
      %1281 = vmatpush1.msra.mxu0 0.0
      %1282 = vmatprep.subr.mxu0 0.0
      %1283 = vmatpush1.msra.mxu0 0.0
      %1284 = vmatprep.subr.mxu0 0.0
      %1285 = vmatpush1.msra.mxu0 0.0
      %1286 = vmatprep.subr.mxu0 0.0
      %1287 = vmatpush1.msra.mxu0 0.0
      %1288 = vmatprep.subr.mxu0 0.0
      %1289 = vmatpush1.msra.mxu0 0.0
      %1290 = vmatprep.subr.mxu0 0.0
      %1291 = vmatpush1.msra.mxu0 0.0
      %1292 = vmatprep.subr.mxu0 0.0
      %1293 = vmatpush1.msra.mxu0 0.0
      %1294 = vmatprep.subr.mxu0 0.0
      %1295 = vmatpush1.msra.mxu0 0.0
      %1296 = vmatprep.subr.mxu0 0.0
      %1297 = vmatpush1.msra.mxu0 0.0
      %1298 = vmatprep.subr.mxu0 0.0
      %1299 = vmatpush1.msra.mxu0 0.0
      %1300 = vmatprep.subr.mxu0 0.0
      %1301 = vmatpush1.msra.mxu0 0.0
      %1302 = vmatprep.subr.mxu0 0.0
      %1303 = vmatpush1.msra.mxu0 0.0
      %1304 = vmatprep.subr.mxu0 0.0
      %1305 = vmatpush1.msra.mxu0 0.0
      %1306 = vmatprep.mubr.f32.mxu0 0.0
      %1307 = vmatmul.mubr.f32.gmra.mrb[0].mxu0 %v1240
      %v1308 = vpop.f32.mrb[0].mxu0
      %v1309 = vadd.f32 0.0, %v1308
      %v1310 = vpop.f32.mrb[0].mxu0
      %1311 = vdwg.mxu0
      %v1312 = vadd.f32 %v1066, %v1309
      %1313 = vrot.lane.b32.xlu0 %v511, 32
      %v1314 = vpop.permute.xlu0 %1313
      %1315 = vrot.lane.b32.xlu0 %v513, 32
      %v1316 = vpop.permute.xlu0 %1315
      %v1317 = vsel %vm585, %v1314, 0
      %v1319 = vsel %vm585, %v1316, 0
      %1321 = vmatprep.subr.mxu0 0.0
      %1322 = vmatpush1.xpose.msra.mxu0 %v1319
      %1323 = vmatprep.subr.mxu0 0.0
      %1324 = vmatpush1.xpose.msra.mxu0 0.0
      %1325 = vmatprep.subr.mxu0 0.0
      %1326 = vmatpush1.xpose.msra.mxu0 0.0
      %1327 = vmatprep.subr.mxu0 0.0
      %1328 = vmatpush1.xpose.msra.mxu0 0.0
      %1329 = vmatprep.subr.mxu0 0.0
      %1330 = vmatpush1.xpose.msra.mxu0 0.0
      %1331 = vmatprep.subr.mxu0 0.0
      %1332 = vmatpush1.xpose.msra.mxu0 0.0
      %1333 = vmatprep.subr.mxu0 0.0
      %1334 = vmatpush1.xpose.msra.mxu0 0.0
      %1335 = vmatprep.subr.mxu0 0.0
      %1336 = vmatpush1.xpose.msra.mxu0 0.0
      %1337 = vmatprep.subr.mxu0 0.0
      %1338 = vmatpush1.xpose.msra.mxu0 0.0
      %1339 = vmatprep.subr.mxu0 0.0
      %1340 = vmatpush1.xpose.msra.mxu0 0.0
      %1341 = vmatprep.subr.mxu0 0.0
      %1342 = vmatpush1.xpose.msra.mxu0 0.0
      %1343 = vmatprep.subr.mxu0 0.0
      %1344 = vmatpush1.xpose.msra.mxu0 0.0
      %1345 = vmatprep.subr.mxu0 0.0
      %1346 = vmatpush1.xpose.msra.mxu0 0.0
      %1347 = vmatprep.subr.mxu0 0.0
      %1348 = vmatpush1.xpose.msra.mxu0 0.0
      %1349 = vmatprep.subr.mxu0 0.0
      %1350 = vmatpush1.xpose.msra.mxu0 0.0
      %1351 = vmatprep.subr.mxu0 0.0
      %1352 = vmatpush1.xpose.msra.mxu0 0.0
      %1353 = vmatprep.subr.mxu0 0.0
      %1354 = vmatpush1.xpose.msra.mxu0 0.0
      %1355 = vmatprep.subr.mxu0 0.0
      %1356 = vmatpush1.xpose.msra.mxu0 0.0
      %1357 = vmatprep.subr.mxu0 0.0
      %1358 = vmatpush1.xpose.msra.mxu0 0.0
      %1359 = vmatprep.subr.mxu0 0.0
      %1360 = vmatpush1.xpose.msra.mxu0 0.0
      %1361 = vmatprep.subr.mxu0 0.0
      %1362 = vmatpush1.xpose.msra.mxu0 0.0
      %1363 = vmatprep.subr.mxu0 0.0
      %1364 = vmatpush1.xpose.msra.mxu0 0.0
      %1365 = vmatprep.subr.mxu0 0.0
      %1366 = vmatpush1.xpose.msra.mxu0 0.0
      %1367 = vmatprep.subr.mxu0 0.0
      %1368 = vmatpush1.xpose.msra.mxu0 0.0
      %1369 = vmatprep.subr.mxu0 0.0
      %1370 = vmatpush1.xpose.msra.mxu0 0.0
      %1371 = vmatprep.subr.mxu0 0.0
      %1372 = vmatpush1.xpose.msra.mxu0 0.0
      %1373 = vmatprep.subr.mxu0 0.0
      %1374 = vmatpush1.xpose.msra.mxu0 0.0
      %1375 = vmatprep.subr.mxu0 0.0
      %1376 = vmatpush1.xpose.msra.mxu0 0.0
      %1377 = vmatprep.subr.mxu0 0.0
      %1378 = vmatpush1.xpose.msra.mxu0 0.0
      %1379 = vmatprep.subr.mxu0 0.0
      %1380 = vmatpush1.xpose.msra.mxu0 0.0
      %1381 = vmatprep.subr.mxu0 0.0
      %1382 = vmatpush1.xpose.msra.mxu0 0.0
      %1383 = vmatprep.subr.mxu0 0.0
      %1384 = vmatpush1.xpose.msra.mxu0 0.0
      %1385 = vmatprep.mubr.f32.mxu0 0.0
      %1386 = vmatmul.mubr.f32.gmra.mrb[0].mxu0 %v1317
      %v1387 = vpop.f32.mrb[0].mxu0
      %v1388 = vadd.f32 0.0, %v1387
      %v1389 = vpop.f32.mrb[0].mxu0
      %1390 = vdwg.mxu0
      %v1391 = vmul.f32 %v1388, 0.17677669
      %v1392 = vsel %vm663, %v1391, -inf
      %1393 = vmax.xlane.f32.xlu0 %v1392
      %v1394 = vpop.xlane.xlu0 %1393
      %v1395 = vsub.f32 %v1391, %v1394
      %v1396 = vmul.f32 %v1395, 1.442695
      %v1397 = vpow.pop %v1396
      %v1398 = vsel %vm663, %v1397, 0.0
      %1399 = vadd.xlane.f32.xlu0 %v1398
      %v1400 = vpop.xlane.xlu0 %1399
      %v1401 = vrcp.pop %v1400
      %v1402 = vmul.f32 %v1397, %v1401
      %1403 = vrot.lane.b32.xlu0 %v582, 32
      %v1404 = vpop.permute.xlu0 %1403
      %v1407 = vsel %vm663, %v1402, 0
      %1409 = vmatprep.subr.mxu0 0.0
      %1410 = vmatpush1.msra.mxu0 %v1404
      %1411 = vmatprep.subr.mxu0 0.0
      %1412 = vmatpush1.msra.mxu0 0.0
      %1413 = vmatprep.subr.mxu0 0.0
      %1414 = vmatpush1.msra.mxu0 0.0
      %1415 = vmatprep.subr.mxu0 0.0
      %1416 = vmatpush1.msra.mxu0 0.0
      %1417 = vmatprep.subr.mxu0 0.0
      %1418 = vmatpush1.msra.mxu0 0.0
      %1419 = vmatprep.subr.mxu0 0.0
      %1420 = vmatpush1.msra.mxu0 0.0
      %1421 = vmatprep.subr.mxu0 0.0
      %1422 = vmatpush1.msra.mxu0 0.0
      %1423 = vmatprep.subr.mxu0 0.0
      %1424 = vmatpush1.msra.mxu0 0.0
      %1425 = vmatprep.subr.mxu0 0.0
      %1426 = vmatpush1.msra.mxu0 0.0
      %1427 = vmatprep.subr.mxu0 0.0
      %1428 = vmatpush1.msra.mxu0 0.0
      %1429 = vmatprep.subr.mxu0 0.0
      %1430 = vmatpush1.msra.mxu0 0.0
      %1431 = vmatprep.subr.mxu0 0.0
      %1432 = vmatpush1.msra.mxu0 0.0
      %1433 = vmatprep.subr.mxu0 0.0
      %1434 = vmatpush1.msra.mxu0 0.0
      %1435 = vmatprep.subr.mxu0 0.0
      %1436 = vmatpush1.msra.mxu0 0.0
      %1437 = vmatprep.subr.mxu0 0.0
      %1438 = vmatpush1.msra.mxu0 0.0
      %1439 = vmatprep.subr.mxu0 0.0
      %1440 = vmatpush1.msra.mxu0 0.0
      %1441 = vmatprep.subr.mxu0 0.0
      %1442 = vmatpush1.msra.mxu0 0.0
      %1443 = vmatprep.subr.mxu0 0.0
      %1444 = vmatpush1.msra.mxu0 0.0
      %1445 = vmatprep.subr.mxu0 0.0
      %1446 = vmatpush1.msra.mxu0 0.0
      %1447 = vmatprep.subr.mxu0 0.0
      %1448 = vmatpush1.msra.mxu0 0.0
      %1449 = vmatprep.subr.mxu0 0.0
      %1450 = vmatpush1.msra.mxu0 0.0
      %1451 = vmatprep.subr.mxu0 0.0
      %1452 = vmatpush1.msra.mxu0 0.0
      %1453 = vmatprep.subr.mxu0 0.0
      %1454 = vmatpush1.msra.mxu0 0.0
      %1455 = vmatprep.subr.mxu0 0.0
      %1456 = vmatpush1.msra.mxu0 0.0
      %1457 = vmatprep.subr.mxu0 0.0
      %1458 = vmatpush1.msra.mxu0 0.0
      %1459 = vmatprep.subr.mxu0 0.0
      %1460 = vmatpush1.msra.mxu0 0.0
      %1461 = vmatprep.subr.mxu0 0.0
      %1462 = vmatpush1.msra.mxu0 0.0
      %1463 = vmatprep.subr.mxu0 0.0
      %1464 = vmatpush1.msra.mxu0 0.0
      %1465 = vmatprep.subr.mxu0 0.0
      %1466 = vmatpush1.msra.mxu0 0.0
      %1467 = vmatprep.subr.mxu0 0.0
      %1468 = vmatpush1.msra.mxu0 0.0
      %1469 = vmatprep.subr.mxu0 0.0
      %1470 = vmatpush1.msra.mxu0 0.0
      %1471 = vmatprep.subr.mxu0 0.0
      %1472 = vmatpush1.msra.mxu0 0.0
      %1473 = vmatprep.mubr.f32.mxu0 0.0
      %1474 = vmatmul.mubr.f32.gmra.mrb[0].mxu0 %v1407
      %v1475 = vpop.f32.mrb[0].mxu0
      %v1476 = vadd.f32 0.0, %v1475
      %v1477 = vpop.f32.mrb[0].mxu0
      %1478 = vdwg.mxu0
      %v1479 = vld [vmem:[%s3 + $0x60] sm:$0xff]
      %v1480 = vld [vmem:[%s3 + $0x68] sm:$0xff]
      %v1481 = vld [vmem:[%s3 + $0x70] sm:$0xff]
      %v1482 = vld [vmem:[%s3 + $0x78] sm:$0xff]
      %v1484 = vsel %vm585, %v1476, 0
      %1486 = vmatprep.subr.mxu0 0.0
      %1487 = vmatpush1.msra.mxu0 %v1479
      %1488 = vmatprep.subr.mxu0 0.0
      %1489 = vmatpush1.msra.mxu0 %v1480
      %1490 = vmatprep.subr.mxu0 0.0
      %1491 = vmatpush1.msra.mxu0 %v1481
      %1492 = vmatprep.subr.mxu0 0.0
      %1493 = vmatpush1.msra.mxu0 %v1482
      %1494 = vmatprep.subr.mxu0 0.0
      %1495 = vmatpush1.msra.mxu0 0.0
      %1496 = vmatprep.subr.mxu0 0.0
      %1497 = vmatpush1.msra.mxu0 0.0
      %1498 = vmatprep.subr.mxu0 0.0
      %1499 = vmatpush1.msra.mxu0 0.0
      %1500 = vmatprep.subr.mxu0 0.0
      %1501 = vmatpush1.msra.mxu0 0.0
      %1502 = vmatprep.subr.mxu0 0.0
      %1503 = vmatpush1.msra.mxu0 0.0
      %1504 = vmatprep.subr.mxu0 0.0
      %1505 = vmatpush1.msra.mxu0 0.0
      %1506 = vmatprep.subr.mxu0 0.0
      %1507 = vmatpush1.msra.mxu0 0.0
      %1508 = vmatprep.subr.mxu0 0.0
      %1509 = vmatpush1.msra.mxu0 0.0
      %1510 = vmatprep.subr.mxu0 0.0
      %1511 = vmatpush1.msra.mxu0 0.0
      %1512 = vmatprep.subr.mxu0 0.0
      %1513 = vmatpush1.msra.mxu0 0.0
      %1514 = vmatprep.subr.mxu0 0.0
      %1515 = vmatpush1.msra.mxu0 0.0
      %1516 = vmatprep.subr.mxu0 0.0
      %1517 = vmatpush1.msra.mxu0 0.0
      %1518 = vmatprep.subr.mxu0 0.0
      %1519 = vmatpush1.msra.mxu0 0.0
      %1520 = vmatprep.subr.mxu0 0.0
      %1521 = vmatpush1.msra.mxu0 0.0
      %1522 = vmatprep.subr.mxu0 0.0
      %1523 = vmatpush1.msra.mxu0 0.0
      %1524 = vmatprep.subr.mxu0 0.0
      %1525 = vmatpush1.msra.mxu0 0.0
      %1526 = vmatprep.subr.mxu0 0.0
      %1527 = vmatpush1.msra.mxu0 0.0
      %1528 = vmatprep.subr.mxu0 0.0
      %1529 = vmatpush1.msra.mxu0 0.0
      %1530 = vmatprep.subr.mxu0 0.0
      %1531 = vmatpush1.msra.mxu0 0.0
      %1532 = vmatprep.subr.mxu0 0.0
      %1533 = vmatpush1.msra.mxu0 0.0
      %1534 = vmatprep.subr.mxu0 0.0
      %1535 = vmatpush1.msra.mxu0 0.0
      %1536 = vmatprep.subr.mxu0 0.0
      %1537 = vmatpush1.msra.mxu0 0.0
      %1538 = vmatprep.subr.mxu0 0.0
      %1539 = vmatpush1.msra.mxu0 0.0
      %1540 = vmatprep.subr.mxu0 0.0
      %1541 = vmatpush1.msra.mxu0 0.0
      %1542 = vmatprep.subr.mxu0 0.0
      %1543 = vmatpush1.msra.mxu0 0.0
      %1544 = vmatprep.subr.mxu0 0.0
      %1545 = vmatpush1.msra.mxu0 0.0
      %1546 = vmatprep.subr.mxu0 0.0
      %1547 = vmatpush1.msra.mxu0 0.0
      %1548 = vmatprep.subr.mxu0 0.0
      %1549 = vmatpush1.msra.mxu0 0.0
      %1550 = vmatprep.mubr.f32.mxu0 0.0
      %1551 = vmatmul.mubr.f32.gmra.mrb[0].mxu0 %v1484
      %v1552 = vpop.f32.mrb[0].mxu0
      %v1553 = vadd.f32 0.0, %v1552
      %v1554 = vpop.f32.mrb[0].mxu0
      %1555 = vdwg.mxu0
      %v1556 = vadd.f32 %v1312, %v1553
      %v1557 = vld [vmem:[%s4] sm:$0x1]
      %v1559 = vlaneseq
      %v1560 = vshrl.u32 %v1559, 7
      %v1561 = vsub.s32 0, %v1560
      %v1562 = vrot.slane %v1557, %v1561
      %v1564 = vadd.f32 %v1556, %v1562
      %1565 = vadd.xlane.f32.xlu0 %v1564
      %v1566 = vpop.xlane.xlu0 %1565
      %v1567 = vmul.f32 %v1566, %v359
      %v1568 = vsub.f32 %v1564, %v1567
      %v1569 = vmul.f32 %v1568, %v1568
      %1570 = vadd.xlane.f32.xlu0 %v1569
      %v1571 = vpop.xlane.xlu0 %1570
      %v1572 = vmul.f32 %v1571, %v359
      %v1573 = vadd.f32 %v1572, 1e-05
      %v1574 = vrsqrt.pop %v1573
      %v1575 = vmul.f32 %v1568, %v1574
      %v1576 = vlaneseq
      %v1577 = vshrl.u32 %v1576, 7
      %v1578 = vsub.s32 2, %v1577
      %v1579 = vrot.slane %v356, %v1578
      %v1580 = vmul.f32 %v1575, %v1579
      %v1581 = vlaneseq
      %v1582 = vshrl.u32 %v1581, 7
      %v1583 = vsub.s32 3, %v1582
      %v1584 = vrot.slane %v356, %v1583
      %v1585 = vadd.f32 %v1580, %v1584
      %v1586 = vadd.f32 %v355, %v1585
      %1587 = vadd.xlane.f32.xlu0 %v1586
      %v1588 = vpop.xlane.xlu0 %1587
      %v1589 = vmul.f32 %v1588, %v359
      %v1590 = vsub.f32 %v1586, %v1589
      %v1591 = vmul.f32 %v1590, %v1590
      %1592 = vadd.xlane.f32.xlu0 %v1591
      %v1593 = vpop.xlane.xlu0 %1592
      %v1594 = vmul.f32 %v1593, %v359
      %v1595 = vadd.f32 %v1594, 1e-05
      %v1596 = vrsqrt.pop %v1595
      %v1597 = vmul.f32 %v1590, %v1596
      %v1598 = vlaneseq
      %v1599 = vshrl.u32 %v1598, 7
      %v1600 = vsub.s32 4, %v1599
      %v1601 = vrot.slane %v356, %v1600
      %v1602 = vmul.f32 %v1597, %v1601
      %v1603 = vlaneseq
      %v1604 = vshrl.u32 %v1603, 7
      %v1605 = vsub.s32 5, %v1604
      %v1606 = vrot.slane %v356, %v1605
      %v1607 = vadd.f32 %v1602, %v1606
      %v1608 = vld [vmem:[%s5] sm:$0xff]
      %v1609 = vld [vmem:[%s5 + $0x8] sm:$0xff]
      %v1610 = vld [vmem:[%s5 + $0x10] sm:$0xff]
      %v1611 = vld [vmem:[%s5 + $0x18] sm:$0xff]
      %v1612 = vld [vmem:[%s5 + $0x20] sm:$0xff]
      %v1613 = vld [vmem:[%s5 + $0x28] sm:$0xff]
      %v1614 = vld [vmem:[%s5 + $0x30] sm:$0xff]
      %v1615 = vld [vmem:[%s5 + $0x38] sm:$0xff]
      %v1616 = vld [vmem:[%s5 + $0x40] sm:$0xff]
      %v1617 = vld [vmem:[%s5 + $0x48] sm:$0xff]
      %v1618 = vld [vmem:[%s5 + $0x50] sm:$0xff]
      %v1619 = vld [vmem:[%s5 + $0x58] sm:$0xff]
      %v1620 = vld [vmem:[%s5 + $0x60] sm:$0xff]
      %v1621 = vld [vmem:[%s5 + $0x68] sm:$0xff]
      %v1622 = vld [vmem:[%s5 + $0x70] sm:$0xff]
      %v1623 = vld [vmem:[%s5 + $0x78] sm:$0xff]
      %v1624 = vld [vmem:[%s5 + $0x80] sm:$0xff]
      %v1625 = vld [vmem:[%s5 + $0x88] sm:$0xff]
      %v1626 = vld [vmem:[%s5 + $0x90] sm:$0xff]
      %v1627 = vld [vmem:[%s5 + $0x98] sm:$0xff]
      %v1628 = vld [vmem:[%s5 + $0xa0] sm:$0xff]
      %v1629 = vld [vmem:[%s5 + $0xa8] sm:$0xff]
      %v1630 = vld [vmem:[%s5 + $0xb0] sm:$0xff]
      %v1631 = vld [vmem:[%s5 + $0xb8] sm:$0xff]
      %v1632 = vld [vmem:[%s5 + $0xc0] sm:$0xff]
      %v1633 = vld [vmem:[%s5 + $0xc8] sm:$0xff]
      %v1634 = vld [vmem:[%s5 + $0xd0] sm:$0xff]
      %v1635 = vld [vmem:[%s5 + $0xd8] sm:$0xff]
      %v1636 = vld [vmem:[%s5 + $0xe0] sm:$0xff]
      %v1637 = vld [vmem:[%s5 + $0xe8] sm:$0xff]
      %v1638 = vld [vmem:[%s5 + $0xf0] sm:$0xff]
      %v1639 = vld [vmem:[%s5 + $0xf8] sm:$0xff]
      %v1640 = vld [vmem:[%s5 + $0x100] sm:$0xff]
      %v1641 = vld [vmem:[%s5 + $0x108] sm:$0xff]
      %v1642 = vld [vmem:[%s5 + $0x110] sm:$0xff]
      %v1643 = vld [vmem:[%s5 + $0x118] sm:$0xff]
      %v1644 = vld [vmem:[%s5 + $0x120] sm:$0xff]
      %v1645 = vld [vmem:[%s5 + $0x128] sm:$0xff]
      %v1646 = vld [vmem:[%s5 + $0x130] sm:$0xff]
      %v1647 = vld [vmem:[%s5 + $0x138] sm:$0xff]
      %v1648 = vld [vmem:[%s5 + $0x140] sm:$0xff]
      %v1649 = vld [vmem:[%s5 + $0x148] sm:$0xff]
      %v1650 = vld [vmem:[%s5 + $0x150] sm:$0xff]
      %v1651 = vld [vmem:[%s5 + $0x158] sm:$0xff]
      %v1652 = vld [vmem:[%s5 + $0x160] sm:$0xff]
      %v1653 = vld [vmem:[%s5 + $0x168] sm:$0xff]
      %v1654 = vld [vmem:[%s5 + $0x170] sm:$0xff]
      %v1655 = vld [vmem:[%s5 + $0x178] sm:$0xff]
      %v1656 = vld [vmem:[%s5 + $0x180] sm:$0xff]
      %v1657 = vld [vmem:[%s5 + $0x188] sm:$0xff]
      %v1658 = vld [vmem:[%s5 + $0x190] sm:$0xff]
      %v1659 = vld [vmem:[%s5 + $0x198] sm:$0xff]
      %v1660 = vld [vmem:[%s5 + $0x1a0] sm:$0xff]
      %v1661 = vld [vmem:[%s5 + $0x1a8] sm:$0xff]
      %v1662 = vld [vmem:[%s5 + $0x1b0] sm:$0xff]
      %v1663 = vld [vmem:[%s5 + $0x1b8] sm:$0xff]
      %v1664 = vld [vmem:[%s5 + $0x1c0] sm:$0xff]
      %v1665 = vld [vmem:[%s5 + $0x1c8] sm:$0xff]
      %v1666 = vld [vmem:[%s5 + $0x1d0] sm:$0xff]
      %v1667 = vld [vmem:[%s5 + $0x1d8] sm:$0xff]
      %v1668 = vld [vmem:[%s5 + $0x1e0] sm:$0xff]
      %v1669 = vld [vmem:[%s5 + $0x1e8] sm:$0xff]
      %v1670 = vld [vmem:[%s5 + $0x1f0] sm:$0xff]
      %v1671 = vld [vmem:[%s5 + $0x1f8] sm:$0xff]
      %v1672 = vld [vmem:[%s6] sm:$0xf]
      %v1674 = vlaneseq
      %v1675 = vshrl.u32 %v1674, 7
      %v1676 = vsub.s32 0, %v1675
      %v1677 = vrot.slane %v1672, %v1676
      %v1678 = vlaneseq
      %v1679 = vshrl.u32 %v1678, 7
      %v1680 = vsub.s32 1, %v1679
      %v1681 = vrot.slane %v1672, %v1680
      %v1682 = vlaneseq
      %v1683 = vshrl.u32 %v1682, 7
      %v1684 = vsub.s32 2, %v1683
      %v1685 = vrot.slane %v1672, %v1684
      %v1686 = vlaneseq
      %v1687 = vshrl.u32 %v1686, 7
      %v1688 = vsub.s32 3, %v1687
      %v1689 = vrot.slane %v1672, %v1688
      %1694 = vmatprep.subr.mxu0 %v1609
      %1695 = vmatpush1.msra.mxu0 %v1608
      %1696 = vmatprep.subr.mxu0 %v1613
      %1697 = vmatpush1.msra.mxu0 %v1612
      %1698 = vmatprep.subr.mxu0 %v1617
      %1699 = vmatpush1.msra.mxu0 %v1616
      %1700 = vmatprep.subr.mxu0 %v1621
      %1701 = vmatpush1.msra.mxu0 %v1620
      %1702 = vmatprep.subr.mxu0 %v1625
      %1703 = vmatpush1.msra.mxu0 %v1624
      %1704 = vmatprep.subr.mxu0 %v1629
      %1705 = vmatpush1.msra.mxu0 %v1628
      %1706 = vmatprep.subr.mxu0 %v1633
      %1707 = vmatpush1.msra.mxu0 %v1632
      %1708 = vmatprep.subr.mxu0 %v1637
      %1709 = vmatpush1.msra.mxu0 %v1636
      %1710 = vmatprep.subr.mxu0 %v1641
      %1711 = vmatpush1.msra.mxu0 %v1640
      %1712 = vmatprep.subr.mxu0 %v1645
      %1713 = vmatpush1.msra.mxu0 %v1644
      %1714 = vmatprep.subr.mxu0 %v1649
      %1715 = vmatpush1.msra.mxu0 %v1648
      %1716 = vmatprep.subr.mxu0 %v1653
      %1717 = vmatpush1.msra.mxu0 %v1652
      %1718 = vmatprep.subr.mxu0 %v1657
      %1719 = vmatpush1.msra.mxu0 %v1656
      %1720 = vmatprep.subr.mxu0 %v1661
      %1721 = vmatpush1.msra.mxu0 %v1660
      %1722 = vmatprep.subr.mxu0 %v1665
      %1723 = vmatpush1.msra.mxu0 %v1664
      %1724 = vmatprep.subr.mxu0 %v1669
      %1725 = vmatpush1.msra.mxu0 %v1668
      %1726 = vmatprep.subr.mxu0 0.0
      %1727 = vmatpush1.msra.mxu0 0.0
      %1728 = vmatprep.subr.mxu0 0.0
      %1729 = vmatpush1.msra.mxu0 0.0
      %1730 = vmatprep.subr.mxu0 0.0
      %1731 = vmatpush1.msra.mxu0 0.0
      %1732 = vmatprep.subr.mxu0 0.0
      %1733 = vmatpush1.msra.mxu0 0.0
      %1734 = vmatprep.subr.mxu0 0.0
      %1735 = vmatpush1.msra.mxu0 0.0
      %1736 = vmatprep.subr.mxu0 0.0
      %1737 = vmatpush1.msra.mxu0 0.0
      %1738 = vmatprep.subr.mxu0 0.0
      %1739 = vmatpush1.msra.mxu0 0.0
      %1740 = vmatprep.subr.mxu0 0.0
      %1741 = vmatpush1.msra.mxu0 0.0
      %1742 = vmatprep.subr.mxu0 0.0
      %1743 = vmatpush1.msra.mxu0 0.0
      %1744 = vmatprep.subr.mxu0 0.0
      %1745 = vmatpush1.msra.mxu0 0.0
      %1746 = vmatprep.subr.mxu0 0.0
      %1747 = vmatpush1.msra.mxu0 0.0
      %1748 = vmatprep.subr.mxu0 0.0
      %1749 = vmatpush1.msra.mxu0 0.0
      %1750 = vmatprep.subr.mxu0 0.0
      %1751 = vmatpush1.msra.mxu0 0.0
      %1752 = vmatprep.subr.mxu0 0.0
      %1753 = vmatpush1.msra.mxu0 0.0
      %1754 = vmatprep.subr.mxu0 0.0
      %1755 = vmatpush1.msra.mxu0 0.0
      %1756 = vmatprep.subr.mxu0 0.0
      %1757 = vmatpush1.msra.mxu0 0.0
      %1758 = vmatprep.mubr.f32.mxu0 0.0
      %1759 = vmatmul.mubr.f32.gmra.mrb[0].mxu0 %v1607
      %v1760 = vpop.f32.mrb[0].mxu0
      %v1761 = vadd.f32 %v1677, %v1760
      %v1762 = vpop.f32.mrb[0].mxu0
      %v1763 = vadd.f32 %v1681, %v1762
      %1764 = vdwg.mxu0
      %1765 = vmatprep.subr.mxu0 %v1611
      %1766 = vmatpush1.msra.mxu0 %v1610
      %1767 = vmatprep.subr.mxu0 %v1615
      %1768 = vmatpush1.msra.mxu0 %v1614
      %1769 = vmatprep.subr.mxu0 %v1619
      %1770 = vmatpush1.msra.mxu0 %v1618
      %1771 = vmatprep.subr.mxu0 %v1623
      %1772 = vmatpush1.msra.mxu0 %v1622
      %1773 = vmatprep.subr.mxu0 %v1627
      %1774 = vmatpush1.msra.mxu0 %v1626
      %1775 = vmatprep.subr.mxu0 %v1631
      %1776 = vmatpush1.msra.mxu0 %v1630
      %1777 = vmatprep.subr.mxu0 %v1635
      %1778 = vmatpush1.msra.mxu0 %v1634
      %1779 = vmatprep.subr.mxu0 %v1639
      %1780 = vmatpush1.msra.mxu0 %v1638
      %1781 = vmatprep.subr.mxu0 %v1643
      %1782 = vmatpush1.msra.mxu0 %v1642
      %1783 = vmatprep.subr.mxu0 %v1647
      %1784 = vmatpush1.msra.mxu0 %v1646
      %1785 = vmatprep.subr.mxu0 %v1651
      %1786 = vmatpush1.msra.mxu0 %v1650
      %1787 = vmatprep.subr.mxu0 %v1655
      %1788 = vmatpush1.msra.mxu0 %v1654
      %1789 = vmatprep.subr.mxu0 %v1659
      %1790 = vmatpush1.msra.mxu0 %v1658
      %1791 = vmatprep.subr.mxu0 %v1663
      %1792 = vmatpush1.msra.mxu0 %v1662
      %1793 = vmatprep.subr.mxu0 %v1667
      %1794 = vmatpush1.msra.mxu0 %v1666
      %1795 = vmatprep.subr.mxu0 %v1671
      %1796 = vmatpush1.msra.mxu0 %v1670
      %1797 = vmatprep.subr.mxu0 0.0
      %1798 = vmatpush1.msra.mxu0 0.0
      %1799 = vmatprep.subr.mxu0 0.0
      %1800 = vmatpush1.msra.mxu0 0.0
      %1801 = vmatprep.subr.mxu0 0.0
      %1802 = vmatpush1.msra.mxu0 0.0
      %1803 = vmatprep.subr.mxu0 0.0
      %1804 = vmatpush1.msra.mxu0 0.0
      %1805 = vmatprep.subr.mxu0 0.0
      %1806 = vmatpush1.msra.mxu0 0.0
      %1807 = vmatprep.subr.mxu0 0.0
      %1808 = vmatpush1.msra.mxu0 0.0
      %1809 = vmatprep.subr.mxu0 0.0
      %1810 = vmatpush1.msra.mxu0 0.0
      %1811 = vmatprep.subr.mxu0 0.0
      %1812 = vmatpush1.msra.mxu0 0.0
      %1813 = vmatprep.subr.mxu0 0.0
      %1814 = vmatpush1.msra.mxu0 0.0
      %1815 = vmatprep.subr.mxu0 0.0
      %1816 = vmatpush1.msra.mxu0 0.0
      %1817 = vmatprep.subr.mxu0 0.0
      %1818 = vmatpush1.msra.mxu0 0.0
      %1819 = vmatprep.subr.mxu0 0.0
      %1820 = vmatpush1.msra.mxu0 0.0
      %1821 = vmatprep.subr.mxu0 0.0
      %1822 = vmatpush1.msra.mxu0 0.0
      %1823 = vmatprep.subr.mxu0 0.0
      %1824 = vmatpush1.msra.mxu0 0.0
      %1825 = vmatprep.subr.mxu0 0.0
      %1826 = vmatpush1.msra.mxu0 0.0
      %1827 = vmatprep.subr.mxu0 0.0
      %1828 = vmatpush1.msra.mxu0 0.0
      %1829 = vmatprep.mubr.f32.mxu0 0.0
      %1830 = vmatmul.mubr.f32.gmra.mrb[0].mxu0 %v1607
      %v1831 = vpop.f32.mrb[0].mxu0
      %v1832 = vadd.f32 %v1685, %v1831
      %v1833 = vpop.f32.mrb[0].mxu0
      %v1834 = vadd.f32 %v1689, %v1833
      %1835 = vdwg.mxu0
      %v1836 = vmax.f32 %v1761, 0.0
      %v1837 = vmax.f32 %v1763, 0.0
      %v1838 = vmax.f32 %v1832, 0.0
      %v1839 = vmax.f32 %v1834, 0.0
      %v1840 = vld [vmem:[%s7] sm:$0xff]
      %v1841 = vld [vmem:[%s7 + $0x8] sm:$0xff]
      %v1842 = vld [vmem:[%s7 + $0x10] sm:$0xff]
      %v1843 = vld [vmem:[%s7 + $0x18] sm:$0xff]
      %v1844 = vld [vmem:[%s7 + $0x20] sm:$0xff]
      %v1845 = vld [vmem:[%s7 + $0x28] sm:$0xff]
      %v1846 = vld [vmem:[%s7 + $0x30] sm:$0xff]
      %v1847 = vld [vmem:[%s7 + $0x38] sm:$0xff]
      %v1848 = vld [vmem:[%s7 + $0x40] sm:$0xff]
      %v1849 = vld [vmem:[%s7 + $0x48] sm:$0xff]
      %v1850 = vld [vmem:[%s7 + $0x50] sm:$0xff]
      %v1851 = vld [vmem:[%s7 + $0x58] sm:$0xff]
      %v1852 = vld [vmem:[%s7 + $0x60] sm:$0xff]
      %v1853 = vld [vmem:[%s7 + $0x68] sm:$0xff]
      %v1854 = vld [vmem:[%s7 + $0x70] sm:$0xff]
      %v1855 = vld [vmem:[%s7 + $0x78] sm:$0xff]
      %v1856 = vld [vmem:[%s7 + $0x80] sm:$0xff]
      %v1857 = vld [vmem:[%s7 + $0x88] sm:$0xff]
      %v1858 = vld [vmem:[%s7 + $0x90] sm:$0xff]
      %v1859 = vld [vmem:[%s7 + $0x98] sm:$0xff]
      %v1860 = vld [vmem:[%s7 + $0xa0] sm:$0xff]
      %v1861 = vld [vmem:[%s7 + $0xa8] sm:$0xff]
      %v1862 = vld [vmem:[%s7 + $0xb0] sm:$0xff]
      %v1863 = vld [vmem:[%s7 + $0xb8] sm:$0xff]
      %v1864 = vld [vmem:[%s7 + $0xc0] sm:$0xff]
      %v1865 = vld [vmem:[%s7 + $0xc8] sm:$0xff]
      %v1866 = vld [vmem:[%s7 + $0xd0] sm:$0xff]
      %v1867 = vld [vmem:[%s7 + $0xd8] sm:$0xff]
      %v1868 = vld [vmem:[%s7 + $0xe0] sm:$0xff]
      %v1869 = vld [vmem:[%s7 + $0xe8] sm:$0xff]
      %v1870 = vld [vmem:[%s7 + $0xf0] sm:$0xff]
      %v1871 = vld [vmem:[%s7 + $0xf8] sm:$0xff]
      %v1872 = vld [vmem:[%s7 + $0x100] sm:$0xff]
      %v1873 = vld [vmem:[%s7 + $0x108] sm:$0xff]
      %v1874 = vld [vmem:[%s7 + $0x110] sm:$0xff]
      %v1875 = vld [vmem:[%s7 + $0x118] sm:$0xff]
      %v1876 = vld [vmem:[%s7 + $0x120] sm:$0xff]
      %v1877 = vld [vmem:[%s7 + $0x128] sm:$0xff]
      %v1878 = vld [vmem:[%s7 + $0x130] sm:$0xff]
      %v1879 = vld [vmem:[%s7 + $0x138] sm:$0xff]
      %v1880 = vld [vmem:[%s7 + $0x140] sm:$0xff]
      %v1881 = vld [vmem:[%s7 + $0x148] sm:$0xff]
      %v1882 = vld [vmem:[%s7 + $0x150] sm:$0xff]
      %v1883 = vld [vmem:[%s7 + $0x158] sm:$0xff]
      %v1884 = vld [vmem:[%s7 + $0x160] sm:$0xff]
      %v1885 = vld [vmem:[%s7 + $0x168] sm:$0xff]
      %v1886 = vld [vmem:[%s7 + $0x170] sm:$0xff]
      %v1887 = vld [vmem:[%s7 + $0x178] sm:$0xff]
      %v1888 = vld [vmem:[%s7 + $0x180] sm:$0xff]
      %v1889 = vld [vmem:[%s7 + $0x188] sm:$0xff]
      %v1890 = vld [vmem:[%s7 + $0x190] sm:$0xff]
      %v1891 = vld [vmem:[%s7 + $0x198] sm:$0xff]
      %v1892 = vld [vmem:[%s7 + $0x1a0] sm:$0xff]
      %v1893 = vld [vmem:[%s7 + $0x1a8] sm:$0xff]
      %v1894 = vld [vmem:[%s7 + $0x1b0] sm:$0xff]
      %v1895 = vld [vmem:[%s7 + $0x1b8] sm:$0xff]
      %v1896 = vld [vmem:[%s7 + $0x1c0] sm:$0xff]
      %v1897 = vld [vmem:[%s7 + $0x1c8] sm:$0xff]
      %v1898 = vld [vmem:[%s7 + $0x1d0] sm:$0xff]
      %v1899 = vld [vmem:[%s7 + $0x1d8] sm:$0xff]
      %v1900 = vld [vmem:[%s7 + $0x1e0] sm:$0xff]
      %v1901 = vld [vmem:[%s7 + $0x1e8] sm:$0xff]
      %v1902 = vld [vmem:[%s7 + $0x1f0] sm:$0xff]
      %v1903 = vld [vmem:[%s7 + $0x1f8] sm:$0xff]
      %v1904 = vld [vmem:[%s8] sm:$0x1]
      %v1906 = vlaneseq
      %v1907 = vshrl.u32 %v1906, 7
      %v1908 = vsub.s32 0, %v1907
      %v1909 = vrot.slane %v1904, %v1908
      %1911 = vmatprep.subr.mxu0 0.0
      %1912 = vmatpush1.msra.mxu0 %v1840
      %1913 = vmatprep.subr.mxu0 0.0
      %1914 = vmatpush1.msra.mxu0 %v1841
      %1915 = vmatprep.subr.mxu0 0.0
      %1916 = vmatpush1.msra.mxu0 %v1842
      %1917 = vmatprep.subr.mxu0 0.0
      %1918 = vmatpush1.msra.mxu0 %v1843
      %1919 = vmatprep.subr.mxu0 0.0
      %1920 = vmatpush1.msra.mxu0 %v1844
      %1921 = vmatprep.subr.mxu0 0.0
      %1922 = vmatpush1.msra.mxu0 %v1845
      %1923 = vmatprep.subr.mxu0 0.0
      %1924 = vmatpush1.msra.mxu0 %v1846
      %1925 = vmatprep.subr.mxu0 0.0
      %1926 = vmatpush1.msra.mxu0 %v1847
      %1927 = vmatprep.subr.mxu0 0.0
      %1928 = vmatpush1.msra.mxu0 %v1848
      %1929 = vmatprep.subr.mxu0 0.0
      %1930 = vmatpush1.msra.mxu0 %v1849
      %1931 = vmatprep.subr.mxu0 0.0
      %1932 = vmatpush1.msra.mxu0 %v1850
      %1933 = vmatprep.subr.mxu0 0.0
      %1934 = vmatpush1.msra.mxu0 %v1851
      %1935 = vmatprep.subr.mxu0 0.0
      %1936 = vmatpush1.msra.mxu0 %v1852
      %1937 = vmatprep.subr.mxu0 0.0
      %1938 = vmatpush1.msra.mxu0 %v1853
      %1939 = vmatprep.subr.mxu0 0.0
      %1940 = vmatpush1.msra.mxu0 %v1854
      %1941 = vmatprep.subr.mxu0 0.0
      %1942 = vmatpush1.msra.mxu0 %v1855
      %1943 = vmatprep.subr.mxu0 0.0
      %1944 = vmatpush1.msra.mxu0 %v1856
      %1945 = vmatprep.subr.mxu0 0.0
      %1946 = vmatpush1.msra.mxu0 %v1857
      %1947 = vmatprep.subr.mxu0 0.0
      %1948 = vmatpush1.msra.mxu0 %v1858
      %1949 = vmatprep.subr.mxu0 0.0
      %1950 = vmatpush1.msra.mxu0 %v1859
      %1951 = vmatprep.subr.mxu0 0.0
      %1952 = vmatpush1.msra.mxu0 %v1860
      %1953 = vmatprep.subr.mxu0 0.0
      %1954 = vmatpush1.msra.mxu0 %v1861
      %1955 = vmatprep.subr.mxu0 0.0
      %1956 = vmatpush1.msra.mxu0 %v1862
      %1957 = vmatprep.subr.mxu0 0.0
      %1958 = vmatpush1.msra.mxu0 %v1863
      %1959 = vmatprep.subr.mxu0 0.0
      %1960 = vmatpush1.msra.mxu0 %v1864
      %1961 = vmatprep.subr.mxu0 0.0
      %1962 = vmatpush1.msra.mxu0 %v1865
      %1963 = vmatprep.subr.mxu0 0.0
      %1964 = vmatpush1.msra.mxu0 %v1866
      %1965 = vmatprep.subr.mxu0 0.0
      %1966 = vmatpush1.msra.mxu0 %v1867
      %1967 = vmatprep.subr.mxu0 0.0
      %1968 = vmatpush1.msra.mxu0 %v1868
      %1969 = vmatprep.subr.mxu0 0.0
      %1970 = vmatpush1.msra.mxu0 %v1869
      %1971 = vmatprep.subr.mxu0 0.0
      %1972 = vmatpush1.msra.mxu0 %v1870
      %1973 = vmatprep.subr.mxu0 0.0
      %1974 = vmatpush1.msra.mxu0 %v1871
      %1975 = vmatprep.mubr.f32.mxu0 %v1837
      %1976 = vmatmul.mubr.f32.gmra.mrb[0].mxu0 %v1836
      %v1977 = vpop.f32.mrb[0].mxu0
      %v1978 = vadd.f32 %v1909, %v1977
      %v1979 = vpop.f32.mrb[0].mxu0
      %1980 = vdwg.mxu0
      %1981 = vmatprep.subr.mxu0 0.0
      %1982 = vmatpush1.msra.mxu0 %v1872
      %1983 = vmatprep.subr.mxu0 0.0
      %1984 = vmatpush1.msra.mxu0 %v1873
      %1985 = vmatprep.subr.mxu0 0.0
      %1986 = vmatpush1.msra.mxu0 %v1874
      %1987 = vmatprep.subr.mxu0 0.0
      %1988 = vmatpush1.msra.mxu0 %v1875
      %1989 = vmatprep.subr.mxu0 0.0
      %1990 = vmatpush1.msra.mxu0 %v1876
      %1991 = vmatprep.subr.mxu0 0.0
      %1992 = vmatpush1.msra.mxu0 %v1877
      %1993 = vmatprep.subr.mxu0 0.0
      %1994 = vmatpush1.msra.mxu0 %v1878
      %1995 = vmatprep.subr.mxu0 0.0
      %1996 = vmatpush1.msra.mxu0 %v1879
      %1997 = vmatprep.subr.mxu0 0.0
      %1998 = vmatpush1.msra.mxu0 %v1880
      %1999 = vmatprep.subr.mxu0 0.0
      %2000 = vmatpush1.msra.mxu0 %v1881
      %2001 = vmatprep.subr.mxu0 0.0
      %2002 = vmatpush1.msra.mxu0 %v1882
      %2003 = vmatprep.subr.mxu0 0.0
      %2004 = vmatpush1.msra.mxu0 %v1883
      %2005 = vmatprep.subr.mxu0 0.0
      %2006 = vmatpush1.msra.mxu0 %v1884
      %2007 = vmatprep.subr.mxu0 0.0
      %2008 = vmatpush1.msra.mxu0 %v1885
      %2009 = vmatprep.subr.mxu0 0.0
      %2010 = vmatpush1.msra.mxu0 %v1886
      %2011 = vmatprep.subr.mxu0 0.0
      %2012 = vmatpush1.msra.mxu0 %v1887
      %2013 = vmatprep.subr.mxu0 0.0
      %2014 = vmatpush1.msra.mxu0 %v1888
      %2015 = vmatprep.subr.mxu0 0.0
      %2016 = vmatpush1.msra.mxu0 %v1889
      %2017 = vmatprep.subr.mxu0 0.0
      %2018 = vmatpush1.msra.mxu0 %v1890
      %2019 = vmatprep.subr.mxu0 0.0
      %2020 = vmatpush1.msra.mxu0 %v1891
      %2021 = vmatprep.subr.mxu0 0.0
      %2022 = vmatpush1.msra.mxu0 %v1892
      %2023 = vmatprep.subr.mxu0 0.0
      %2024 = vmatpush1.msra.mxu0 %v1893
      %2025 = vmatprep.subr.mxu0 0.0
      %2026 = vmatpush1.msra.mxu0 %v1894
      %2027 = vmatprep.subr.mxu0 0.0
      %2028 = vmatpush1.msra.mxu0 %v1895
      %2029 = vmatprep.subr.mxu0 0.0
      %2030 = vmatpush1.msra.mxu0 %v1896
      %2031 = vmatprep.subr.mxu0 0.0
      %2032 = vmatpush1.msra.mxu0 %v1897
      %2033 = vmatprep.subr.mxu0 0.0
      %2034 = vmatpush1.msra.mxu0 %v1898
      %2035 = vmatprep.subr.mxu0 0.0
      %2036 = vmatpush1.msra.mxu0 %v1899
      %2037 = vmatprep.subr.mxu0 0.0
      %2038 = vmatpush1.msra.mxu0 %v1900
      %2039 = vmatprep.subr.mxu0 0.0
      %2040 = vmatpush1.msra.mxu0 %v1901
      %2041 = vmatprep.subr.mxu0 0.0
      %2042 = vmatpush1.msra.mxu0 %v1902
      %2043 = vmatprep.subr.mxu0 0.0
      %2044 = vmatpush1.msra.mxu0 %v1903
      %2045 = vmatprep.mubr.f32.mxu0 %v1839
      %2046 = vmatmul.mubr.f32.gmra.mrb[0].mxu0 %v1838
      %v2047 = vpop.f32.mrb[0].mxu0
      %v2048 = vadd.f32 %v1978, %v2047
      %v2049 = vpop.f32.mrb[0].mxu0
      %2050 = vdwg.mxu0
      %2051 = vadd.xlane.f32.xlu0 %v2048
      %v2052 = vpop.xlane.xlu0 %2051
      %v2053 = vmul.f32 %v2052, %v359
      %v2054 = vsub.f32 %v2048, %v2053
      %v2055 = vmul.f32 %v2054, %v2054
      %2056 = vadd.xlane.f32.xlu0 %v2055
      %v2057 = vpop.xlane.xlu0 %2056
      %v2058 = vmul.f32 %v2057, %v359
      %v2059 = vadd.f32 %v2058, 1e-05
      %v2060 = vrsqrt.pop %v2059
      %v2061 = vmul.f32 %v2054, %v2060
      %v2062 = vlaneseq
      %v2063 = vshrl.u32 %v2062, 7
      %v2064 = vsub.s32 6, %v2063
      %v2065 = vrot.slane %v356, %v2064
      %v2066 = vmul.f32 %v2061, %v2065
      %v2067 = vlaneseq
      %v2068 = vshrl.u32 %v2067, 7
      %v2069 = vsub.s32 7, %v2068
      %v2070 = vrot.slane %v356, %v2069
      %v2071 = vadd.f32 %v2066, %v2070
      %v2072 = vadd.f32 %v1586, %v2071
      %2073 = vst [vmem:[%s354] sm:$0xff] %v2072
      %p2074 = scmp.lt.s32.totalorder %s21, 1
      %s2075 = scalar_select %p2074, %s21, 1
      %s2076 = smul.addr %s2075, 8
      %s2077 = scalar_lea.vmem %s10, %s2076
      // Predicated region
      $region61: #{emo_model_forward.13} parent=59 // pred_check
        %p2078 = pneg %p254
      $region62: #{emo_model_forward.13} parent=59 // pred_check_branch
        %2080 = sbr.rel (%p2078) target = $region64
      $region63: #{emo_model_forward.13} parent=59 // pred_region
        _
      $region64: #{emo_model_forward.13} parent=59 // pred_fallthru
        _
    $region60: #{emo_model_forward.13} parent=5 // pred_fallthru
      _
    %p2081 = scmp.le.s32.totalorder 2, %s16
    // Predicated region
    $region65: #{emo_model_forward.13} parent=5 // pred_check
      %p2082 = pneg %p2081
    $region66: #{emo_model_forward.13} parent=5 // pred_check_branch
      %2084 = sbr.rel (%p2082) target = $region68
    $region67: #{emo_model_forward.13} parent=5 // pred_region
      %s2085 = ssub.s32 %s16, 2
      // Predicated region
      $region69: #{emo_model_forward.13} parent=67 // pred_check
        %p2086 = pneg %p260
      $region70: #{emo_model_forward.13} parent=67 // pred_check_branch
        %2088 = sbr.rel (%p2086) target = $region72
      $region71: #{emo_model_forward.13} parent=67 // pred_region
        %p2089 = scmp.lt.s32.totalorder %s22, 1
        %s2090 = scalar_select %p2089, %s22, 1
        %s2091 = smul.addr %s2090, 8
        %s2092 = scalar_lea.vmem %s10, %s2091
      $region72: #{emo_model_forward.13} parent=67 // pred_fallthru
        _
    $region68: #{emo_model_forward.13} parent=5 // pred_fallthru
      _
  $region6: #{emo_model_forward.13} parent=0 // loop_footer
    %s20 = sadd.s32 1, %s16
  $region7: #{emo_model_forward.13} parent=0 // loop_footer_branch
    %15 = sbr.rel target = $region3
  $region8: #{emo_model_forward.13} parent=0 // loop_exit
    _

</llo_original>
